<compile_context>
chip_gen: v7x
topology: tpu7x:2x2x1
jax: 0.10.0
libtpu: 0.0.40
codegen_flags: <defaults>
</compile_context>

<pallas_src>
import functools

import jax
import jax.numpy as jnp
from jax import lax
from jax.experimental import pallas as pl
from jax.experimental.pallas import tpu as pltpu

N_SAMPLES = 2 ** 14
N_FRAMES = N_SAMPLES // 256        # 64
KSIZE = 7
PAD = 3
DIM = 32                           # `dim` argument of EmbedAmp
C1, C2 = 16, 32
LEAK = 0.2

MAX_TB = 256                       # max batch rows per grid step
K3_TILE = 512                      # tile of layer-3 contraction (= h2 columns), multiple of 128


def _round_up(n, m):
    return ((n + m - 1) // m) * m


def _leaky(x):
    return jnp.where(x > 0, x, LEAK * x)


def _make_band(w, L):
    """PyTorch Conv1d weight (Cout, Cin, K) (stride 1, padding (K-1)//2) -> banded
    matrix of shape (L*Cin, L*Cout) such that, for activations flattened as
    h_flat[b, l*Cin + c] = h[b, l, c]:
        (h_flat @ band)[b, l*Cout + o] = sum_{c,k} w[o, c, k] * h[b, l + k - pad, c]
    with zero padding (PyTorch cross-correlation semantics)."""
    cout, cin, K = w.shape
    pad = (K - 1) // 2
    wk = jnp.transpose(w, (2, 1, 0)).astype(jnp.float32)      # (K, Cin, Cout)
    band = jnp.zeros((L, cin, L, cout), jnp.float32)
    for k in range(K):
        d = k - pad                          # input offset: l_in = l_out + d
        lo, hi = max(0, -d), min(L, L - d)   # valid output positions
        if hi <= lo:
            continue
        l_out = jnp.arange(lo, hi)
        l_in = l_out + d
        upd = jnp.broadcast_to(wk[k], (hi - lo, cin, cout))
        band = band.at[l_in, :, l_out, :].set(upd)
    return band.reshape(L * cin, L * cout)


def _flat_bias(b, L):
    # flattened bias: element l*Cout + o = b[o]
    return jnp.tile(b.astype(jnp.float32), L).reshape(1, -1)


def embed_amp_kernel(x_ref, w1_ref, b1_ref, w2_ref, b2_ref, w3_ref, b3_ref,
                     o_ref, h1_ref, acc_ref):
    """Grid = (batch tiles, layer-3 K tiles). All operands lane-dense.

    x_ref  : (TB, L)            input amplitudes
    w1_ref : (L, L*C1)          banded layer-1 weights (constant over grid)
    b1_ref : (1, L*C1)
    w2_ref : (L*C1, K3_TILE)    banded layer-2 weights, column chunk j
    b2_ref : (1, K3_TILE)
    w3_ref : (K3_TILE, L*DIM)   banded layer-3 weights, row chunk j
    b3_ref : (1, L*DIM)
    o_ref  : (TB, L*DIM)        lane-dense output slab
    h1_ref : (TB, L*C1)  VMEM scratch: layer-1 activations (persist over j)
    acc_ref: (TB, L*DIM) VMEM scratch: layer-3 f32 accumulator
    """
    j = pl.program_id(1)

    @pl.when(j == 0)
    def _():
        h1 = jnp.dot(x_ref[...], w1_ref[...],
                     preferred_element_type=jnp.float32) + b1_ref[...]
        h1_ref[...] = _leaky(h1)
        acc_ref[...] = jnp.zeros_like(acc_ref)

    h2 = jnp.dot(h1_ref[...], w2_ref[...],
                 preferred_element_type=jnp.float32) + b2_ref[...]
    h2 = _leaky(h2)
    acc_ref[...] += jnp.dot(h2, w3_ref[...], preferred_element_type=jnp.float32)

    @pl.when(j == pl.num_programs(1) - 1)
    def _():
        o_ref[...] = (acc_ref[...] + b3_ref[...]).astype(o_ref.dtype)


def init_params(key, dim=DIM):
    """PyTorch-layout Conv1d params: weight (Cout, Cin, K), bias (Cout,)."""
    shapes = [((C1, 1, KSIZE), (C1,)),
              ((C2, C1, KSIZE), (C2,)),
              ((dim, C2, KSIZE), (dim,))]
    params = []
    for wshape, bshape in shapes:
        key, kw, kb = jax.random.split(key, 3)
        bound = 1.0 / jnp.sqrt(jnp.float32(wshape[1] * wshape[2]))
        w = jax.random.uniform(kw, wshape, jnp.float32, -bound, bound)
        b = jax.random.uniform(kb, bshape, jnp.float32, -bound, bound)
        params.append((w, b))
    return params


@functools.partial(jax.jit, static_argnames=("dim", "max_tb"))
def embed_amp(x, params, dim=DIM, max_tb=MAX_TB):
    """x: any shape whose size is divisible by N_FRAMES (matches x.view(-1, 1, n_frames))."""
    B = x.size // N_FRAMES
    x2 = x.reshape(B, N_FRAMES).astype(jnp.float32)          # 2-D, lane-friendly

    (w1, b1), (w2, b2), (w3, b3) = params
    band1 = _make_band(w1, N_FRAMES)                          # (64, 1024)
    band2 = _make_band(w2, N_FRAMES)                          # (1024, 2048)
    band3 = _make_band(w3, N_FRAMES)                          # (2048, 64*dim)
    b1f = _flat_bias(b1, N_FRAMES)
    b2f = _flat_bias(b2, N_FRAMES)
    b3f = _flat_bias(b3, N_FRAMES)

    # ---- batch tiling: even split of round_up(B, 8), >= 2 tiles when possible ----
    b8 = _round_up(max(B, 1), 8)
    n_tiles = (b8 + max_tb - 1) // max_tb
    if n_tiles == 1 and b8 >= 16:
        n_tiles = 2                                           # let megacore split the batch
    tb = _round_up((b8 + n_tiles - 1) // n_tiles, 8)
    b_pad = tb * n_tiles
    if b_pad != B:
        x2 = jnp.pad(x2, ((0, b_pad - B), (0, 0)))

    kc = band2.shape[1]                                       # 2048 = L*C2
    assert kc % K3_TILE == 0 and K3_TILE % 128 == 0
    nj = kc // K3_TILE
    n_out = N_FRAMES * dim

    out = pl.pallas_call(
        embed_amp_kernel,
        out_shape=jax.ShapeDtypeStruct((b_pad, n_out), jnp.float32),
        grid=(n_tiles, nj),
        in_specs=[
            pl.BlockSpec((tb, N_FRAMES), lambda i, j: (i, 0)),
            pl.BlockSpec(band1.shape, lambda i, j: (0, 0)),
            pl.BlockSpec(b1f.shape, lambda i, j: (0, 0)),
            pl.BlockSpec((band2.shape[0], K3_TILE), lambda i, j: (0, j)),
            pl.BlockSpec((1, K3_TILE), lambda i, j: (0, j)),
            pl.BlockSpec((K3_TILE, n_out), lambda i, j: (j, 0)),
            pl.BlockSpec(b3f.shape, lambda i, j: (0, 0)),
        ],
        out_specs=pl.BlockSpec((tb, n_out), lambda i, j: (i, 0)),
        scratch_shapes=[
            pltpu.VMEM((tb, band1.shape[1]), jnp.float32),    # h1 (layer-1 activations)
            pltpu.VMEM((tb, n_out), jnp.float32),             # layer-3 accumulator
        ],
        compiler_params=pltpu.CompilerParams(
            dimension_semantics=("parallel", "arbitrary"),
            vmem_limit_bytes=48 * 1024 * 1024,
        ),
    )(x2, band1, b1f, band2, b2f, band3, b3f)

    return out[:B].reshape(B, N_FRAMES, dim)                  # (B, n_frames, dim)


def embed_amp_reference(x, params, dim=DIM):
    """Plain-JAX reference with PyTorch Conv1d (cross-correlation, padding=3) semantics."""
    B = x.size // N_FRAMES
    h = x.reshape(B, N_FRAMES, 1).astype(jnp.float32)
    for li, (w, b) in enumerate(params):
        wk = jnp.transpose(w, (2, 1, 0))                      # (K, Cin, Cout)
        hp = jnp.pad(h, ((0, 0), (PAD, PAD), (0, 0)))
        acc = jnp.zeros((B, N_FRAMES, w.shape[0]), jnp.float32)
        for k in range(KSIZE):
            acc = acc + jnp.einsum('blc,cd->bld', hp[:, k:k + N_FRAMES, :], wk[k],
                                   precision=lax.Precision.HIGHEST,
                                   preferred_element_type=jnp.float32)
        h = acc + b.reshape(1, 1, -1)
        if li < 2:
            h = jnp.where(h > 0, h, LEAK * h)
    return h


if __name__ == "__main__":
    key = jax.random.PRNGKey(0)
    key, kx = jax.random.split(key)
    # module input: anything that views to (-1, 1, n_frames); pick batch=2
    x = jax.random.normal(kx, (2, N_FRAMES), jnp.float32)

    params = init_params(jax.random.PRNGKey(0), DIM)

    out = jax.block_until_ready(embed_amp(x, params, dim=DIM))
    ref = embed_amp_reference(x, params, DIM)

    assert out.shape == (2, N_FRAMES, DIM), out.shape
    max_err = float(jnp.max(jnp.abs(out - ref)))
    assert jnp.allclose(out, ref, atol=5e-4, rtol=5e-3), f"mismatch vs reference: {max_err}"

    print("KERNEL_OK")
</pallas_src>

<mosaic_0001>
module attributes {stable_mosaic.version = 11 : i64} {
  func.func @embed_amp_kernel(%arg0: i32, %arg1: i32, %arg2: memref<8x64xf32, #tpu.memory_space<vmem>>, %arg3: memref<64x1024xf32, #tpu.memory_space<vmem>>, %arg4: memref<1x1024xf32, #tpu.memory_space<vmem>>, %arg5: memref<1024x512xf32, #tpu.memory_space<vmem>>, %arg6: memref<1x512xf32, #tpu.memory_space<vmem>>, %arg7: memref<512x2048xf32, #tpu.memory_space<vmem>>, %arg8: memref<1x2048xf32, #tpu.memory_space<vmem>>, %arg9: memref<8x2048xf32, #tpu.memory_space<vmem>>, %arg10: memref<8x1024xf32, #tpu.memory_space<vmem>>, %arg11: memref<8x2048xf32, #tpu.memory_space<vmem>>) attributes {dimension_semantics = [#tpu.dimension_semantics<parallel>, #tpu.dimension_semantics<arbitrary>], iteration_bounds = array<i64: 1, 4>, scalar_prefetch = 0 : i64, scratch_operands = 2 : i64, tpu.core_type = #tpu.core_type<tc>, window_params = [{transform_indices = @transform_0, window_bounds = array<i64: 8, 64>}, {pipeline_mode = #tpu.pipeline_mode<synchronous>, transform_indices = @transform_1, window_bounds = array<i64: 64, 1024>}, {pipeline_mode = #tpu.pipeline_mode<synchronous>, transform_indices = @transform_2, window_bounds = array<i64: 1, 1024>}, {transform_indices = @transform_3, window_bounds = array<i64: 1024, 512>}, {transform_indices = @transform_4, window_bounds = array<i64: 1, 512>}, {transform_indices = @transform_5, window_bounds = array<i64: 512, 2048>}, {pipeline_mode = #tpu.pipeline_mode<synchronous>, transform_indices = @transform_6, window_bounds = array<i64: 1, 2048>}, {transform_indices = @transform_7, window_bounds = array<i64: 8, 2048>}]} {
    %c0_i32 = arith.constant 0 : i32
    %0 = arith.cmpi eq, %arg1, %c0_i32 : i32
    %1 = arith.extui %0 : i1 to i32
    %c0_i32_0 = arith.constant 0 : i32
    %2 = arith.cmpi ne, %1, %c0_i32_0 : i32
    scf.if %2 {
      %c0_16 = arith.constant 0 : index
      %c0_17 = arith.constant 0 : index
      %22 = vector.load %arg2[%c0_16, %c0_17] : memref<8x64xf32, #tpu.memory_space<vmem>>, vector<8x64xf32>
      %c0_18 = arith.constant 0 : index
      %c0_19 = arith.constant 0 : index
      %23 = vector.load %arg3[%c0_18, %c0_19] : memref<64x1024xf32, #tpu.memory_space<vmem>>, vector<64x1024xf32>
      %cst_20 = arith.constant dense<0.000000e+00> : vector<8x1024xf32>
      %24 = tpu.matmul %22, %23, %cst_20 {dimension_numbers = #tpu.dot_dimension_numbers<[1], [0], [0], [1], [0, 0, 1, 1], [], []>} : vector<8x64xf32>, vector<64x1024xf32>, vector<8x1024xf32> -> vector<8x1024xf32>
      %c0_21 = arith.constant 0 : index
      %c0_22 = arith.constant 0 : index
      %25 = vector.load %arg4[%c0_21, %c0_22] : memref<1x1024xf32, #tpu.memory_space<vmem>>, vector<1x1024xf32>
      %26 = vector.broadcast %25 : vector<1x1024xf32> to vector<8x1024xf32>
      %27 = arith.addf %24, %26 : vector<8x1024xf32>
      %cst_23 = arith.constant 0.000000e+00 : f32
      %28 = vector.broadcast %cst_23 : f32 to vector<8x1024xf32>
      %29 = arith.cmpf ogt, %27, %28 : vector<8x1024xf32>
      %cst_24 = arith.constant 2.000000e-01 : f32
      %30 = vector.broadcast %cst_24 : f32 to vector<8x1024xf32>
      %31 = arith.mulf %30, %27 : vector<8x1024xf32>
      %32 = arith.select %29, %27, %31 : vector<8x1024xi1>, vector<8x1024xf32>
      %c0_25 = arith.constant 0 : index
      %c0_26 = arith.constant 0 : index
      %33 = vector.load %arg10[%c0_25, %c0_26] : memref<8x1024xf32, #tpu.memory_space<vmem>>, vector<8x1024xf32>
      tpu.vector_store %arg10[%c0_25, %c0_26], %32 {strides = array<i32>} : memref<8x1024xf32, #tpu.memory_space<vmem>>, vector<8x1024xf32>,
      %cst_27 = arith.constant 0.000000e+00 : f32
      %34 = vector.broadcast %cst_27 : f32 to vector<8x2048xf32>
      %c0_28 = arith.constant 0 : index
      %c0_29 = arith.constant 0 : index
      %35 = vector.load %arg11[%c0_28, %c0_29] : memref<8x2048xf32, #tpu.memory_space<vmem>>, vector<8x2048xf32>
      tpu.vector_store %arg11[%c0_28, %c0_29], %34 {strides = array<i32>} : memref<8x2048xf32, #tpu.memory_space<vmem>>, vector<8x2048xf32>,
    } else {
    }
    %c0 = arith.constant 0 : index
    %c0_1 = arith.constant 0 : index
    %3 = vector.load %arg10[%c0, %c0_1] : memref<8x1024xf32, #tpu.memory_space<vmem>>, vector<8x1024xf32>
    %c0_2 = arith.constant 0 : index
    %c0_3 = arith.constant 0 : index
    %4 = vector.load %arg5[%c0_2, %c0_3] : memref<1024x512xf32, #tpu.memory_space<vmem>>, vector<1024x512xf32>
    %cst = arith.constant dense<0.000000e+00> : vector<8x512xf32>
    %5 = tpu.matmul %3, %4, %cst {dimension_numbers = #tpu.dot_dimension_numbers<[1], [0], [0], [1], [0, 0, 1, 1], [], []>} : vector<8x1024xf32>, vector<1024x512xf32>, vector<8x512xf32> -> vector<8x512xf32>
    %c0_4 = arith.constant 0 : index
    %c0_5 = arith.constant 0 : index
    %6 = vector.load %arg6[%c0_4, %c0_5] : memref<1x512xf32, #tpu.memory_space<vmem>>, vector<1x512xf32>
    %7 = vector.broadcast %6 : vector<1x512xf32> to vector<8x512xf32>
    %8 = arith.addf %5, %7 : vector<8x512xf32>
    %cst_6 = arith.constant 0.000000e+00 : f32
    %9 = vector.broadcast %cst_6 : f32 to vector<8x512xf32>
    %10 = arith.cmpf ogt, %8, %9 : vector<8x512xf32>
    %cst_7 = arith.constant 2.000000e-01 : f32
    %11 = vector.broadcast %cst_7 : f32 to vector<8x512xf32>
    %12 = arith.mulf %11, %8 : vector<8x512xf32>
    %13 = arith.select %10, %8, %12 : vector<8x512xi1>, vector<8x512xf32>
    %c0_8 = arith.constant 0 : index
    %c0_9 = arith.constant 0 : index
    %14 = vector.load %arg11[%c0_8, %c0_9] : memref<8x2048xf32, #tpu.memory_space<vmem>>, vector<8x2048xf32>
    %c0_10 = arith.constant 0 : index
    %c0_11 = arith.constant 0 : index
    %15 = vector.load %arg7[%c0_10, %c0_11] : memref<512x2048xf32, #tpu.memory_space<vmem>>, vector<512x2048xf32>
    %cst_12 = arith.constant dense<0.000000e+00> : vector<8x2048xf32>
    %16 = tpu.matmul %13, %15, %cst_12 {dimension_numbers = #tpu.dot_dimension_numbers<[1], [0], [0], [1], [0, 0, 1, 1], [], []>} : vector<8x512xf32>, vector<512x2048xf32>, vector<8x2048xf32> -> vector<8x2048xf32>
    %17 = arith.addf %14, %16 : vector<8x2048xf32>
    %c0_13 = arith.constant 0 : index
    %c0_14 = arith.constant 0 : index
    %18 = vector.load %arg11[%c0_13, %c0_14] : memref<8x2048xf32, #tpu.memory_space<vmem>>, vector<8x2048xf32>
    tpu.vector_store %arg11[%c0_13, %c0_14], %17 {strides = array<i32>} : memref<8x2048xf32, #tpu.memory_space<vmem>>, vector<8x2048xf32>,
    %c3_i32 = arith.constant 3 : i32
    %19 = arith.cmpi eq, %arg1, %c3_i32 : i32
    %20 = arith.extui %19 : i1 to i32
    %c0_i32_15 = arith.constant 0 : i32
    %21 = arith.cmpi ne, %20, %c0_i32_15 : i32
    scf.if %21 {
      %c0_16 = arith.constant 0 : index
      %c0_17 = arith.constant 0 : index
      %22 = vector.load %arg11[%c0_16, %c0_17] : memref<8x2048xf32, #tpu.memory_space<vmem>>, vector<8x2048xf32>
      %c0_18 = arith.constant 0 : index
      %c0_19 = arith.constant 0 : index
      %23 = vector.load %arg8[%c0_18, %c0_19] : memref<1x2048xf32, #tpu.memory_space<vmem>>, vector<1x2048xf32>
      %24 = vector.broadcast %23 : vector<1x2048xf32> to vector<8x2048xf32>
      %25 = arith.addf %22, %24 : vector<8x2048xf32>
      %c0_20 = arith.constant 0 : index
      %c0_21 = arith.constant 0 : index
      %26 = vector.load %arg9[%c0_20, %c0_21] : memref<8x2048xf32, #tpu.memory_space<vmem>>, vector<8x2048xf32>
      tpu.vector_store %arg9[%c0_20, %c0_21], %25 {strides = array<i32>} : memref<8x2048xf32, #tpu.memory_space<vmem>>, vector<8x2048xf32>,
    } else {
    }
    return
  }
  func.func @transform_0(%arg0: i32, %arg1: i32) -> (i32, i32) {
    %c0_i32 = arith.constant 0 : i32
    %c0_i32_0 = arith.constant 0 : i32
    return %arg0, %c0_i32 : i32, i32
  }
  func.func @transform_1(%arg0: i32, %arg1: i32) -> (i32, i32) {
    %c0_i32 = arith.constant 0 : i32
    %c0_i32_0 = arith.constant 0 : i32
    %c0_i32_1 = arith.constant 0 : i32
    return %c0_i32, %c0_i32_0 : i32, i32
  }
  func.func @transform_2(%arg0: i32, %arg1: i32) -> (i32, i32) {
    %c0_i32 = arith.constant 0 : i32
    %c0_i32_0 = arith.constant 0 : i32
    %c0_i32_1 = arith.constant 0 : i32
    return %c0_i32, %c0_i32_0 : i32, i32
  }
  func.func @transform_3(%arg0: i32, %arg1: i32) -> (i32, i32) {
    %c0_i32 = arith.constant 0 : i32
    %c0_i32_0 = arith.constant 0 : i32
    return %c0_i32, %arg1 : i32, i32
  }
  func.func @transform_4(%arg0: i32, %arg1: i32) -> (i32, i32) {
    %c0_i32 = arith.constant 0 : i32
    %c0_i32_0 = arith.constant 0 : i32
    return %c0_i32, %arg1 : i32, i32
  }
  func.func @transform_5(%arg0: i32, %arg1: i32) -> (i32, i32) {
    %c0_i32 = arith.constant 0 : i32
    %c0_i32_0 = arith.constant 0 : i32
    return %arg1, %c0_i32 : i32, i32
  }
  func.func @transform_6(%arg0: i32, %arg1: i32) -> (i32, i32) {
    %c0_i32 = arith.constant 0 : i32
    %c0_i32_0 = arith.constant 0 : i32
    %c0_i32_1 = arith.constant 0 : i32
    return %c0_i32, %c0_i32_0 : i32, i32
  }
  func.func @transform_7(%arg0: i32, %arg1: i32) -> (i32, i32) {
    %c0_i32 = arith.constant 0 : i32
    %c0_i32_0 = arith.constant 0 : i32
    return %arg0, %c0_i32 : i32, i32
  }
}

</mosaic_0001>

<llo_original>
// kernel: tile.23
$region0: #{tile.23}
  #allocation0 [shape = 's32[1]{0}', space=sflag, size = 0x4, scoped, tag = 'scoped memory for tile.23']
  %s0 = inlined_call_operand.vmem [shape: f32[32], index: 0, kind: input, shape index: {}]
  %s1 = inlined_call_operand.vmem [shape: f32[64,32], index: 1, kind: output, shape index: {}]
  // Predicated region
  $region2: #{tile.23} parent=0 // pred_check
    _
  $region3: #{tile.23} parent=0 // pred_check_branch
    %3 = sbr.rel (0) target = $region5
  $region4: #{tile.23} parent=0 // pred_region
    _
  $region5: #{tile.23} parent=0 // pred_fallthru
    _
  %v4 = vld [vmem:[%s0] ss:$0 sm:$0xff]
  %5 = vst [vmem:[%s1] sm:$0xff] %v4
  %s6 = scalar_lea.vmem %s1, 8
  %7 = vst [vmem:[%s6] sm:$0xff] %v4
  %s8 = scalar_lea.vmem %s1, 16
  %9 = vst [vmem:[%s8] sm:$0xff] %v4
  %s10 = scalar_lea.vmem %s1, 24
  %11 = vst [vmem:[%s10] sm:$0xff] %v4
  %s12 = scalar_lea.vmem %s1, 32
  %13 = vst [vmem:[%s12] sm:$0xff] %v4
  %s14 = scalar_lea.vmem %s1, 40
  %15 = vst [vmem:[%s14] sm:$0xff] %v4
  %s16 = scalar_lea.vmem %s1, 48
  %17 = vst [vmem:[%s16] sm:$0xff] %v4
  %s18 = scalar_lea.vmem %s1, 56
  %19 = vst [vmem:[%s18] sm:$0xff] %v4

// kernel: tile.24
$region0: #{tile.24}
  %s0 = inlined_call_operand.vmem [shape: f32[64,32], index: 0, kind: input, shape index: {}]
  %s1 = inlined_call_operand.vmem [shape: f32[1,2048], index: 1, kind: output, shape index: {}]
  $region1: #{tile.24} parent=0
    #allocation0 [shape = 'u8[65536]{0}', space=vmem, size = 0x10000, scoped, tag = 'scoped mem for output reshape']
    %v2 = vld [vmem:[%s0] ss:$4 sm:$0xff]
    %vm3 = vcmask 261120
    %4 = vst.msk [vmem:[#allocation0] ss:$8 sm:$0xf] %vm3, %v2
    %5 = vst.msk [vmem:[#allocation0] ss:$8 sm:$0xf0] %vm3, %v2
    %s6 = scalar_lea.vmem %s0, 32
    %v7 = vld [vmem:[%s6] ss:$4 sm:$0xff]
    %vm8 = vcmask 261120
    %s9 = scalar_lea.vmem [#allocation0], 64
    %10 = vst.msk [vmem:[%s9] ss:$8 sm:$0xf] %vm8, %v7
    %s11 = scalar_lea.vmem [#allocation0], 64
    %12 = vst.msk [vmem:[%s11] ss:$8 sm:$0xf0] %vm8, %v7
    %s13 = scalar_lea.vmem %s0, 3
    %v14 = vld [vmem:[%s13] ss:$4 sm:$0xff]
    %15 = vrot.lane.b32.xlu0 %v14, 96
    %v16 = vpop.permute.xlu0 %15
    %vm17 = vcmask 1048320
    %18 = vst.msk [vmem:[#allocation0] ss:$8 sm:$0xf] %vm17, %v16
    %19 = vst.msk [vmem:[#allocation0] ss:$8 sm:$0xf0] %vm17, %v16
    %s20 = scalar_lea.vmem %s0, 35
    %v21 = vld [vmem:[%s20] ss:$4 sm:$0xff]
    %22 = vrot.lane.b32.xlu0 %v21, 96
    %v23 = vpop.permute.xlu0 %22
    %vm24 = vcmask 1048320
    %s25 = scalar_lea.vmem [#allocation0], 64
    %26 = vst.msk [vmem:[%s25] ss:$8 sm:$0xf] %vm24, %v23
    %s27 = scalar_lea.vmem [#allocation0], 64
    %28 = vst.msk [vmem:[%s27] ss:$8 sm:$0xf0] %vm24, %v23
    %s29 = scalar_lea.vmem %s0, 2
    %v30 = vld [vmem:[%s29] ss:$4 sm:$0xff]
    %31 = vrot.lane.b32.xlu0 %v30, 64
    %v32 = vpop.permute.xlu0 %31
    %vm33 = vcmask 785920
    %34 = vst.msk [vmem:[#allocation0] ss:$8 sm:$0xf] %vm33, %v32
    %35 = vst.msk [vmem:[#allocation0] ss:$8 sm:$0xf0] %vm33, %v32
    %s36 = scalar_lea.vmem %s0, 34
    %v37 = vld [vmem:[%s36] ss:$4 sm:$0xff]
    %38 = vrot.lane.b32.xlu0 %v37, 64
    %v39 = vpop.permute.xlu0 %38
    %vm40 = vcmask 785920
    %s41 = scalar_lea.vmem [#allocation0], 64
    %42 = vst.msk [vmem:[%s41] ss:$8 sm:$0xf] %vm40, %v39
    %s43 = scalar_lea.vmem [#allocation0], 64
    %44 = vst.msk [vmem:[%s43] ss:$8 sm:$0xf0] %vm40, %v39
    %s45 = scalar_lea.vmem %s0, 1
    %v46 = vld [vmem:[%s45] ss:$4 sm:$0xff]
    %47 = vrot.lane.b32.xlu0 %v46, 32
    %v48 = vpop.permute.xlu0 %47
    %vm49 = vcmask 523520
    %50 = vst.msk [vmem:[#allocation0] ss:$8 sm:$0xf] %vm49, %v48
    %51 = vst.msk [vmem:[#allocation0] ss:$8 sm:$0xf0] %vm49, %v48
    %s52 = scalar_lea.vmem %s0, 33
    %v53 = vld [vmem:[%s52] ss:$4 sm:$0xff]
    %54 = vrot.lane.b32.xlu0 %v53, 32
    %v55 = vpop.permute.xlu0 %54
    %vm56 = vcmask 523520
    %s57 = scalar_lea.vmem [#allocation0], 64
    %58 = vst.msk [vmem:[%s57] ss:$8 sm:$0xf] %vm56, %v55
    %s59 = scalar_lea.vmem [#allocation0], 64
    %60 = vst.msk [vmem:[%s59] ss:$8 sm:$0xf0] %vm56, %v55
    %s62 = sshllo.u32 0, 1
    %v64 = vld [vmem:[#allocation0] sm:%s62]
    %s65 = sshllo.u32 0, 1
    %66 = vst [vmem:[%s1] sm:%s65] %v64
    %s67 = scalar_lea.vmem [#allocation0], 8
    %v68 = vld [vmem:[%s67] sm:%s62]
    %s69 = sshllo.u32 0, 1
    %s70 = scalar_lea.vmem %s1, 1
    %71 = vst [vmem:[%s70] sm:%s69] %v68
    %s72 = scalar_lea.vmem [#allocation0], 16
    %v73 = vld [vmem:[%s72] sm:%s62]
    %s74 = sshllo.u32 0, 1
    %s75 = smul.addr 1, 2
    %s76 = scalar_lea.vmem %s1, %s75
    %77 = vst [vmem:[%s76] sm:%s74] %v73
    %s78 = scalar_lea.vmem [#allocation0], 24
    %v79 = vld [vmem:[%s78] sm:%s62]
    %s80 = sshllo.u32 0, 1
    %s81 = smul.addr 1, 3
    %s82 = scalar_lea.vmem %s1, %s81
    %83 = vst [vmem:[%s82] sm:%s80] %v79
    %s84 = scalar_lea.vmem [#allocation0], 32
    %v85 = vld [vmem:[%s84] sm:%s62]
    %s86 = sshllo.u32 0, 1
    %s87 = smul.addr 1, 4
    %s88 = scalar_lea.vmem %s1, %s87
    %89 = vst [vmem:[%s88] sm:%s86] %v85
    %s90 = scalar_lea.vmem [#allocation0], 40
    %v91 = vld [vmem:[%s90] sm:%s62]
    %s92 = sshllo.u32 0, 1
    %s93 = smul.addr 1, 5
    %s94 = scalar_lea.vmem %s1, %s93
    %95 = vst [vmem:[%s94] sm:%s92] %v91
    %s96 = scalar_lea.vmem [#allocation0], 48
    %v97 = vld [vmem:[%s96] sm:%s62]
    %s98 = sshllo.u32 0, 1
    %s99 = smul.addr 1, 6
    %s100 = scalar_lea.vmem %s1, %s99
    %101 = vst [vmem:[%s100] sm:%s98] %v97
    %s102 = scalar_lea.vmem [#allocation0], 56
    %v103 = vld [vmem:[%s102] sm:%s62]
    %s104 = sshllo.u32 0, 1
    %s105 = smul.addr 1, 7
    %s106 = scalar_lea.vmem %s1, %s105
    %107 = vst [vmem:[%s106] sm:%s104] %v103
    %s108 = scalar_lea.vmem [#allocation0], 64
    %v109 = vld [vmem:[%s108] sm:%s62]
    %s110 = sshllo.u32 0, 1
    %s111 = smul.addr 1, 8
    %s112 = scalar_lea.vmem %s1, %s111
    %113 = vst [vmem:[%s112] sm:%s110] %v109
    %s114 = scalar_lea.vmem [#allocation0], 72
    %v115 = vld [vmem:[%s114] sm:%s62]
    %s116 = sshllo.u32 0, 1
    %s117 = smul.addr 1, 9
    %s118 = scalar_lea.vmem %s1, %s117
    %119 = vst [vmem:[%s118] sm:%s116] %v115
    %s120 = scalar_lea.vmem [#allocation0], 80
    %v121 = vld [vmem:[%s120] sm:%s62]
    %s122 = sshllo.u32 0, 1
    %s123 = smul.addr 1, 10
    %s124 = scalar_lea.vmem %s1, %s123
    %125 = vst [vmem:[%s124] sm:%s122] %v121
    %s126 = scalar_lea.vmem [#allocation0], 88
    %v127 = vld [vmem:[%s126] sm:%s62]
    %s128 = sshllo.u32 0, 1
    %s129 = smul.addr 1, 11
    %s130 = scalar_lea.vmem %s1, %s129
    %131 = vst [vmem:[%s130] sm:%s128] %v127
    %s132 = scalar_lea.vmem [#allocation0], 96
    %v133 = vld [vmem:[%s132] sm:%s62]
    %s134 = sshllo.u32 0, 1
    %s135 = smul.addr 1, 12
    %s136 = scalar_lea.vmem %s1, %s135
    %137 = vst [vmem:[%s136] sm:%s134] %v133
    %s138 = scalar_lea.vmem [#allocation0], 104
    %v139 = vld [vmem:[%s138] sm:%s62]
    %s140 = sshllo.u32 0, 1
    %s141 = smul.addr 1, 13
    %s142 = scalar_lea.vmem %s1, %s141
    %143 = vst [vmem:[%s142] sm:%s140] %v139
    %s144 = scalar_lea.vmem [#allocation0], 112
    %v145 = vld [vmem:[%s144] sm:%s62]
    %s146 = sshllo.u32 0, 1
    %s147 = smul.addr 1, 14
    %s148 = scalar_lea.vmem %s1, %s147
    %149 = vst [vmem:[%s148] sm:%s146] %v145
    %s150 = scalar_lea.vmem [#allocation0], 120
    %v151 = vld [vmem:[%s150] sm:%s62]
    %s152 = sshllo.u32 0, 1
    %s153 = smul.addr 1, 15
    %s154 = scalar_lea.vmem %s1, %s153
    %155 = vst [vmem:[%s154] sm:%s152] %v151

// kernel: tile.19
$region0: #{tile.19}
  %s0 = inlined_call_operand.vmem [shape: f32[64,16], index: 0, kind: input, shape index: {}]
  %s1 = inlined_call_operand.vmem [shape: f32[1,1024], index: 1, kind: output, shape index: {}]
  $region1: #{tile.19} parent=0
    #allocation0 [shape = 'u8[32768]{0}', space=vmem, size = 0x8000, scoped, tag = 'scoped mem for output reshape']
    %v2 = vld [vmem:[%s0] ss:$8 sm:$0xf]
    %v3 = vld [vmem:[%s0] ss:$8 sm:$0xf0]
    %vm4 = vcmask 1047556
    %v5 = vsel %vm4, %v3, %v2
    %vm6 = vcmask 130048
    %7 = vst.msk [vmem:[#allocation0] ss:$8 sm:$0xf] %vm6, %v5
    %8 = vst.msk [vmem:[#allocation0] ss:$8 sm:$0xf0] %vm6, %v5
    %s9 = scalar_lea.vmem %s0, 7
    %v10 = vld [vmem:[%s9] ss:$8 sm:$0xf]
    %s11 = scalar_lea.vmem %s0, 7
    %v12 = vld [vmem:[%s11] ss:$8 sm:$0xf0]
    %vm13 = vcmask 1047556
    %v14 = vsel %vm13, %v12, %v10
    %15 = vrot.lane.b32.xlu0 %v14, 112
    %v16 = vpop.permute.xlu0 %15
    %vm17 = vcmask 1048448
    %18 = vst.msk [vmem:[#allocation0] ss:$8 sm:$0xf] %vm17, %v16
    %19 = vst.msk [vmem:[#allocation0] ss:$8 sm:$0xf0] %vm17, %v16
    %s20 = scalar_lea.vmem %s0, 6
    %v21 = vld [vmem:[%s20] ss:$8 sm:$0xf]
    %s22 = scalar_lea.vmem %s0, 6
    %v23 = vld [vmem:[%s22] ss:$8 sm:$0xf0]
    %vm24 = vcmask 1047556
    %v25 = vsel %vm24, %v23, %v21
    %26 = vrot.lane.b32.xlu0 %v25, 96
    %v27 = vpop.permute.xlu0 %26
    %vm28 = vcmask 917248
    %29 = vst.msk [vmem:[#allocation0] ss:$8 sm:$0xf] %vm28, %v27
    %30 = vst.msk [vmem:[#allocation0] ss:$8 sm:$0xf0] %vm28, %v27
    %s31 = scalar_lea.vmem %s0, 5
    %v32 = vld [vmem:[%s31] ss:$8 sm:$0xf]
    %s33 = scalar_lea.vmem %s0, 5
    %v34 = vld [vmem:[%s33] ss:$8 sm:$0xf0]
    %vm35 = vcmask 1047556
    %v36 = vsel %vm35, %v34, %v32
    %37 = vrot.lane.b32.xlu0 %v36, 80
    %v38 = vpop.permute.xlu0 %37
    %vm39 = vcmask 786048
    %40 = vst.msk [vmem:[#allocation0] ss:$8 sm:$0xf] %vm39, %v38
    %41 = vst.msk [vmem:[#allocation0] ss:$8 sm:$0xf0] %vm39, %v38
    %s42 = scalar_lea.vmem %s0, 4
    %v43 = vld [vmem:[%s42] ss:$8 sm:$0xf]
    %s44 = scalar_lea.vmem %s0, 4
    %v45 = vld [vmem:[%s44] ss:$8 sm:$0xf0]
    %vm46 = vcmask 1047556
    %v47 = vsel %vm46, %v45, %v43
    %48 = vrot.lane.b32.xlu0 %v47, 64
    %v49 = vpop.permute.xlu0 %48
    %vm50 = vcmask 654848
    %51 = vst.msk [vmem:[#allocation0] ss:$8 sm:$0xf] %vm50, %v49
    %52 = vst.msk [vmem:[#allocation0] ss:$8 sm:$0xf0] %vm50, %v49
    %s53 = scalar_lea.vmem %s0, 3
    %v54 = vld [vmem:[%s53] ss:$8 sm:$0xf]
    %s55 = scalar_lea.vmem %s0, 3
    %v56 = vld [vmem:[%s55] ss:$8 sm:$0xf0]
    %vm57 = vcmask 1047556
    %v58 = vsel %vm57, %v56, %v54
    %59 = vrot.lane.b32.xlu0 %v58, 48
    %v60 = vpop.permute.xlu0 %59
    %vm61 = vcmask 523648
    %62 = vst.msk [vmem:[#allocation0] ss:$8 sm:$0xf] %vm61, %v60
    %63 = vst.msk [vmem:[#allocation0] ss:$8 sm:$0xf0] %vm61, %v60
    %s64 = scalar_lea.vmem %s0, 2
    %v65 = vld [vmem:[%s64] ss:$8 sm:$0xf]
    %s66 = scalar_lea.vmem %s0, 2
    %v67 = vld [vmem:[%s66] ss:$8 sm:$0xf0]
    %vm68 = vcmask 1047556
    %v69 = vsel %vm68, %v67, %v65
    %70 = vrot.lane.b32.xlu0 %v69, 32
    %v71 = vpop.permute.xlu0 %70
    %vm72 = vcmask 392448
    %73 = vst.msk [vmem:[#allocation0] ss:$8 sm:$0xf] %vm72, %v71
    %74 = vst.msk [vmem:[#allocation0] ss:$8 sm:$0xf0] %vm72, %v71
    %s75 = scalar_lea.vmem %s0, 1
    %v76 = vld [vmem:[%s75] ss:$8 sm:$0xf]
    %s77 = scalar_lea.vmem %s0, 1
    %v78 = vld [vmem:[%s77] ss:$8 sm:$0xf0]
    %vm79 = vcmask 1047556
    %v80 = vsel %vm79, %v78, %v76
    %81 = vrot.lane.b32.xlu0 %v80, 16
    %v82 = vpop.permute.xlu0 %81
    %vm83 = vcmask 261248
    %84 = vst.msk [vmem:[#allocation0] ss:$8 sm:$0xf] %vm83, %v82
    %85 = vst.msk [vmem:[#allocation0] ss:$8 sm:$0xf0] %vm83, %v82
    %s87 = sshllo.u32 0, 1
    %v89 = vld [vmem:[#allocation0] sm:%s87]
    %s90 = sshllo.u32 0, 1
    %91 = vst [vmem:[%s1] sm:%s90] %v89
    %s92 = scalar_lea.vmem [#allocation0], 8
    %v93 = vld [vmem:[%s92] sm:%s87]
    %s94 = sshllo.u32 0, 1
    %s95 = scalar_lea.vmem %s1, 1
    %96 = vst [vmem:[%s95] sm:%s94] %v93
    %s97 = scalar_lea.vmem [#allocation0], 16
    %v98 = vld [vmem:[%s97] sm:%s87]
    %s99 = sshllo.u32 0, 1
    %s100 = smul.addr 1, 2
    %s101 = scalar_lea.vmem %s1, %s100
    %102 = vst [vmem:[%s101] sm:%s99] %v98
    %s103 = scalar_lea.vmem [#allocation0], 24
    %v104 = vld [vmem:[%s103] sm:%s87]
    %s105 = sshllo.u32 0, 1
    %s106 = smul.addr 1, 3
    %s107 = scalar_lea.vmem %s1, %s106
    %108 = vst [vmem:[%s107] sm:%s105] %v104
    %s109 = scalar_lea.vmem [#allocation0], 32
    %v110 = vld [vmem:[%s109] sm:%s87]
    %s111 = sshllo.u32 0, 1
    %s112 = smul.addr 1, 4
    %s113 = scalar_lea.vmem %s1, %s112
    %114 = vst [vmem:[%s113] sm:%s111] %v110
    %s115 = scalar_lea.vmem [#allocation0], 40
    %v116 = vld [vmem:[%s115] sm:%s87]
    %s117 = sshllo.u32 0, 1
    %s118 = smul.addr 1, 5
    %s119 = scalar_lea.vmem %s1, %s118
    %120 = vst [vmem:[%s119] sm:%s117] %v116
    %s121 = scalar_lea.vmem [#allocation0], 48
    %v122 = vld [vmem:[%s121] sm:%s87]
    %s123 = sshllo.u32 0, 1
    %s124 = smul.addr 1, 6
    %s125 = scalar_lea.vmem %s1, %s124
    %126 = vst [vmem:[%s125] sm:%s123] %v122
    %s127 = scalar_lea.vmem [#allocation0], 56
    %v128 = vld [vmem:[%s127] sm:%s87]
    %s129 = sshllo.u32 0, 1
    %s130 = smul.addr 1, 7
    %s131 = scalar_lea.vmem %s1, %s130
    %132 = vst [vmem:[%s131] sm:%s129] %v128

// kernel: embed_amp.1
$region0: #{embed_amp.1}
  #allocation0 [shape = 'u32[]', space=smem, size = 0x4, offset = 0x4, fixed_abs, tag = 'smem constant byte address 0x4 - core index']
  #allocation1 [shape = 'u32[144,128]{1,0:T(1,128)}', space=vmem, size = 0x12000, scoped, tag = 'internal scratch']
  #allocation2 [shape = 'f32[8,1024]{1,0:T(8,128)}', space=vmem, size = 0x8000, scoped, tag = 'scratch operand']
  #allocation3 [shape = 'f32[8,2048]{1,0:T(8,128)}', space=vmem, size = 0x10000, scoped, tag = 'scratch operand']
  %s0 = inlined_call_operand.vmem [shape: f32[8,64], index: 0, kind: input, shape index: {}]
  %s1 = inlined_call_operand.vmem [shape: f32[64,1024], index: 1, kind: input, shape index: {}]
  %s2 = inlined_call_operand.vmem [shape: f32[1,1024], index: 2, kind: input, shape index: {}]
  %s3 = inlined_call_operand.vmem [shape: f32[1024,2048], index: 3, kind: input, shape index: {}]
  %s4 = inlined_call_operand.vmem [shape: f32[1,2048], index: 4, kind: input, shape index: {}]
  %s5 = inlined_call_operand.hbm [shape: f32[2048,2048], index: 5, kind: input, shape index: {}]
  %s6 = inlined_call_operand.vmem [shape: f32[1,2048], index: 6, kind: input, shape index: {}]
  %s7 = inlined_call_operand.vmem [shape: f32[8,2048], index: 7, kind: output, shape index: {}]
  %s8 = sld [smem:[#allocation0]]
  $region96: #{embed_amp.1} parent=0
    _
  %s10 = ssub.s32 1, %s8
  %s11 = scalar_select 0, %s10, %s8
  $region1: #{embed_amp.1} parent=0
    #allocation4 [shape = 'u8[4194304]{0}', space=vmem, size = 0x400000, scoped, tag = 'input window, operand 3']
    #allocation5 [shape = 'u8[8388608]{0}', space=vmem, size = 0x800000, scoped, tag = 'input window, operand 5']
    #allocation6 [shape = 's32[2]{0}', space=sflag, size = 0x8, scoped, tag = 'scoped memory for embed_amp.1']
    %12 = vsyncpa [#allocation6], 0
    %s13 = scalar_lea.sflag [#allocation6], 1
    %14 = vsyncpa %s13, 0
    loop: start=0, step=1, limit=6
    $region2: #{embed_amp.1} parent=1 // loop_pre_header
      _
    $region3: #{embed_amp.1} parent=1 // loop_header
      %s16 = sphi 0, %s20
      %p17 = scmp.ge.s32.totalorder %s16, 6
      %s23 = sphi 0, %s35
      %s24 = sphi 0, %s31
      %s25 = sphi 0, %s23
      %s26 = sphi 0, %s24
      %s27 = sphi 0, %s25
      %s28 = sphi 0, %s26
      %s38 = sphi 0, %s40
      %s41 = sphi 0, %s38
      %s42 = sphi 0, %s41
      %s58 = sphi 0, %s42
      %s62 = sphi 0, %s62
      %s64 = sphi 0, %s62
      %s65 = sphi 0, %s64
      %s79 = sphi 0, %s65
      %s83 = sphi 0, %s83
      %s85 = sphi 0, %s83
      %s86 = sphi 0, %s85
      %s100 = sphi 0, %s86
      %s106 = sphi 0, %s108
      %s109 = sphi 0, %s106
      %s110 = sphi 0, %s109
      %s126 = sphi 0, %s110
      %s132 = sphi 0, %s134
      %s135 = sphi 0, %s132
      %s136 = sphi 0, %s135
      %s152 = sphi 0, %s136
      %s158 = sphi 0, %s160
      %s161 = sphi 0, %s158
      %s162 = sphi 0, %s161
      %s178 = sphi 0, %s162
      %s182 = sphi 0, %s182
      %s184 = sphi 0, %s182
      %s185 = sphi 0, %s184
      %s199 = sphi 0, %s185
      %s205 = sphi 0, %s207
      %s208 = sphi 0, %s205
      %s209 = sphi 0, %s208
      %s225 = sphi 0, %s209
    $region4: #{embed_amp.1} parent=1 // loop_header_branch
      %19 = sbr.rel (%p17) target = $region8
    $region5: #{embed_amp.1} parent=1 // loop_body
      %s21 = ssub.s32 %s16, 1
      %s22 = ssub.s32 %s16, 2
      %s29 = sadd.s32 1, %s24
      %p30 = scmp.ge.s32.totalorder %s29, 4
      %s31 = scalar_select %p30, 0, %s29
      %s32 = sadd.s32 1, %s23
      %s33 = scalar_select %p30, %s32, %s23
      %p34 = scmp.ge.s32.totalorder %s33, 1
      %s35 = scalar_select %p34, 0, %s33
      %s36 = ssub.s32 %s23, %s35
      %p37 = scmp.eq.s32.totalorder %s36, 0
      %s39 = sadd.s32 %s38, 1
      %s40 = scalar_select %p37, %s38, %s39
      %p43 = pneg %p37
      %p44 = scmp.eq.s32.totalorder %s16, 3
      %p45 = por %p43, %p44
      %p46 = scmp.ne.s32.totalorder %s38, %s41
      %p47 = scmp.eq.s32.totalorder %s16, 0
      %p48 = por %p46, %p47
      %p49 = scmp.ne.s32.totalorder %s38, %s41
      %p50 = scmp.eq.s32.totalorder %s21, 3
      %p51 = por %p49, %p50
      %p52 = scmp.ne.s32.totalorder %s41, %s42
      %p53 = scmp.eq.s32.totalorder %s21, 0
      %p54 = por %p52, %p53
      %p55 = scmp.ne.s32.totalorder %s41, %s42
      %p56 = scmp.eq.s32.totalorder %s22, 3
      %p57 = por %p55, %p56
      %p59 = scmp.ne.s32.totalorder %s42, %s58
      %p60 = scmp.eq.s32.totalorder %s22, 0
      %p61 = por %p59, %p60
      %s63 = sadd.s32 %s62, 1
      %p66 = scmp.eq.s32.totalorder %s16, 3
      %p67 = scmp.ne.s32.totalorder %s62, %s64
      %p68 = scmp.eq.s32.totalorder %s16, 0
      %p69 = por %p67, %p68
      %p70 = scmp.ne.s32.totalorder %s62, %s64
      %p71 = scmp.eq.s32.totalorder %s21, 3
      %p72 = por %p70, %p71
      %p73 = scmp.ne.s32.totalorder %s64, %s65
      %p74 = scmp.eq.s32.totalorder %s21, 0
      %p75 = por %p73, %p74
      %p76 = scmp.ne.s32.totalorder %s64, %s65
      %p77 = scmp.eq.s32.totalorder %s22, 3
      %p78 = por %p76, %p77
      %p80 = scmp.ne.s32.totalorder %s65, %s79
      %p81 = scmp.eq.s32.totalorder %s22, 0
      %p82 = por %p80, %p81
      %s84 = sadd.s32 %s83, 1
      %p87 = scmp.eq.s32.totalorder %s16, 3
      %p88 = scmp.ne.s32.totalorder %s83, %s85
      %p89 = scmp.eq.s32.totalorder %s16, 0
      %p90 = por %p88, %p89
      %p91 = scmp.ne.s32.totalorder %s83, %s85
      %p92 = scmp.eq.s32.totalorder %s21, 3
      %p93 = por %p91, %p92
      %p94 = scmp.ne.s32.totalorder %s85, %s86
      %p95 = scmp.eq.s32.totalorder %s21, 0
      %p96 = por %p94, %p95
      %p97 = scmp.ne.s32.totalorder %s85, %s86
      %p98 = scmp.eq.s32.totalorder %s22, 3
      %p99 = por %p97, %p98
      %p101 = scmp.ne.s32.totalorder %s86, %s100
      %p102 = scmp.eq.s32.totalorder %s22, 0
      %p103 = por %p101, %p102
      %s104 = ssub.s32 %s24, %s31
      %p105 = scmp.eq.s32.totalorder %s104, 0
      %s107 = sadd.s32 %s106, 1
      %s108 = scalar_select %p105, %s106, %s107
      %p111 = pneg %p105
      %p112 = scmp.eq.s32.totalorder %s16, 3
      %p113 = por %p111, %p112
      %p114 = scmp.ne.s32.totalorder %s106, %s109
      %p115 = scmp.eq.s32.totalorder %s16, 0
      %p116 = por %p114, %p115
      %p117 = scmp.ne.s32.totalorder %s106, %s109
      %p118 = scmp.eq.s32.totalorder %s21, 3
      %p119 = por %p117, %p118
      %p120 = scmp.ne.s32.totalorder %s109, %s110
      %p121 = scmp.eq.s32.totalorder %s21, 0
      %p122 = por %p120, %p121
      %p123 = scmp.ne.s32.totalorder %s109, %s110
      %p124 = scmp.eq.s32.totalorder %s22, 3
      %p125 = por %p123, %p124
      %p127 = scmp.ne.s32.totalorder %s110, %s126
      %p128 = scmp.eq.s32.totalorder %s22, 0
      %p129 = por %p127, %p128
      %s130 = ssub.s32 %s24, %s31
      %p131 = scmp.eq.s32.totalorder %s130, 0
      %s133 = sadd.s32 %s132, 1
      %s134 = scalar_select %p131, %s132, %s133
      %p137 = pneg %p131
      %p138 = scmp.eq.s32.totalorder %s16, 3
      %p139 = por %p137, %p138
      %p140 = scmp.ne.s32.totalorder %s132, %s135
      %p141 = scmp.eq.s32.totalorder %s16, 0
      %p142 = por %p140, %p141
      %p143 = scmp.ne.s32.totalorder %s132, %s135
      %p144 = scmp.eq.s32.totalorder %s21, 3
      %p145 = por %p143, %p144
      %p146 = scmp.ne.s32.totalorder %s135, %s136
      %p147 = scmp.eq.s32.totalorder %s21, 0
      %p148 = por %p146, %p147
      %p149 = scmp.ne.s32.totalorder %s135, %s136
      %p150 = scmp.eq.s32.totalorder %s22, 3
      %p151 = por %p149, %p150
      %p153 = scmp.ne.s32.totalorder %s136, %s152
      %p154 = scmp.eq.s32.totalorder %s22, 0
      %p155 = por %p153, %p154
      %s156 = ssub.s32 %s24, %s31
      %p157 = scmp.eq.s32.totalorder %s156, 0
      %s159 = sadd.s32 %s158, 1
      %s160 = scalar_select %p157, %s158, %s159
      %p163 = pneg %p157
      %p164 = scmp.eq.s32.totalorder %s16, 3
      %p165 = por %p163, %p164
      %p166 = scmp.ne.s32.totalorder %s158, %s161
      %p167 = scmp.eq.s32.totalorder %s16, 0
      %p168 = por %p166, %p167
      %p169 = scmp.ne.s32.totalorder %s158, %s161
      %p170 = scmp.eq.s32.totalorder %s21, 3
      %p171 = por %p169, %p170
      %p172 = scmp.ne.s32.totalorder %s161, %s162
      %p173 = scmp.eq.s32.totalorder %s21, 0
      %p174 = por %p172, %p173
      %p175 = scmp.ne.s32.totalorder %s161, %s162
      %p176 = scmp.eq.s32.totalorder %s22, 3
      %p177 = por %p175, %p176
      %p179 = scmp.ne.s32.totalorder %s162, %s178
      %p180 = scmp.eq.s32.totalorder %s22, 0
      %p181 = por %p179, %p180
      %s183 = sadd.s32 %s182, 1
      %p186 = scmp.eq.s32.totalorder %s16, 3
      %p187 = scmp.ne.s32.totalorder %s182, %s184
      %p188 = scmp.eq.s32.totalorder %s16, 0
      %p189 = por %p187, %p188
      %p190 = scmp.ne.s32.totalorder %s182, %s184
      %p191 = scmp.eq.s32.totalorder %s21, 3
      %p192 = por %p190, %p191
      %p193 = scmp.ne.s32.totalorder %s184, %s185
      %p194 = scmp.eq.s32.totalorder %s21, 0
      %p195 = por %p193, %p194
      %p196 = scmp.ne.s32.totalorder %s184, %s185
      %p197 = scmp.eq.s32.totalorder %s22, 3
      %p198 = por %p196, %p197
      %p200 = scmp.ne.s32.totalorder %s185, %s199
      %p201 = scmp.eq.s32.totalorder %s22, 0
      %p202 = por %p200, %p201
      %s203 = ssub.s32 %s23, %s35
      %p204 = scmp.eq.s32.totalorder %s203, 0
      %s206 = sadd.s32 %s205, 1
      %s207 = scalar_select %p204, %s205, %s206
      %p210 = pneg %p204
      %p211 = scmp.eq.s32.totalorder %s16, 3
      %p212 = por %p210, %p211
      %p213 = scmp.ne.s32.totalorder %s205, %s208
      %p214 = scmp.eq.s32.totalorder %s16, 0
      %p215 = por %p213, %p214
      %p216 = scmp.ne.s32.totalorder %s205, %s208
      %p217 = scmp.eq.s32.totalorder %s21, 3
      %p218 = por %p216, %p217
      %p219 = scmp.ne.s32.totalorder %s208, %s209
      %p220 = scmp.eq.s32.totalorder %s21, 0
      %p221 = por %p219, %p220
      %p222 = scmp.ne.s32.totalorder %s208, %s209
      %p223 = scmp.eq.s32.totalorder %s22, 3
      %p224 = por %p222, %p223
      %p226 = scmp.ne.s32.totalorder %s209, %s225
      %p227 = scmp.eq.s32.totalorder %s22, 0
      %p228 = por %p226, %p227
      %p229 = scmp.le.s32.totalorder 1, %s16
      %p230 = scmp.lt.s32.totalorder %s16, 5
      %p231 = pnand %p229, %p230
      %p232 = pneg %p231
      // Predicated region
      $region9: #{embed_amp.1} parent=5 // pred_check
        _
      $region10: #{embed_amp.1} parent=5 // pred_check_branch
        %234 = sbr.rel (%p231) target = $region12
      $region11: #{embed_amp.1} parent=5 // pred_region
        %s235 = ssub.s32 %s16, 1
        // Predicated region
        $region13: #{embed_amp.1} parent=11 // pred_check
          %p236 = pneg %p54
        $region14: #{embed_amp.1} parent=11 // pred_check_branch
          %238 = sbr.rel (%p236) target = $region16
        $region15: #{embed_amp.1} parent=11 // pred_region
          %p239 = scmp.lt.s32.totalorder %s25, 0
          %s240 = scalar_select %p239, %s25, 0
          %s241 = smul.addr %s240, 8
          %s242 = scalar_lea.vmem %s0, %s241
        $region16: #{embed_amp.1} parent=11 // pred_fallthru
          _
        // Predicated region
        $region17: #{embed_amp.1} parent=11 // pred_check
          %p243 = pneg %p75
        $region18: #{embed_amp.1} parent=11 // pred_check_branch
          %245 = sbr.rel (%p243) target = $region20
        $region19: #{embed_amp.1} parent=11 // pred_region
          _
        $region20: #{embed_amp.1} parent=11 // pred_fallthru
          _
        // Predicated region
        $region21: #{embed_amp.1} parent=11 // pred_check
          %p246 = pneg %p96
        $region22: #{embed_amp.1} parent=11 // pred_check_branch
          %248 = sbr.rel (%p246) target = $region24
        $region23: #{embed_amp.1} parent=11 // pred_region
          _
        $region24: #{embed_amp.1} parent=11 // pred_fallthru
          _
        // Predicated region
        $region25: #{embed_amp.1} parent=11 // pred_check
          %p249 = pneg %p195
        $region26: #{embed_amp.1} parent=11 // pred_check_branch
          %251 = sbr.rel (%p249) target = $region28
        $region27: #{embed_amp.1} parent=11 // pred_region
          _
        $region28: #{embed_amp.1} parent=11 // pred_fallthru
          _
      $region12: #{embed_amp.1} parent=5 // pred_fallthru
        _
      %p252 = scmp.lt.s32.totalorder %s16, 4
      // Predicated region
      $region29: #{embed_amp.1} parent=5 // pred_check
        %p253 = pneg %p252
      $region30: #{embed_amp.1} parent=5 // pred_check_branch
        %255 = sbr.rel (%p253) target = $region32
      $region31: #{embed_amp.1} parent=5 // pred_region
        // Predicated region
        $region33: #{embed_amp.1} parent=31 // pred_check
          %p256 = pneg %p116
        $region34: #{embed_amp.1} parent=31 // pred_check_branch
          %258 = sbr.rel (%p256) target = $region36
        $region35: #{embed_amp.1} parent=31 // pred_region
          %s259 = sand.u32 %s106, 1
          %s260 = sand.u32 %s106, 1
          %s261 = smul.addr %s260, 4096
          %s262 = scalar_lea.vmem [#allocation4], %s261
          %s263 = smul.u32 4, %s24
          %s264 = smul.addr %s263, 8
          %s265 = scalar_lea.vmem %s3, %s264
          // Predicated region
          $region37: #{embed_amp.1} parent=35 // pred_check
            _
          $region38: #{embed_amp.1} parent=35 // pred_check_branch
            %267 = sbr.rel (0) target = $region40
          $region39: #{embed_amp.1} parent=35 // pred_region
            // Predicated region
            $region41: #{embed_amp.1} parent=39 // pred_check
              _
            $region42: #{embed_amp.1} parent=39 // pred_check_branch
              %269 = sbr.rel (0) target = $region44
            $region43: #{embed_amp.1} parent=39 // pred_region
              loop: start=0, step=1, limit=1
              $region45: #{embed_amp.1} parent=43 // loop_pre_header
                _
              $region46: #{embed_amp.1} parent=43 // loop_header
                %s271 = sphi 0, %s275
                %p272 = scmp.ge.s32.totalorder %s271, 1
                %s276 = sphi %s265, %s265
                %s277 = sphi %s262, %s262
              $region47: #{embed_amp.1} parent=43 // loop_header_branch
                %274 = sbr.rel (%p272) target = $region51
              $region48: #{embed_amp.1} parent=43 // loop_body
                %v278 = vld [vmem:[%s276] sm:$0xff]
                %279 = vst [vmem:[%s277] sm:$0xff] %v278
                %v280 = vld [vmem:[%s276 + $0x8] sm:$0xff]
                %281 = vst [vmem:[%s277 + $0x8] sm:$0xff] %v280
                %v282 = vld [vmem:[%s276 + $0x10] sm:$0xff]
                %283 = vst [vmem:[%s277 + $0x10] sm:$0xff] %v282
                %v284 = vld [vmem:[%s276 + $0x18] sm:$0xff]
                %285 = vst [vmem:[%s277 + $0x18] sm:$0xff] %v284
                %v286 = vld [vmem:[%s276 + $0x80] sm:$0xff]
                %287 = vst [vmem:[%s277 + $0x20] sm:$0xff] %v286
                %v288 = vld [vmem:[%s276 + $0x88] sm:$0xff]
                %289 = vst [vmem:[%s277 + $0x28] sm:$0xff] %v288
                %v290 = vld [vmem:[%s276 + $0x90] sm:$0xff]
                %291 = vst [vmem:[%s277 + $0x30] sm:$0xff] %v290
                %v292 = vld [vmem:[%s276 + $0x98] sm:$0xff]
                %293 = vst [vmem:[%s277 + $0x38] sm:$0xff] %v292
                %v294 = vld [vmem:[%s276 + $0x100] sm:$0xff]
                %295 = vst [vmem:[%s277 + $0x40] sm:$0xff] %v294
                %v296 = vld [vmem:[%s276 + $0x108] sm:$0xff]
                %297 = vst [vmem:[%s277 + $0x48] sm:$0xff] %v296
                %v298 = vld [vmem:[%s276 + $0x110] sm:$0xff]
                %299 = vst [vmem:[%s277 + $0x50] sm:$0xff] %v298
                %v300 = vld [vmem:[%s276 + $0x118] sm:$0xff]
                %301 = vst [vmem:[%s277 + $0x58] sm:$0xff] %v300
                %v302 = vld [vmem:[%s276 + $0x180] sm:$0xff]
                %303 = vst [vmem:[%s277 + $0x60] sm:$0xff] %v302
                %v304 = vld [vmem:[%s276 + $0x188] sm:$0xff]
                %305 = vst [vmem:[%s277 + $0x68] sm:$0xff] %v304
                %v306 = vld [vmem:[%s276 + $0x190] sm:$0xff]
                %307 = vst [vmem:[%s277 + $0x70] sm:$0xff] %v306
                %v308 = vld [vmem:[%s276 + $0x198] sm:$0xff]
                %309 = vst [vmem:[%s277 + $0x78] sm:$0xff] %v308
                %v310 = vld [vmem:[%s276 + $0x200] sm:$0xff]
                %311 = vst [vmem:[%s277 + $0x80] sm:$0xff] %v310
                %v312 = vld [vmem:[%s276 + $0x208] sm:$0xff]
                %313 = vst [vmem:[%s277 + $0x88] sm:$0xff] %v312
                %v314 = vld [vmem:[%s276 + $0x210] sm:$0xff]
                %315 = vst [vmem:[%s277 + $0x90] sm:$0xff] %v314
                %v316 = vld [vmem:[%s276 + $0x218] sm:$0xff]
                %317 = vst [vmem:[%s277 + $0x98] sm:$0xff] %v316
                %v318 = vld [vmem:[%s276 + $0x280] sm:$0xff]
                %319 = vst [vmem:[%s277 + $0xa0] sm:$0xff] %v318
                %v320 = vld [vmem:[%s276 + $0x288] sm:$0xff]
                %321 = vst [vmem:[%s277 + $0xa8] sm:$0xff] %v320
                %v322 = vld [vmem:[%s276 + $0x290] sm:$0xff]
                %323 = vst [vmem:[%s277 + $0xb0] sm:$0xff] %v322
                %v324 = vld [vmem:[%s276 + $0x298] sm:$0xff]
                %325 = vst [vmem:[%s277 + $0xb8] sm:$0xff] %v324
                %v326 = vld [vmem:[%s276 + $0x300] sm:$0xff]
                %327 = vst [vmem:[%s277 + $0xc0] sm:$0xff] %v326
                %v328 = vld [vmem:[%s276 + $0x308] sm:$0xff]
                %329 = vst [vmem:[%s277 + $0xc8] sm:$0xff] %v328
                %v330 = vld [vmem:[%s276 + $0x310] sm:$0xff]
                %331 = vst [vmem:[%s277 + $0xd0] sm:$0xff] %v330
                %v332 = vld [vmem:[%s276 + $0x318] sm:$0xff]
                %333 = vst [vmem:[%s277 + $0xd8] sm:$0xff] %v332
                %v334 = vld [vmem:[%s276 + $0x380] sm:$0xff]
                %335 = vst [vmem:[%s277 + $0xe0] sm:$0xff] %v334
                %v336 = vld [vmem:[%s276 + $0x388] sm:$0xff]
                %337 = vst [vmem:[%s277 + $0xe8] sm:$0xff] %v336
                %v338 = vld [vmem:[%s276 + $0x390] sm:$0xff]
                %339 = vst [vmem:[%s277 + $0xf0] sm:$0xff] %v338
                %v340 = vld [vmem:[%s276 + $0x398] sm:$0xff]
                %341 = vst [vmem:[%s277 + $0xf8] sm:$0xff] %v340
                %v342 = vld [vmem:[%s276 + $0x400] sm:$0xff]
                %343 = vst [vmem:[%s277 + $0x100] sm:$0xff] %v342
                %v344 = vld [vmem:[%s276 + $0x408] sm:$0xff]
                %345 = vst [vmem:[%s277 + $0x108] sm:$0xff] %v344
                %v346 = vld [vmem:[%s276 + $0x410] sm:$0xff]
                %347 = vst [vmem:[%s277 + $0x110] sm:$0xff] %v346
                %v348 = vld [vmem:[%s276 + $0x418] sm:$0xff]
                %349 = vst [vmem:[%s277 + $0x118] sm:$0xff] %v348
                %v350 = vld [vmem:[%s276 + $0x480] sm:$0xff]
                %351 = vst [vmem:[%s277 + $0x120] sm:$0xff] %v350
                %v352 = vld [vmem:[%s276 + $0x488] sm:$0xff]
                %353 = vst [vmem:[%s277 + $0x128] sm:$0xff] %v352
                %v354 = vld [vmem:[%s276 + $0x490] sm:$0xff]
                %355 = vst [vmem:[%s277 + $0x130] sm:$0xff] %v354
                %v356 = vld [vmem:[%s276 + $0x498] sm:$0xff]
                %357 = vst [vmem:[%s277 + $0x138] sm:$0xff] %v356
                %v358 = vld [vmem:[%s276 + $0x500] sm:$0xff]
                %359 = vst [vmem:[%s277 + $0x140] sm:$0xff] %v358
                %v360 = vld [vmem:[%s276 + $0x508] sm:$0xff]
                %361 = vst [vmem:[%s277 + $0x148] sm:$0xff] %v360
                %v362 = vld [vmem:[%s276 + $0x510] sm:$0xff]
                %363 = vst [vmem:[%s277 + $0x150] sm:$0xff] %v362
                %v364 = vld [vmem:[%s276 + $0x518] sm:$0xff]
                %365 = vst [vmem:[%s277 + $0x158] sm:$0xff] %v364
                %v366 = vld [vmem:[%s276 + $0x580] sm:$0xff]
                %367 = vst [vmem:[%s277 + $0x160] sm:$0xff] %v366
                %v368 = vld [vmem:[%s276 + $0x588] sm:$0xff]
                %369 = vst [vmem:[%s277 + $0x168] sm:$0xff] %v368
                %v370 = vld [vmem:[%s276 + $0x590] sm:$0xff]
                %371 = vst [vmem:[%s277 + $0x170] sm:$0xff] %v370
                %v372 = vld [vmem:[%s276 + $0x598] sm:$0xff]
                %373 = vst [vmem:[%s277 + $0x178] sm:$0xff] %v372
                %v374 = vld [vmem:[%s276 + $0x600] sm:$0xff]
                %375 = vst [vmem:[%s277 + $0x180] sm:$0xff] %v374
                %v376 = vld [vmem:[%s276 + $0x608] sm:$0xff]
                %377 = vst [vmem:[%s277 + $0x188] sm:$0xff] %v376
                %v378 = vld [vmem:[%s276 + $0x610] sm:$0xff]
                %379 = vst [vmem:[%s277 + $0x190] sm:$0xff] %v378
                %v380 = vld [vmem:[%s276 + $0x618] sm:$0xff]
                %381 = vst [vmem:[%s277 + $0x198] sm:$0xff] %v380
                %v382 = vld [vmem:[%s276 + $0x680] sm:$0xff]
                %383 = vst [vmem:[%s277 + $0x1a0] sm:$0xff] %v382
                %v384 = vld [vmem:[%s276 + $0x688] sm:$0xff]
                %385 = vst [vmem:[%s277 + $0x1a8] sm:$0xff] %v384
                %v386 = vld [vmem:[%s276 + $0x690] sm:$0xff]
                %387 = vst [vmem:[%s277 + $0x1b0] sm:$0xff] %v386
                %v388 = vld [vmem:[%s276 + $0x698] sm:$0xff]
                %389 = vst [vmem:[%s277 + $0x1b8] sm:$0xff] %v388
                %v390 = vld [vmem:[%s276 + $0x700] sm:$0xff]
                %391 = vst [vmem:[%s277 + $0x1c0] sm:$0xff] %v390
                %v392 = vld [vmem:[%s276 + $0x708] sm:$0xff]
                %393 = vst [vmem:[%s277 + $0x1c8] sm:$0xff] %v392
                %v394 = vld [vmem:[%s276 + $0x710] sm:$0xff]
                %395 = vst [vmem:[%s277 + $0x1d0] sm:$0xff] %v394
                %v396 = vld [vmem:[%s276 + $0x718] sm:$0xff]
                %397 = vst [vmem:[%s277 + $0x1d8] sm:$0xff] %v396
                %v398 = vld [vmem:[%s276 + $0x780] sm:$0xff]
                %399 = vst [vmem:[%s277 + $0x1e0] sm:$0xff] %v398
                %v400 = vld [vmem:[%s276 + $0x788] sm:$0xff]
                %401 = vst [vmem:[%s277 + $0x1e8] sm:$0xff] %v400
                %v402 = vld [vmem:[%s276 + $0x790] sm:$0xff]
                %403 = vst [vmem:[%s277 + $0x1f0] sm:$0xff] %v402
                %v404 = vld [vmem:[%s276 + $0x798] sm:$0xff]
                %405 = vst [vmem:[%s277 + $0x1f8] sm:$0xff] %v404
                %v406 = vld [vmem:[%s276 + $0x800] sm:$0xff]
                %407 = vst [vmem:[%s277 + $0x200] sm:$0xff] %v406
                %v408 = vld [vmem:[%s276 + $0x808] sm:$0xff]
                %409 = vst [vmem:[%s277 + $0x208] sm:$0xff] %v408
                %v410 = vld [vmem:[%s276 + $0x810] sm:$0xff]
                %411 = vst [vmem:[%s277 + $0x210] sm:$0xff] %v410
                %v412 = vld [vmem:[%s276 + $0x818] sm:$0xff]
                %413 = vst [vmem:[%s277 + $0x218] sm:$0xff] %v412
                %v414 = vld [vmem:[%s276 + $0x880] sm:$0xff]
                %415 = vst [vmem:[%s277 + $0x220] sm:$0xff] %v414
                %v416 = vld [vmem:[%s276 + $0x888] sm:$0xff]
                %417 = vst [vmem:[%s277 + $0x228] sm:$0xff] %v416
                %v418 = vld [vmem:[%s276 + $0x890] sm:$0xff]
                %419 = vst [vmem:[%s277 + $0x230] sm:$0xff] %v418
                %v420 = vld [vmem:[%s276 + $0x898] sm:$0xff]
                %421 = vst [vmem:[%s277 + $0x238] sm:$0xff] %v420
                %v422 = vld [vmem:[%s276 + $0x900] sm:$0xff]
                %423 = vst [vmem:[%s277 + $0x240] sm:$0xff] %v422
                %v424 = vld [vmem:[%s276 + $0x908] sm:$0xff]
                %425 = vst [vmem:[%s277 + $0x248] sm:$0xff] %v424
                %v426 = vld [vmem:[%s276 + $0x910] sm:$0xff]
                %427 = vst [vmem:[%s277 + $0x250] sm:$0xff] %v426
                %v428 = vld [vmem:[%s276 + $0x918] sm:$0xff]
                %429 = vst [vmem:[%s277 + $0x258] sm:$0xff] %v428
                %v430 = vld [vmem:[%s276 + $0x980] sm:$0xff]
                %431 = vst [vmem:[%s277 + $0x260] sm:$0xff] %v430
                %v432 = vld [vmem:[%s276 + $0x988] sm:$0xff]
                %433 = vst [vmem:[%s277 + $0x268] sm:$0xff] %v432
                %v434 = vld [vmem:[%s276 + $0x990] sm:$0xff]
                %435 = vst [vmem:[%s277 + $0x270] sm:$0xff] %v434
                %v436 = vld [vmem:[%s276 + $0x998] sm:$0xff]
                %437 = vst [vmem:[%s277 + $0x278] sm:$0xff] %v436
                %v438 = vld [vmem:[%s276 + $0xa00] sm:$0xff]
                %439 = vst [vmem:[%s277 + $0x280] sm:$0xff] %v438
                %v440 = vld [vmem:[%s276 + $0xa08] sm:$0xff]
                %441 = vst [vmem:[%s277 + $0x288] sm:$0xff] %v440
                %v442 = vld [vmem:[%s276 + $0xa10] sm:$0xff]
                %443 = vst [vmem:[%s277 + $0x290] sm:$0xff] %v442
                %v444 = vld [vmem:[%s276 + $0xa18] sm:$0xff]
                %445 = vst [vmem:[%s277 + $0x298] sm:$0xff] %v444
                %v446 = vld [vmem:[%s276 + $0xa80] sm:$0xff]
                %447 = vst [vmem:[%s277 + $0x2a0] sm:$0xff] %v446
                %v448 = vld [vmem:[%s276 + $0xa88] sm:$0xff]
                %449 = vst [vmem:[%s277 + $0x2a8] sm:$0xff] %v448
                %v450 = vld [vmem:[%s276 + $0xa90] sm:$0xff]
                %451 = vst [vmem:[%s277 + $0x2b0] sm:$0xff] %v450
                %v452 = vld [vmem:[%s276 + $0xa98] sm:$0xff]
                %453 = vst [vmem:[%s277 + $0x2b8] sm:$0xff] %v452
                %v454 = vld [vmem:[%s276 + $0xb00] sm:$0xff]
                %455 = vst [vmem:[%s277 + $0x2c0] sm:$0xff] %v454
                %v456 = vld [vmem:[%s276 + $0xb08] sm:$0xff]
                %457 = vst [vmem:[%s277 + $0x2c8] sm:$0xff] %v456
                %v458 = vld [vmem:[%s276 + $0xb10] sm:$0xff]
                %459 = vst [vmem:[%s277 + $0x2d0] sm:$0xff] %v458
                %v460 = vld [vmem:[%s276 + $0xb18] sm:$0xff]
                %461 = vst [vmem:[%s277 + $0x2d8] sm:$0xff] %v460
                %v462 = vld [vmem:[%s276 + $0xb80] sm:$0xff]
                %463 = vst [vmem:[%s277 + $0x2e0] sm:$0xff] %v462
                %v464 = vld [vmem:[%s276 + $0xb88] sm:$0xff]
                %465 = vst [vmem:[%s277 + $0x2e8] sm:$0xff] %v464
                %v466 = vld [vmem:[%s276 + $0xb90] sm:$0xff]
                %467 = vst [vmem:[%s277 + $0x2f0] sm:$0xff] %v466
                %v468 = vld [vmem:[%s276 + $0xb98] sm:$0xff]
                %469 = vst [vmem:[%s277 + $0x2f8] sm:$0xff] %v468
                %v470 = vld [vmem:[%s276 + $0xc00] sm:$0xff]
                %471 = vst [vmem:[%s277 + $0x300] sm:$0xff] %v470
                %v472 = vld [vmem:[%s276 + $0xc08] sm:$0xff]
                %473 = vst [vmem:[%s277 + $0x308] sm:$0xff] %v472
                %v474 = vld [vmem:[%s276 + $0xc10] sm:$0xff]
                %475 = vst [vmem:[%s277 + $0x310] sm:$0xff] %v474
                %v476 = vld [vmem:[%s276 + $0xc18] sm:$0xff]
                %477 = vst [vmem:[%s277 + $0x318] sm:$0xff] %v476
                %v478 = vld [vmem:[%s276 + $0xc80] sm:$0xff]
                %479 = vst [vmem:[%s277 + $0x320] sm:$0xff] %v478
                %v480 = vld [vmem:[%s276 + $0xc88] sm:$0xff]
                %481 = vst [vmem:[%s277 + $0x328] sm:$0xff] %v480
                %v482 = vld [vmem:[%s276 + $0xc90] sm:$0xff]
                %483 = vst [vmem:[%s277 + $0x330] sm:$0xff] %v482
                %v484 = vld [vmem:[%s276 + $0xc98] sm:$0xff]
                %485 = vst [vmem:[%s277 + $0x338] sm:$0xff] %v484
                %v486 = vld [vmem:[%s276 + $0xd00] sm:$0xff]
                %487 = vst [vmem:[%s277 + $0x340] sm:$0xff] %v486
                %v488 = vld [vmem:[%s276 + $0xd08] sm:$0xff]
                %489 = vst [vmem:[%s277 + $0x348] sm:$0xff] %v488
                %v490 = vld [vmem:[%s276 + $0xd10] sm:$0xff]
                %491 = vst [vmem:[%s277 + $0x350] sm:$0xff] %v490
                %v492 = vld [vmem:[%s276 + $0xd18] sm:$0xff]
                %493 = vst [vmem:[%s277 + $0x358] sm:$0xff] %v492
                %v494 = vld [vmem:[%s276 + $0xd80] sm:$0xff]
                %495 = vst [vmem:[%s277 + $0x360] sm:$0xff] %v494
                %v496 = vld [vmem:[%s276 + $0xd88] sm:$0xff]
                %497 = vst [vmem:[%s277 + $0x368] sm:$0xff] %v496
                %v498 = vld [vmem:[%s276 + $0xd90] sm:$0xff]
                %499 = vst [vmem:[%s277 + $0x370] sm:$0xff] %v498
                %v500 = vld [vmem:[%s276 + $0xd98] sm:$0xff]
                %501 = vst [vmem:[%s277 + $0x378] sm:$0xff] %v500
                %v502 = vld [vmem:[%s276 + $0xe00] sm:$0xff]
                %503 = vst [vmem:[%s277 + $0x380] sm:$0xff] %v502
                %v504 = vld [vmem:[%s276 + $0xe08] sm:$0xff]
                %505 = vst [vmem:[%s277 + $0x388] sm:$0xff] %v504
                %v506 = vld [vmem:[%s276 + $0xe10] sm:$0xff]
                %507 = vst [vmem:[%s277 + $0x390] sm:$0xff] %v506
                %v508 = vld [vmem:[%s276 + $0xe18] sm:$0xff]
                %509 = vst [vmem:[%s277 + $0x398] sm:$0xff] %v508
                %v510 = vld [vmem:[%s276 + $0xe80] sm:$0xff]
                %511 = vst [vmem:[%s277 + $0x3a0] sm:$0xff] %v510
                %v512 = vld [vmem:[%s276 + $0xe88] sm:$0xff]
                %513 = vst [vmem:[%s277 + $0x3a8] sm:$0xff] %v512
                %v514 = vld [vmem:[%s276 + $0xe90] sm:$0xff]
                %515 = vst [vmem:[%s277 + $0x3b0] sm:$0xff] %v514
                %v516 = vld [vmem:[%s276 + $0xe98] sm:$0xff]
                %517 = vst [vmem:[%s277 + $0x3b8] sm:$0xff] %v516
                %v518 = vld [vmem:[%s276 + $0xf00] sm:$0xff]
                %519 = vst [vmem:[%s277 + $0x3c0] sm:$0xff] %v518
                %v520 = vld [vmem:[%s276 + $0xf08] sm:$0xff]
                %521 = vst [vmem:[%s277 + $0x3c8] sm:$0xff] %v520
                %v522 = vld [vmem:[%s276 + $0xf10] sm:$0xff]
                %523 = vst [vmem:[%s277 + $0x3d0] sm:$0xff] %v522
                %v524 = vld [vmem:[%s276 + $0xf18] sm:$0xff]
                %525 = vst [vmem:[%s277 + $0x3d8] sm:$0xff] %v524
                %v526 = vld [vmem:[%s276 + $0xf80] sm:$0xff]
                %527 = vst [vmem:[%s277 + $0x3e0] sm:$0xff] %v526
                %v528 = vld [vmem:[%s276 + $0xf88] sm:$0xff]
                %529 = vst [vmem:[%s277 + $0x3e8] sm:$0xff] %v528
                %v530 = vld [vmem:[%s276 + $0xf90] sm:$0xff]
                %531 = vst [vmem:[%s277 + $0x3f0] sm:$0xff] %v530
                %v532 = vld [vmem:[%s276 + $0xf98] sm:$0xff]
                %533 = vst [vmem:[%s277 + $0x3f8] sm:$0xff] %v532
                %v534 = vld [vmem:[%s276 + $0x1000] sm:$0xff]
                %535 = vst [vmem:[%s277 + $0x400] sm:$0xff] %v534
                %v536 = vld [vmem:[%s276 + $0x1008] sm:$0xff]
                %537 = vst [vmem:[%s277 + $0x408] sm:$0xff] %v536
                %v538 = vld [vmem:[%s276 + $0x1010] sm:$0xff]
                %539 = vst [vmem:[%s277 + $0x410] sm:$0xff] %v538
                %v540 = vld [vmem:[%s276 + $0x1018] sm:$0xff]
                %541 = vst [vmem:[%s277 + $0x418] sm:$0xff] %v540
                %v542 = vld [vmem:[%s276 + $0x1080] sm:$0xff]
                %543 = vst [vmem:[%s277 + $0x420] sm:$0xff] %v542
                %v544 = vld [vmem:[%s276 + $0x1088] sm:$0xff]
                %545 = vst [vmem:[%s277 + $0x428] sm:$0xff] %v544
                %v546 = vld [vmem:[%s276 + $0x1090] sm:$0xff]
                %547 = vst [vmem:[%s277 + $0x430] sm:$0xff] %v546
                %v548 = vld [vmem:[%s276 + $0x1098] sm:$0xff]
                %549 = vst [vmem:[%s277 + $0x438] sm:$0xff] %v548
                %v550 = vld [vmem:[%s276 + $0x1100] sm:$0xff]
                %551 = vst [vmem:[%s277 + $0x440] sm:$0xff] %v550
                %v552 = vld [vmem:[%s276 + $0x1108] sm:$0xff]
                %553 = vst [vmem:[%s277 + $0x448] sm:$0xff] %v552
                %v554 = vld [vmem:[%s276 + $0x1110] sm:$0xff]
                %555 = vst [vmem:[%s277 + $0x450] sm:$0xff] %v554
                %v556 = vld [vmem:[%s276 + $0x1118] sm:$0xff]
                %557 = vst [vmem:[%s277 + $0x458] sm:$0xff] %v556
                %v558 = vld [vmem:[%s276 + $0x1180] sm:$0xff]
                %559 = vst [vmem:[%s277 + $0x460] sm:$0xff] %v558
                %v560 = vld [vmem:[%s276 + $0x1188] sm:$0xff]
                %561 = vst [vmem:[%s277 + $0x468] sm:$0xff] %v560
                %v562 = vld [vmem:[%s276 + $0x1190] sm:$0xff]
                %563 = vst [vmem:[%s277 + $0x470] sm:$0xff] %v562
                %v564 = vld [vmem:[%s276 + $0x1198] sm:$0xff]
                %565 = vst [vmem:[%s277 + $0x478] sm:$0xff] %v564
                %v566 = vld [vmem:[%s276 + $0x1200] sm:$0xff]
                %567 = vst [vmem:[%s277 + $0x480] sm:$0xff] %v566
                %v568 = vld [vmem:[%s276 + $0x1208] sm:$0xff]
                %569 = vst [vmem:[%s277 + $0x488] sm:$0xff] %v568
                %v570 = vld [vmem:[%s276 + $0x1210] sm:$0xff]
                %571 = vst [vmem:[%s277 + $0x490] sm:$0xff] %v570
                %v572 = vld [vmem:[%s276 + $0x1218] sm:$0xff]
                %573 = vst [vmem:[%s277 + $0x498] sm:$0xff] %v572
                %v574 = vld [vmem:[%s276 + $0x1280] sm:$0xff]
                %575 = vst [vmem:[%s277 + $0x4a0] sm:$0xff] %v574
                %v576 = vld [vmem:[%s276 + $0x1288] sm:$0xff]
                %577 = vst [vmem:[%s277 + $0x4a8] sm:$0xff] %v576
                %v578 = vld [vmem:[%s276 + $0x1290] sm:$0xff]
                %579 = vst [vmem:[%s277 + $0x4b0] sm:$0xff] %v578
                %v580 = vld [vmem:[%s276 + $0x1298] sm:$0xff]
                %581 = vst [vmem:[%s277 + $0x4b8] sm:$0xff] %v580
                %v582 = vld [vmem:[%s276 + $0x1300] sm:$0xff]
                %583 = vst [vmem:[%s277 + $0x4c0] sm:$0xff] %v582
                %v584 = vld [vmem:[%s276 + $0x1308] sm:$0xff]
                %585 = vst [vmem:[%s277 + $0x4c8] sm:$0xff] %v584
                %v586 = vld [vmem:[%s276 + $0x1310] sm:$0xff]
                %587 = vst [vmem:[%s277 + $0x4d0] sm:$0xff] %v586
                %v588 = vld [vmem:[%s276 + $0x1318] sm:$0xff]
                %589 = vst [vmem:[%s277 + $0x4d8] sm:$0xff] %v588
                %v590 = vld [vmem:[%s276 + $0x1380] sm:$0xff]
                %591 = vst [vmem:[%s277 + $0x4e0] sm:$0xff] %v590
                %v592 = vld [vmem:[%s276 + $0x1388] sm:$0xff]
                %593 = vst [vmem:[%s277 + $0x4e8] sm:$0xff] %v592
                %v594 = vld [vmem:[%s276 + $0x1390] sm:$0xff]
                %595 = vst [vmem:[%s277 + $0x4f0] sm:$0xff] %v594
                %v596 = vld [vmem:[%s276 + $0x1398] sm:$0xff]
                %597 = vst [vmem:[%s277 + $0x4f8] sm:$0xff] %v596
                %v598 = vld [vmem:[%s276 + $0x1400] sm:$0xff]
                %599 = vst [vmem:[%s277 + $0x500] sm:$0xff] %v598
                %v600 = vld [vmem:[%s276 + $0x1408] sm:$0xff]
                %601 = vst [vmem:[%s277 + $0x508] sm:$0xff] %v600
                %v602 = vld [vmem:[%s276 + $0x1410] sm:$0xff]
                %603 = vst [vmem:[%s277 + $0x510] sm:$0xff] %v602
                %v604 = vld [vmem:[%s276 + $0x1418] sm:$0xff]
                %605 = vst [vmem:[%s277 + $0x518] sm:$0xff] %v604
                %v606 = vld [vmem:[%s276 + $0x1480] sm:$0xff]
                %607 = vst [vmem:[%s277 + $0x520] sm:$0xff] %v606
                %v608 = vld [vmem:[%s276 + $0x1488] sm:$0xff]
                %609 = vst [vmem:[%s277 + $0x528] sm:$0xff] %v608
                %v610 = vld [vmem:[%s276 + $0x1490] sm:$0xff]
                %611 = vst [vmem:[%s277 + $0x530] sm:$0xff] %v610
                %v612 = vld [vmem:[%s276 + $0x1498] sm:$0xff]
                %613 = vst [vmem:[%s277 + $0x538] sm:$0xff] %v612
                %v614 = vld [vmem:[%s276 + $0x1500] sm:$0xff]
                %615 = vst [vmem:[%s277 + $0x540] sm:$0xff] %v614
                %v616 = vld [vmem:[%s276 + $0x1508] sm:$0xff]
                %617 = vst [vmem:[%s277 + $0x548] sm:$0xff] %v616
                %v618 = vld [vmem:[%s276 + $0x1510] sm:$0xff]
                %619 = vst [vmem:[%s277 + $0x550] sm:$0xff] %v618
                %v620 = vld [vmem:[%s276 + $0x1518] sm:$0xff]
                %621 = vst [vmem:[%s277 + $0x558] sm:$0xff] %v620
                %v622 = vld [vmem:[%s276 + $0x1580] sm:$0xff]
                %623 = vst [vmem:[%s277 + $0x560] sm:$0xff] %v622
                %v624 = vld [vmem:[%s276 + $0x1588] sm:$0xff]
                %625 = vst [vmem:[%s277 + $0x568] sm:$0xff] %v624
                %v626 = vld [vmem:[%s276 + $0x1590] sm:$0xff]
                %627 = vst [vmem:[%s277 + $0x570] sm:$0xff] %v626
                %v628 = vld [vmem:[%s276 + $0x1598] sm:$0xff]
                %629 = vst [vmem:[%s277 + $0x578] sm:$0xff] %v628
                %v630 = vld [vmem:[%s276 + $0x1600] sm:$0xff]
                %631 = vst [vmem:[%s277 + $0x580] sm:$0xff] %v630
                %v632 = vld [vmem:[%s276 + $0x1608] sm:$0xff]
                %633 = vst [vmem:[%s277 + $0x588] sm:$0xff] %v632
                %v634 = vld [vmem:[%s276 + $0x1610] sm:$0xff]
                %635 = vst [vmem:[%s277 + $0x590] sm:$0xff] %v634
                %v636 = vld [vmem:[%s276 + $0x1618] sm:$0xff]
                %637 = vst [vmem:[%s277 + $0x598] sm:$0xff] %v636
                %v638 = vld [vmem:[%s276 + $0x1680] sm:$0xff]
                %639 = vst [vmem:[%s277 + $0x5a0] sm:$0xff] %v638
                %v640 = vld [vmem:[%s276 + $0x1688] sm:$0xff]
                %641 = vst [vmem:[%s277 + $0x5a8] sm:$0xff] %v640
                %v642 = vld [vmem:[%s276 + $0x1690] sm:$0xff]
                %643 = vst [vmem:[%s277 + $0x5b0] sm:$0xff] %v642
                %v644 = vld [vmem:[%s276 + $0x1698] sm:$0xff]
                %645 = vst [vmem:[%s277 + $0x5b8] sm:$0xff] %v644
                %v646 = vld [vmem:[%s276 + $0x1700] sm:$0xff]
                %647 = vst [vmem:[%s277 + $0x5c0] sm:$0xff] %v646
                %v648 = vld [vmem:[%s276 + $0x1708] sm:$0xff]
                %649 = vst [vmem:[%s277 + $0x5c8] sm:$0xff] %v648
                %v650 = vld [vmem:[%s276 + $0x1710] sm:$0xff]
                %651 = vst [vmem:[%s277 + $0x5d0] sm:$0xff] %v650
                %v652 = vld [vmem:[%s276 + $0x1718] sm:$0xff]
                %653 = vst [vmem:[%s277 + $0x5d8] sm:$0xff] %v652
                %v654 = vld [vmem:[%s276 + $0x1780] sm:$0xff]
                %655 = vst [vmem:[%s277 + $0x5e0] sm:$0xff] %v654
                %v656 = vld [vmem:[%s276 + $0x1788] sm:$0xff]
                %657 = vst [vmem:[%s277 + $0x5e8] sm:$0xff] %v656
                %v658 = vld [vmem:[%s276 + $0x1790] sm:$0xff]
                %659 = vst [vmem:[%s277 + $0x5f0] sm:$0xff] %v658
                %v660 = vld [vmem:[%s276 + $0x1798] sm:$0xff]
                %661 = vst [vmem:[%s277 + $0x5f8] sm:$0xff] %v660
                %v662 = vld [vmem:[%s276 + $0x1800] sm:$0xff]
                %663 = vst [vmem:[%s277 + $0x600] sm:$0xff] %v662
                %v664 = vld [vmem:[%s276 + $0x1808] sm:$0xff]
                %665 = vst [vmem:[%s277 + $0x608] sm:$0xff] %v664
                %v666 = vld [vmem:[%s276 + $0x1810] sm:$0xff]
                %667 = vst [vmem:[%s277 + $0x610] sm:$0xff] %v666
                %v668 = vld [vmem:[%s276 + $0x1818] sm:$0xff]
                %669 = vst [vmem:[%s277 + $0x618] sm:$0xff] %v668
                %v670 = vld [vmem:[%s276 + $0x1880] sm:$0xff]
                %671 = vst [vmem:[%s277 + $0x620] sm:$0xff] %v670
                %v672 = vld [vmem:[%s276 + $0x1888] sm:$0xff]
                %673 = vst [vmem:[%s277 + $0x628] sm:$0xff] %v672
                %v674 = vld [vmem:[%s276 + $0x1890] sm:$0xff]
                %675 = vst [vmem:[%s277 + $0x630] sm:$0xff] %v674
                %v676 = vld [vmem:[%s276 + $0x1898] sm:$0xff]
                %677 = vst [vmem:[%s277 + $0x638] sm:$0xff] %v676
                %v678 = vld [vmem:[%s276 + $0x1900] sm:$0xff]
                %679 = vst [vmem:[%s277 + $0x640] sm:$0xff] %v678
                %v680 = vld [vmem:[%s276 + $0x1908] sm:$0xff]
                %681 = vst [vmem:[%s277 + $0x648] sm:$0xff] %v680
                %v682 = vld [vmem:[%s276 + $0x1910] sm:$0xff]
                %683 = vst [vmem:[%s277 + $0x650] sm:$0xff] %v682
                %v684 = vld [vmem:[%s276 + $0x1918] sm:$0xff]
                %685 = vst [vmem:[%s277 + $0x658] sm:$0xff] %v684
                %v686 = vld [vmem:[%s276 + $0x1980] sm:$0xff]
                %687 = vst [vmem:[%s277 + $0x660] sm:$0xff] %v686
                %v688 = vld [vmem:[%s276 + $0x1988] sm:$0xff]
                %689 = vst [vmem:[%s277 + $0x668] sm:$0xff] %v688
                %v690 = vld [vmem:[%s276 + $0x1990] sm:$0xff]
                %691 = vst [vmem:[%s277 + $0x670] sm:$0xff] %v690
                %v692 = vld [vmem:[%s276 + $0x1998] sm:$0xff]
                %693 = vst [vmem:[%s277 + $0x678] sm:$0xff] %v692
                %v694 = vld [vmem:[%s276 + $0x1a00] sm:$0xff]
                %695 = vst [vmem:[%s277 + $0x680] sm:$0xff] %v694
                %v696 = vld [vmem:[%s276 + $0x1a08] sm:$0xff]
                %697 = vst [vmem:[%s277 + $0x688] sm:$0xff] %v696
                %v698 = vld [vmem:[%s276 + $0x1a10] sm:$0xff]
                %699 = vst [vmem:[%s277 + $0x690] sm:$0xff] %v698
                %v700 = vld [vmem:[%s276 + $0x1a18] sm:$0xff]
                %701 = vst [vmem:[%s277 + $0x698] sm:$0xff] %v700
                %v702 = vld [vmem:[%s276 + $0x1a80] sm:$0xff]
                %703 = vst [vmem:[%s277 + $0x6a0] sm:$0xff] %v702
                %v704 = vld [vmem:[%s276 + $0x1a88] sm:$0xff]
                %705 = vst [vmem:[%s277 + $0x6a8] sm:$0xff] %v704
                %v706 = vld [vmem:[%s276 + $0x1a90] sm:$0xff]
                %707 = vst [vmem:[%s277 + $0x6b0] sm:$0xff] %v706
                %v708 = vld [vmem:[%s276 + $0x1a98] sm:$0xff]
                %709 = vst [vmem:[%s277 + $0x6b8] sm:$0xff] %v708
                %v710 = vld [vmem:[%s276 + $0x1b00] sm:$0xff]
                %711 = vst [vmem:[%s277 + $0x6c0] sm:$0xff] %v710
                %v712 = vld [vmem:[%s276 + $0x1b08] sm:$0xff]
                %713 = vst [vmem:[%s277 + $0x6c8] sm:$0xff] %v712
                %v714 = vld [vmem:[%s276 + $0x1b10] sm:$0xff]
                %715 = vst [vmem:[%s277 + $0x6d0] sm:$0xff] %v714
                %v716 = vld [vmem:[%s276 + $0x1b18] sm:$0xff]
                %717 = vst [vmem:[%s277 + $0x6d8] sm:$0xff] %v716
                %v718 = vld [vmem:[%s276 + $0x1b80] sm:$0xff]
                %719 = vst [vmem:[%s277 + $0x6e0] sm:$0xff] %v718
                %v720 = vld [vmem:[%s276 + $0x1b88] sm:$0xff]
                %721 = vst [vmem:[%s277 + $0x6e8] sm:$0xff] %v720
                %v722 = vld [vmem:[%s276 + $0x1b90] sm:$0xff]
                %723 = vst [vmem:[%s277 + $0x6f0] sm:$0xff] %v722
                %v724 = vld [vmem:[%s276 + $0x1b98] sm:$0xff]
                %725 = vst [vmem:[%s277 + $0x6f8] sm:$0xff] %v724
                %v726 = vld [vmem:[%s276 + $0x1c00] sm:$0xff]
                %727 = vst [vmem:[%s277 + $0x700] sm:$0xff] %v726
                %v728 = vld [vmem:[%s276 + $0x1c08] sm:$0xff]
                %729 = vst [vmem:[%s277 + $0x708] sm:$0xff] %v728
                %v730 = vld [vmem:[%s276 + $0x1c10] sm:$0xff]
                %731 = vst [vmem:[%s277 + $0x710] sm:$0xff] %v730
                %v732 = vld [vmem:[%s276 + $0x1c18] sm:$0xff]
                %733 = vst [vmem:[%s277 + $0x718] sm:$0xff] %v732
                %v734 = vld [vmem:[%s276 + $0x1c80] sm:$0xff]
                %735 = vst [vmem:[%s277 + $0x720] sm:$0xff] %v734
                %v736 = vld [vmem:[%s276 + $0x1c88] sm:$0xff]
                %737 = vst [vmem:[%s277 + $0x728] sm:$0xff] %v736
                %v738 = vld [vmem:[%s276 + $0x1c90] sm:$0xff]
                %739 = vst [vmem:[%s277 + $0x730] sm:$0xff] %v738
                %v740 = vld [vmem:[%s276 + $0x1c98] sm:$0xff]
                %741 = vst [vmem:[%s277 + $0x738] sm:$0xff] %v740
                %v742 = vld [vmem:[%s276 + $0x1d00] sm:$0xff]
                %743 = vst [vmem:[%s277 + $0x740] sm:$0xff] %v742
                %v744 = vld [vmem:[%s276 + $0x1d08] sm:$0xff]
                %745 = vst [vmem:[%s277 + $0x748] sm:$0xff] %v744
                %v746 = vld [vmem:[%s276 + $0x1d10] sm:$0xff]
                %747 = vst [vmem:[%s277 + $0x750] sm:$0xff] %v746
                %v748 = vld [vmem:[%s276 + $0x1d18] sm:$0xff]
                %749 = vst [vmem:[%s277 + $0x758] sm:$0xff] %v748
                %v750 = vld [vmem:[%s276 + $0x1d80] sm:$0xff]
                %751 = vst [vmem:[%s277 + $0x760] sm:$0xff] %v750
                %v752 = vld [vmem:[%s276 + $0x1d88] sm:$0xff]
                %753 = vst [vmem:[%s277 + $0x768] sm:$0xff] %v752
                %v754 = vld [vmem:[%s276 + $0x1d90] sm:$0xff]
                %755 = vst [vmem:[%s277 + $0x770] sm:$0xff] %v754
                %v756 = vld [vmem:[%s276 + $0x1d98] sm:$0xff]
                %757 = vst [vmem:[%s277 + $0x778] sm:$0xff] %v756
                %v758 = vld [vmem:[%s276 + $0x1e00] sm:$0xff]
                %759 = vst [vmem:[%s277 + $0x780] sm:$0xff] %v758
                %v760 = vld [vmem:[%s276 + $0x1e08] sm:$0xff]
                %761 = vst [vmem:[%s277 + $0x788] sm:$0xff] %v760
                %v762 = vld [vmem:[%s276 + $0x1e10] sm:$0xff]
                %763 = vst [vmem:[%s277 + $0x790] sm:$0xff] %v762
                %v764 = vld [vmem:[%s276 + $0x1e18] sm:$0xff]
                %765 = vst [vmem:[%s277 + $0x798] sm:$0xff] %v764
                %v766 = vld [vmem:[%s276 + $0x1e80] sm:$0xff]
                %767 = vst [vmem:[%s277 + $0x7a0] sm:$0xff] %v766
                %v768 = vld [vmem:[%s276 + $0x1e88] sm:$0xff]
                %769 = vst [vmem:[%s277 + $0x7a8] sm:$0xff] %v768
                %v770 = vld [vmem:[%s276 + $0x1e90] sm:$0xff]
                %771 = vst [vmem:[%s277 + $0x7b0] sm:$0xff] %v770
                %v772 = vld [vmem:[%s276 + $0x1e98] sm:$0xff]
                %773 = vst [vmem:[%s277 + $0x7b8] sm:$0xff] %v772
                %v774 = vld [vmem:[%s276 + $0x1f00] sm:$0xff]
                %775 = vst [vmem:[%s277 + $0x7c0] sm:$0xff] %v774
                %v776 = vld [vmem:[%s276 + $0x1f08] sm:$0xff]
                %777 = vst [vmem:[%s277 + $0x7c8] sm:$0xff] %v776
                %v778 = vld [vmem:[%s276 + $0x1f10] sm:$0xff]
                %779 = vst [vmem:[%s277 + $0x7d0] sm:$0xff] %v778
                %v780 = vld [vmem:[%s276 + $0x1f18] sm:$0xff]
                %781 = vst [vmem:[%s277 + $0x7d8] sm:$0xff] %v780
                %v782 = vld [vmem:[%s276 + $0x1f80] sm:$0xff]
                %783 = vst [vmem:[%s277 + $0x7e0] sm:$0xff] %v782
                %v784 = vld [vmem:[%s276 + $0x1f88] sm:$0xff]
                %785 = vst [vmem:[%s277 + $0x7e8] sm:$0xff] %v784
                %v786 = vld [vmem:[%s276 + $0x1f90] sm:$0xff]
                %787 = vst [vmem:[%s277 + $0x7f0] sm:$0xff] %v786
                %v788 = vld [vmem:[%s276 + $0x1f98] sm:$0xff]
                %789 = vst [vmem:[%s277 + $0x7f8] sm:$0xff] %v788
                %v790 = vld [vmem:[%s276 + $0x2000] sm:$0xff]
                %791 = vst [vmem:[%s277 + $0x800] sm:$0xff] %v790
                %v792 = vld [vmem:[%s276 + $0x2008] sm:$0xff]
                %793 = vst [vmem:[%s277 + $0x808] sm:$0xff] %v792
                %v794 = vld [vmem:[%s276 + $0x2010] sm:$0xff]
                %795 = vst [vmem:[%s277 + $0x810] sm:$0xff] %v794
                %v796 = vld [vmem:[%s276 + $0x2018] sm:$0xff]
                %797 = vst [vmem:[%s277 + $0x818] sm:$0xff] %v796
                %v798 = vld [vmem:[%s276 + $0x2080] sm:$0xff]
                %799 = vst [vmem:[%s277 + $0x820] sm:$0xff] %v798
                %v800 = vld [vmem:[%s276 + $0x2088] sm:$0xff]
                %801 = vst [vmem:[%s277 + $0x828] sm:$0xff] %v800
                %v802 = vld [vmem:[%s276 + $0x2090] sm:$0xff]
                %803 = vst [vmem:[%s277 + $0x830] sm:$0xff] %v802
                %v804 = vld [vmem:[%s276 + $0x2098] sm:$0xff]
                %805 = vst [vmem:[%s277 + $0x838] sm:$0xff] %v804
                %v806 = vld [vmem:[%s276 + $0x2100] sm:$0xff]
                %807 = vst [vmem:[%s277 + $0x840] sm:$0xff] %v806
                %v808 = vld [vmem:[%s276 + $0x2108] sm:$0xff]
                %809 = vst [vmem:[%s277 + $0x848] sm:$0xff] %v808
                %v810 = vld [vmem:[%s276 + $0x2110] sm:$0xff]
                %811 = vst [vmem:[%s277 + $0x850] sm:$0xff] %v810
                %v812 = vld [vmem:[%s276 + $0x2118] sm:$0xff]
                %813 = vst [vmem:[%s277 + $0x858] sm:$0xff] %v812
                %v814 = vld [vmem:[%s276 + $0x2180] sm:$0xff]
                %815 = vst [vmem:[%s277 + $0x860] sm:$0xff] %v814
                %v816 = vld [vmem:[%s276 + $0x2188] sm:$0xff]
                %817 = vst [vmem:[%s277 + $0x868] sm:$0xff] %v816
                %v818 = vld [vmem:[%s276 + $0x2190] sm:$0xff]
                %819 = vst [vmem:[%s277 + $0x870] sm:$0xff] %v818
                %v820 = vld [vmem:[%s276 + $0x2198] sm:$0xff]
                %821 = vst [vmem:[%s277 + $0x878] sm:$0xff] %v820
                %v822 = vld [vmem:[%s276 + $0x2200] sm:$0xff]
                %823 = vst [vmem:[%s277 + $0x880] sm:$0xff] %v822
                %v824 = vld [vmem:[%s276 + $0x2208] sm:$0xff]
                %825 = vst [vmem:[%s277 + $0x888] sm:$0xff] %v824
                %v826 = vld [vmem:[%s276 + $0x2210] sm:$0xff]
                %827 = vst [vmem:[%s277 + $0x890] sm:$0xff] %v826
                %v828 = vld [vmem:[%s276 + $0x2218] sm:$0xff]
                %829 = vst [vmem:[%s277 + $0x898] sm:$0xff] %v828
                %v830 = vld [vmem:[%s276 + $0x2280] sm:$0xff]
                %831 = vst [vmem:[%s277 + $0x8a0] sm:$0xff] %v830
                %v832 = vld [vmem:[%s276 + $0x2288] sm:$0xff]
                %833 = vst [vmem:[%s277 + $0x8a8] sm:$0xff] %v832
                %v834 = vld [vmem:[%s276 + $0x2290] sm:$0xff]
                %835 = vst [vmem:[%s277 + $0x8b0] sm:$0xff] %v834
                %v836 = vld [vmem:[%s276 + $0x2298] sm:$0xff]
                %837 = vst [vmem:[%s277 + $0x8b8] sm:$0xff] %v836
                %v838 = vld [vmem:[%s276 + $0x2300] sm:$0xff]
                %839 = vst [vmem:[%s277 + $0x8c0] sm:$0xff] %v838
                %v840 = vld [vmem:[%s276 + $0x2308] sm:$0xff]
                %841 = vst [vmem:[%s277 + $0x8c8] sm:$0xff] %v840
                %v842 = vld [vmem:[%s276 + $0x2310] sm:$0xff]
                %843 = vst [vmem:[%s277 + $0x8d0] sm:$0xff] %v842
                %v844 = vld [vmem:[%s276 + $0x2318] sm:$0xff]
                %845 = vst [vmem:[%s277 + $0x8d8] sm:$0xff] %v844
                %v846 = vld [vmem:[%s276 + $0x2380] sm:$0xff]
                %847 = vst [vmem:[%s277 + $0x8e0] sm:$0xff] %v846
                %v848 = vld [vmem:[%s276 + $0x2388] sm:$0xff]
                %849 = vst [vmem:[%s277 + $0x8e8] sm:$0xff] %v848
                %v850 = vld [vmem:[%s276 + $0x2390] sm:$0xff]
                %851 = vst [vmem:[%s277 + $0x8f0] sm:$0xff] %v850
                %v852 = vld [vmem:[%s276 + $0x2398] sm:$0xff]
                %853 = vst [vmem:[%s277 + $0x8f8] sm:$0xff] %v852
                %v854 = vld [vmem:[%s276 + $0x2400] sm:$0xff]
                %855 = vst [vmem:[%s277 + $0x900] sm:$0xff] %v854
                %v856 = vld [vmem:[%s276 + $0x2408] sm:$0xff]
                %857 = vst [vmem:[%s277 + $0x908] sm:$0xff] %v856
                %v858 = vld [vmem:[%s276 + $0x2410] sm:$0xff]
                %859 = vst [vmem:[%s277 + $0x910] sm:$0xff] %v858
                %v860 = vld [vmem:[%s276 + $0x2418] sm:$0xff]
                %861 = vst [vmem:[%s277 + $0x918] sm:$0xff] %v860
                %v862 = vld [vmem:[%s276 + $0x2480] sm:$0xff]
                %863 = vst [vmem:[%s277 + $0x920] sm:$0xff] %v862
                %v864 = vld [vmem:[%s276 + $0x2488] sm:$0xff]
                %865 = vst [vmem:[%s277 + $0x928] sm:$0xff] %v864
                %v866 = vld [vmem:[%s276 + $0x2490] sm:$0xff]
                %867 = vst [vmem:[%s277 + $0x930] sm:$0xff] %v866
                %v868 = vld [vmem:[%s276 + $0x2498] sm:$0xff]
                %869 = vst [vmem:[%s277 + $0x938] sm:$0xff] %v868
                %v870 = vld [vmem:[%s276 + $0x2500] sm:$0xff]
                %871 = vst [vmem:[%s277 + $0x940] sm:$0xff] %v870
                %v872 = vld [vmem:[%s276 + $0x2508] sm:$0xff]
                %873 = vst [vmem:[%s277 + $0x948] sm:$0xff] %v872
                %v874 = vld [vmem:[%s276 + $0x2510] sm:$0xff]
                %875 = vst [vmem:[%s277 + $0x950] sm:$0xff] %v874
                %v876 = vld [vmem:[%s276 + $0x2518] sm:$0xff]
                %877 = vst [vmem:[%s277 + $0x958] sm:$0xff] %v876
                %v878 = vld [vmem:[%s276 + $0x2580] sm:$0xff]
                %879 = vst [vmem:[%s277 + $0x960] sm:$0xff] %v878
                %v880 = vld [vmem:[%s276 + $0x2588] sm:$0xff]
                %881 = vst [vmem:[%s277 + $0x968] sm:$0xff] %v880
                %v882 = vld [vmem:[%s276 + $0x2590] sm:$0xff]
                %883 = vst [vmem:[%s277 + $0x970] sm:$0xff] %v882
                %v884 = vld [vmem:[%s276 + $0x2598] sm:$0xff]
                %885 = vst [vmem:[%s277 + $0x978] sm:$0xff] %v884
                %v886 = vld [vmem:[%s276 + $0x2600] sm:$0xff]
                %887 = vst [vmem:[%s277 + $0x980] sm:$0xff] %v886
                %v888 = vld [vmem:[%s276 + $0x2608] sm:$0xff]
                %889 = vst [vmem:[%s277 + $0x988] sm:$0xff] %v888
                %v890 = vld [vmem:[%s276 + $0x2610] sm:$0xff]
                %891 = vst [vmem:[%s277 + $0x990] sm:$0xff] %v890
                %v892 = vld [vmem:[%s276 + $0x2618] sm:$0xff]
                %893 = vst [vmem:[%s277 + $0x998] sm:$0xff] %v892
                %v894 = vld [vmem:[%s276 + $0x2680] sm:$0xff]
                %895 = vst [vmem:[%s277 + $0x9a0] sm:$0xff] %v894
                %v896 = vld [vmem:[%s276 + $0x2688] sm:$0xff]
                %897 = vst [vmem:[%s277 + $0x9a8] sm:$0xff] %v896
                %v898 = vld [vmem:[%s276 + $0x2690] sm:$0xff]
                %899 = vst [vmem:[%s277 + $0x9b0] sm:$0xff] %v898
                %v900 = vld [vmem:[%s276 + $0x2698] sm:$0xff]
                %901 = vst [vmem:[%s277 + $0x9b8] sm:$0xff] %v900
                %v902 = vld [vmem:[%s276 + $0x2700] sm:$0xff]
                %903 = vst [vmem:[%s277 + $0x9c0] sm:$0xff] %v902
                %v904 = vld [vmem:[%s276 + $0x2708] sm:$0xff]
                %905 = vst [vmem:[%s277 + $0x9c8] sm:$0xff] %v904
                %v906 = vld [vmem:[%s276 + $0x2710] sm:$0xff]
                %907 = vst [vmem:[%s277 + $0x9d0] sm:$0xff] %v906
                %v908 = vld [vmem:[%s276 + $0x2718] sm:$0xff]
                %909 = vst [vmem:[%s277 + $0x9d8] sm:$0xff] %v908
                %v910 = vld [vmem:[%s276 + $0x2780] sm:$0xff]
                %911 = vst [vmem:[%s277 + $0x9e0] sm:$0xff] %v910
                %v912 = vld [vmem:[%s276 + $0x2788] sm:$0xff]
                %913 = vst [vmem:[%s277 + $0x9e8] sm:$0xff] %v912
                %v914 = vld [vmem:[%s276 + $0x2790] sm:$0xff]
                %915 = vst [vmem:[%s277 + $0x9f0] sm:$0xff] %v914
                %v916 = vld [vmem:[%s276 + $0x2798] sm:$0xff]
                %917 = vst [vmem:[%s277 + $0x9f8] sm:$0xff] %v916
                %v918 = vld [vmem:[%s276 + $0x2800] sm:$0xff]
                %919 = vst [vmem:[%s277 + $0xa00] sm:$0xff] %v918
                %v920 = vld [vmem:[%s276 + $0x2808] sm:$0xff]
                %921 = vst [vmem:[%s277 + $0xa08] sm:$0xff] %v920
                %v922 = vld [vmem:[%s276 + $0x2810] sm:$0xff]
                %923 = vst [vmem:[%s277 + $0xa10] sm:$0xff] %v922
                %v924 = vld [vmem:[%s276 + $0x2818] sm:$0xff]
                %925 = vst [vmem:[%s277 + $0xa18] sm:$0xff] %v924
                %v926 = vld [vmem:[%s276 + $0x2880] sm:$0xff]
                %927 = vst [vmem:[%s277 + $0xa20] sm:$0xff] %v926
                %v928 = vld [vmem:[%s276 + $0x2888] sm:$0xff]
                %929 = vst [vmem:[%s277 + $0xa28] sm:$0xff] %v928
                %v930 = vld [vmem:[%s276 + $0x2890] sm:$0xff]
                %931 = vst [vmem:[%s277 + $0xa30] sm:$0xff] %v930
                %v932 = vld [vmem:[%s276 + $0x2898] sm:$0xff]
                %933 = vst [vmem:[%s277 + $0xa38] sm:$0xff] %v932
                %v934 = vld [vmem:[%s276 + $0x2900] sm:$0xff]
                %935 = vst [vmem:[%s277 + $0xa40] sm:$0xff] %v934
                %v936 = vld [vmem:[%s276 + $0x2908] sm:$0xff]
                %937 = vst [vmem:[%s277 + $0xa48] sm:$0xff] %v936
                %v938 = vld [vmem:[%s276 + $0x2910] sm:$0xff]
                %939 = vst [vmem:[%s277 + $0xa50] sm:$0xff] %v938
                %v940 = vld [vmem:[%s276 + $0x2918] sm:$0xff]
                %941 = vst [vmem:[%s277 + $0xa58] sm:$0xff] %v940
                %v942 = vld [vmem:[%s276 + $0x2980] sm:$0xff]
                %943 = vst [vmem:[%s277 + $0xa60] sm:$0xff] %v942
                %v944 = vld [vmem:[%s276 + $0x2988] sm:$0xff]
                %945 = vst [vmem:[%s277 + $0xa68] sm:$0xff] %v944
                %v946 = vld [vmem:[%s276 + $0x2990] sm:$0xff]
                %947 = vst [vmem:[%s277 + $0xa70] sm:$0xff] %v946
                %v948 = vld [vmem:[%s276 + $0x2998] sm:$0xff]
                %949 = vst [vmem:[%s277 + $0xa78] sm:$0xff] %v948
                %v950 = vld [vmem:[%s276 + $0x2a00] sm:$0xff]
                %951 = vst [vmem:[%s277 + $0xa80] sm:$0xff] %v950
                %v952 = vld [vmem:[%s276 + $0x2a08] sm:$0xff]
                %953 = vst [vmem:[%s277 + $0xa88] sm:$0xff] %v952
                %v954 = vld [vmem:[%s276 + $0x2a10] sm:$0xff]
                %955 = vst [vmem:[%s277 + $0xa90] sm:$0xff] %v954
                %v956 = vld [vmem:[%s276 + $0x2a18] sm:$0xff]
                %957 = vst [vmem:[%s277 + $0xa98] sm:$0xff] %v956
                %v958 = vld [vmem:[%s276 + $0x2a80] sm:$0xff]
                %959 = vst [vmem:[%s277 + $0xaa0] sm:$0xff] %v958
                %v960 = vld [vmem:[%s276 + $0x2a88] sm:$0xff]
                %961 = vst [vmem:[%s277 + $0xaa8] sm:$0xff] %v960
                %v962 = vld [vmem:[%s276 + $0x2a90] sm:$0xff]
                %963 = vst [vmem:[%s277 + $0xab0] sm:$0xff] %v962
                %v964 = vld [vmem:[%s276 + $0x2a98] sm:$0xff]
                %965 = vst [vmem:[%s277 + $0xab8] sm:$0xff] %v964
                %v966 = vld [vmem:[%s276 + $0x2b00] sm:$0xff]
                %967 = vst [vmem:[%s277 + $0xac0] sm:$0xff] %v966
                %v968 = vld [vmem:[%s276 + $0x2b08] sm:$0xff]
                %969 = vst [vmem:[%s277 + $0xac8] sm:$0xff] %v968
                %v970 = vld [vmem:[%s276 + $0x2b10] sm:$0xff]
                %971 = vst [vmem:[%s277 + $0xad0] sm:$0xff] %v970
                %v972 = vld [vmem:[%s276 + $0x2b18] sm:$0xff]
                %973 = vst [vmem:[%s277 + $0xad8] sm:$0xff] %v972
                %v974 = vld [vmem:[%s276 + $0x2b80] sm:$0xff]
                %975 = vst [vmem:[%s277 + $0xae0] sm:$0xff] %v974
                %v976 = vld [vmem:[%s276 + $0x2b88] sm:$0xff]
                %977 = vst [vmem:[%s277 + $0xae8] sm:$0xff] %v976
                %v978 = vld [vmem:[%s276 + $0x2b90] sm:$0xff]
                %979 = vst [vmem:[%s277 + $0xaf0] sm:$0xff] %v978
                %v980 = vld [vmem:[%s276 + $0x2b98] sm:$0xff]
                %981 = vst [vmem:[%s277 + $0xaf8] sm:$0xff] %v980
                %v982 = vld [vmem:[%s276 + $0x2c00] sm:$0xff]
                %983 = vst [vmem:[%s277 + $0xb00] sm:$0xff] %v982
                %v984 = vld [vmem:[%s276 + $0x2c08] sm:$0xff]
                %985 = vst [vmem:[%s277 + $0xb08] sm:$0xff] %v984
                %v986 = vld [vmem:[%s276 + $0x2c10] sm:$0xff]
                %987 = vst [vmem:[%s277 + $0xb10] sm:$0xff] %v986
                %v988 = vld [vmem:[%s276 + $0x2c18] sm:$0xff]
                %989 = vst [vmem:[%s277 + $0xb18] sm:$0xff] %v988
                %v990 = vld [vmem:[%s276 + $0x2c80] sm:$0xff]
                %991 = vst [vmem:[%s277 + $0xb20] sm:$0xff] %v990
                %v992 = vld [vmem:[%s276 + $0x2c88] sm:$0xff]
                %993 = vst [vmem:[%s277 + $0xb28] sm:$0xff] %v992
                %v994 = vld [vmem:[%s276 + $0x2c90] sm:$0xff]
                %995 = vst [vmem:[%s277 + $0xb30] sm:$0xff] %v994
                %v996 = vld [vmem:[%s276 + $0x2c98] sm:$0xff]
                %997 = vst [vmem:[%s277 + $0xb38] sm:$0xff] %v996
                %v998 = vld [vmem:[%s276 + $0x2d00] sm:$0xff]
                %999 = vst [vmem:[%s277 + $0xb40] sm:$0xff] %v998
                %v1000 = vld [vmem:[%s276 + $0x2d08] sm:$0xff]
                %1001 = vst [vmem:[%s277 + $0xb48] sm:$0xff] %v1000
                %v1002 = vld [vmem:[%s276 + $0x2d10] sm:$0xff]
                %1003 = vst [vmem:[%s277 + $0xb50] sm:$0xff] %v1002
                %v1004 = vld [vmem:[%s276 + $0x2d18] sm:$0xff]
                %1005 = vst [vmem:[%s277 + $0xb58] sm:$0xff] %v1004
                %v1006 = vld [vmem:[%s276 + $0x2d80] sm:$0xff]
                %1007 = vst [vmem:[%s277 + $0xb60] sm:$0xff] %v1006
                %v1008 = vld [vmem:[%s276 + $0x2d88] sm:$0xff]
                %1009 = vst [vmem:[%s277 + $0xb68] sm:$0xff] %v1008
                %v1010 = vld [vmem:[%s276 + $0x2d90] sm:$0xff]
                %1011 = vst [vmem:[%s277 + $0xb70] sm:$0xff] %v1010
                %v1012 = vld [vmem:[%s276 + $0x2d98] sm:$0xff]
                %1013 = vst [vmem:[%s277 + $0xb78] sm:$0xff] %v1012
                %v1014 = vld [vmem:[%s276 + $0x2e00] sm:$0xff]
                %1015 = vst [vmem:[%s277 + $0xb80] sm:$0xff] %v1014
                %v1016 = vld [vmem:[%s276 + $0x2e08] sm:$0xff]
                %1017 = vst [vmem:[%s277 + $0xb88] sm:$0xff] %v1016
                %v1018 = vld [vmem:[%s276 + $0x2e10] sm:$0xff]
                %1019 = vst [vmem:[%s277 + $0xb90] sm:$0xff] %v1018
                %v1020 = vld [vmem:[%s276 + $0x2e18] sm:$0xff]
                %1021 = vst [vmem:[%s277 + $0xb98] sm:$0xff] %v1020
                %v1022 = vld [vmem:[%s276 + $0x2e80] sm:$0xff]
                %1023 = vst [vmem:[%s277 + $0xba0] sm:$0xff] %v1022
                %v1024 = vld [vmem:[%s276 + $0x2e88] sm:$0xff]
                %1025 = vst [vmem:[%s277 + $0xba8] sm:$0xff] %v1024
                %v1026 = vld [vmem:[%s276 + $0x2e90] sm:$0xff]
                %1027 = vst [vmem:[%s277 + $0xbb0] sm:$0xff] %v1026
                %v1028 = vld [vmem:[%s276 + $0x2e98] sm:$0xff]
                %1029 = vst [vmem:[%s277 + $0xbb8] sm:$0xff] %v1028
                %v1030 = vld [vmem:[%s276 + $0x2f00] sm:$0xff]
                %1031 = vst [vmem:[%s277 + $0xbc0] sm:$0xff] %v1030
                %v1032 = vld [vmem:[%s276 + $0x2f08] sm:$0xff]
                %1033 = vst [vmem:[%s277 + $0xbc8] sm:$0xff] %v1032
                %v1034 = vld [vmem:[%s276 + $0x2f10] sm:$0xff]
                %1035 = vst [vmem:[%s277 + $0xbd0] sm:$0xff] %v1034
                %v1036 = vld [vmem:[%s276 + $0x2f18] sm:$0xff]
                %1037 = vst [vmem:[%s277 + $0xbd8] sm:$0xff] %v1036
                %v1038 = vld [vmem:[%s276 + $0x2f80] sm:$0xff]
                %1039 = vst [vmem:[%s277 + $0xbe0] sm:$0xff] %v1038
                %v1040 = vld [vmem:[%s276 + $0x2f88] sm:$0xff]
                %1041 = vst [vmem:[%s277 + $0xbe8] sm:$0xff] %v1040
                %v1042 = vld [vmem:[%s276 + $0x2f90] sm:$0xff]
                %1043 = vst [vmem:[%s277 + $0xbf0] sm:$0xff] %v1042
                %v1044 = vld [vmem:[%s276 + $0x2f98] sm:$0xff]
                %1045 = vst [vmem:[%s277 + $0xbf8] sm:$0xff] %v1044
                %v1046 = vld [vmem:[%s276 + $0x3000] sm:$0xff]
                %1047 = vst [vmem:[%s277 + $0xc00] sm:$0xff] %v1046
                %v1048 = vld [vmem:[%s276 + $0x3008] sm:$0xff]
                %1049 = vst [vmem:[%s277 + $0xc08] sm:$0xff] %v1048
                %v1050 = vld [vmem:[%s276 + $0x3010] sm:$0xff]
                %1051 = vst [vmem:[%s277 + $0xc10] sm:$0xff] %v1050
                %v1052 = vld [vmem:[%s276 + $0x3018] sm:$0xff]
                %1053 = vst [vmem:[%s277 + $0xc18] sm:$0xff] %v1052
                %v1054 = vld [vmem:[%s276 + $0x3080] sm:$0xff]
                %1055 = vst [vmem:[%s277 + $0xc20] sm:$0xff] %v1054
                %v1056 = vld [vmem:[%s276 + $0x3088] sm:$0xff]
                %1057 = vst [vmem:[%s277 + $0xc28] sm:$0xff] %v1056
                %v1058 = vld [vmem:[%s276 + $0x3090] sm:$0xff]
                %1059 = vst [vmem:[%s277 + $0xc30] sm:$0xff] %v1058
                %v1060 = vld [vmem:[%s276 + $0x3098] sm:$0xff]
                %1061 = vst [vmem:[%s277 + $0xc38] sm:$0xff] %v1060
                %v1062 = vld [vmem:[%s276 + $0x3100] sm:$0xff]
                %1063 = vst [vmem:[%s277 + $0xc40] sm:$0xff] %v1062
                %v1064 = vld [vmem:[%s276 + $0x3108] sm:$0xff]
                %1065 = vst [vmem:[%s277 + $0xc48] sm:$0xff] %v1064
                %v1066 = vld [vmem:[%s276 + $0x3110] sm:$0xff]
                %1067 = vst [vmem:[%s277 + $0xc50] sm:$0xff] %v1066
                %v1068 = vld [vmem:[%s276 + $0x3118] sm:$0xff]
                %1069 = vst [vmem:[%s277 + $0xc58] sm:$0xff] %v1068
                %v1070 = vld [vmem:[%s276 + $0x3180] sm:$0xff]
                %1071 = vst [vmem:[%s277 + $0xc60] sm:$0xff] %v1070
                %v1072 = vld [vmem:[%s276 + $0x3188] sm:$0xff]
                %1073 = vst [vmem:[%s277 + $0xc68] sm:$0xff] %v1072
                %v1074 = vld [vmem:[%s276 + $0x3190] sm:$0xff]
                %1075 = vst [vmem:[%s277 + $0xc70] sm:$0xff] %v1074
                %v1076 = vld [vmem:[%s276 + $0x3198] sm:$0xff]
                %1077 = vst [vmem:[%s277 + $0xc78] sm:$0xff] %v1076
                %v1078 = vld [vmem:[%s276 + $0x3200] sm:$0xff]
                %1079 = vst [vmem:[%s277 + $0xc80] sm:$0xff] %v1078
                %v1080 = vld [vmem:[%s276 + $0x3208] sm:$0xff]
                %1081 = vst [vmem:[%s277 + $0xc88] sm:$0xff] %v1080
                %v1082 = vld [vmem:[%s276 + $0x3210] sm:$0xff]
                %1083 = vst [vmem:[%s277 + $0xc90] sm:$0xff] %v1082
                %v1084 = vld [vmem:[%s276 + $0x3218] sm:$0xff]
                %1085 = vst [vmem:[%s277 + $0xc98] sm:$0xff] %v1084
                %v1086 = vld [vmem:[%s276 + $0x3280] sm:$0xff]
                %1087 = vst [vmem:[%s277 + $0xca0] sm:$0xff] %v1086
                %v1088 = vld [vmem:[%s276 + $0x3288] sm:$0xff]
                %1089 = vst [vmem:[%s277 + $0xca8] sm:$0xff] %v1088
                %v1090 = vld [vmem:[%s276 + $0x3290] sm:$0xff]
                %1091 = vst [vmem:[%s277 + $0xcb0] sm:$0xff] %v1090
                %v1092 = vld [vmem:[%s276 + $0x3298] sm:$0xff]
                %1093 = vst [vmem:[%s277 + $0xcb8] sm:$0xff] %v1092
                %v1094 = vld [vmem:[%s276 + $0x3300] sm:$0xff]
                %1095 = vst [vmem:[%s277 + $0xcc0] sm:$0xff] %v1094
                %v1096 = vld [vmem:[%s276 + $0x3308] sm:$0xff]
                %1097 = vst [vmem:[%s277 + $0xcc8] sm:$0xff] %v1096
                %v1098 = vld [vmem:[%s276 + $0x3310] sm:$0xff]
                %1099 = vst [vmem:[%s277 + $0xcd0] sm:$0xff] %v1098
                %v1100 = vld [vmem:[%s276 + $0x3318] sm:$0xff]
                %1101 = vst [vmem:[%s277 + $0xcd8] sm:$0xff] %v1100
                %v1102 = vld [vmem:[%s276 + $0x3380] sm:$0xff]
                %1103 = vst [vmem:[%s277 + $0xce0] sm:$0xff] %v1102
                %v1104 = vld [vmem:[%s276 + $0x3388] sm:$0xff]
                %1105 = vst [vmem:[%s277 + $0xce8] sm:$0xff] %v1104
                %v1106 = vld [vmem:[%s276 + $0x3390] sm:$0xff]
                %1107 = vst [vmem:[%s277 + $0xcf0] sm:$0xff] %v1106
                %v1108 = vld [vmem:[%s276 + $0x3398] sm:$0xff]
                %1109 = vst [vmem:[%s277 + $0xcf8] sm:$0xff] %v1108
                %v1110 = vld [vmem:[%s276 + $0x3400] sm:$0xff]
                %1111 = vst [vmem:[%s277 + $0xd00] sm:$0xff] %v1110
                %v1112 = vld [vmem:[%s276 + $0x3408] sm:$0xff]
                %1113 = vst [vmem:[%s277 + $0xd08] sm:$0xff] %v1112
                %v1114 = vld [vmem:[%s276 + $0x3410] sm:$0xff]
                %1115 = vst [vmem:[%s277 + $0xd10] sm:$0xff] %v1114
                %v1116 = vld [vmem:[%s276 + $0x3418] sm:$0xff]
                %1117 = vst [vmem:[%s277 + $0xd18] sm:$0xff] %v1116
                %v1118 = vld [vmem:[%s276 + $0x3480] sm:$0xff]
                %1119 = vst [vmem:[%s277 + $0xd20] sm:$0xff] %v1118
                %v1120 = vld [vmem:[%s276 + $0x3488] sm:$0xff]
                %1121 = vst [vmem:[%s277 + $0xd28] sm:$0xff] %v1120
                %v1122 = vld [vmem:[%s276 + $0x3490] sm:$0xff]
                %1123 = vst [vmem:[%s277 + $0xd30] sm:$0xff] %v1122
                %v1124 = vld [vmem:[%s276 + $0x3498] sm:$0xff]
                %1125 = vst [vmem:[%s277 + $0xd38] sm:$0xff] %v1124
                %v1126 = vld [vmem:[%s276 + $0x3500] sm:$0xff]
                %1127 = vst [vmem:[%s277 + $0xd40] sm:$0xff] %v1126
                %v1128 = vld [vmem:[%s276 + $0x3508] sm:$0xff]
                %1129 = vst [vmem:[%s277 + $0xd48] sm:$0xff] %v1128
                %v1130 = vld [vmem:[%s276 + $0x3510] sm:$0xff]
                %1131 = vst [vmem:[%s277 + $0xd50] sm:$0xff] %v1130
                %v1132 = vld [vmem:[%s276 + $0x3518] sm:$0xff]
                %1133 = vst [vmem:[%s277 + $0xd58] sm:$0xff] %v1132
                %v1134 = vld [vmem:[%s276 + $0x3580] sm:$0xff]
                %1135 = vst [vmem:[%s277 + $0xd60] sm:$0xff] %v1134
                %v1136 = vld [vmem:[%s276 + $0x3588] sm:$0xff]
                %1137 = vst [vmem:[%s277 + $0xd68] sm:$0xff] %v1136
                %v1138 = vld [vmem:[%s276 + $0x3590] sm:$0xff]
                %1139 = vst [vmem:[%s277 + $0xd70] sm:$0xff] %v1138
                %v1140 = vld [vmem:[%s276 + $0x3598] sm:$0xff]
                %1141 = vst [vmem:[%s277 + $0xd78] sm:$0xff] %v1140
                %v1142 = vld [vmem:[%s276 + $0x3600] sm:$0xff]
                %1143 = vst [vmem:[%s277 + $0xd80] sm:$0xff] %v1142
                %v1144 = vld [vmem:[%s276 + $0x3608] sm:$0xff]
                %1145 = vst [vmem:[%s277 + $0xd88] sm:$0xff] %v1144
                %v1146 = vld [vmem:[%s276 + $0x3610] sm:$0xff]
                %1147 = vst [vmem:[%s277 + $0xd90] sm:$0xff] %v1146
                %v1148 = vld [vmem:[%s276 + $0x3618] sm:$0xff]
                %1149 = vst [vmem:[%s277 + $0xd98] sm:$0xff] %v1148
                %v1150 = vld [vmem:[%s276 + $0x3680] sm:$0xff]
                %1151 = vst [vmem:[%s277 + $0xda0] sm:$0xff] %v1150
                %v1152 = vld [vmem:[%s276 + $0x3688] sm:$0xff]
                %1153 = vst [vmem:[%s277 + $0xda8] sm:$0xff] %v1152
                %v1154 = vld [vmem:[%s276 + $0x3690] sm:$0xff]
                %1155 = vst [vmem:[%s277 + $0xdb0] sm:$0xff] %v1154
                %v1156 = vld [vmem:[%s276 + $0x3698] sm:$0xff]
                %1157 = vst [vmem:[%s277 + $0xdb8] sm:$0xff] %v1156
                %v1158 = vld [vmem:[%s276 + $0x3700] sm:$0xff]
                %1159 = vst [vmem:[%s277 + $0xdc0] sm:$0xff] %v1158
                %v1160 = vld [vmem:[%s276 + $0x3708] sm:$0xff]
                %1161 = vst [vmem:[%s277 + $0xdc8] sm:$0xff] %v1160
                %v1162 = vld [vmem:[%s276 + $0x3710] sm:$0xff]
                %1163 = vst [vmem:[%s277 + $0xdd0] sm:$0xff] %v1162
                %v1164 = vld [vmem:[%s276 + $0x3718] sm:$0xff]
                %1165 = vst [vmem:[%s277 + $0xdd8] sm:$0xff] %v1164
                %v1166 = vld [vmem:[%s276 + $0x3780] sm:$0xff]
                %1167 = vst [vmem:[%s277 + $0xde0] sm:$0xff] %v1166
                %v1168 = vld [vmem:[%s276 + $0x3788] sm:$0xff]
                %1169 = vst [vmem:[%s277 + $0xde8] sm:$0xff] %v1168
                %v1170 = vld [vmem:[%s276 + $0x3790] sm:$0xff]
                %1171 = vst [vmem:[%s277 + $0xdf0] sm:$0xff] %v1170
                %v1172 = vld [vmem:[%s276 + $0x3798] sm:$0xff]
                %1173 = vst [vmem:[%s277 + $0xdf8] sm:$0xff] %v1172
                %v1174 = vld [vmem:[%s276 + $0x3800] sm:$0xff]
                %1175 = vst [vmem:[%s277 + $0xe00] sm:$0xff] %v1174
                %v1176 = vld [vmem:[%s276 + $0x3808] sm:$0xff]
                %1177 = vst [vmem:[%s277 + $0xe08] sm:$0xff] %v1176
                %v1178 = vld [vmem:[%s276 + $0x3810] sm:$0xff]
                %1179 = vst [vmem:[%s277 + $0xe10] sm:$0xff] %v1178
                %v1180 = vld [vmem:[%s276 + $0x3818] sm:$0xff]
                %1181 = vst [vmem:[%s277 + $0xe18] sm:$0xff] %v1180
                %v1182 = vld [vmem:[%s276 + $0x3880] sm:$0xff]
                %1183 = vst [vmem:[%s277 + $0xe20] sm:$0xff] %v1182
                %v1184 = vld [vmem:[%s276 + $0x3888] sm:$0xff]
                %1185 = vst [vmem:[%s277 + $0xe28] sm:$0xff] %v1184
                %v1186 = vld [vmem:[%s276 + $0x3890] sm:$0xff]
                %1187 = vst [vmem:[%s277 + $0xe30] sm:$0xff] %v1186
                %v1188 = vld [vmem:[%s276 + $0x3898] sm:$0xff]
                %1189 = vst [vmem:[%s277 + $0xe38] sm:$0xff] %v1188
                %v1190 = vld [vmem:[%s276 + $0x3900] sm:$0xff]
                %1191 = vst [vmem:[%s277 + $0xe40] sm:$0xff] %v1190
                %v1192 = vld [vmem:[%s276 + $0x3908] sm:$0xff]
                %1193 = vst [vmem:[%s277 + $0xe48] sm:$0xff] %v1192
                %v1194 = vld [vmem:[%s276 + $0x3910] sm:$0xff]
                %1195 = vst [vmem:[%s277 + $0xe50] sm:$0xff] %v1194
                %v1196 = vld [vmem:[%s276 + $0x3918] sm:$0xff]
                %1197 = vst [vmem:[%s277 + $0xe58] sm:$0xff] %v1196
                %v1198 = vld [vmem:[%s276 + $0x3980] sm:$0xff]
                %1199 = vst [vmem:[%s277 + $0xe60] sm:$0xff] %v1198
                %v1200 = vld [vmem:[%s276 + $0x3988] sm:$0xff]
                %1201 = vst [vmem:[%s277 + $0xe68] sm:$0xff] %v1200
                %v1202 = vld [vmem:[%s276 + $0x3990] sm:$0xff]
                %1203 = vst [vmem:[%s277 + $0xe70] sm:$0xff] %v1202
                %v1204 = vld [vmem:[%s276 + $0x3998] sm:$0xff]
                %1205 = vst [vmem:[%s277 + $0xe78] sm:$0xff] %v1204
                %v1206 = vld [vmem:[%s276 + $0x3a00] sm:$0xff]
                %1207 = vst [vmem:[%s277 + $0xe80] sm:$0xff] %v1206
                %v1208 = vld [vmem:[%s276 + $0x3a08] sm:$0xff]
                %1209 = vst [vmem:[%s277 + $0xe88] sm:$0xff] %v1208
                %v1210 = vld [vmem:[%s276 + $0x3a10] sm:$0xff]
                %1211 = vst [vmem:[%s277 + $0xe90] sm:$0xff] %v1210
                %v1212 = vld [vmem:[%s276 + $0x3a18] sm:$0xff]
                %1213 = vst [vmem:[%s277 + $0xe98] sm:$0xff] %v1212
                %v1214 = vld [vmem:[%s276 + $0x3a80] sm:$0xff]
                %1215 = vst [vmem:[%s277 + $0xea0] sm:$0xff] %v1214
                %v1216 = vld [vmem:[%s276 + $0x3a88] sm:$0xff]
                %1217 = vst [vmem:[%s277 + $0xea8] sm:$0xff] %v1216
                %v1218 = vld [vmem:[%s276 + $0x3a90] sm:$0xff]
                %1219 = vst [vmem:[%s277 + $0xeb0] sm:$0xff] %v1218
                %v1220 = vld [vmem:[%s276 + $0x3a98] sm:$0xff]
                %1221 = vst [vmem:[%s277 + $0xeb8] sm:$0xff] %v1220
                %v1222 = vld [vmem:[%s276 + $0x3b00] sm:$0xff]
                %1223 = vst [vmem:[%s277 + $0xec0] sm:$0xff] %v1222
                %v1224 = vld [vmem:[%s276 + $0x3b08] sm:$0xff]
                %1225 = vst [vmem:[%s277 + $0xec8] sm:$0xff] %v1224
                %v1226 = vld [vmem:[%s276 + $0x3b10] sm:$0xff]
                %1227 = vst [vmem:[%s277 + $0xed0] sm:$0xff] %v1226
                %v1228 = vld [vmem:[%s276 + $0x3b18] sm:$0xff]
                %1229 = vst [vmem:[%s277 + $0xed8] sm:$0xff] %v1228
                %v1230 = vld [vmem:[%s276 + $0x3b80] sm:$0xff]
                %1231 = vst [vmem:[%s277 + $0xee0] sm:$0xff] %v1230
                %v1232 = vld [vmem:[%s276 + $0x3b88] sm:$0xff]
                %1233 = vst [vmem:[%s277 + $0xee8] sm:$0xff] %v1232
                %v1234 = vld [vmem:[%s276 + $0x3b90] sm:$0xff]
                %1235 = vst [vmem:[%s277 + $0xef0] sm:$0xff] %v1234
                %v1236 = vld [vmem:[%s276 + $0x3b98] sm:$0xff]
                %1237 = vst [vmem:[%s277 + $0xef8] sm:$0xff] %v1236
                %v1238 = vld [vmem:[%s276 + $0x3c00] sm:$0xff]
                %1239 = vst [vmem:[%s277 + $0xf00] sm:$0xff] %v1238
                %v1240 = vld [vmem:[%s276 + $0x3c08] sm:$0xff]
                %1241 = vst [vmem:[%s277 + $0xf08] sm:$0xff] %v1240
                %v1242 = vld [vmem:[%s276 + $0x3c10] sm:$0xff]
                %1243 = vst [vmem:[%s277 + $0xf10] sm:$0xff] %v1242
                %v1244 = vld [vmem:[%s276 + $0x3c18] sm:$0xff]
                %1245 = vst [vmem:[%s277 + $0xf18] sm:$0xff] %v1244
                %v1246 = vld [vmem:[%s276 + $0x3c80] sm:$0xff]
                %1247 = vst [vmem:[%s277 + $0xf20] sm:$0xff] %v1246
                %v1248 = vld [vmem:[%s276 + $0x3c88] sm:$0xff]
                %1249 = vst [vmem:[%s277 + $0xf28] sm:$0xff] %v1248
                %v1250 = vld [vmem:[%s276 + $0x3c90] sm:$0xff]
                %1251 = vst [vmem:[%s277 + $0xf30] sm:$0xff] %v1250
                %v1252 = vld [vmem:[%s276 + $0x3c98] sm:$0xff]
                %1253 = vst [vmem:[%s277 + $0xf38] sm:$0xff] %v1252
                %v1254 = vld [vmem:[%s276 + $0x3d00] sm:$0xff]
                %1255 = vst [vmem:[%s277 + $0xf40] sm:$0xff] %v1254
                %v1256 = vld [vmem:[%s276 + $0x3d08] sm:$0xff]
                %1257 = vst [vmem:[%s277 + $0xf48] sm:$0xff] %v1256
                %v1258 = vld [vmem:[%s276 + $0x3d10] sm:$0xff]
                %1259 = vst [vmem:[%s277 + $0xf50] sm:$0xff] %v1258
                %v1260 = vld [vmem:[%s276 + $0x3d18] sm:$0xff]
                %1261 = vst [vmem:[%s277 + $0xf58] sm:$0xff] %v1260
                %v1262 = vld [vmem:[%s276 + $0x3d80] sm:$0xff]
                %1263 = vst [vmem:[%s277 + $0xf60] sm:$0xff] %v1262
                %v1264 = vld [vmem:[%s276 + $0x3d88] sm:$0xff]
                %1265 = vst [vmem:[%s277 + $0xf68] sm:$0xff] %v1264
                %v1266 = vld [vmem:[%s276 + $0x3d90] sm:$0xff]
                %1267 = vst [vmem:[%s277 + $0xf70] sm:$0xff] %v1266
                %v1268 = vld [vmem:[%s276 + $0x3d98] sm:$0xff]
                %1269 = vst [vmem:[%s277 + $0xf78] sm:$0xff] %v1268
                %v1270 = vld [vmem:[%s276 + $0x3e00] sm:$0xff]
                %1271 = vst [vmem:[%s277 + $0xf80] sm:$0xff] %v1270
                %v1272 = vld [vmem:[%s276 + $0x3e08] sm:$0xff]
                %1273 = vst [vmem:[%s277 + $0xf88] sm:$0xff] %v1272
                %v1274 = vld [vmem:[%s276 + $0x3e10] sm:$0xff]
                %1275 = vst [vmem:[%s277 + $0xf90] sm:$0xff] %v1274
                %v1276 = vld [vmem:[%s276 + $0x3e18] sm:$0xff]
                %1277 = vst [vmem:[%s277 + $0xf98] sm:$0xff] %v1276
                %v1278 = vld [vmem:[%s276 + $0x3e80] sm:$0xff]
                %1279 = vst [vmem:[%s277 + $0xfa0] sm:$0xff] %v1278
                %v1280 = vld [vmem:[%s276 + $0x3e88] sm:$0xff]
                %1281 = vst [vmem:[%s277 + $0xfa8] sm:$0xff] %v1280
                %v1282 = vld [vmem:[%s276 + $0x3e90] sm:$0xff]
                %1283 = vst [vmem:[%s277 + $0xfb0] sm:$0xff] %v1282
                %v1284 = vld [vmem:[%s276 + $0x3e98] sm:$0xff]
                %1285 = vst [vmem:[%s277 + $0xfb8] sm:$0xff] %v1284
                %v1286 = vld [vmem:[%s276 + $0x3f00] sm:$0xff]
                %1287 = vst [vmem:[%s277 + $0xfc0] sm:$0xff] %v1286
                %v1288 = vld [vmem:[%s276 + $0x3f08] sm:$0xff]
                %1289 = vst [vmem:[%s277 + $0xfc8] sm:$0xff] %v1288
                %v1290 = vld [vmem:[%s276 + $0x3f10] sm:$0xff]
                %1291 = vst [vmem:[%s277 + $0xfd0] sm:$0xff] %v1290
                %v1292 = vld [vmem:[%s276 + $0x3f18] sm:$0xff]
                %1293 = vst [vmem:[%s277 + $0xfd8] sm:$0xff] %v1292
                %v1294 = vld [vmem:[%s276 + $0x3f80] sm:$0xff]
                %1295 = vst [vmem:[%s277 + $0xfe0] sm:$0xff] %v1294
                %v1296 = vld [vmem:[%s276 + $0x3f88] sm:$0xff]
                %1297 = vst [vmem:[%s277 + $0xfe8] sm:$0xff] %v1296
                %v1298 = vld [vmem:[%s276 + $0x3f90] sm:$0xff]
                %1299 = vst [vmem:[%s277 + $0xff0] sm:$0xff] %v1298
                %v1300 = vld [vmem:[%s276 + $0x3f98] sm:$0xff]
                %1301 = vst [vmem:[%s277 + $0xff8] sm:$0xff] %v1300
              $region49: #{embed_amp.1} parent=43 // loop_footer
                %s275 = sadd.s32 1, %s271
              $region50: #{embed_amp.1} parent=43 // loop_footer_branch
                %270 = sbr.rel target = $region46
              $region51: #{embed_amp.1} parent=43 // loop_exit
                _
            $region44: #{embed_amp.1} parent=39 // pred_fallthru
              _
            // Predicated region
            $region52: #{embed_amp.1} parent=39 // pred_check
              _
            $region53: #{embed_amp.1} parent=39 // pred_check_branch
              %1303 = sbr.rel target = $region55
            $region54: #{embed_amp.1} parent=39 // pred_region
              _
            $region55: #{embed_amp.1} parent=39 // pred_fallthru
              _
          $region40: #{embed_amp.1} parent=35 // pred_fallthru
            _
          %1304 = vnop
        $region36: #{embed_amp.1} parent=31 // pred_fallthru
          _
        // Predicated region
        $region56: #{embed_amp.1} parent=31 // pred_check
          %p1305 = pneg %p142
        $region57: #{embed_amp.1} parent=31 // pred_check_branch
          %1307 = sbr.rel (%p1305) target = $region59
        $region58: #{embed_amp.1} parent=31 // pred_region
          %s1308 = smul.u32 4, %s24
          %p1309 = scmp.lt.s32.totalorder %s1308, 15
          %s1310 = scalar_select %p1309, %s1308, 15
          %s1311 = scalar_lea.vmem %s4, %s1310
          %s1312 = smul.u32 4, %s24
        $region59: #{embed_amp.1} parent=31 // pred_fallthru
          _
        // Predicated region
        $region60: #{embed_amp.1} parent=31 // pred_check
          %p1313 = pneg %p168
        $region61: #{embed_amp.1} parent=31 // pred_check_branch
          %1315 = sbr.rel (%p1313) target = $region63
        $region62: #{embed_amp.1} parent=31 // pred_region
          %s1316 = sand.u32 %s158, 1
          %s1317 = scalar_lea.sflag [#allocation6], %s1316
          %s1318 = sand.u32 %s158, 1
          %s1319 = smul.addr %s1318, 8192
          %s1320 = scalar_lea.vmem [#allocation5], %s1319
          %s1321 = smul.u32 64, %s24
          %s1323 = ssub.s32 131072, 131072
          %1324 = vsyncadd %s1317, %s1323
          %s1325 = smul.addr %s1321, 16
          %s1326 = smul.addr %s1325, 128
          %s1327 = scalar_lea.hbm %s5, %s1326
          %s1328 = sshll.u32 %s1320, 4
          %s1329 = int_to_ptr.vmem [resolvable:$true] %s1328
          %1334 = dma.hbm_to_vmem [thread:$0]  %s1327, 131072, %s1329, %s1317, 2048, 2048, 128
        $region63: #{embed_amp.1} parent=31 // pred_fallthru
          _
      $region32: #{embed_amp.1} parent=5 // pred_fallthru
        _
      %p1335 = scmp.le.s32.totalorder 1, %s16
      %p1336 = scmp.lt.s32.totalorder %s16, 5
      %p1337 = pnand %p1335, %p1336
      %p1338 = pneg %p1337
      // Predicated region
      $region64: #{embed_amp.1} parent=5 // pred_check
        _
      $region65: #{embed_amp.1} parent=5 // pred_check_branch
        %1340 = sbr.rel (%p1337) target = $region67
      $region66: #{embed_amp.1} parent=5 // pred_region
        %s1341 = ssub.s32 %s16, 1
        %s1342 = sand.u32 %s109, 1
        %s1343 = sand.u32 %s109, 1
        %s1344 = smul.addr %s1343, 4096
        %s1345 = scalar_lea.vmem [#allocation4], %s1344
        // Predicated region
        $region68: #{embed_amp.1} parent=66 // pred_check
          %p1346 = pneg %p122
        $region69: #{embed_amp.1} parent=66 // pred_check_branch
          %1348 = sbr.rel (%p1346) target = $region71
        $region70: #{embed_amp.1} parent=66 // pred_region
          _
        $region71: #{embed_amp.1} parent=66 // pred_fallthru
          _
        %s1349 = sand.u32 %s161, 1
        %s1350 = scalar_lea.sflag [#allocation6], %s1349
        %s1351 = sand.u32 %s161, 1
        %s1352 = smul.addr %s1351, 8192
        %s1353 = scalar_lea.vmem [#allocation5], %s1352
        // Predicated region
        $region72: #{embed_amp.1} parent=66 // pred_check
          %p1354 = pneg %p174
        $region73: #{embed_amp.1} parent=66 // pred_check_branch
          %1356 = sbr.rel (%p1354) target = $region75
        $region74: #{embed_amp.1} parent=66 // pred_region
          %1357 = dma.done %s1350, 131072
        $region75: #{embed_amp.1} parent=66 // pred_fallthru
          _
        %p1358 = scmp.lt.s32.totalorder %s25, 0
        %s1359 = scalar_select %p1358, %s25, 0
        %s1360 = smul.addr %s1359, 8
        %s1361 = scalar_lea.vmem %s0, %s1360
        %p1362 = pneg %p54
        %p1363 = pneg %p51
        %p1364 = pneg %p75
        %p1365 = pneg %p72
        %p1366 = pneg %p96
        %p1367 = pneg %p93
        %s1368 = sand.u32 %s109, 1
        %s1369 = sand.u32 %s109, 1
        %s1370 = smul.addr %s1369, 4096
        %s1371 = scalar_lea.vmem [#allocation4], %s1370
        %p1372 = pneg %p122
        %p1373 = pneg %p119
        %s1374 = smul.u32 4, %s26
        %p1375 = scmp.lt.s32.totalorder %s1374, 15
        %s1376 = scalar_select %p1375, %s1374, 15
        %s1377 = scalar_lea.vmem %s4, %s1376
        %p1378 = pneg %p148
        %p1379 = pneg %p145
        %s1380 = sand.u32 %s161, 1
        %s1381 = scalar_lea.sflag [#allocation6], %s1380
        %s1382 = sand.u32 %s161, 1
        %s1383 = smul.addr %s1382, 8192
        %s1384 = scalar_lea.vmem [#allocation5], %s1383
        %p1385 = pneg %p174
        %p1386 = pneg %p171
        %p1387 = pneg %p195
        %p1388 = pneg %p192
        %p1389 = pneg %p221
        %p1390 = pneg %p218
        %p1391 = scmp.lt.s32.totalorder %s25, 0
        %s1392 = scalar_select %p1391, %s25, 0
        %s1393 = smul.addr %s1392, 16
        %s1394 = smul.addr %s1393, 8
        %s1395 = scalar_lea.vmem %s7, %s1394
        %p1396 = scmp.lt.s32.totalorder %s25, 0
        %s1397 = scalar_select %p1396, %s25, 0
        %s1398 = smul.addr %s1397, 8
        %s1399 = scalar_lea.vmem %s0, %s1398
        %s1400 = smul.u32 4, %s26
        %s1401 = smul.u32 4, %s26
        %p1402 = scmp.lt.s32.totalorder %s1401, 15
        %s1403 = scalar_select %p1402, %s1401, 15
        %s1404 = scalar_lea.vmem %s4, %s1403
        %s1405 = smul.u32 4, %s26
        %s1406 = smul.u32 64, %s26
        %p1407 = scmp.lt.s32.totalorder %s25, 0
        %s1408 = scalar_select %p1407, %s25, 0
        %s1409 = smul.addr %s1408, 16
        %s1410 = smul.addr %s1409, 8
        %s1411 = scalar_lea.vmem %s7, %s1410
        %p1412 = scmp.eq.s32.totalorder %s26, 0
        // Predicated region
        $region76: #{embed_amp.1} parent=66 // pred_check
          %p1413 = pneg %p1412
        $region77: #{embed_amp.1} parent=66 // pred_check_branch
          %1415 = sbr.rel (%p1413) target = $region79
        $region78: #{embed_amp.1} parent=66 // pred_region
          %v1416 = vld [vmem:[%s1399] sm:$0xff]
          %v1417 = vld [vmem:[%s1] sm:$0xff]
          %v1418 = vld [vmem:[%s1 + $0x8] sm:$0xff]
          %v1419 = vld [vmem:[%s1 + $0x10] sm:$0xff]
          %v1420 = vld [vmem:[%s1 + $0x18] sm:$0xff]
          %v1421 = vld [vmem:[%s1 + $0x20] sm:$0xff]
          %v1422 = vld [vmem:[%s1 + $0x28] sm:$0xff]
          %v1423 = vld [vmem:[%s1 + $0x30] sm:$0xff]
          %v1424 = vld [vmem:[%s1 + $0x38] sm:$0xff]
          %v1425 = vld [vmem:[%s1 + $0x40] sm:$0xff]
          %v1426 = vld [vmem:[%s1 + $0x48] sm:$0xff]
          %v1427 = vld [vmem:[%s1 + $0x50] sm:$0xff]
          %v1428 = vld [vmem:[%s1 + $0x58] sm:$0xff]
          %v1429 = vld [vmem:[%s1 + $0x60] sm:$0xff]
          %v1430 = vld [vmem:[%s1 + $0x68] sm:$0xff]
          %v1431 = vld [vmem:[%s1 + $0x70] sm:$0xff]
          %v1432 = vld [vmem:[%s1 + $0x78] sm:$0xff]
          %v1433 = vld [vmem:[%s1 + $0x80] sm:$0xff]
          %v1434 = vld [vmem:[%s1 + $0x88] sm:$0xff]
          %v1435 = vld [vmem:[%s1 + $0x90] sm:$0xff]
          %v1436 = vld [vmem:[%s1 + $0x98] sm:$0xff]
          %v1437 = vld [vmem:[%s1 + $0xa0] sm:$0xff]
          %v1438 = vld [vmem:[%s1 + $0xa8] sm:$0xff]
          %v1439 = vld [vmem:[%s1 + $0xb0] sm:$0xff]
          %v1440 = vld [vmem:[%s1 + $0xb8] sm:$0xff]
          %v1441 = vld [vmem:[%s1 + $0xc0] sm:$0xff]
          %v1442 = vld [vmem:[%s1 + $0xc8] sm:$0xff]
          %v1443 = vld [vmem:[%s1 + $0xd0] sm:$0xff]
          %v1444 = vld [vmem:[%s1 + $0xd8] sm:$0xff]
          %v1445 = vld [vmem:[%s1 + $0xe0] sm:$0xff]
          %v1446 = vld [vmem:[%s1 + $0xe8] sm:$0xff]
          %v1447 = vld [vmem:[%s1 + $0xf0] sm:$0xff]
          %v1448 = vld [vmem:[%s1 + $0xf8] sm:$0xff]
          %v1449 = vld [vmem:[%s1 + $0x100] sm:$0xff]
          %v1450 = vld [vmem:[%s1 + $0x108] sm:$0xff]
          %v1451 = vld [vmem:[%s1 + $0x110] sm:$0xff]
          %v1452 = vld [vmem:[%s1 + $0x118] sm:$0xff]
          %v1453 = vld [vmem:[%s1 + $0x120] sm:$0xff]
          %v1454 = vld [vmem:[%s1 + $0x128] sm:$0xff]
          %v1455 = vld [vmem:[%s1 + $0x130] sm:$0xff]
          %v1456 = vld [vmem:[%s1 + $0x138] sm:$0xff]
          %v1457 = vld [vmem:[%s1 + $0x140] sm:$0xff]
          %v1458 = vld [vmem:[%s1 + $0x148] sm:$0xff]
          %v1459 = vld [vmem:[%s1 + $0x150] sm:$0xff]
          %v1460 = vld [vmem:[%s1 + $0x158] sm:$0xff]
          %v1461 = vld [vmem:[%s1 + $0x160] sm:$0xff]
          %v1462 = vld [vmem:[%s1 + $0x168] sm:$0xff]
          %v1463 = vld [vmem:[%s1 + $0x170] sm:$0xff]
          %v1464 = vld [vmem:[%s1 + $0x178] sm:$0xff]
          %v1465 = vld [vmem:[%s1 + $0x180] sm:$0xff]
          %v1466 = vld [vmem:[%s1 + $0x188] sm:$0xff]
          %v1467 = vld [vmem:[%s1 + $0x190] sm:$0xff]
          %v1468 = vld [vmem:[%s1 + $0x198] sm:$0xff]
          %v1469 = vld [vmem:[%s1 + $0x1a0] sm:$0xff]
          %v1470 = vld [vmem:[%s1 + $0x1a8] sm:$0xff]
          %v1471 = vld [vmem:[%s1 + $0x1b0] sm:$0xff]
          %v1472 = vld [vmem:[%s1 + $0x1b8] sm:$0xff]
          %v1473 = vld [vmem:[%s1 + $0x1c0] sm:$0xff]
          %v1474 = vld [vmem:[%s1 + $0x1c8] sm:$0xff]
          %v1475 = vld [vmem:[%s1 + $0x1d0] sm:$0xff]
          %v1476 = vld [vmem:[%s1 + $0x1d8] sm:$0xff]
          %v1477 = vld [vmem:[%s1 + $0x1e0] sm:$0xff]
          %v1478 = vld [vmem:[%s1 + $0x1e8] sm:$0xff]
          %v1479 = vld [vmem:[%s1 + $0x1f0] sm:$0xff]
          %v1480 = vld [vmem:[%s1 + $0x1f8] sm:$0xff]
          %v1481 = vld [vmem:[%s2] sm:$0xff]
          %v1483 = vlaneseq
          %v1484 = vshrl.u32 %v1483, 7
          %v1485 = vsub.s32 0, %v1484
          %v1486 = vrot.slane %v1481, %v1485
          %v1487 = vlaneseq
          %v1488 = vshrl.u32 %v1487, 7
          %v1489 = vsub.s32 1, %v1488
          %v1490 = vrot.slane %v1481, %v1489
          %v1491 = vlaneseq
          %v1492 = vshrl.u32 %v1491, 7
          %v1493 = vsub.s32 2, %v1492
          %v1494 = vrot.slane %v1481, %v1493
          %v1495 = vlaneseq
          %v1496 = vshrl.u32 %v1495, 7
          %v1497 = vsub.s32 3, %v1496
          %v1498 = vrot.slane %v1481, %v1497
          %v1499 = vlaneseq
          %v1500 = vshrl.u32 %v1499, 7
          %v1501 = vsub.s32 4, %v1500
          %v1502 = vrot.slane %v1481, %v1501
          %v1503 = vlaneseq
          %v1504 = vshrl.u32 %v1503, 7
          %v1505 = vsub.s32 5, %v1504
          %v1506 = vrot.slane %v1481, %v1505
          %v1507 = vlaneseq
          %v1508 = vshrl.u32 %v1507, 7
          %v1509 = vsub.s32 6, %v1508
          %v1510 = vrot.slane %v1481, %v1509
          %v1511 = vlaneseq
          %v1512 = vshrl.u32 %v1511, 7
          %v1513 = vsub.s32 7, %v1512
          %v1514 = vrot.slane %v1481, %v1513
          %vm1523 = vcmask 523264
          %v1525 = vsel %vm1523, %v1416, 0
          %1527 = vmatprep.subr.mxu0 %v1418
          %1528 = vmatpush1.msra.mxu0 %v1417
          %1529 = vmatprep.subr.mxu0 %v1426
          %1530 = vmatpush1.msra.mxu0 %v1425
          %1531 = vmatprep.subr.mxu0 %v1434
          %1532 = vmatpush1.msra.mxu0 %v1433
          %1533 = vmatprep.subr.mxu0 %v1442
          %1534 = vmatpush1.msra.mxu0 %v1441
          %1535 = vmatprep.subr.mxu0 %v1450
          %1536 = vmatpush1.msra.mxu0 %v1449
          %1537 = vmatprep.subr.mxu0 %v1458
          %1538 = vmatpush1.msra.mxu0 %v1457
          %1539 = vmatprep.subr.mxu0 %v1466
          %1540 = vmatpush1.msra.mxu0 %v1465
          %1541 = vmatprep.subr.mxu0 %v1474
          %1542 = vmatpush1.msra.mxu0 %v1473
          %1543 = vmatprep.subr.mxu0 0.0
          %1544 = vmatpush1.msra.mxu0 0.0
          %1545 = vmatprep.subr.mxu0 0.0
          %1546 = vmatpush1.msra.mxu0 0.0
          %1547 = vmatprep.subr.mxu0 0.0
          %1548 = vmatpush1.msra.mxu0 0.0
          %1549 = vmatprep.subr.mxu0 0.0
          %1550 = vmatpush1.msra.mxu0 0.0
          %1551 = vmatprep.subr.mxu0 0.0
          %1552 = vmatpush1.msra.mxu0 0.0
          %1553 = vmatprep.subr.mxu0 0.0
          %1554 = vmatpush1.msra.mxu0 0.0
          %1555 = vmatprep.subr.mxu0 0.0
          %1556 = vmatpush1.msra.mxu0 0.0
          %1557 = vmatprep.subr.mxu0 0.0
          %1558 = vmatpush1.msra.mxu0 0.0
          %1559 = vmatprep.subr.mxu0 0.0
          %1560 = vmatpush1.msra.mxu0 0.0
          %1561 = vmatprep.subr.mxu0 0.0
          %1562 = vmatpush1.msra.mxu0 0.0
          %1563 = vmatprep.subr.mxu0 0.0
          %1564 = vmatpush1.msra.mxu0 0.0
          %1565 = vmatprep.subr.mxu0 0.0
          %1566 = vmatpush1.msra.mxu0 0.0
          %1567 = vmatprep.subr.mxu0 0.0
          %1568 = vmatpush1.msra.mxu0 0.0
          %1569 = vmatprep.subr.mxu0 0.0
          %1570 = vmatpush1.msra.mxu0 0.0
          %1571 = vmatprep.subr.mxu0 0.0
          %1572 = vmatpush1.msra.mxu0 0.0
          %1573 = vmatprep.subr.mxu0 0.0
          %1574 = vmatpush1.msra.mxu0 0.0
          %1575 = vmatprep.subr.mxu0 0.0
          %1576 = vmatpush1.msra.mxu0 0.0
          %1577 = vmatprep.subr.mxu0 0.0
          %1578 = vmatpush1.msra.mxu0 0.0
          %1579 = vmatprep.subr.mxu0 0.0
          %1580 = vmatpush1.msra.mxu0 0.0
          %1581 = vmatprep.subr.mxu0 0.0
          %1582 = vmatpush1.msra.mxu0 0.0
          %1583 = vmatprep.subr.mxu0 0.0
          %1584 = vmatpush1.msra.mxu0 0.0
          %1585 = vmatprep.subr.mxu0 0.0
          %1586 = vmatpush1.msra.mxu0 0.0
          %1587 = vmatprep.subr.mxu0 0.0
          %1588 = vmatpush1.msra.mxu0 0.0
          %1589 = vmatprep.subr.mxu0 0.0
          %1590 = vmatpush1.msra.mxu0 0.0
          %1591 = vmatprep.mubr.f32.mxu0 0.0
          %1592 = vmatmul.mubr.f32.gmra.mrb[0].mxu0 %v1525
          %v1593 = vpop.f32.mrb[0].mxu0
          %v1594 = vadd.f32 %v1486, %v1593
          %v1595 = vpop.f32.mrb[0].mxu0
          %v1596 = vadd.f32 %v1490, %v1595
          %1597 = vdwg.mxu0
          %1598 = vmatprep.subr.mxu0 %v1420
          %1599 = vmatpush1.msra.mxu0 %v1419
          %1600 = vmatprep.subr.mxu0 %v1428
          %1601 = vmatpush1.msra.mxu0 %v1427
          %1602 = vmatprep.subr.mxu0 %v1436
          %1603 = vmatpush1.msra.mxu0 %v1435
          %1604 = vmatprep.subr.mxu0 %v1444
          %1605 = vmatpush1.msra.mxu0 %v1443
          %1606 = vmatprep.subr.mxu0 %v1452
          %1607 = vmatpush1.msra.mxu0 %v1451
          %1608 = vmatprep.subr.mxu0 %v1460
          %1609 = vmatpush1.msra.mxu0 %v1459
          %1610 = vmatprep.subr.mxu0 %v1468
          %1611 = vmatpush1.msra.mxu0 %v1467
          %1612 = vmatprep.subr.mxu0 %v1476
          %1613 = vmatpush1.msra.mxu0 %v1475
          %1614 = vmatprep.subr.mxu0 0.0
          %1615 = vmatpush1.msra.mxu0 0.0
          %1616 = vmatprep.subr.mxu0 0.0
          %1617 = vmatpush1.msra.mxu0 0.0
          %1618 = vmatprep.subr.mxu0 0.0
          %1619 = vmatpush1.msra.mxu0 0.0
          %1620 = vmatprep.subr.mxu0 0.0
          %1621 = vmatpush1.msra.mxu0 0.0
          %1622 = vmatprep.subr.mxu0 0.0
          %1623 = vmatpush1.msra.mxu0 0.0
          %1624 = vmatprep.subr.mxu0 0.0
          %1625 = vmatpush1.msra.mxu0 0.0
          %1626 = vmatprep.subr.mxu0 0.0
          %1627 = vmatpush1.msra.mxu0 0.0
          %1628 = vmatprep.subr.mxu0 0.0
          %1629 = vmatpush1.msra.mxu0 0.0
          %1630 = vmatprep.subr.mxu0 0.0
          %1631 = vmatpush1.msra.mxu0 0.0
          %1632 = vmatprep.subr.mxu0 0.0
          %1633 = vmatpush1.msra.mxu0 0.0
          %1634 = vmatprep.subr.mxu0 0.0
          %1635 = vmatpush1.msra.mxu0 0.0
          %1636 = vmatprep.subr.mxu0 0.0
          %1637 = vmatpush1.msra.mxu0 0.0
          %1638 = vmatprep.subr.mxu0 0.0
          %1639 = vmatpush1.msra.mxu0 0.0
          %1640 = vmatprep.subr.mxu0 0.0
          %1641 = vmatpush1.msra.mxu0 0.0
          %1642 = vmatprep.subr.mxu0 0.0
          %1643 = vmatpush1.msra.mxu0 0.0
          %1644 = vmatprep.subr.mxu0 0.0
          %1645 = vmatpush1.msra.mxu0 0.0
          %1646 = vmatprep.subr.mxu0 0.0
          %1647 = vmatpush1.msra.mxu0 0.0
          %1648 = vmatprep.subr.mxu0 0.0
          %1649 = vmatpush1.msra.mxu0 0.0
          %1650 = vmatprep.subr.mxu0 0.0
          %1651 = vmatpush1.msra.mxu0 0.0
          %1652 = vmatprep.subr.mxu0 0.0
          %1653 = vmatpush1.msra.mxu0 0.0
          %1654 = vmatprep.subr.mxu0 0.0
          %1655 = vmatpush1.msra.mxu0 0.0
          %1656 = vmatprep.subr.mxu0 0.0
          %1657 = vmatpush1.msra.mxu0 0.0
          %1658 = vmatprep.subr.mxu0 0.0
          %1659 = vmatpush1.msra.mxu0 0.0
          %1660 = vmatprep.subr.mxu0 0.0
          %1661 = vmatpush1.msra.mxu0 0.0
          %1662 = vmatprep.mubr.f32.mxu0 0.0
          %1663 = vmatmul.mubr.f32.gmra.mrb[0].mxu0 %v1525
          %v1664 = vpop.f32.mrb[0].mxu0
          %v1665 = vadd.f32 %v1494, %v1664
          %v1666 = vpop.f32.mrb[0].mxu0
          %v1667 = vadd.f32 %v1498, %v1666
          %1668 = vdwg.mxu0
          %1669 = vmatprep.subr.mxu0 %v1422
          %1670 = vmatpush1.msra.mxu0 %v1421
          %1671 = vmatprep.subr.mxu0 %v1430
          %1672 = vmatpush1.msra.mxu0 %v1429
          %1673 = vmatprep.subr.mxu0 %v1438
          %1674 = vmatpush1.msra.mxu0 %v1437
          %1675 = vmatprep.subr.mxu0 %v1446
          %1676 = vmatpush1.msra.mxu0 %v1445
          %1677 = vmatprep.subr.mxu0 %v1454
          %1678 = vmatpush1.msra.mxu0 %v1453
          %1679 = vmatprep.subr.mxu0 %v1462
          %1680 = vmatpush1.msra.mxu0 %v1461
          %1681 = vmatprep.subr.mxu0 %v1470
          %1682 = vmatpush1.msra.mxu0 %v1469
          %1683 = vmatprep.subr.mxu0 %v1478
          %1684 = vmatpush1.msra.mxu0 %v1477
          %1685 = vmatprep.subr.mxu0 0.0
          %1686 = vmatpush1.msra.mxu0 0.0
          %1687 = vmatprep.subr.mxu0 0.0
          %1688 = vmatpush1.msra.mxu0 0.0
          %1689 = vmatprep.subr.mxu0 0.0
          %1690 = vmatpush1.msra.mxu0 0.0
          %1691 = vmatprep.subr.mxu0 0.0
          %1692 = vmatpush1.msra.mxu0 0.0
          %1693 = vmatprep.subr.mxu0 0.0
          %1694 = vmatpush1.msra.mxu0 0.0
          %1695 = vmatprep.subr.mxu0 0.0
          %1696 = vmatpush1.msra.mxu0 0.0
          %1697 = vmatprep.subr.mxu0 0.0
          %1698 = vmatpush1.msra.mxu0 0.0
          %1699 = vmatprep.subr.mxu0 0.0
          %1700 = vmatpush1.msra.mxu0 0.0
          %1701 = vmatprep.subr.mxu0 0.0
          %1702 = vmatpush1.msra.mxu0 0.0
          %1703 = vmatprep.subr.mxu0 0.0
          %1704 = vmatpush1.msra.mxu0 0.0
          %1705 = vmatprep.subr.mxu0 0.0
          %1706 = vmatpush1.msra.mxu0 0.0
          %1707 = vmatprep.subr.mxu0 0.0
          %1708 = vmatpush1.msra.mxu0 0.0
          %1709 = vmatprep.subr.mxu0 0.0
          %1710 = vmatpush1.msra.mxu0 0.0
          %1711 = vmatprep.subr.mxu0 0.0
          %1712 = vmatpush1.msra.mxu0 0.0
          %1713 = vmatprep.subr.mxu0 0.0
          %1714 = vmatpush1.msra.mxu0 0.0
          %1715 = vmatprep.subr.mxu0 0.0
          %1716 = vmatpush1.msra.mxu0 0.0
          %1717 = vmatprep.subr.mxu0 0.0
          %1718 = vmatpush1.msra.mxu0 0.0
          %1719 = vmatprep.subr.mxu0 0.0
          %1720 = vmatpush1.msra.mxu0 0.0
          %1721 = vmatprep.subr.mxu0 0.0
          %1722 = vmatpush1.msra.mxu0 0.0
          %1723 = vmatprep.subr.mxu0 0.0
          %1724 = vmatpush1.msra.mxu0 0.0
          %1725 = vmatprep.subr.mxu0 0.0
          %1726 = vmatpush1.msra.mxu0 0.0
          %1727 = vmatprep.subr.mxu0 0.0
          %1728 = vmatpush1.msra.mxu0 0.0
          %1729 = vmatprep.subr.mxu0 0.0
          %1730 = vmatpush1.msra.mxu0 0.0
          %1731 = vmatprep.subr.mxu0 0.0
          %1732 = vmatpush1.msra.mxu0 0.0
          %1733 = vmatprep.mubr.f32.mxu0 0.0
          %1734 = vmatmul.mubr.f32.gmra.mrb[0].mxu0 %v1525
          %v1735 = vpop.f32.mrb[0].mxu0
          %v1736 = vadd.f32 %v1502, %v1735
          %v1737 = vpop.f32.mrb[0].mxu0
          %v1738 = vadd.f32 %v1506, %v1737
          %1739 = vdwg.mxu0
          %1740 = vmatprep.subr.mxu0 %v1424
          %1741 = vmatpush1.msra.mxu0 %v1423
          %1742 = vmatprep.subr.mxu0 %v1432
          %1743 = vmatpush1.msra.mxu0 %v1431
          %1744 = vmatprep.subr.mxu0 %v1440
          %1745 = vmatpush1.msra.mxu0 %v1439
          %1746 = vmatprep.subr.mxu0 %v1448
          %1747 = vmatpush1.msra.mxu0 %v1447
          %1748 = vmatprep.subr.mxu0 %v1456
          %1749 = vmatpush1.msra.mxu0 %v1455
          %1750 = vmatprep.subr.mxu0 %v1464
          %1751 = vmatpush1.msra.mxu0 %v1463
          %1752 = vmatprep.subr.mxu0 %v1472
          %1753 = vmatpush1.msra.mxu0 %v1471
          %1754 = vmatprep.subr.mxu0 %v1480
          %1755 = vmatpush1.msra.mxu0 %v1479
          %1756 = vmatprep.subr.mxu0 0.0
          %1757 = vmatpush1.msra.mxu0 0.0
          %1758 = vmatprep.subr.mxu0 0.0
          %1759 = vmatpush1.msra.mxu0 0.0
          %1760 = vmatprep.subr.mxu0 0.0
          %1761 = vmatpush1.msra.mxu0 0.0
          %1762 = vmatprep.subr.mxu0 0.0
          %1763 = vmatpush1.msra.mxu0 0.0
          %1764 = vmatprep.subr.mxu0 0.0
          %1765 = vmatpush1.msra.mxu0 0.0
          %1766 = vmatprep.subr.mxu0 0.0
          %1767 = vmatpush1.msra.mxu0 0.0
          %1768 = vmatprep.subr.mxu0 0.0
          %1769 = vmatpush1.msra.mxu0 0.0
          %1770 = vmatprep.subr.mxu0 0.0
          %1771 = vmatpush1.msra.mxu0 0.0
          %1772 = vmatprep.subr.mxu0 0.0
          %1773 = vmatpush1.msra.mxu0 0.0
          %1774 = vmatprep.subr.mxu0 0.0
          %1775 = vmatpush1.msra.mxu0 0.0
          %1776 = vmatprep.subr.mxu0 0.0
          %1777 = vmatpush1.msra.mxu0 0.0
          %1778 = vmatprep.subr.mxu0 0.0
          %1779 = vmatpush1.msra.mxu0 0.0
          %1780 = vmatprep.subr.mxu0 0.0
          %1781 = vmatpush1.msra.mxu0 0.0
          %1782 = vmatprep.subr.mxu0 0.0
          %1783 = vmatpush1.msra.mxu0 0.0
          %1784 = vmatprep.subr.mxu0 0.0
          %1785 = vmatpush1.msra.mxu0 0.0
          %1786 = vmatprep.subr.mxu0 0.0
          %1787 = vmatpush1.msra.mxu0 0.0
          %1788 = vmatprep.subr.mxu0 0.0
          %1789 = vmatpush1.msra.mxu0 0.0
          %1790 = vmatprep.subr.mxu0 0.0
          %1791 = vmatpush1.msra.mxu0 0.0
          %1792 = vmatprep.subr.mxu0 0.0
          %1793 = vmatpush1.msra.mxu0 0.0
          %1794 = vmatprep.subr.mxu0 0.0
          %1795 = vmatpush1.msra.mxu0 0.0
          %1796 = vmatprep.subr.mxu0 0.0
          %1797 = vmatpush1.msra.mxu0 0.0
          %1798 = vmatprep.subr.mxu0 0.0
          %1799 = vmatpush1.msra.mxu0 0.0
          %1800 = vmatprep.subr.mxu0 0.0
          %1801 = vmatpush1.msra.mxu0 0.0
          %1802 = vmatprep.subr.mxu0 0.0
          %1803 = vmatpush1.msra.mxu0 0.0
          %1804 = vmatprep.mubr.f32.mxu0 0.0
          %1805 = vmatmul.mubr.f32.gmra.mrb[0].mxu0 %v1525
          %v1806 = vpop.f32.mrb[0].mxu0
          %v1807 = vadd.f32 %v1510, %v1806
          %v1808 = vpop.f32.mrb[0].mxu0
          %v1809 = vadd.f32 %v1514, %v1808
          %1810 = vdwg.mxu0
          %vm1811 = vcmp.gt.f32.partialorder %v1594, 0.0
          %vm1812 = vcmp.gt.f32.partialorder %v1596, 0.0
          %vm1813 = vcmp.gt.f32.partialorder %v1665, 0.0
          %vm1814 = vcmp.gt.f32.partialorder %v1667, 0.0
          %vm1815 = vcmp.gt.f32.partialorder %v1736, 0.0
          %vm1816 = vcmp.gt.f32.partialorder %v1738, 0.0
          %vm1817 = vcmp.gt.f32.partialorder %v1807, 0.0
          %vm1818 = vcmp.gt.f32.partialorder %v1809, 0.0
          %v1819 = vmul.f32 %v1594, 0.2
          %v1820 = vmul.f32 %v1596, 0.2
          %v1821 = vmul.f32 %v1665, 0.2
          %v1822 = vmul.f32 %v1667, 0.2
          %v1823 = vmul.f32 %v1736, 0.2
          %v1824 = vmul.f32 %v1738, 0.2
          %v1825 = vmul.f32 %v1807, 0.2
          %v1826 = vmul.f32 %v1809, 0.2
          %v1827 = vsel %vm1811, %v1594, %v1819
          %v1828 = vsel %vm1812, %v1596, %v1820
          %v1829 = vsel %vm1813, %v1665, %v1821
          %v1830 = vsel %vm1814, %v1667, %v1822
          %v1831 = vsel %vm1815, %v1736, %v1823
          %v1832 = vsel %vm1816, %v1738, %v1824
          %v1833 = vsel %vm1817, %v1807, %v1825
          %v1834 = vsel %vm1818, %v1809, %v1826
          %1835 = vst [vmem:[#allocation2] sm:$0xff] %v1827
          %1836 = vst [vmem:[#allocation2 + $0x8] sm:$0xff] %v1828
          %1837 = vst [vmem:[#allocation2 + $0x10] sm:$0xff] %v1829
          %1838 = vst [vmem:[#allocation2 + $0x18] sm:$0xff] %v1830
          %1839 = vst [vmem:[#allocation2 + $0x20] sm:$0xff] %v1831
          %1840 = vst [vmem:[#allocation2 + $0x28] sm:$0xff] %v1832
          %1841 = vst [vmem:[#allocation2 + $0x30] sm:$0xff] %v1833
          %1842 = vst [vmem:[#allocation2 + $0x38] sm:$0xff] %v1834
          %1843 = vst [vmem:[#allocation3] sm:$0xff] 0.0
          %1844 = vst [vmem:[#allocation3 + $0x8] sm:$0xff] 0.0
          %1845 = vst [vmem:[#allocation3 + $0x10] sm:$0xff] 0.0
          %1846 = vst [vmem:[#allocation3 + $0x18] sm:$0xff] 0.0
          %1847 = vst [vmem:[#allocation3 + $0x20] sm:$0xff] 0.0
          %1848 = vst [vmem:[#allocation3 + $0x28] sm:$0xff] 0.0
          %1849 = vst [vmem:[#allocation3 + $0x30] sm:$0xff] 0.0
          %1850 = vst [vmem:[#allocation3 + $0x38] sm:$0xff] 0.0
          %1851 = vst [vmem:[#allocation3 + $0x40] sm:$0xff] 0.0
          %1852 = vst [vmem:[#allocation3 + $0x48] sm:$0xff] 0.0
          %1853 = vst [vmem:[#allocation3 + $0x50] sm:$0xff] 0.0
          %1854 = vst [vmem:[#allocation3 + $0x58] sm:$0xff] 0.0
          %1855 = vst [vmem:[#allocation3 + $0x60] sm:$0xff] 0.0
          %1856 = vst [vmem:[#allocation3 + $0x68] sm:$0xff] 0.0
          %1857 = vst [vmem:[#allocation3 + $0x70] sm:$0xff] 0.0
          %1858 = vst [vmem:[#allocation3 + $0x78] sm:$0xff] 0.0
        $region79: #{embed_amp.1} parent=66 // pred_fallthru
          _
        %v1859 = vld [vmem:[#allocation2] sm:$0xff]
        %v1860 = vld [vmem:[#allocation2 + $0x8] sm:$0xff]
        %v1861 = vld [vmem:[#allocation2 + $0x10] sm:$0xff]
        %v1862 = vld [vmem:[#allocation2 + $0x18] sm:$0xff]
        %v1863 = vld [vmem:[#allocation2 + $0x20] sm:$0xff]
        %v1864 = vld [vmem:[#allocation2 + $0x28] sm:$0xff]
        %v1865 = vld [vmem:[#allocation2 + $0x30] sm:$0xff]
        %v1866 = vld [vmem:[#allocation2 + $0x38] sm:$0xff]
        %v1867 = vld [vmem:[%s1345] sm:$0xff]
        %v1868 = vld [vmem:[%s1345 + $0x8] sm:$0xff]
        %v1869 = vld [vmem:[%s1345 + $0x10] sm:$0xff]
        %v1870 = vld [vmem:[%s1345 + $0x18] sm:$0xff]
        %v1871 = vld [vmem:[%s1345 + $0x20] sm:$0xff]
        %v1872 = vld [vmem:[%s1345 + $0x28] sm:$0xff]
        %v1873 = vld [vmem:[%s1345 + $0x30] sm:$0xff]
        %v1874 = vld [vmem:[%s1345 + $0x38] sm:$0xff]
        %v1875 = vld [vmem:[%s1345 + $0x40] sm:$0xff]
        %v1876 = vld [vmem:[%s1345 + $0x48] sm:$0xff]
        %v1877 = vld [vmem:[%s1345 + $0x50] sm:$0xff]
        %v1878 = vld [vmem:[%s1345 + $0x58] sm:$0xff]
        %v1879 = vld [vmem:[%s1345 + $0x60] sm:$0xff]
        %v1880 = vld [vmem:[%s1345 + $0x68] sm:$0xff]
        %v1881 = vld [vmem:[%s1345 + $0x70] sm:$0xff]
        %v1882 = vld [vmem:[%s1345 + $0x78] sm:$0xff]
        %v1883 = vld [vmem:[%s1345 + $0x80] sm:$0xff]
        %v1884 = vld [vmem:[%s1345 + $0x88] sm:$0xff]
        %v1885 = vld [vmem:[%s1345 + $0x90] sm:$0xff]
        %v1886 = vld [vmem:[%s1345 + $0x98] sm:$0xff]
        %v1887 = vld [vmem:[%s1345 + $0xa0] sm:$0xff]
        %v1888 = vld [vmem:[%s1345 + $0xa8] sm:$0xff]
        %v1889 = vld [vmem:[%s1345 + $0xb0] sm:$0xff]
        %v1890 = vld [vmem:[%s1345 + $0xb8] sm:$0xff]
        %v1891 = vld [vmem:[%s1345 + $0xc0] sm:$0xff]
        %v1892 = vld [vmem:[%s1345 + $0xc8] sm:$0xff]
        %v1893 = vld [vmem:[%s1345 + $0xd0] sm:$0xff]
        %v1894 = vld [vmem:[%s1345 + $0xd8] sm:$0xff]
        %v1895 = vld [vmem:[%s1345 + $0xe0] sm:$0xff]
        %v1896 = vld [vmem:[%s1345 + $0xe8] sm:$0xff]
        %v1897 = vld [vmem:[%s1345 + $0xf0] sm:$0xff]
        %v1898 = vld [vmem:[%s1345 + $0xf8] sm:$0xff]
        %v1899 = vld [vmem:[%s1345 + $0x100] sm:$0xff]
        %v1900 = vld [vmem:[%s1345 + $0x108] sm:$0xff]
        %v1901 = vld [vmem:[%s1345 + $0x110] sm:$0xff]
        %v1902 = vld [vmem:[%s1345 + $0x118] sm:$0xff]
        %v1903 = vld [vmem:[%s1345 + $0x120] sm:$0xff]
        %v1904 = vld [vmem:[%s1345 + $0x128] sm:$0xff]
        %v1905 = vld [vmem:[%s1345 + $0x130] sm:$0xff]
        %v1906 = vld [vmem:[%s1345 + $0x138] sm:$0xff]
        %v1907 = vld [vmem:[%s1345 + $0x140] sm:$0xff]
        %v1908 = vld [vmem:[%s1345 + $0x148] sm:$0xff]
        %v1909 = vld [vmem:[%s1345 + $0x150] sm:$0xff]
        %v1910 = vld [vmem:[%s1345 + $0x158] sm:$0xff]
        %v1911 = vld [vmem:[%s1345 + $0x160] sm:$0xff]
        %v1912 = vld [vmem:[%s1345 + $0x168] sm:$0xff]
        %v1913 = vld [vmem:[%s1345 + $0x170] sm:$0xff]
        %v1914 = vld [vmem:[%s1345 + $0x178] sm:$0xff]
        %v1915 = vld [vmem:[%s1345 + $0x180] sm:$0xff]
        %v1916 = vld [vmem:[%s1345 + $0x188] sm:$0xff]
        %v1917 = vld [vmem:[%s1345 + $0x190] sm:$0xff]
        %v1918 = vld [vmem:[%s1345 + $0x198] sm:$0xff]
        %v1919 = vld [vmem:[%s1345 + $0x1a0] sm:$0xff]
        %v1920 = vld [vmem:[%s1345 + $0x1a8] sm:$0xff]
        %v1921 = vld [vmem:[%s1345 + $0x1b0] sm:$0xff]
        %v1922 = vld [vmem:[%s1345 + $0x1b8] sm:$0xff]
        %v1923 = vld [vmem:[%s1345 + $0x1c0] sm:$0xff]
        %v1924 = vld [vmem:[%s1345 + $0x1c8] sm:$0xff]
        %v1925 = vld [vmem:[%s1345 + $0x1d0] sm:$0xff]
        %v1926 = vld [vmem:[%s1345 + $0x1d8] sm:$0xff]
        %v1927 = vld [vmem:[%s1345 + $0x1e0] sm:$0xff]
        %v1928 = vld [vmem:[%s1345 + $0x1e8] sm:$0xff]
        %v1929 = vld [vmem:[%s1345 + $0x1f0] sm:$0xff]
        %v1930 = vld [vmem:[%s1345 + $0x1f8] sm:$0xff]
        %v1931 = vld [vmem:[%s1345 + $0x200] sm:$0xff]
        %v1932 = vld [vmem:[%s1345 + $0x208] sm:$0xff]
        %v1933 = vld [vmem:[%s1345 + $0x210] sm:$0xff]
        %v1934 = vld [vmem:[%s1345 + $0x218] sm:$0xff]
        %v1935 = vld [vmem:[%s1345 + $0x220] sm:$0xff]
        %v1936 = vld [vmem:[%s1345 + $0x228] sm:$0xff]
        %v1937 = vld [vmem:[%s1345 + $0x230] sm:$0xff]
        %v1938 = vld [vmem:[%s1345 + $0x238] sm:$0xff]
        %v1939 = vld [vmem:[%s1345 + $0x240] sm:$0xff]
        %v1940 = vld [vmem:[%s1345 + $0x248] sm:$0xff]
        %v1941 = vld [vmem:[%s1345 + $0x250] sm:$0xff]
        %v1942 = vld [vmem:[%s1345 + $0x258] sm:$0xff]
        %v1943 = vld [vmem:[%s1345 + $0x260] sm:$0xff]
        %v1944 = vld [vmem:[%s1345 + $0x268] sm:$0xff]
        %v1945 = vld [vmem:[%s1345 + $0x270] sm:$0xff]
        %v1946 = vld [vmem:[%s1345 + $0x278] sm:$0xff]
        %v1947 = vld [vmem:[%s1345 + $0x280] sm:$0xff]
        %v1948 = vld [vmem:[%s1345 + $0x288] sm:$0xff]
        %v1949 = vld [vmem:[%s1345 + $0x290] sm:$0xff]
        %v1950 = vld [vmem:[%s1345 + $0x298] sm:$0xff]
        %v1951 = vld [vmem:[%s1345 + $0x2a0] sm:$0xff]
        %v1952 = vld [vmem:[%s1345 + $0x2a8] sm:$0xff]
        %v1953 = vld [vmem:[%s1345 + $0x2b0] sm:$0xff]
        %v1954 = vld [vmem:[%s1345 + $0x2b8] sm:$0xff]
        %v1955 = vld [vmem:[%s1345 + $0x2c0] sm:$0xff]
        %v1956 = vld [vmem:[%s1345 + $0x2c8] sm:$0xff]
        %v1957 = vld [vmem:[%s1345 + $0x2d0] sm:$0xff]
        %v1958 = vld [vmem:[%s1345 + $0x2d8] sm:$0xff]
        %v1959 = vld [vmem:[%s1345 + $0x2e0] sm:$0xff]
        %v1960 = vld [vmem:[%s1345 + $0x2e8] sm:$0xff]
        %v1961 = vld [vmem:[%s1345 + $0x2f0] sm:$0xff]
        %v1962 = vld [vmem:[%s1345 + $0x2f8] sm:$0xff]
        %v1963 = vld [vmem:[%s1345 + $0x300] sm:$0xff]
        %v1964 = vld [vmem:[%s1345 + $0x308] sm:$0xff]
        %v1965 = vld [vmem:[%s1345 + $0x310] sm:$0xff]
        %v1966 = vld [vmem:[%s1345 + $0x318] sm:$0xff]
        %v1967 = vld [vmem:[%s1345 + $0x320] sm:$0xff]
        %v1968 = vld [vmem:[%s1345 + $0x328] sm:$0xff]
        %v1969 = vld [vmem:[%s1345 + $0x330] sm:$0xff]
        %v1970 = vld [vmem:[%s1345 + $0x338] sm:$0xff]
        %v1971 = vld [vmem:[%s1345 + $0x340] sm:$0xff]
        %v1972 = vld [vmem:[%s1345 + $0x348] sm:$0xff]
        %v1973 = vld [vmem:[%s1345 + $0x350] sm:$0xff]
        %v1974 = vld [vmem:[%s1345 + $0x358] sm:$0xff]
        %v1975 = vld [vmem:[%s1345 + $0x360] sm:$0xff]
        %v1976 = vld [vmem:[%s1345 + $0x368] sm:$0xff]
        %v1977 = vld [vmem:[%s1345 + $0x370] sm:$0xff]
        %v1978 = vld [vmem:[%s1345 + $0x378] sm:$0xff]
        %v1979 = vld [vmem:[%s1345 + $0x380] sm:$0xff]
        %v1980 = vld [vmem:[%s1345 + $0x388] sm:$0xff]
        %v1981 = vld [vmem:[%s1345 + $0x390] sm:$0xff]
        %v1982 = vld [vmem:[%s1345 + $0x398] sm:$0xff]
        %v1983 = vld [vmem:[%s1345 + $0x3a0] sm:$0xff]
        %v1984 = vld [vmem:[%s1345 + $0x3a8] sm:$0xff]
        %v1985 = vld [vmem:[%s1345 + $0x3b0] sm:$0xff]
        %v1986 = vld [vmem:[%s1345 + $0x3b8] sm:$0xff]
        %v1987 = vld [vmem:[%s1345 + $0x3c0] sm:$0xff]
        %v1988 = vld [vmem:[%s1345 + $0x3c8] sm:$0xff]
        %v1989 = vld [vmem:[%s1345 + $0x3d0] sm:$0xff]
        %v1990 = vld [vmem:[%s1345 + $0x3d8] sm:$0xff]
        %v1991 = vld [vmem:[%s1345 + $0x3e0] sm:$0xff]
        %v1992 = vld [vmem:[%s1345 + $0x3e8] sm:$0xff]
        %v1993 = vld [vmem:[%s1345 + $0x3f0] sm:$0xff]
        %v1994 = vld [vmem:[%s1345 + $0x3f8] sm:$0xff]
        %v1995 = vld [vmem:[%s1345 + $0x400] sm:$0xff]
        %v1996 = vld [vmem:[%s1345 + $0x408] sm:$0xff]
        %v1997 = vld [vmem:[%s1345 + $0x410] sm:$0xff]
        %v1998 = vld [vmem:[%s1345 + $0x418] sm:$0xff]
        %v1999 = vld [vmem:[%s1345 + $0x420] sm:$0xff]
        %v2000 = vld [vmem:[%s1345 + $0x428] sm:$0xff]
        %v2001 = vld [vmem:[%s1345 + $0x430] sm:$0xff]
        %v2002 = vld [vmem:[%s1345 + $0x438] sm:$0xff]
        %v2003 = vld [vmem:[%s1345 + $0x440] sm:$0xff]
        %v2004 = vld [vmem:[%s1345 + $0x448] sm:$0xff]
        %v2005 = vld [vmem:[%s1345 + $0x450] sm:$0xff]
        %v2006 = vld [vmem:[%s1345 + $0x458] sm:$0xff]
        %v2007 = vld [vmem:[%s1345 + $0x460] sm:$0xff]
        %v2008 = vld [vmem:[%s1345 + $0x468] sm:$0xff]
        %v2009 = vld [vmem:[%s1345 + $0x470] sm:$0xff]
        %v2010 = vld [vmem:[%s1345 + $0x478] sm:$0xff]
        %v2011 = vld [vmem:[%s1345 + $0x480] sm:$0xff]
        %v2012 = vld [vmem:[%s1345 + $0x488] sm:$0xff]
        %v2013 = vld [vmem:[%s1345 + $0x490] sm:$0xff]
        %v2014 = vld [vmem:[%s1345 + $0x498] sm:$0xff]
        %v2015 = vld [vmem:[%s1345 + $0x4a0] sm:$0xff]
        %v2016 = vld [vmem:[%s1345 + $0x4a8] sm:$0xff]
        %v2017 = vld [vmem:[%s1345 + $0x4b0] sm:$0xff]
        %v2018 = vld [vmem:[%s1345 + $0x4b8] sm:$0xff]
        %v2019 = vld [vmem:[%s1345 + $0x4c0] sm:$0xff]
        %v2020 = vld [vmem:[%s1345 + $0x4c8] sm:$0xff]
        %v2021 = vld [vmem:[%s1345 + $0x4d0] sm:$0xff]
        %v2022 = vld [vmem:[%s1345 + $0x4d8] sm:$0xff]
        %v2023 = vld [vmem:[%s1345 + $0x4e0] sm:$0xff]
        %v2024 = vld [vmem:[%s1345 + $0x4e8] sm:$0xff]
        %v2025 = vld [vmem:[%s1345 + $0x4f0] sm:$0xff]
        %v2026 = vld [vmem:[%s1345 + $0x4f8] sm:$0xff]
        %v2027 = vld [vmem:[%s1345 + $0x500] sm:$0xff]
        %v2028 = vld [vmem:[%s1345 + $0x508] sm:$0xff]
        %v2029 = vld [vmem:[%s1345 + $0x510] sm:$0xff]
        %v2030 = vld [vmem:[%s1345 + $0x518] sm:$0xff]
        %v2031 = vld [vmem:[%s1345 + $0x520] sm:$0xff]
        %v2032 = vld [vmem:[%s1345 + $0x528] sm:$0xff]
        %v2033 = vld [vmem:[%s1345 + $0x530] sm:$0xff]
        %v2034 = vld [vmem:[%s1345 + $0x538] sm:$0xff]
        %v2035 = vld [vmem:[%s1345 + $0x540] sm:$0xff]
        %v2036 = vld [vmem:[%s1345 + $0x548] sm:$0xff]
        %v2037 = vld [vmem:[%s1345 + $0x550] sm:$0xff]
        %v2038 = vld [vmem:[%s1345 + $0x558] sm:$0xff]
        %v2039 = vld [vmem:[%s1345 + $0x560] sm:$0xff]
        %v2040 = vld [vmem:[%s1345 + $0x568] sm:$0xff]
        %v2041 = vld [vmem:[%s1345 + $0x570] sm:$0xff]
        %v2042 = vld [vmem:[%s1345 + $0x578] sm:$0xff]
        %v2043 = vld [vmem:[%s1345 + $0x580] sm:$0xff]
        %v2044 = vld [vmem:[%s1345 + $0x588] sm:$0xff]
        %v2045 = vld [vmem:[%s1345 + $0x590] sm:$0xff]
        %v2046 = vld [vmem:[%s1345 + $0x598] sm:$0xff]
        %v2047 = vld [vmem:[%s1345 + $0x5a0] sm:$0xff]
        %v2048 = vld [vmem:[%s1345 + $0x5a8] sm:$0xff]
        %v2049 = vld [vmem:[%s1345 + $0x5b0] sm:$0xff]
        %v2050 = vld [vmem:[%s1345 + $0x5b8] sm:$0xff]
        %v2051 = vld [vmem:[%s1345 + $0x5c0] sm:$0xff]
        %v2052 = vld [vmem:[%s1345 + $0x5c8] sm:$0xff]
        %v2053 = vld [vmem:[%s1345 + $0x5d0] sm:$0xff]
        %v2054 = vld [vmem:[%s1345 + $0x5d8] sm:$0xff]
        %v2055 = vld [vmem:[%s1345 + $0x5e0] sm:$0xff]
        %v2056 = vld [vmem:[%s1345 + $0x5e8] sm:$0xff]
        %v2057 = vld [vmem:[%s1345 + $0x5f0] sm:$0xff]
        %v2058 = vld [vmem:[%s1345 + $0x5f8] sm:$0xff]
        %v2059 = vld [vmem:[%s1345 + $0x600] sm:$0xff]
        %v2060 = vld [vmem:[%s1345 + $0x608] sm:$0xff]
        %v2061 = vld [vmem:[%s1345 + $0x610] sm:$0xff]
        %v2062 = vld [vmem:[%s1345 + $0x618] sm:$0xff]
        %v2063 = vld [vmem:[%s1345 + $0x620] sm:$0xff]
        %v2064 = vld [vmem:[%s1345 + $0x628] sm:$0xff]
        %v2065 = vld [vmem:[%s1345 + $0x630] sm:$0xff]
        %v2066 = vld [vmem:[%s1345 + $0x638] sm:$0xff]
        %v2067 = vld [vmem:[%s1345 + $0x640] sm:$0xff]
        %v2068 = vld [vmem:[%s1345 + $0x648] sm:$0xff]
        %v2069 = vld [vmem:[%s1345 + $0x650] sm:$0xff]
        %v2070 = vld [vmem:[%s1345 + $0x658] sm:$0xff]
        %v2071 = vld [vmem:[%s1345 + $0x660] sm:$0xff]
        %v2072 = vld [vmem:[%s1345 + $0x668] sm:$0xff]
        %v2073 = vld [vmem:[%s1345 + $0x670] sm:$0xff]
        %v2074 = vld [vmem:[%s1345 + $0x678] sm:$0xff]
        %v2075 = vld [vmem:[%s1345 + $0x680] sm:$0xff]
        %v2076 = vld [vmem:[%s1345 + $0x688] sm:$0xff]
        %v2077 = vld [vmem:[%s1345 + $0x690] sm:$0xff]
        %v2078 = vld [vmem:[%s1345 + $0x698] sm:$0xff]
        %v2079 = vld [vmem:[%s1345 + $0x6a0] sm:$0xff]
        %v2080 = vld [vmem:[%s1345 + $0x6a8] sm:$0xff]
        %v2081 = vld [vmem:[%s1345 + $0x6b0] sm:$0xff]
        %v2082 = vld [vmem:[%s1345 + $0x6b8] sm:$0xff]
        %v2083 = vld [vmem:[%s1345 + $0x6c0] sm:$0xff]
        %v2084 = vld [vmem:[%s1345 + $0x6c8] sm:$0xff]
        %v2085 = vld [vmem:[%s1345 + $0x6d0] sm:$0xff]
        %v2086 = vld [vmem:[%s1345 + $0x6d8] sm:$0xff]
        %v2087 = vld [vmem:[%s1345 + $0x6e0] sm:$0xff]
        %v2088 = vld [vmem:[%s1345 + $0x6e8] sm:$0xff]
        %v2089 = vld [vmem:[%s1345 + $0x6f0] sm:$0xff]
        %v2090 = vld [vmem:[%s1345 + $0x6f8] sm:$0xff]
        %v2091 = vld [vmem:[%s1345 + $0x700] sm:$0xff]
        %v2092 = vld [vmem:[%s1345 + $0x708] sm:$0xff]
        %v2093 = vld [vmem:[%s1345 + $0x710] sm:$0xff]
        %v2094 = vld [vmem:[%s1345 + $0x718] sm:$0xff]
        %v2095 = vld [vmem:[%s1345 + $0x720] sm:$0xff]
        %v2096 = vld [vmem:[%s1345 + $0x728] sm:$0xff]
        %v2097 = vld [vmem:[%s1345 + $0x730] sm:$0xff]
        %v2098 = vld [vmem:[%s1345 + $0x738] sm:$0xff]
        %v2099 = vld [vmem:[%s1345 + $0x740] sm:$0xff]
        %v2100 = vld [vmem:[%s1345 + $0x748] sm:$0xff]
        %v2101 = vld [vmem:[%s1345 + $0x750] sm:$0xff]
        %v2102 = vld [vmem:[%s1345 + $0x758] sm:$0xff]
        %v2103 = vld [vmem:[%s1345 + $0x760] sm:$0xff]
        %v2104 = vld [vmem:[%s1345 + $0x768] sm:$0xff]
        %v2105 = vld [vmem:[%s1345 + $0x770] sm:$0xff]
        %v2106 = vld [vmem:[%s1345 + $0x778] sm:$0xff]
        %v2107 = vld [vmem:[%s1345 + $0x780] sm:$0xff]
        %v2108 = vld [vmem:[%s1345 + $0x788] sm:$0xff]
        %v2109 = vld [vmem:[%s1345 + $0x790] sm:$0xff]
        %v2110 = vld [vmem:[%s1345 + $0x798] sm:$0xff]
        %v2111 = vld [vmem:[%s1345 + $0x7a0] sm:$0xff]
        %v2112 = vld [vmem:[%s1345 + $0x7a8] sm:$0xff]
        %v2113 = vld [vmem:[%s1345 + $0x7b0] sm:$0xff]
        %v2114 = vld [vmem:[%s1345 + $0x7b8] sm:$0xff]
        %v2115 = vld [vmem:[%s1345 + $0x7c0] sm:$0xff]
        %v2116 = vld [vmem:[%s1345 + $0x7c8] sm:$0xff]
        %v2117 = vld [vmem:[%s1345 + $0x7d0] sm:$0xff]
        %v2118 = vld [vmem:[%s1345 + $0x7d8] sm:$0xff]
        %v2119 = vld [vmem:[%s1345 + $0x7e0] sm:$0xff]
        %v2120 = vld [vmem:[%s1345 + $0x7e8] sm:$0xff]
        %v2121 = vld [vmem:[%s1345 + $0x7f0] sm:$0xff]
        %v2122 = vld [vmem:[%s1345 + $0x7f8] sm:$0xff]
        %v2123 = vld [vmem:[%s1345 + $0x800] sm:$0xff]
        %v2124 = vld [vmem:[%s1345 + $0x808] sm:$0xff]
        %v2125 = vld [vmem:[%s1345 + $0x810] sm:$0xff]
        %v2126 = vld [vmem:[%s1345 + $0x818] sm:$0xff]
        %v2127 = vld [vmem:[%s1345 + $0x820] sm:$0xff]
        %v2128 = vld [vmem:[%s1345 + $0x828] sm:$0xff]
        %v2129 = vld [vmem:[%s1345 + $0x830] sm:$0xff]
        %v2130 = vld [vmem:[%s1345 + $0x838] sm:$0xff]
        %v2131 = vld [vmem:[%s1345 + $0x840] sm:$0xff]
        %v2132 = vld [vmem:[%s1345 + $0x848] sm:$0xff]
        %v2133 = vld [vmem:[%s1345 + $0x850] sm:$0xff]
        %v2134 = vld [vmem:[%s1345 + $0x858] sm:$0xff]
        %v2135 = vld [vmem:[%s1345 + $0x860] sm:$0xff]
        %v2136 = vld [vmem:[%s1345 + $0x868] sm:$0xff]
        %v2137 = vld [vmem:[%s1345 + $0x870] sm:$0xff]
        %v2138 = vld [vmem:[%s1345 + $0x878] sm:$0xff]
        %v2139 = vld [vmem:[%s1345 + $0x880] sm:$0xff]
        %v2140 = vld [vmem:[%s1345 + $0x888] sm:$0xff]
        %v2141 = vld [vmem:[%s1345 + $0x890] sm:$0xff]
        %v2142 = vld [vmem:[%s1345 + $0x898] sm:$0xff]
        %v2143 = vld [vmem:[%s1345 + $0x8a0] sm:$0xff]
        %v2144 = vld [vmem:[%s1345 + $0x8a8] sm:$0xff]
        %v2145 = vld [vmem:[%s1345 + $0x8b0] sm:$0xff]
        %v2146 = vld [vmem:[%s1345 + $0x8b8] sm:$0xff]
        %v2147 = vld [vmem:[%s1345 + $0x8c0] sm:$0xff]
        %v2148 = vld [vmem:[%s1345 + $0x8c8] sm:$0xff]
        %v2149 = vld [vmem:[%s1345 + $0x8d0] sm:$0xff]
        %v2150 = vld [vmem:[%s1345 + $0x8d8] sm:$0xff]
        %v2151 = vld [vmem:[%s1345 + $0x8e0] sm:$0xff]
        %v2152 = vld [vmem:[%s1345 + $0x8e8] sm:$0xff]
        %v2153 = vld [vmem:[%s1345 + $0x8f0] sm:$0xff]
        %v2154 = vld [vmem:[%s1345 + $0x8f8] sm:$0xff]
        %v2155 = vld [vmem:[%s1345 + $0x900] sm:$0xff]
        %v2156 = vld [vmem:[%s1345 + $0x908] sm:$0xff]
        %v2157 = vld [vmem:[%s1345 + $0x910] sm:$0xff]
        %v2158 = vld [vmem:[%s1345 + $0x918] sm:$0xff]
        %v2159 = vld [vmem:[%s1345 + $0x920] sm:$0xff]
        %v2160 = vld [vmem:[%s1345 + $0x928] sm:$0xff]
        %v2161 = vld [vmem:[%s1345 + $0x930] sm:$0xff]
        %v2162 = vld [vmem:[%s1345 + $0x938] sm:$0xff]
        %v2163 = vld [vmem:[%s1345 + $0x940] sm:$0xff]
        %v2164 = vld [vmem:[%s1345 + $0x948] sm:$0xff]
        %v2165 = vld [vmem:[%s1345 + $0x950] sm:$0xff]
        %v2166 = vld [vmem:[%s1345 + $0x958] sm:$0xff]
        %v2167 = vld [vmem:[%s1345 + $0x960] sm:$0xff]
        %v2168 = vld [vmem:[%s1345 + $0x968] sm:$0xff]
        %v2169 = vld [vmem:[%s1345 + $0x970] sm:$0xff]
        %v2170 = vld [vmem:[%s1345 + $0x978] sm:$0xff]
        %v2171 = vld [vmem:[%s1345 + $0x980] sm:$0xff]
        %v2172 = vld [vmem:[%s1345 + $0x988] sm:$0xff]
        %v2173 = vld [vmem:[%s1345 + $0x990] sm:$0xff]
        %v2174 = vld [vmem:[%s1345 + $0x998] sm:$0xff]
        %v2175 = vld [vmem:[%s1345 + $0x9a0] sm:$0xff]
        %v2176 = vld [vmem:[%s1345 + $0x9a8] sm:$0xff]
        %v2177 = vld [vmem:[%s1345 + $0x9b0] sm:$0xff]
        %v2178 = vld [vmem:[%s1345 + $0x9b8] sm:$0xff]
        %v2179 = vld [vmem:[%s1345 + $0x9c0] sm:$0xff]
        %v2180 = vld [vmem:[%s1345 + $0x9c8] sm:$0xff]
        %v2181 = vld [vmem:[%s1345 + $0x9d0] sm:$0xff]
        %v2182 = vld [vmem:[%s1345 + $0x9d8] sm:$0xff]
        %v2183 = vld [vmem:[%s1345 + $0x9e0] sm:$0xff]
        %v2184 = vld [vmem:[%s1345 + $0x9e8] sm:$0xff]
        %v2185 = vld [vmem:[%s1345 + $0x9f0] sm:$0xff]
        %v2186 = vld [vmem:[%s1345 + $0x9f8] sm:$0xff]
        %v2187 = vld [vmem:[%s1345 + $0xa00] sm:$0xff]
        %v2188 = vld [vmem:[%s1345 + $0xa08] sm:$0xff]
        %v2189 = vld [vmem:[%s1345 + $0xa10] sm:$0xff]
        %v2190 = vld [vmem:[%s1345 + $0xa18] sm:$0xff]
        %v2191 = vld [vmem:[%s1345 + $0xa20] sm:$0xff]
        %v2192 = vld [vmem:[%s1345 + $0xa28] sm:$0xff]
        %v2193 = vld [vmem:[%s1345 + $0xa30] sm:$0xff]
        %v2194 = vld [vmem:[%s1345 + $0xa38] sm:$0xff]
        %v2195 = vld [vmem:[%s1345 + $0xa40] sm:$0xff]
        %v2196 = vld [vmem:[%s1345 + $0xa48] sm:$0xff]
        %v2197 = vld [vmem:[%s1345 + $0xa50] sm:$0xff]
        %v2198 = vld [vmem:[%s1345 + $0xa58] sm:$0xff]
        %v2199 = vld [vmem:[%s1345 + $0xa60] sm:$0xff]
        %v2200 = vld [vmem:[%s1345 + $0xa68] sm:$0xff]
        %v2201 = vld [vmem:[%s1345 + $0xa70] sm:$0xff]
        %v2202 = vld [vmem:[%s1345 + $0xa78] sm:$0xff]
        %v2203 = vld [vmem:[%s1345 + $0xa80] sm:$0xff]
        %v2204 = vld [vmem:[%s1345 + $0xa88] sm:$0xff]
        %v2205 = vld [vmem:[%s1345 + $0xa90] sm:$0xff]
        %v2206 = vld [vmem:[%s1345 + $0xa98] sm:$0xff]
        %v2207 = vld [vmem:[%s1345 + $0xaa0] sm:$0xff]
        %v2208 = vld [vmem:[%s1345 + $0xaa8] sm:$0xff]
        %v2209 = vld [vmem:[%s1345 + $0xab0] sm:$0xff]
        %v2210 = vld [vmem:[%s1345 + $0xab8] sm:$0xff]
        %v2211 = vld [vmem:[%s1345 + $0xac0] sm:$0xff]
        %v2212 = vld [vmem:[%s1345 + $0xac8] sm:$0xff]
        %v2213 = vld [vmem:[%s1345 + $0xad0] sm:$0xff]
        %v2214 = vld [vmem:[%s1345 + $0xad8] sm:$0xff]
        %v2215 = vld [vmem:[%s1345 + $0xae0] sm:$0xff]
        %v2216 = vld [vmem:[%s1345 + $0xae8] sm:$0xff]
        %v2217 = vld [vmem:[%s1345 + $0xaf0] sm:$0xff]
        %v2218 = vld [vmem:[%s1345 + $0xaf8] sm:$0xff]
        %v2219 = vld [vmem:[%s1345 + $0xb00] sm:$0xff]
        %v2220 = vld [vmem:[%s1345 + $0xb08] sm:$0xff]
        %v2221 = vld [vmem:[%s1345 + $0xb10] sm:$0xff]
        %v2222 = vld [vmem:[%s1345 + $0xb18] sm:$0xff]
        %v2223 = vld [vmem:[%s1345 + $0xb20] sm:$0xff]
        %v2224 = vld [vmem:[%s1345 + $0xb28] sm:$0xff]
        %v2225 = vld [vmem:[%s1345 + $0xb30] sm:$0xff]
        %v2226 = vld [vmem:[%s1345 + $0xb38] sm:$0xff]
        %v2227 = vld [vmem:[%s1345 + $0xb40] sm:$0xff]
        %v2228 = vld [vmem:[%s1345 + $0xb48] sm:$0xff]
        %v2229 = vld [vmem:[%s1345 + $0xb50] sm:$0xff]
        %v2230 = vld [vmem:[%s1345 + $0xb58] sm:$0xff]
        %v2231 = vld [vmem:[%s1345 + $0xb60] sm:$0xff]
        %v2232 = vld [vmem:[%s1345 + $0xb68] sm:$0xff]
        %v2233 = vld [vmem:[%s1345 + $0xb70] sm:$0xff]
        %v2234 = vld [vmem:[%s1345 + $0xb78] sm:$0xff]
        %v2235 = vld [vmem:[%s1345 + $0xb80] sm:$0xff]
        %v2236 = vld [vmem:[%s1345 + $0xb88] sm:$0xff]
        %v2237 = vld [vmem:[%s1345 + $0xb90] sm:$0xff]
        %v2238 = vld [vmem:[%s1345 + $0xb98] sm:$0xff]
        %v2239 = vld [vmem:[%s1345 + $0xba0] sm:$0xff]
        %v2240 = vld [vmem:[%s1345 + $0xba8] sm:$0xff]
        %v2241 = vld [vmem:[%s1345 + $0xbb0] sm:$0xff]
        %v2242 = vld [vmem:[%s1345 + $0xbb8] sm:$0xff]
        %v2243 = vld [vmem:[%s1345 + $0xbc0] sm:$0xff]
        %v2244 = vld [vmem:[%s1345 + $0xbc8] sm:$0xff]
        %v2245 = vld [vmem:[%s1345 + $0xbd0] sm:$0xff]
        %v2246 = vld [vmem:[%s1345 + $0xbd8] sm:$0xff]
        %v2247 = vld [vmem:[%s1345 + $0xbe0] sm:$0xff]
        %v2248 = vld [vmem:[%s1345 + $0xbe8] sm:$0xff]
        %v2249 = vld [vmem:[%s1345 + $0xbf0] sm:$0xff]
        %v2250 = vld [vmem:[%s1345 + $0xbf8] sm:$0xff]
        %v2251 = vld [vmem:[%s1345 + $0xc00] sm:$0xff]
        %v2252 = vld [vmem:[%s1345 + $0xc08] sm:$0xff]
        %v2253 = vld [vmem:[%s1345 + $0xc10] sm:$0xff]
        %v2254 = vld [vmem:[%s1345 + $0xc18] sm:$0xff]
        %v2255 = vld [vmem:[%s1345 + $0xc20] sm:$0xff]
        %v2256 = vld [vmem:[%s1345 + $0xc28] sm:$0xff]
        %v2257 = vld [vmem:[%s1345 + $0xc30] sm:$0xff]
        %v2258 = vld [vmem:[%s1345 + $0xc38] sm:$0xff]
        %v2259 = vld [vmem:[%s1345 + $0xc40] sm:$0xff]
        %v2260 = vld [vmem:[%s1345 + $0xc48] sm:$0xff]
        %v2261 = vld [vmem:[%s1345 + $0xc50] sm:$0xff]
        %v2262 = vld [vmem:[%s1345 + $0xc58] sm:$0xff]
        %v2263 = vld [vmem:[%s1345 + $0xc60] sm:$0xff]
        %v2264 = vld [vmem:[%s1345 + $0xc68] sm:$0xff]
        %v2265 = vld [vmem:[%s1345 + $0xc70] sm:$0xff]
        %v2266 = vld [vmem:[%s1345 + $0xc78] sm:$0xff]
        %v2267 = vld [vmem:[%s1345 + $0xc80] sm:$0xff]
        %v2268 = vld [vmem:[%s1345 + $0xc88] sm:$0xff]
        %v2269 = vld [vmem:[%s1345 + $0xc90] sm:$0xff]
        %v2270 = vld [vmem:[%s1345 + $0xc98] sm:$0xff]
        %v2271 = vld [vmem:[%s1345 + $0xca0] sm:$0xff]
        %v2272 = vld [vmem:[%s1345 + $0xca8] sm:$0xff]
        %v2273 = vld [vmem:[%s1345 + $0xcb0] sm:$0xff]
        %v2274 = vld [vmem:[%s1345 + $0xcb8] sm:$0xff]
        %v2275 = vld [vmem:[%s1345 + $0xcc0] sm:$0xff]
        %v2276 = vld [vmem:[%s1345 + $0xcc8] sm:$0xff]
        %v2277 = vld [vmem:[%s1345 + $0xcd0] sm:$0xff]
        %v2278 = vld [vmem:[%s1345 + $0xcd8] sm:$0xff]
        %v2279 = vld [vmem:[%s1345 + $0xce0] sm:$0xff]
        %v2280 = vld [vmem:[%s1345 + $0xce8] sm:$0xff]
        %v2281 = vld [vmem:[%s1345 + $0xcf0] sm:$0xff]
        %v2282 = vld [vmem:[%s1345 + $0xcf8] sm:$0xff]
        %v2283 = vld [vmem:[%s1345 + $0xd00] sm:$0xff]
        %v2284 = vld [vmem:[%s1345 + $0xd08] sm:$0xff]
        %v2285 = vld [vmem:[%s1345 + $0xd10] sm:$0xff]
        %v2286 = vld [vmem:[%s1345 + $0xd18] sm:$0xff]
        %v2287 = vld [vmem:[%s1345 + $0xd20] sm:$0xff]
        %v2288 = vld [vmem:[%s1345 + $0xd28] sm:$0xff]
        %v2289 = vld [vmem:[%s1345 + $0xd30] sm:$0xff]
        %v2290 = vld [vmem:[%s1345 + $0xd38] sm:$0xff]
        %v2291 = vld [vmem:[%s1345 + $0xd40] sm:$0xff]
        %v2292 = vld [vmem:[%s1345 + $0xd48] sm:$0xff]
        %v2293 = vld [vmem:[%s1345 + $0xd50] sm:$0xff]
        %v2294 = vld [vmem:[%s1345 + $0xd58] sm:$0xff]
        %v2295 = vld [vmem:[%s1345 + $0xd60] sm:$0xff]
        %v2296 = vld [vmem:[%s1345 + $0xd68] sm:$0xff]
        %v2297 = vld [vmem:[%s1345 + $0xd70] sm:$0xff]
        %v2298 = vld [vmem:[%s1345 + $0xd78] sm:$0xff]
        %v2299 = vld [vmem:[%s1345 + $0xd80] sm:$0xff]
        %v2300 = vld [vmem:[%s1345 + $0xd88] sm:$0xff]
        %v2301 = vld [vmem:[%s1345 + $0xd90] sm:$0xff]
        %v2302 = vld [vmem:[%s1345 + $0xd98] sm:$0xff]
        %v2303 = vld [vmem:[%s1345 + $0xda0] sm:$0xff]
        %v2304 = vld [vmem:[%s1345 + $0xda8] sm:$0xff]
        %v2305 = vld [vmem:[%s1345 + $0xdb0] sm:$0xff]
        %v2306 = vld [vmem:[%s1345 + $0xdb8] sm:$0xff]
        %v2307 = vld [vmem:[%s1345 + $0xdc0] sm:$0xff]
        %v2308 = vld [vmem:[%s1345 + $0xdc8] sm:$0xff]
        %v2309 = vld [vmem:[%s1345 + $0xdd0] sm:$0xff]
        %v2310 = vld [vmem:[%s1345 + $0xdd8] sm:$0xff]
        %v2311 = vld [vmem:[%s1345 + $0xde0] sm:$0xff]
        %v2312 = vld [vmem:[%s1345 + $0xde8] sm:$0xff]
        %v2313 = vld [vmem:[%s1345 + $0xdf0] sm:$0xff]
        %v2314 = vld [vmem:[%s1345 + $0xdf8] sm:$0xff]
        %v2315 = vld [vmem:[%s1345 + $0xe00] sm:$0xff]
        %v2316 = vld [vmem:[%s1345 + $0xe08] sm:$0xff]
        %v2317 = vld [vmem:[%s1345 + $0xe10] sm:$0xff]
        %v2318 = vld [vmem:[%s1345 + $0xe18] sm:$0xff]
        %v2319 = vld [vmem:[%s1345 + $0xe20] sm:$0xff]
        %v2320 = vld [vmem:[%s1345 + $0xe28] sm:$0xff]
        %v2321 = vld [vmem:[%s1345 + $0xe30] sm:$0xff]
        %v2322 = vld [vmem:[%s1345 + $0xe38] sm:$0xff]
        %v2323 = vld [vmem:[%s1345 + $0xe40] sm:$0xff]
        %v2324 = vld [vmem:[%s1345 + $0xe48] sm:$0xff]
        %v2325 = vld [vmem:[%s1345 + $0xe50] sm:$0xff]
        %v2326 = vld [vmem:[%s1345 + $0xe58] sm:$0xff]
        %v2327 = vld [vmem:[%s1345 + $0xe60] sm:$0xff]
        %v2328 = vld [vmem:[%s1345 + $0xe68] sm:$0xff]
        %v2329 = vld [vmem:[%s1345 + $0xe70] sm:$0xff]
        %v2330 = vld [vmem:[%s1345 + $0xe78] sm:$0xff]
        %v2331 = vld [vmem:[%s1345 + $0xe80] sm:$0xff]
        %v2332 = vld [vmem:[%s1345 + $0xe88] sm:$0xff]
        %v2333 = vld [vmem:[%s1345 + $0xe90] sm:$0xff]
        %v2334 = vld [vmem:[%s1345 + $0xe98] sm:$0xff]
        %v2335 = vld [vmem:[%s1345 + $0xea0] sm:$0xff]
        %v2336 = vld [vmem:[%s1345 + $0xea8] sm:$0xff]
        %v2337 = vld [vmem:[%s1345 + $0xeb0] sm:$0xff]
        %v2338 = vld [vmem:[%s1345 + $0xeb8] sm:$0xff]
        %v2339 = vld [vmem:[%s1345 + $0xec0] sm:$0xff]
        %v2340 = vld [vmem:[%s1345 + $0xec8] sm:$0xff]
        %v2341 = vld [vmem:[%s1345 + $0xed0] sm:$0xff]
        %v2342 = vld [vmem:[%s1345 + $0xed8] sm:$0xff]
        %v2343 = vld [vmem:[%s1345 + $0xee0] sm:$0xff]
        %v2344 = vld [vmem:[%s1345 + $0xee8] sm:$0xff]
        %v2345 = vld [vmem:[%s1345 + $0xef0] sm:$0xff]
        %v2346 = vld [vmem:[%s1345 + $0xef8] sm:$0xff]
        %v2347 = vld [vmem:[%s1345 + $0xf00] sm:$0xff]
        %v2348 = vld [vmem:[%s1345 + $0xf08] sm:$0xff]
        %v2349 = vld [vmem:[%s1345 + $0xf10] sm:$0xff]
        %v2350 = vld [vmem:[%s1345 + $0xf18] sm:$0xff]
        %v2351 = vld [vmem:[%s1345 + $0xf20] sm:$0xff]
        %v2352 = vld [vmem:[%s1345 + $0xf28] sm:$0xff]
        %v2353 = vld [vmem:[%s1345 + $0xf30] sm:$0xff]
        %v2354 = vld [vmem:[%s1345 + $0xf38] sm:$0xff]
        %v2355 = vld [vmem:[%s1345 + $0xf40] sm:$0xff]
        %v2356 = vld [vmem:[%s1345 + $0xf48] sm:$0xff]
        %v2357 = vld [vmem:[%s1345 + $0xf50] sm:$0xff]
        %v2358 = vld [vmem:[%s1345 + $0xf58] sm:$0xff]
        %v2359 = vld [vmem:[%s1345 + $0xf60] sm:$0xff]
        %v2360 = vld [vmem:[%s1345 + $0xf68] sm:$0xff]
        %v2361 = vld [vmem:[%s1345 + $0xf70] sm:$0xff]
        %v2362 = vld [vmem:[%s1345 + $0xf78] sm:$0xff]
        %v2363 = vld [vmem:[%s1345 + $0xf80] sm:$0xff]
        %v2364 = vld [vmem:[%s1345 + $0xf88] sm:$0xff]
        %v2365 = vld [vmem:[%s1345 + $0xf90] sm:$0xff]
        %v2366 = vld [vmem:[%s1345 + $0xf98] sm:$0xff]
        %v2367 = vld [vmem:[%s1345 + $0xfa0] sm:$0xff]
        %v2368 = vld [vmem:[%s1345 + $0xfa8] sm:$0xff]
        %v2369 = vld [vmem:[%s1345 + $0xfb0] sm:$0xff]
        %v2370 = vld [vmem:[%s1345 + $0xfb8] sm:$0xff]
        %v2371 = vld [vmem:[%s1345 + $0xfc0] sm:$0xff]
        %v2372 = vld [vmem:[%s1345 + $0xfc8] sm:$0xff]
        %v2373 = vld [vmem:[%s1345 + $0xfd0] sm:$0xff]
        %v2374 = vld [vmem:[%s1345 + $0xfd8] sm:$0xff]
        %v2375 = vld [vmem:[%s1345 + $0xfe0] sm:$0xff]
        %v2376 = vld [vmem:[%s1345 + $0xfe8] sm:$0xff]
        %v2377 = vld [vmem:[%s1345 + $0xff0] sm:$0xff]
        %v2378 = vld [vmem:[%s1345 + $0xff8] sm:$0xff]
        %v2379 = vld [vmem:[%s1404] sm:$0xf]
        %v2381 = vlaneseq
        %v2382 = vshrl.u32 %v2381, 7
        %v2383 = vsub.s32 0, %v2382
        %v2384 = vrot.slane %v2379, %v2383
        %v2385 = vlaneseq
        %v2386 = vshrl.u32 %v2385, 7
        %v2387 = vsub.s32 1, %v2386
        %v2388 = vrot.slane %v2379, %v2387
        %v2389 = vlaneseq
        %v2390 = vshrl.u32 %v2389, 7
        %v2391 = vsub.s32 2, %v2390
        %v2392 = vrot.slane %v2379, %v2391
        %v2393 = vlaneseq
        %v2394 = vshrl.u32 %v2393, 7
        %v2395 = vsub.s32 3, %v2394
        %v2396 = vrot.slane %v2379, %v2395
        %2401 = vmatprep.subr.mxu0 %v1868
        %2402 = vmatpush1.msra.mxu0 %v1867
        %2403 = vmatprep.subr.mxu0 %v1872
        %2404 = vmatpush1.msra.mxu0 %v1871
        %2405 = vmatprep.subr.mxu0 %v1876
        %2406 = vmatpush1.msra.mxu0 %v1875
        %2407 = vmatprep.subr.mxu0 %v1880
        %2408 = vmatpush1.msra.mxu0 %v1879
        %2409 = vmatprep.subr.mxu0 %v1884
        %2410 = vmatpush1.msra.mxu0 %v1883
        %2411 = vmatprep.subr.mxu0 %v1888
        %2412 = vmatpush1.msra.mxu0 %v1887
        %2413 = vmatprep.subr.mxu0 %v1892
        %2414 = vmatpush1.msra.mxu0 %v1891
        %2415 = vmatprep.subr.mxu0 %v1896
        %2416 = vmatpush1.msra.mxu0 %v1895
        %2417 = vmatprep.subr.mxu0 %v1900
        %2418 = vmatpush1.msra.mxu0 %v1899
        %2419 = vmatprep.subr.mxu0 %v1904
        %2420 = vmatpush1.msra.mxu0 %v1903
        %2421 = vmatprep.subr.mxu0 %v1908
        %2422 = vmatpush1.msra.mxu0 %v1907
        %2423 = vmatprep.subr.mxu0 %v1912
        %2424 = vmatpush1.msra.mxu0 %v1911
        %2425 = vmatprep.subr.mxu0 %v1916
        %2426 = vmatpush1.msra.mxu0 %v1915
        %2427 = vmatprep.subr.mxu0 %v1920
        %2428 = vmatpush1.msra.mxu0 %v1919
        %2429 = vmatprep.subr.mxu0 %v1924
        %2430 = vmatpush1.msra.mxu0 %v1923
        %2431 = vmatprep.subr.mxu0 %v1928
        %2432 = vmatpush1.msra.mxu0 %v1927
        %2433 = vmatprep.subr.mxu0 %v1932
        %2434 = vmatpush1.msra.mxu0 %v1931
        %2435 = vmatprep.subr.mxu0 %v1936
        %2436 = vmatpush1.msra.mxu0 %v1935
        %2437 = vmatprep.subr.mxu0 %v1940
        %2438 = vmatpush1.msra.mxu0 %v1939
        %2439 = vmatprep.subr.mxu0 %v1944
        %2440 = vmatpush1.msra.mxu0 %v1943
        %2441 = vmatprep.subr.mxu0 %v1948
        %2442 = vmatpush1.msra.mxu0 %v1947
        %2443 = vmatprep.subr.mxu0 %v1952
        %2444 = vmatpush1.msra.mxu0 %v1951
        %2445 = vmatprep.subr.mxu0 %v1956
        %2446 = vmatpush1.msra.mxu0 %v1955
        %2447 = vmatprep.subr.mxu0 %v1960
        %2448 = vmatpush1.msra.mxu0 %v1959
        %2449 = vmatprep.subr.mxu0 %v1964
        %2450 = vmatpush1.msra.mxu0 %v1963
        %2451 = vmatprep.subr.mxu0 %v1968
        %2452 = vmatpush1.msra.mxu0 %v1967
        %2453 = vmatprep.subr.mxu0 %v1972
        %2454 = vmatpush1.msra.mxu0 %v1971
        %2455 = vmatprep.subr.mxu0 %v1976
        %2456 = vmatpush1.msra.mxu0 %v1975
        %2457 = vmatprep.subr.mxu0 %v1980
        %2458 = vmatpush1.msra.mxu0 %v1979
        %2459 = vmatprep.subr.mxu0 %v1984
        %2460 = vmatpush1.msra.mxu0 %v1983
        %2461 = vmatprep.subr.mxu0 %v1988
        %2462 = vmatpush1.msra.mxu0 %v1987
        %2463 = vmatprep.subr.mxu0 %v1992
        %2464 = vmatpush1.msra.mxu0 %v1991
        %2465 = vmatprep.mubr.f32.mxu0 %v1860
        %2466 = vmatmul.mubr.f32.gmra.mrb[0].mxu0 %v1859
        %v2467 = vpop.f32.mrb[0].mxu0
        %v2468 = vadd.f32 %v2384, %v2467
        %v2469 = vpop.f32.mrb[0].mxu0
        %v2470 = vadd.f32 %v2388, %v2469
        %2471 = vdwg.mxu0
        %2472 = vmatprep.subr.mxu0 %v1996
        %2473 = vmatpush1.msra.mxu0 %v1995
        %2474 = vmatprep.subr.mxu0 %v2000
        %2475 = vmatpush1.msra.mxu0 %v1999
        %2476 = vmatprep.subr.mxu0 %v2004
        %2477 = vmatpush1.msra.mxu0 %v2003
        %2478 = vmatprep.subr.mxu0 %v2008
        %2479 = vmatpush1.msra.mxu0 %v2007
        %2480 = vmatprep.subr.mxu0 %v2012
        %2481 = vmatpush1.msra.mxu0 %v2011
        %2482 = vmatprep.subr.mxu0 %v2016
        %2483 = vmatpush1.msra.mxu0 %v2015
        %2484 = vmatprep.subr.mxu0 %v2020
        %2485 = vmatpush1.msra.mxu0 %v2019
        %2486 = vmatprep.subr.mxu0 %v2024
        %2487 = vmatpush1.msra.mxu0 %v2023
        %2488 = vmatprep.subr.mxu0 %v2028
        %2489 = vmatpush1.msra.mxu0 %v2027
        %2490 = vmatprep.subr.mxu0 %v2032
        %2491 = vmatpush1.msra.mxu0 %v2031
        %2492 = vmatprep.subr.mxu0 %v2036
        %2493 = vmatpush1.msra.mxu0 %v2035
        %2494 = vmatprep.subr.mxu0 %v2040
        %2495 = vmatpush1.msra.mxu0 %v2039
        %2496 = vmatprep.subr.mxu0 %v2044
        %2497 = vmatpush1.msra.mxu0 %v2043
        %2498 = vmatprep.subr.mxu0 %v2048
        %2499 = vmatpush1.msra.mxu0 %v2047
        %2500 = vmatprep.subr.mxu0 %v2052
        %2501 = vmatpush1.msra.mxu0 %v2051
        %2502 = vmatprep.subr.mxu0 %v2056
        %2503 = vmatpush1.msra.mxu0 %v2055
        %2504 = vmatprep.subr.mxu0 %v2060
        %2505 = vmatpush1.msra.mxu0 %v2059
        %2506 = vmatprep.subr.mxu0 %v2064
        %2507 = vmatpush1.msra.mxu0 %v2063
        %2508 = vmatprep.subr.mxu0 %v2068
        %2509 = vmatpush1.msra.mxu0 %v2067
        %2510 = vmatprep.subr.mxu0 %v2072
        %2511 = vmatpush1.msra.mxu0 %v2071
        %2512 = vmatprep.subr.mxu0 %v2076
        %2513 = vmatpush1.msra.mxu0 %v2075
        %2514 = vmatprep.subr.mxu0 %v2080
        %2515 = vmatpush1.msra.mxu0 %v2079
        %2516 = vmatprep.subr.mxu0 %v2084
        %2517 = vmatpush1.msra.mxu0 %v2083
        %2518 = vmatprep.subr.mxu0 %v2088
        %2519 = vmatpush1.msra.mxu0 %v2087
        %2520 = vmatprep.subr.mxu0 %v2092
        %2521 = vmatpush1.msra.mxu0 %v2091
        %2522 = vmatprep.subr.mxu0 %v2096
        %2523 = vmatpush1.msra.mxu0 %v2095
        %2524 = vmatprep.subr.mxu0 %v2100
        %2525 = vmatpush1.msra.mxu0 %v2099
        %2526 = vmatprep.subr.mxu0 %v2104
        %2527 = vmatpush1.msra.mxu0 %v2103
        %2528 = vmatprep.subr.mxu0 %v2108
        %2529 = vmatpush1.msra.mxu0 %v2107
        %2530 = vmatprep.subr.mxu0 %v2112
        %2531 = vmatpush1.msra.mxu0 %v2111
        %2532 = vmatprep.subr.mxu0 %v2116
        %2533 = vmatpush1.msra.mxu0 %v2115
        %2534 = vmatprep.subr.mxu0 %v2120
        %2535 = vmatpush1.msra.mxu0 %v2119
        %2536 = vmatprep.mubr.f32.mxu0 %v1862
        %2537 = vmatmul.mubr.f32.gmra.mrb[0].mxu0 %v1861
        %v2538 = vpop.f32.mrb[0].mxu0
        %v2539 = vadd.f32 %v2468, %v2538
        %v2540 = vpop.f32.mrb[0].mxu0
        %v2541 = vadd.f32 %v2470, %v2540
        %2542 = vdwg.mxu0
        %2543 = vmatprep.subr.mxu0 %v2124
        %2544 = vmatpush1.msra.mxu0 %v2123
        %2545 = vmatprep.subr.mxu0 %v2128
        %2546 = vmatpush1.msra.mxu0 %v2127
        %2547 = vmatprep.subr.mxu0 %v2132
        %2548 = vmatpush1.msra.mxu0 %v2131
        %2549 = vmatprep.subr.mxu0 %v2136
        %2550 = vmatpush1.msra.mxu0 %v2135
        %2551 = vmatprep.subr.mxu0 %v2140
        %2552 = vmatpush1.msra.mxu0 %v2139
        %2553 = vmatprep.subr.mxu0 %v2144
        %2554 = vmatpush1.msra.mxu0 %v2143
        %2555 = vmatprep.subr.mxu0 %v2148
        %2556 = vmatpush1.msra.mxu0 %v2147
        %2557 = vmatprep.subr.mxu0 %v2152
        %2558 = vmatpush1.msra.mxu0 %v2151
        %2559 = vmatprep.subr.mxu0 %v2156
        %2560 = vmatpush1.msra.mxu0 %v2155
        %2561 = vmatprep.subr.mxu0 %v2160
        %2562 = vmatpush1.msra.mxu0 %v2159
        %2563 = vmatprep.subr.mxu0 %v2164
        %2564 = vmatpush1.msra.mxu0 %v2163
        %2565 = vmatprep.subr.mxu0 %v2168
        %2566 = vmatpush1.msra.mxu0 %v2167
        %2567 = vmatprep.subr.mxu0 %v2172
        %2568 = vmatpush1.msra.mxu0 %v2171
        %2569 = vmatprep.subr.mxu0 %v2176
        %2570 = vmatpush1.msra.mxu0 %v2175
        %2571 = vmatprep.subr.mxu0 %v2180
        %2572 = vmatpush1.msra.mxu0 %v2179
        %2573 = vmatprep.subr.mxu0 %v2184
        %2574 = vmatpush1.msra.mxu0 %v2183
        %2575 = vmatprep.subr.mxu0 %v2188
        %2576 = vmatpush1.msra.mxu0 %v2187
        %2577 = vmatprep.subr.mxu0 %v2192
        %2578 = vmatpush1.msra.mxu0 %v2191
        %2579 = vmatprep.subr.mxu0 %v2196
        %2580 = vmatpush1.msra.mxu0 %v2195
        %2581 = vmatprep.subr.mxu0 %v2200
        %2582 = vmatpush1.msra.mxu0 %v2199
        %2583 = vmatprep.subr.mxu0 %v2204
        %2584 = vmatpush1.msra.mxu0 %v2203
        %2585 = vmatprep.subr.mxu0 %v2208
        %2586 = vmatpush1.msra.mxu0 %v2207
        %2587 = vmatprep.subr.mxu0 %v2212
        %2588 = vmatpush1.msra.mxu0 %v2211
        %2589 = vmatprep.subr.mxu0 %v2216
        %2590 = vmatpush1.msra.mxu0 %v2215
        %2591 = vmatprep.subr.mxu0 %v2220
        %2592 = vmatpush1.msra.mxu0 %v2219
        %2593 = vmatprep.subr.mxu0 %v2224
        %2594 = vmatpush1.msra.mxu0 %v2223
        %2595 = vmatprep.subr.mxu0 %v2228
        %2596 = vmatpush1.msra.mxu0 %v2227
        %2597 = vmatprep.subr.mxu0 %v2232
        %2598 = vmatpush1.msra.mxu0 %v2231
        %2599 = vmatprep.subr.mxu0 %v2236
        %2600 = vmatpush1.msra.mxu0 %v2235
        %2601 = vmatprep.subr.mxu0 %v2240
        %2602 = vmatpush1.msra.mxu0 %v2239
        %2603 = vmatprep.subr.mxu0 %v2244
        %2604 = vmatpush1.msra.mxu0 %v2243
        %2605 = vmatprep.subr.mxu0 %v2248
        %2606 = vmatpush1.msra.mxu0 %v2247
        %2607 = vmatprep.mubr.f32.mxu0 %v1864
        %2608 = vmatmul.mubr.f32.gmra.mrb[0].mxu0 %v1863
        %v2609 = vpop.f32.mrb[0].mxu0
        %v2610 = vadd.f32 %v2539, %v2609
        %v2611 = vpop.f32.mrb[0].mxu0
        %v2612 = vadd.f32 %v2541, %v2611
        %2613 = vdwg.mxu0
        %2614 = vmatprep.subr.mxu0 %v2252
        %2615 = vmatpush1.msra.mxu0 %v2251
        %2616 = vmatprep.subr.mxu0 %v2256
        %2617 = vmatpush1.msra.mxu0 %v2255
        %2618 = vmatprep.subr.mxu0 %v2260
        %2619 = vmatpush1.msra.mxu0 %v2259
        %2620 = vmatprep.subr.mxu0 %v2264
        %2621 = vmatpush1.msra.mxu0 %v2263
        %2622 = vmatprep.subr.mxu0 %v2268
        %2623 = vmatpush1.msra.mxu0 %v2267
        %2624 = vmatprep.subr.mxu0 %v2272
        %2625 = vmatpush1.msra.mxu0 %v2271
        %2626 = vmatprep.subr.mxu0 %v2276
        %2627 = vmatpush1.msra.mxu0 %v2275
        %2628 = vmatprep.subr.mxu0 %v2280
        %2629 = vmatpush1.msra.mxu0 %v2279
        %2630 = vmatprep.subr.mxu0 %v2284
        %2631 = vmatpush1.msra.mxu0 %v2283
        %2632 = vmatprep.subr.mxu0 %v2288
        %2633 = vmatpush1.msra.mxu0 %v2287
        %2634 = vmatprep.subr.mxu0 %v2292
        %2635 = vmatpush1.msra.mxu0 %v2291
        %2636 = vmatprep.subr.mxu0 %v2296
        %2637 = vmatpush1.msra.mxu0 %v2295
        %2638 = vmatprep.subr.mxu0 %v2300
        %2639 = vmatpush1.msra.mxu0 %v2299
        %2640 = vmatprep.subr.mxu0 %v2304
        %2641 = vmatpush1.msra.mxu0 %v2303
        %2642 = vmatprep.subr.mxu0 %v2308
        %2643 = vmatpush1.msra.mxu0 %v2307
        %2644 = vmatprep.subr.mxu0 %v2312
        %2645 = vmatpush1.msra.mxu0 %v2311
        %2646 = vmatprep.subr.mxu0 %v2316
        %2647 = vmatpush1.msra.mxu0 %v2315
        %2648 = vmatprep.subr.mxu0 %v2320
        %2649 = vmatpush1.msra.mxu0 %v2319
        %2650 = vmatprep.subr.mxu0 %v2324
        %2651 = vmatpush1.msra.mxu0 %v2323
        %2652 = vmatprep.subr.mxu0 %v2328
        %2653 = vmatpush1.msra.mxu0 %v2327
        %2654 = vmatprep.subr.mxu0 %v2332
        %2655 = vmatpush1.msra.mxu0 %v2331
        %2656 = vmatprep.subr.mxu0 %v2336
        %2657 = vmatpush1.msra.mxu0 %v2335
        %2658 = vmatprep.subr.mxu0 %v2340
        %2659 = vmatpush1.msra.mxu0 %v2339
        %2660 = vmatprep.subr.mxu0 %v2344
        %2661 = vmatpush1.msra.mxu0 %v2343
        %2662 = vmatprep.subr.mxu0 %v2348
        %2663 = vmatpush1.msra.mxu0 %v2347
        %2664 = vmatprep.subr.mxu0 %v2352
        %2665 = vmatpush1.msra.mxu0 %v2351
        %2666 = vmatprep.subr.mxu0 %v2356
        %2667 = vmatpush1.msra.mxu0 %v2355
        %2668 = vmatprep.subr.mxu0 %v2360
        %2669 = vmatpush1.msra.mxu0 %v2359
        %2670 = vmatprep.subr.mxu0 %v2364
        %2671 = vmatpush1.msra.mxu0 %v2363
        %2672 = vmatprep.subr.mxu0 %v2368
        %2673 = vmatpush1.msra.mxu0 %v2367
        %2674 = vmatprep.subr.mxu0 %v2372
        %2675 = vmatpush1.msra.mxu0 %v2371
        %2676 = vmatprep.subr.mxu0 %v2376
        %2677 = vmatpush1.msra.mxu0 %v2375
        %2678 = vmatprep.mubr.f32.mxu0 %v1866
        %2679 = vmatmul.mubr.f32.gmra.mrb[0].mxu0 %v1865
        %v2680 = vpop.f32.mrb[0].mxu0
        %v2681 = vadd.f32 %v2610, %v2680
        %v2682 = vpop.f32.mrb[0].mxu0
        %v2683 = vadd.f32 %v2612, %v2682
        %2684 = vdwg.mxu0
        %2685 = vmatprep.subr.mxu0 %v1870
        %2686 = vmatpush1.msra.mxu0 %v1869
        %2687 = vmatprep.subr.mxu0 %v1874
        %2688 = vmatpush1.msra.mxu0 %v1873
        %2689 = vmatprep.subr.mxu0 %v1878
        %2690 = vmatpush1.msra.mxu0 %v1877
        %2691 = vmatprep.subr.mxu0 %v1882
        %2692 = vmatpush1.msra.mxu0 %v1881
        %2693 = vmatprep.subr.mxu0 %v1886
        %2694 = vmatpush1.msra.mxu0 %v1885
        %2695 = vmatprep.subr.mxu0 %v1890
        %2696 = vmatpush1.msra.mxu0 %v1889
        %2697 = vmatprep.subr.mxu0 %v1894
        %2698 = vmatpush1.msra.mxu0 %v1893
        %2699 = vmatprep.subr.mxu0 %v1898
        %2700 = vmatpush1.msra.mxu0 %v1897
        %2701 = vmatprep.subr.mxu0 %v1902
        %2702 = vmatpush1.msra.mxu0 %v1901
        %2703 = vmatprep.subr.mxu0 %v1906
        %2704 = vmatpush1.msra.mxu0 %v1905
        %2705 = vmatprep.subr.mxu0 %v1910
        %2706 = vmatpush1.msra.mxu0 %v1909
        %2707 = vmatprep.subr.mxu0 %v1914
        %2708 = vmatpush1.msra.mxu0 %v1913
        %2709 = vmatprep.subr.mxu0 %v1918
        %2710 = vmatpush1.msra.mxu0 %v1917
        %2711 = vmatprep.subr.mxu0 %v1922
        %2712 = vmatpush1.msra.mxu0 %v1921
        %2713 = vmatprep.subr.mxu0 %v1926
        %2714 = vmatpush1.msra.mxu0 %v1925
        %2715 = vmatprep.subr.mxu0 %v1930
        %2716 = vmatpush1.msra.mxu0 %v1929
        %2717 = vmatprep.subr.mxu0 %v1934
        %2718 = vmatpush1.msra.mxu0 %v1933
        %2719 = vmatprep.subr.mxu0 %v1938
        %2720 = vmatpush1.msra.mxu0 %v1937
        %2721 = vmatprep.subr.mxu0 %v1942
        %2722 = vmatpush1.msra.mxu0 %v1941
        %2723 = vmatprep.subr.mxu0 %v1946
        %2724 = vmatpush1.msra.mxu0 %v1945
        %2725 = vmatprep.subr.mxu0 %v1950
        %2726 = vmatpush1.msra.mxu0 %v1949
        %2727 = vmatprep.subr.mxu0 %v1954
        %2728 = vmatpush1.msra.mxu0 %v1953
        %2729 = vmatprep.subr.mxu0 %v1958
        %2730 = vmatpush1.msra.mxu0 %v1957
        %2731 = vmatprep.subr.mxu0 %v1962
        %2732 = vmatpush1.msra.mxu0 %v1961
        %2733 = vmatprep.subr.mxu0 %v1966
        %2734 = vmatpush1.msra.mxu0 %v1965
        %2735 = vmatprep.subr.mxu0 %v1970
        %2736 = vmatpush1.msra.mxu0 %v1969
        %2737 = vmatprep.subr.mxu0 %v1974
        %2738 = vmatpush1.msra.mxu0 %v1973
        %2739 = vmatprep.subr.mxu0 %v1978
        %2740 = vmatpush1.msra.mxu0 %v1977
        %2741 = vmatprep.subr.mxu0 %v1982
        %2742 = vmatpush1.msra.mxu0 %v1981
        %2743 = vmatprep.subr.mxu0 %v1986
        %2744 = vmatpush1.msra.mxu0 %v1985
        %2745 = vmatprep.subr.mxu0 %v1990
        %2746 = vmatpush1.msra.mxu0 %v1989
        %2747 = vmatprep.subr.mxu0 %v1994
        %2748 = vmatpush1.msra.mxu0 %v1993
        %2749 = vmatprep.mubr.f32.mxu0 %v1860
        %2750 = vmatmul.mubr.f32.gmra.mrb[0].mxu0 %v1859
        %v2751 = vpop.f32.mrb[0].mxu0
        %v2752 = vadd.f32 %v2392, %v2751
        %v2753 = vpop.f32.mrb[0].mxu0
        %v2754 = vadd.f32 %v2396, %v2753
        %2755 = vdwg.mxu0
        %2756 = vmatprep.subr.mxu0 %v1998
        %2757 = vmatpush1.msra.mxu0 %v1997
        %2758 = vmatprep.subr.mxu0 %v2002
        %2759 = vmatpush1.msra.mxu0 %v2001
        %2760 = vmatprep.subr.mxu0 %v2006
        %2761 = vmatpush1.msra.mxu0 %v2005
        %2762 = vmatprep.subr.mxu0 %v2010
        %2763 = vmatpush1.msra.mxu0 %v2009
        %2764 = vmatprep.subr.mxu0 %v2014
        %2765 = vmatpush1.msra.mxu0 %v2013
        %2766 = vmatprep.subr.mxu0 %v2018
        %2767 = vmatpush1.msra.mxu0 %v2017
        %2768 = vmatprep.subr.mxu0 %v2022
        %2769 = vmatpush1.msra.mxu0 %v2021
        %2770 = vmatprep.subr.mxu0 %v2026
        %2771 = vmatpush1.msra.mxu0 %v2025
        %2772 = vmatprep.subr.mxu0 %v2030
        %2773 = vmatpush1.msra.mxu0 %v2029
        %2774 = vmatprep.subr.mxu0 %v2034
        %2775 = vmatpush1.msra.mxu0 %v2033
        %2776 = vmatprep.subr.mxu0 %v2038
        %2777 = vmatpush1.msra.mxu0 %v2037
        %2778 = vmatprep.subr.mxu0 %v2042
        %2779 = vmatpush1.msra.mxu0 %v2041
        %2780 = vmatprep.subr.mxu0 %v2046
        %2781 = vmatpush1.msra.mxu0 %v2045
        %2782 = vmatprep.subr.mxu0 %v2050
        %2783 = vmatpush1.msra.mxu0 %v2049
        %2784 = vmatprep.subr.mxu0 %v2054
        %2785 = vmatpush1.msra.mxu0 %v2053
        %2786 = vmatprep.subr.mxu0 %v2058
        %2787 = vmatpush1.msra.mxu0 %v2057
        %2788 = vmatprep.subr.mxu0 %v2062
        %2789 = vmatpush1.msra.mxu0 %v2061
        %2790 = vmatprep.subr.mxu0 %v2066
        %2791 = vmatpush1.msra.mxu0 %v2065
        %2792 = vmatprep.subr.mxu0 %v2070
        %2793 = vmatpush1.msra.mxu0 %v2069
        %2794 = vmatprep.subr.mxu0 %v2074
        %2795 = vmatpush1.msra.mxu0 %v2073
        %2796 = vmatprep.subr.mxu0 %v2078
        %2797 = vmatpush1.msra.mxu0 %v2077
        %2798 = vmatprep.subr.mxu0 %v2082
        %2799 = vmatpush1.msra.mxu0 %v2081
        %2800 = vmatprep.subr.mxu0 %v2086
        %2801 = vmatpush1.msra.mxu0 %v2085
        %2802 = vmatprep.subr.mxu0 %v2090
        %2803 = vmatpush1.msra.mxu0 %v2089
        %2804 = vmatprep.subr.mxu0 %v2094
        %2805 = vmatpush1.msra.mxu0 %v2093
        %2806 = vmatprep.subr.mxu0 %v2098
        %2807 = vmatpush1.msra.mxu0 %v2097
        %2808 = vmatprep.subr.mxu0 %v2102
        %2809 = vmatpush1.msra.mxu0 %v2101
        %2810 = vmatprep.subr.mxu0 %v2106
        %2811 = vmatpush1.msra.mxu0 %v2105
        %2812 = vmatprep.subr.mxu0 %v2110
        %2813 = vmatpush1.msra.mxu0 %v2109
        %2814 = vmatprep.subr.mxu0 %v2114
        %2815 = vmatpush1.msra.mxu0 %v2113
        %2816 = vmatprep.subr.mxu0 %v2118
        %2817 = vmatpush1.msra.mxu0 %v2117
        %2818 = vmatprep.subr.mxu0 %v2122
        %2819 = vmatpush1.msra.mxu0 %v2121
        %2820 = vmatprep.mubr.f32.mxu0 %v1862
        %2821 = vmatmul.mubr.f32.gmra.mrb[0].mxu0 %v1861
        %v2822 = vpop.f32.mrb[0].mxu0
        %v2823 = vadd.f32 %v2752, %v2822
        %v2824 = vpop.f32.mrb[0].mxu0
        %v2825 = vadd.f32 %v2754, %v2824
        %2826 = vdwg.mxu0
        %2827 = vmatprep.subr.mxu0 %v2126
        %2828 = vmatpush1.msra.mxu0 %v2125
        %2829 = vmatprep.subr.mxu0 %v2130
        %2830 = vmatpush1.msra.mxu0 %v2129
        %2831 = vmatprep.subr.mxu0 %v2134
        %2832 = vmatpush1.msra.mxu0 %v2133
        %2833 = vmatprep.subr.mxu0 %v2138
        %2834 = vmatpush1.msra.mxu0 %v2137
        %2835 = vmatprep.subr.mxu0 %v2142
        %2836 = vmatpush1.msra.mxu0 %v2141
        %2837 = vmatprep.subr.mxu0 %v2146
        %2838 = vmatpush1.msra.mxu0 %v2145
        %2839 = vmatprep.subr.mxu0 %v2150
        %2840 = vmatpush1.msra.mxu0 %v2149
        %2841 = vmatprep.subr.mxu0 %v2154
        %2842 = vmatpush1.msra.mxu0 %v2153
        %2843 = vmatprep.subr.mxu0 %v2158
        %2844 = vmatpush1.msra.mxu0 %v2157
        %2845 = vmatprep.subr.mxu0 %v2162
        %2846 = vmatpush1.msra.mxu0 %v2161
        %2847 = vmatprep.subr.mxu0 %v2166
        %2848 = vmatpush1.msra.mxu0 %v2165
        %2849 = vmatprep.subr.mxu0 %v2170
        %2850 = vmatpush1.msra.mxu0 %v2169
        %2851 = vmatprep.subr.mxu0 %v2174
        %2852 = vmatpush1.msra.mxu0 %v2173
        %2853 = vmatprep.subr.mxu0 %v2178
        %2854 = vmatpush1.msra.mxu0 %v2177
        %2855 = vmatprep.subr.mxu0 %v2182
        %2856 = vmatpush1.msra.mxu0 %v2181
        %2857 = vmatprep.subr.mxu0 %v2186
        %2858 = vmatpush1.msra.mxu0 %v2185
        %2859 = vmatprep.subr.mxu0 %v2190
        %2860 = vmatpush1.msra.mxu0 %v2189
        %2861 = vmatprep.subr.mxu0 %v2194
        %2862 = vmatpush1.msra.mxu0 %v2193
        %2863 = vmatprep.subr.mxu0 %v2198
        %2864 = vmatpush1.msra.mxu0 %v2197
        %2865 = vmatprep.subr.mxu0 %v2202
        %2866 = vmatpush1.msra.mxu0 %v2201
        %2867 = vmatprep.subr.mxu0 %v2206
        %2868 = vmatpush1.msra.mxu0 %v2205
        %2869 = vmatprep.subr.mxu0 %v2210
        %2870 = vmatpush1.msra.mxu0 %v2209
        %2871 = vmatprep.subr.mxu0 %v2214
        %2872 = vmatpush1.msra.mxu0 %v2213
        %2873 = vmatprep.subr.mxu0 %v2218
        %2874 = vmatpush1.msra.mxu0 %v2217
        %2875 = vmatprep.subr.mxu0 %v2222
        %2876 = vmatpush1.msra.mxu0 %v2221
        %2877 = vmatprep.subr.mxu0 %v2226
        %2878 = vmatpush1.msra.mxu0 %v2225
        %2879 = vmatprep.subr.mxu0 %v2230
        %2880 = vmatpush1.msra.mxu0 %v2229
        %2881 = vmatprep.subr.mxu0 %v2234
        %2882 = vmatpush1.msra.mxu0 %v2233
        %2883 = vmatprep.subr.mxu0 %v2238
        %2884 = vmatpush1.msra.mxu0 %v2237
        %2885 = vmatprep.subr.mxu0 %v2242
        %2886 = vmatpush1.msra.mxu0 %v2241
        %2887 = vmatprep.subr.mxu0 %v2246
        %2888 = vmatpush1.msra.mxu0 %v2245
        %2889 = vmatprep.subr.mxu0 %v2250
        %2890 = vmatpush1.msra.mxu0 %v2249
        %2891 = vmatprep.mubr.f32.mxu0 %v1864
        %2892 = vmatmul.mubr.f32.gmra.mrb[0].mxu0 %v1863
        %v2893 = vpop.f32.mrb[0].mxu0
        %v2894 = vadd.f32 %v2823, %v2893
        %v2895 = vpop.f32.mrb[0].mxu0
        %v2896 = vadd.f32 %v2825, %v2895
        %2897 = vdwg.mxu0
        %2898 = vmatprep.subr.mxu0 %v2254
        %2899 = vmatpush1.msra.mxu0 %v2253
        %2900 = vmatprep.subr.mxu0 %v2258
        %2901 = vmatpush1.msra.mxu0 %v2257
        %2902 = vmatprep.subr.mxu0 %v2262
        %2903 = vmatpush1.msra.mxu0 %v2261
        %2904 = vmatprep.subr.mxu0 %v2266
        %2905 = vmatpush1.msra.mxu0 %v2265
        %2906 = vmatprep.subr.mxu0 %v2270
        %2907 = vmatpush1.msra.mxu0 %v2269
        %2908 = vmatprep.subr.mxu0 %v2274
        %2909 = vmatpush1.msra.mxu0 %v2273
        %2910 = vmatprep.subr.mxu0 %v2278
        %2911 = vmatpush1.msra.mxu0 %v2277
        %2912 = vmatprep.subr.mxu0 %v2282
        %2913 = vmatpush1.msra.mxu0 %v2281
        %2914 = vmatprep.subr.mxu0 %v2286
        %2915 = vmatpush1.msra.mxu0 %v2285
        %2916 = vmatprep.subr.mxu0 %v2290
        %2917 = vmatpush1.msra.mxu0 %v2289
        %2918 = vmatprep.subr.mxu0 %v2294
        %2919 = vmatpush1.msra.mxu0 %v2293
        %2920 = vmatprep.subr.mxu0 %v2298
        %2921 = vmatpush1.msra.mxu0 %v2297
        %2922 = vmatprep.subr.mxu0 %v2302
        %2923 = vmatpush1.msra.mxu0 %v2301
        %2924 = vmatprep.subr.mxu0 %v2306
        %2925 = vmatpush1.msra.mxu0 %v2305
        %2926 = vmatprep.subr.mxu0 %v2310
        %2927 = vmatpush1.msra.mxu0 %v2309
        %2928 = vmatprep.subr.mxu0 %v2314
        %2929 = vmatpush1.msra.mxu0 %v2313
        %2930 = vmatprep.subr.mxu0 %v2318
        %2931 = vmatpush1.msra.mxu0 %v2317
        %2932 = vmatprep.subr.mxu0 %v2322
        %2933 = vmatpush1.msra.mxu0 %v2321
        %2934 = vmatprep.subr.mxu0 %v2326
        %2935 = vmatpush1.msra.mxu0 %v2325
        %2936 = vmatprep.subr.mxu0 %v2330
        %2937 = vmatpush1.msra.mxu0 %v2329
        %2938 = vmatprep.subr.mxu0 %v2334
        %2939 = vmatpush1.msra.mxu0 %v2333
        %2940 = vmatprep.subr.mxu0 %v2338
        %2941 = vmatpush1.msra.mxu0 %v2337
        %2942 = vmatprep.subr.mxu0 %v2342
        %2943 = vmatpush1.msra.mxu0 %v2341
        %2944 = vmatprep.subr.mxu0 %v2346
        %2945 = vmatpush1.msra.mxu0 %v2345
        %2946 = vmatprep.subr.mxu0 %v2350
        %2947 = vmatpush1.msra.mxu0 %v2349
        %2948 = vmatprep.subr.mxu0 %v2354
        %2949 = vmatpush1.msra.mxu0 %v2353
        %2950 = vmatprep.subr.mxu0 %v2358
        %2951 = vmatpush1.msra.mxu0 %v2357
        %2952 = vmatprep.subr.mxu0 %v2362
        %2953 = vmatpush1.msra.mxu0 %v2361
        %2954 = vmatprep.subr.mxu0 %v2366
        %2955 = vmatpush1.msra.mxu0 %v2365
        %2956 = vmatprep.subr.mxu0 %v2370
        %2957 = vmatpush1.msra.mxu0 %v2369
        %2958 = vmatprep.subr.mxu0 %v2374
        %2959 = vmatpush1.msra.mxu0 %v2373
        %2960 = vmatprep.subr.mxu0 %v2378
        %2961 = vmatpush1.msra.mxu0 %v2377
        %2962 = vmatprep.mubr.f32.mxu0 %v1866
        %2963 = vmatmul.mubr.f32.gmra.mrb[0].mxu0 %v1865
        %v2964 = vpop.f32.mrb[0].mxu0
        %v2965 = vadd.f32 %v2894, %v2964
        %v2966 = vpop.f32.mrb[0].mxu0
        %v2967 = vadd.f32 %v2896, %v2966
        %2968 = vdwg.mxu0
        %vm2969 = vcmp.gt.f32.partialorder %v2681, 0.0
        %vm2970 = vcmp.gt.f32.partialorder %v2683, 0.0
        %vm2971 = vcmp.gt.f32.partialorder %v2965, 0.0
        %vm2972 = vcmp.gt.f32.partialorder %v2967, 0.0
        %v2973 = vmul.f32 %v2681, 0.2
        %v2974 = vmul.f32 %v2683, 0.2
        %v2975 = vmul.f32 %v2965, 0.2
        %v2976 = vmul.f32 %v2967, 0.2
        %v2977 = vsel %vm2969, %v2681, %v2973
        %v2978 = vsel %vm2970, %v2683, %v2974
        %v2979 = vsel %vm2971, %v2965, %v2975
        %v2980 = vsel %vm2972, %v2967, %v2976
        %v2981 = vld [vmem:[#allocation3] sm:$0xff]
        %v2982 = vld [vmem:[#allocation3 + $0x8] sm:$0xff]
        %v2983 = vld [vmem:[#allocation3 + $0x10] sm:$0xff]
        %v2984 = vld [vmem:[#allocation3 + $0x18] sm:$0xff]
        %v2985 = vld [vmem:[#allocation3 + $0x20] sm:$0xff]
        %v2986 = vld [vmem:[#allocation3 + $0x28] sm:$0xff]
        %v2987 = vld [vmem:[#allocation3 + $0x30] sm:$0xff]
        %v2988 = vld [vmem:[#allocation3 + $0x38] sm:$0xff]
        %v2989 = vld [vmem:[#allocation3 + $0x40] sm:$0xff]
        %v2990 = vld [vmem:[#allocation3 + $0x48] sm:$0xff]
        %v2991 = vld [vmem:[#allocation3 + $0x50] sm:$0xff]
        %v2992 = vld [vmem:[#allocation3 + $0x58] sm:$0xff]
        %v2993 = vld [vmem:[#allocation3 + $0x60] sm:$0xff]
        %v2994 = vld [vmem:[#allocation3 + $0x68] sm:$0xff]
        %v2995 = vld [vmem:[#allocation3 + $0x70] sm:$0xff]
        %v2996 = vld [vmem:[#allocation3 + $0x78] sm:$0xff]
        %v2997 = vld [vmem:[%s1353] sm:$0xff]
        %v2998 = vld [vmem:[%s1353 + $0x8] sm:$0xff]
        %v2999 = vld [vmem:[%s1353 + $0x10] sm:$0xff]
        %v3000 = vld [vmem:[%s1353 + $0x18] sm:$0xff]
        %v3001 = vld [vmem:[%s1353 + $0x20] sm:$0xff]
        %v3002 = vld [vmem:[%s1353 + $0x28] sm:$0xff]
        %v3003 = vld [vmem:[%s1353 + $0x30] sm:$0xff]
        %v3004 = vld [vmem:[%s1353 + $0x38] sm:$0xff]
        %v3005 = vld [vmem:[%s1353 + $0x40] sm:$0xff]
        %v3006 = vld [vmem:[%s1353 + $0x48] sm:$0xff]
        %v3007 = vld [vmem:[%s1353 + $0x50] sm:$0xff]
        %v3008 = vld [vmem:[%s1353 + $0x58] sm:$0xff]
        %v3009 = vld [vmem:[%s1353 + $0x60] sm:$0xff]
        %v3010 = vld [vmem:[%s1353 + $0x68] sm:$0xff]
        %v3011 = vld [vmem:[%s1353 + $0x70] sm:$0xff]
        %v3012 = vld [vmem:[%s1353 + $0x78] sm:$0xff]
        %v3013 = vld [vmem:[%s1353 + $0x80] sm:$0xff]
        %v3014 = vld [vmem:[%s1353 + $0x88] sm:$0xff]
        %v3015 = vld [vmem:[%s1353 + $0x90] sm:$0xff]
        %v3016 = vld [vmem:[%s1353 + $0x98] sm:$0xff]
        %v3017 = vld [vmem:[%s1353 + $0xa0] sm:$0xff]
        %v3018 = vld [vmem:[%s1353 + $0xa8] sm:$0xff]
        %v3019 = vld [vmem:[%s1353 + $0xb0] sm:$0xff]
        %v3020 = vld [vmem:[%s1353 + $0xb8] sm:$0xff]
        %v3021 = vld [vmem:[%s1353 + $0xc0] sm:$0xff]
        %v3022 = vld [vmem:[%s1353 + $0xc8] sm:$0xff]
        %v3023 = vld [vmem:[%s1353 + $0xd0] sm:$0xff]
        %v3024 = vld [vmem:[%s1353 + $0xd8] sm:$0xff]
        %v3025 = vld [vmem:[%s1353 + $0xe0] sm:$0xff]
        %v3026 = vld [vmem:[%s1353 + $0xe8] sm:$0xff]
        %v3027 = vld [vmem:[%s1353 + $0xf0] sm:$0xff]
        %v3028 = vld [vmem:[%s1353 + $0xf8] sm:$0xff]
        %v3029 = vld [vmem:[%s1353 + $0x100] sm:$0xff]
        %v3030 = vld [vmem:[%s1353 + $0x108] sm:$0xff]
        %v3031 = vld [vmem:[%s1353 + $0x110] sm:$0xff]
        %v3032 = vld [vmem:[%s1353 + $0x118] sm:$0xff]
        %v3033 = vld [vmem:[%s1353 + $0x120] sm:$0xff]
        %v3034 = vld [vmem:[%s1353 + $0x128] sm:$0xff]
        %v3035 = vld [vmem:[%s1353 + $0x130] sm:$0xff]
        %v3036 = vld [vmem:[%s1353 + $0x138] sm:$0xff]
        %v3037 = vld [vmem:[%s1353 + $0x140] sm:$0xff]
        %v3038 = vld [vmem:[%s1353 + $0x148] sm:$0xff]
        %v3039 = vld [vmem:[%s1353 + $0x150] sm:$0xff]
        %v3040 = vld [vmem:[%s1353 + $0x158] sm:$0xff]
        %v3041 = vld [vmem:[%s1353 + $0x160] sm:$0xff]
        %v3042 = vld [vmem:[%s1353 + $0x168] sm:$0xff]
        %v3043 = vld [vmem:[%s1353 + $0x170] sm:$0xff]
        %v3044 = vld [vmem:[%s1353 + $0x178] sm:$0xff]
        %v3045 = vld [vmem:[%s1353 + $0x180] sm:$0xff]
        %v3046 = vld [vmem:[%s1353 + $0x188] sm:$0xff]
        %v3047 = vld [vmem:[%s1353 + $0x190] sm:$0xff]
        %v3048 = vld [vmem:[%s1353 + $0x198] sm:$0xff]
        %v3049 = vld [vmem:[%s1353 + $0x1a0] sm:$0xff]
        %v3050 = vld [vmem:[%s1353 + $0x1a8] sm:$0xff]
        %v3051 = vld [vmem:[%s1353 + $0x1b0] sm:$0xff]
        %v3052 = vld [vmem:[%s1353 + $0x1b8] sm:$0xff]
        %v3053 = vld [vmem:[%s1353 + $0x1c0] sm:$0xff]
        %v3054 = vld [vmem:[%s1353 + $0x1c8] sm:$0xff]
        %v3055 = vld [vmem:[%s1353 + $0x1d0] sm:$0xff]
        %v3056 = vld [vmem:[%s1353 + $0x1d8] sm:$0xff]
        %v3057 = vld [vmem:[%s1353 + $0x1e0] sm:$0xff]
        %v3058 = vld [vmem:[%s1353 + $0x1e8] sm:$0xff]
        %v3059 = vld [vmem:[%s1353 + $0x1f0] sm:$0xff]
        %v3060 = vld [vmem:[%s1353 + $0x1f8] sm:$0xff]
        %v3061 = vld [vmem:[%s1353 + $0x200] sm:$0xff]
        %v3062 = vld [vmem:[%s1353 + $0x208] sm:$0xff]
        %v3063 = vld [vmem:[%s1353 + $0x210] sm:$0xff]
        %v3064 = vld [vmem:[%s1353 + $0x218] sm:$0xff]
        %v3065 = vld [vmem:[%s1353 + $0x220] sm:$0xff]
        %v3066 = vld [vmem:[%s1353 + $0x228] sm:$0xff]
        %v3067 = vld [vmem:[%s1353 + $0x230] sm:$0xff]
        %v3068 = vld [vmem:[%s1353 + $0x238] sm:$0xff]
        %v3069 = vld [vmem:[%s1353 + $0x240] sm:$0xff]
        %v3070 = vld [vmem:[%s1353 + $0x248] sm:$0xff]
        %v3071 = vld [vmem:[%s1353 + $0x250] sm:$0xff]
        %v3072 = vld [vmem:[%s1353 + $0x258] sm:$0xff]
        %v3073 = vld [vmem:[%s1353 + $0x260] sm:$0xff]
        %v3074 = vld [vmem:[%s1353 + $0x268] sm:$0xff]
        %v3075 = vld [vmem:[%s1353 + $0x270] sm:$0xff]
        %v3076 = vld [vmem:[%s1353 + $0x278] sm:$0xff]
        %v3077 = vld [vmem:[%s1353 + $0x280] sm:$0xff]
        %v3078 = vld [vmem:[%s1353 + $0x288] sm:$0xff]
        %v3079 = vld [vmem:[%s1353 + $0x290] sm:$0xff]
        %v3080 = vld [vmem:[%s1353 + $0x298] sm:$0xff]
        %v3081 = vld [vmem:[%s1353 + $0x2a0] sm:$0xff]
        %v3082 = vld [vmem:[%s1353 + $0x2a8] sm:$0xff]
        %v3083 = vld [vmem:[%s1353 + $0x2b0] sm:$0xff]
        %v3084 = vld [vmem:[%s1353 + $0x2b8] sm:$0xff]
        %v3085 = vld [vmem:[%s1353 + $0x2c0] sm:$0xff]
        %v3086 = vld [vmem:[%s1353 + $0x2c8] sm:$0xff]
        %v3087 = vld [vmem:[%s1353 + $0x2d0] sm:$0xff]
        %v3088 = vld [vmem:[%s1353 + $0x2d8] sm:$0xff]
        %v3089 = vld [vmem:[%s1353 + $0x2e0] sm:$0xff]
        %v3090 = vld [vmem:[%s1353 + $0x2e8] sm:$0xff]
        %v3091 = vld [vmem:[%s1353 + $0x2f0] sm:$0xff]
        %v3092 = vld [vmem:[%s1353 + $0x2f8] sm:$0xff]
        %v3093 = vld [vmem:[%s1353 + $0x300] sm:$0xff]
        %v3094 = vld [vmem:[%s1353 + $0x308] sm:$0xff]
        %v3095 = vld [vmem:[%s1353 + $0x310] sm:$0xff]
        %v3096 = vld [vmem:[%s1353 + $0x318] sm:$0xff]
        %v3097 = vld [vmem:[%s1353 + $0x320] sm:$0xff]
        %v3098 = vld [vmem:[%s1353 + $0x328] sm:$0xff]
        %v3099 = vld [vmem:[%s1353 + $0x330] sm:$0xff]
        %v3100 = vld [vmem:[%s1353 + $0x338] sm:$0xff]
        %v3101 = vld [vmem:[%s1353 + $0x340] sm:$0xff]
        %v3102 = vld [vmem:[%s1353 + $0x348] sm:$0xff]
        %v3103 = vld [vmem:[%s1353 + $0x350] sm:$0xff]
        %v3104 = vld [vmem:[%s1353 + $0x358] sm:$0xff]
        %v3105 = vld [vmem:[%s1353 + $0x360] sm:$0xff]
        %v3106 = vld [vmem:[%s1353 + $0x368] sm:$0xff]
        %v3107 = vld [vmem:[%s1353 + $0x370] sm:$0xff]
        %v3108 = vld [vmem:[%s1353 + $0x378] sm:$0xff]
        %v3109 = vld [vmem:[%s1353 + $0x380] sm:$0xff]
        %v3110 = vld [vmem:[%s1353 + $0x388] sm:$0xff]
        %v3111 = vld [vmem:[%s1353 + $0x390] sm:$0xff]
        %v3112 = vld [vmem:[%s1353 + $0x398] sm:$0xff]
        %v3113 = vld [vmem:[%s1353 + $0x3a0] sm:$0xff]
        %v3114 = vld [vmem:[%s1353 + $0x3a8] sm:$0xff]
        %v3115 = vld [vmem:[%s1353 + $0x3b0] sm:$0xff]
        %v3116 = vld [vmem:[%s1353 + $0x3b8] sm:$0xff]
        %v3117 = vld [vmem:[%s1353 + $0x3c0] sm:$0xff]
        %v3118 = vld [vmem:[%s1353 + $0x3c8] sm:$0xff]
        %v3119 = vld [vmem:[%s1353 + $0x3d0] sm:$0xff]
        %v3120 = vld [vmem:[%s1353 + $0x3d8] sm:$0xff]
        %v3121 = vld [vmem:[%s1353 + $0x3e0] sm:$0xff]
        %v3122 = vld [vmem:[%s1353 + $0x3e8] sm:$0xff]
        %v3123 = vld [vmem:[%s1353 + $0x3f0] sm:$0xff]
        %v3124 = vld [vmem:[%s1353 + $0x3f8] sm:$0xff]
        %v3125 = vld [vmem:[%s1353 + $0x400] sm:$0xff]
        %v3126 = vld [vmem:[%s1353 + $0x408] sm:$0xff]
        %v3127 = vld [vmem:[%s1353 + $0x410] sm:$0xff]
        %v3128 = vld [vmem:[%s1353 + $0x418] sm:$0xff]
        %v3129 = vld [vmem:[%s1353 + $0x420] sm:$0xff]
        %v3130 = vld [vmem:[%s1353 + $0x428] sm:$0xff]
        %v3131 = vld [vmem:[%s1353 + $0x430] sm:$0xff]
        %v3132 = vld [vmem:[%s1353 + $0x438] sm:$0xff]
        %v3133 = vld [vmem:[%s1353 + $0x440] sm:$0xff]
        %v3134 = vld [vmem:[%s1353 + $0x448] sm:$0xff]
        %v3135 = vld [vmem:[%s1353 + $0x450] sm:$0xff]
        %v3136 = vld [vmem:[%s1353 + $0x458] sm:$0xff]
        %v3137 = vld [vmem:[%s1353 + $0x460] sm:$0xff]
        %v3138 = vld [vmem:[%s1353 + $0x468] sm:$0xff]
        %v3139 = vld [vmem:[%s1353 + $0x470] sm:$0xff]
        %v3140 = vld [vmem:[%s1353 + $0x478] sm:$0xff]
        %v3141 = vld [vmem:[%s1353 + $0x480] sm:$0xff]
        %v3142 = vld [vmem:[%s1353 + $0x488] sm:$0xff]
        %v3143 = vld [vmem:[%s1353 + $0x490] sm:$0xff]
        %v3144 = vld [vmem:[%s1353 + $0x498] sm:$0xff]
        %v3145 = vld [vmem:[%s1353 + $0x4a0] sm:$0xff]
        %v3146 = vld [vmem:[%s1353 + $0x4a8] sm:$0xff]
        %v3147 = vld [vmem:[%s1353 + $0x4b0] sm:$0xff]
        %v3148 = vld [vmem:[%s1353 + $0x4b8] sm:$0xff]
        %v3149 = vld [vmem:[%s1353 + $0x4c0] sm:$0xff]
        %v3150 = vld [vmem:[%s1353 + $0x4c8] sm:$0xff]
        %v3151 = vld [vmem:[%s1353 + $0x4d0] sm:$0xff]
        %v3152 = vld [vmem:[%s1353 + $0x4d8] sm:$0xff]
        %v3153 = vld [vmem:[%s1353 + $0x4e0] sm:$0xff]
        %v3154 = vld [vmem:[%s1353 + $0x4e8] sm:$0xff]
        %v3155 = vld [vmem:[%s1353 + $0x4f0] sm:$0xff]
        %v3156 = vld [vmem:[%s1353 + $0x4f8] sm:$0xff]
        %v3157 = vld [vmem:[%s1353 + $0x500] sm:$0xff]
        %v3158 = vld [vmem:[%s1353 + $0x508] sm:$0xff]
        %v3159 = vld [vmem:[%s1353 + $0x510] sm:$0xff]
        %v3160 = vld [vmem:[%s1353 + $0x518] sm:$0xff]
        %v3161 = vld [vmem:[%s1353 + $0x520] sm:$0xff]
        %v3162 = vld [vmem:[%s1353 + $0x528] sm:$0xff]
        %v3163 = vld [vmem:[%s1353 + $0x530] sm:$0xff]
        %v3164 = vld [vmem:[%s1353 + $0x538] sm:$0xff]
        %v3165 = vld [vmem:[%s1353 + $0x540] sm:$0xff]
        %v3166 = vld [vmem:[%s1353 + $0x548] sm:$0xff]
        %v3167 = vld [vmem:[%s1353 + $0x550] sm:$0xff]
        %v3168 = vld [vmem:[%s1353 + $0x558] sm:$0xff]
        %v3169 = vld [vmem:[%s1353 + $0x560] sm:$0xff]
        %v3170 = vld [vmem:[%s1353 + $0x568] sm:$0xff]
        %v3171 = vld [vmem:[%s1353 + $0x570] sm:$0xff]
        %v3172 = vld [vmem:[%s1353 + $0x578] sm:$0xff]
        %v3173 = vld [vmem:[%s1353 + $0x580] sm:$0xff]
        %v3174 = vld [vmem:[%s1353 + $0x588] sm:$0xff]
        %v3175 = vld [vmem:[%s1353 + $0x590] sm:$0xff]
        %v3176 = vld [vmem:[%s1353 + $0x598] sm:$0xff]
        %v3177 = vld [vmem:[%s1353 + $0x5a0] sm:$0xff]
        %v3178 = vld [vmem:[%s1353 + $0x5a8] sm:$0xff]
        %v3179 = vld [vmem:[%s1353 + $0x5b0] sm:$0xff]
        %v3180 = vld [vmem:[%s1353 + $0x5b8] sm:$0xff]
        %v3181 = vld [vmem:[%s1353 + $0x5c0] sm:$0xff]
        %v3182 = vld [vmem:[%s1353 + $0x5c8] sm:$0xff]
        %v3183 = vld [vmem:[%s1353 + $0x5d0] sm:$0xff]
        %v3184 = vld [vmem:[%s1353 + $0x5d8] sm:$0xff]
        %v3185 = vld [vmem:[%s1353 + $0x5e0] sm:$0xff]
        %v3186 = vld [vmem:[%s1353 + $0x5e8] sm:$0xff]
        %v3187 = vld [vmem:[%s1353 + $0x5f0] sm:$0xff]
        %v3188 = vld [vmem:[%s1353 + $0x5f8] sm:$0xff]
        %v3189 = vld [vmem:[%s1353 + $0x600] sm:$0xff]
        %v3190 = vld [vmem:[%s1353 + $0x608] sm:$0xff]
        %v3191 = vld [vmem:[%s1353 + $0x610] sm:$0xff]
        %v3192 = vld [vmem:[%s1353 + $0x618] sm:$0xff]
        %v3193 = vld [vmem:[%s1353 + $0x620] sm:$0xff]
        %v3194 = vld [vmem:[%s1353 + $0x628] sm:$0xff]
        %v3195 = vld [vmem:[%s1353 + $0x630] sm:$0xff]
        %v3196 = vld [vmem:[%s1353 + $0x638] sm:$0xff]
        %v3197 = vld [vmem:[%s1353 + $0x640] sm:$0xff]
        %v3198 = vld [vmem:[%s1353 + $0x648] sm:$0xff]
        %v3199 = vld [vmem:[%s1353 + $0x650] sm:$0xff]
        %v3200 = vld [vmem:[%s1353 + $0x658] sm:$0xff]
        %v3201 = vld [vmem:[%s1353 + $0x660] sm:$0xff]
        %v3202 = vld [vmem:[%s1353 + $0x668] sm:$0xff]
        %v3203 = vld [vmem:[%s1353 + $0x670] sm:$0xff]
        %v3204 = vld [vmem:[%s1353 + $0x678] sm:$0xff]
        %v3205 = vld [vmem:[%s1353 + $0x680] sm:$0xff]
        %v3206 = vld [vmem:[%s1353 + $0x688] sm:$0xff]
        %v3207 = vld [vmem:[%s1353 + $0x690] sm:$0xff]
        %v3208 = vld [vmem:[%s1353 + $0x698] sm:$0xff]
        %v3209 = vld [vmem:[%s1353 + $0x6a0] sm:$0xff]
        %v3210 = vld [vmem:[%s1353 + $0x6a8] sm:$0xff]
        %v3211 = vld [vmem:[%s1353 + $0x6b0] sm:$0xff]
        %v3212 = vld [vmem:[%s1353 + $0x6b8] sm:$0xff]
        %v3213 = vld [vmem:[%s1353 + $0x6c0] sm:$0xff]
        %v3214 = vld [vmem:[%s1353 + $0x6c8] sm:$0xff]
        %v3215 = vld [vmem:[%s1353 + $0x6d0] sm:$0xff]
        %v3216 = vld [vmem:[%s1353 + $0x6d8] sm:$0xff]
        %v3217 = vld [vmem:[%s1353 + $0x6e0] sm:$0xff]
        %v3218 = vld [vmem:[%s1353 + $0x6e8] sm:$0xff]
        %v3219 = vld [vmem:[%s1353 + $0x6f0] sm:$0xff]
        %v3220 = vld [vmem:[%s1353 + $0x6f8] sm:$0xff]
        %v3221 = vld [vmem:[%s1353 + $0x700] sm:$0xff]
        %v3222 = vld [vmem:[%s1353 + $0x708] sm:$0xff]
        %v3223 = vld [vmem:[%s1353 + $0x710] sm:$0xff]
        %v3224 = vld [vmem:[%s1353 + $0x718] sm:$0xff]
        %v3225 = vld [vmem:[%s1353 + $0x720] sm:$0xff]
        %v3226 = vld [vmem:[%s1353 + $0x728] sm:$0xff]
        %v3227 = vld [vmem:[%s1353 + $0x730] sm:$0xff]
        %v3228 = vld [vmem:[%s1353 + $0x738] sm:$0xff]
        %v3229 = vld [vmem:[%s1353 + $0x740] sm:$0xff]
        %v3230 = vld [vmem:[%s1353 + $0x748] sm:$0xff]
        %v3231 = vld [vmem:[%s1353 + $0x750] sm:$0xff]
        %v3232 = vld [vmem:[%s1353 + $0x758] sm:$0xff]
        %v3233 = vld [vmem:[%s1353 + $0x760] sm:$0xff]
        %v3234 = vld [vmem:[%s1353 + $0x768] sm:$0xff]
        %v3235 = vld [vmem:[%s1353 + $0x770] sm:$0xff]
        %v3236 = vld [vmem:[%s1353 + $0x778] sm:$0xff]
        %v3237 = vld [vmem:[%s1353 + $0x780] sm:$0xff]
        %v3238 = vld [vmem:[%s1353 + $0x788] sm:$0xff]
        %v3239 = vld [vmem:[%s1353 + $0x790] sm:$0xff]
        %v3240 = vld [vmem:[%s1353 + $0x798] sm:$0xff]
        %v3241 = vld [vmem:[%s1353 + $0x7a0] sm:$0xff]
        %v3242 = vld [vmem:[%s1353 + $0x7a8] sm:$0xff]
        %v3243 = vld [vmem:[%s1353 + $0x7b0] sm:$0xff]
        %v3244 = vld [vmem:[%s1353 + $0x7b8] sm:$0xff]
        %v3245 = vld [vmem:[%s1353 + $0x7c0] sm:$0xff]
        %v3246 = vld [vmem:[%s1353 + $0x7c8] sm:$0xff]
        %v3247 = vld [vmem:[%s1353 + $0x7d0] sm:$0xff]
        %v3248 = vld [vmem:[%s1353 + $0x7d8] sm:$0xff]
        %v3249 = vld [vmem:[%s1353 + $0x7e0] sm:$0xff]
        %v3250 = vld [vmem:[%s1353 + $0x7e8] sm:$0xff]
        %v3251 = vld [vmem:[%s1353 + $0x7f0] sm:$0xff]
        %v3252 = vld [vmem:[%s1353 + $0x7f8] sm:$0xff]
        %v3253 = vld [vmem:[%s1353 + $0x800] sm:$0xff]
        %v3254 = vld [vmem:[%s1353 + $0x808] sm:$0xff]
        %v3255 = vld [vmem:[%s1353 + $0x810] sm:$0xff]
        %v3256 = vld [vmem:[%s1353 + $0x818] sm:$0xff]
        %v3257 = vld [vmem:[%s1353 + $0x820] sm:$0xff]
        %v3258 = vld [vmem:[%s1353 + $0x828] sm:$0xff]
        %v3259 = vld [vmem:[%s1353 + $0x830] sm:$0xff]
        %v3260 = vld [vmem:[%s1353 + $0x838] sm:$0xff]
        %v3261 = vld [vmem:[%s1353 + $0x840] sm:$0xff]
        %v3262 = vld [vmem:[%s1353 + $0x848] sm:$0xff]
        %v3263 = vld [vmem:[%s1353 + $0x850] sm:$0xff]
        %v3264 = vld [vmem:[%s1353 + $0x858] sm:$0xff]
        %v3265 = vld [vmem:[%s1353 + $0x860] sm:$0xff]
        %v3266 = vld [vmem:[%s1353 + $0x868] sm:$0xff]
        %v3267 = vld [vmem:[%s1353 + $0x870] sm:$0xff]
        %v3268 = vld [vmem:[%s1353 + $0x878] sm:$0xff]
        %v3269 = vld [vmem:[%s1353 + $0x880] sm:$0xff]
        %v3270 = vld [vmem:[%s1353 + $0x888] sm:$0xff]
        %v3271 = vld [vmem:[%s1353 + $0x890] sm:$0xff]
        %v3272 = vld [vmem:[%s1353 + $0x898] sm:$0xff]
        %v3273 = vld [vmem:[%s1353 + $0x8a0] sm:$0xff]
        %v3274 = vld [vmem:[%s1353 + $0x8a8] sm:$0xff]
        %v3275 = vld [vmem:[%s1353 + $0x8b0] sm:$0xff]
        %v3276 = vld [vmem:[%s1353 + $0x8b8] sm:$0xff]
        %v3277 = vld [vmem:[%s1353 + $0x8c0] sm:$0xff]
        %v3278 = vld [vmem:[%s1353 + $0x8c8] sm:$0xff]
        %v3279 = vld [vmem:[%s1353 + $0x8d0] sm:$0xff]
        %v3280 = vld [vmem:[%s1353 + $0x8d8] sm:$0xff]
        %v3281 = vld [vmem:[%s1353 + $0x8e0] sm:$0xff]
        %v3282 = vld [vmem:[%s1353 + $0x8e8] sm:$0xff]
        %v3283 = vld [vmem:[%s1353 + $0x8f0] sm:$0xff]
        %v3284 = vld [vmem:[%s1353 + $0x8f8] sm:$0xff]
        %v3285 = vld [vmem:[%s1353 + $0x900] sm:$0xff]
        %v3286 = vld [vmem:[%s1353 + $0x908] sm:$0xff]
        %v3287 = vld [vmem:[%s1353 + $0x910] sm:$0xff]
        %v3288 = vld [vmem:[%s1353 + $0x918] sm:$0xff]
        %v3289 = vld [vmem:[%s1353 + $0x920] sm:$0xff]
        %v3290 = vld [vmem:[%s1353 + $0x928] sm:$0xff]
        %v3291 = vld [vmem:[%s1353 + $0x930] sm:$0xff]
        %v3292 = vld [vmem:[%s1353 + $0x938] sm:$0xff]
        %v3293 = vld [vmem:[%s1353 + $0x940] sm:$0xff]
        %v3294 = vld [vmem:[%s1353 + $0x948] sm:$0xff]
        %v3295 = vld [vmem:[%s1353 + $0x950] sm:$0xff]
        %v3296 = vld [vmem:[%s1353 + $0x958] sm:$0xff]
        %v3297 = vld [vmem:[%s1353 + $0x960] sm:$0xff]
        %v3298 = vld [vmem:[%s1353 + $0x968] sm:$0xff]
        %v3299 = vld [vmem:[%s1353 + $0x970] sm:$0xff]
        %v3300 = vld [vmem:[%s1353 + $0x978] sm:$0xff]
        %v3301 = vld [vmem:[%s1353 + $0x980] sm:$0xff]
        %v3302 = vld [vmem:[%s1353 + $0x988] sm:$0xff]
        %v3303 = vld [vmem:[%s1353 + $0x990] sm:$0xff]
        %v3304 = vld [vmem:[%s1353 + $0x998] sm:$0xff]
        %v3305 = vld [vmem:[%s1353 + $0x9a0] sm:$0xff]
        %v3306 = vld [vmem:[%s1353 + $0x9a8] sm:$0xff]
        %v3307 = vld [vmem:[%s1353 + $0x9b0] sm:$0xff]
        %v3308 = vld [vmem:[%s1353 + $0x9b8] sm:$0xff]
        %v3309 = vld [vmem:[%s1353 + $0x9c0] sm:$0xff]
        %v3310 = vld [vmem:[%s1353 + $0x9c8] sm:$0xff]
        %v3311 = vld [vmem:[%s1353 + $0x9d0] sm:$0xff]
        %v3312 = vld [vmem:[%s1353 + $0x9d8] sm:$0xff]
        %v3313 = vld [vmem:[%s1353 + $0x9e0] sm:$0xff]
        %v3314 = vld [vmem:[%s1353 + $0x9e8] sm:$0xff]
        %v3315 = vld [vmem:[%s1353 + $0x9f0] sm:$0xff]
        %v3316 = vld [vmem:[%s1353 + $0x9f8] sm:$0xff]
        %v3317 = vld [vmem:[%s1353 + $0xa00] sm:$0xff]
        %v3318 = vld [vmem:[%s1353 + $0xa08] sm:$0xff]
        %v3319 = vld [vmem:[%s1353 + $0xa10] sm:$0xff]
        %v3320 = vld [vmem:[%s1353 + $0xa18] sm:$0xff]
        %v3321 = vld [vmem:[%s1353 + $0xa20] sm:$0xff]
        %v3322 = vld [vmem:[%s1353 + $0xa28] sm:$0xff]
        %v3323 = vld [vmem:[%s1353 + $0xa30] sm:$0xff]
        %v3324 = vld [vmem:[%s1353 + $0xa38] sm:$0xff]
        %v3325 = vld [vmem:[%s1353 + $0xa40] sm:$0xff]
        %v3326 = vld [vmem:[%s1353 + $0xa48] sm:$0xff]
        %v3327 = vld [vmem:[%s1353 + $0xa50] sm:$0xff]
        %v3328 = vld [vmem:[%s1353 + $0xa58] sm:$0xff]
        %v3329 = vld [vmem:[%s1353 + $0xa60] sm:$0xff]
        %v3330 = vld [vmem:[%s1353 + $0xa68] sm:$0xff]
        %v3331 = vld [vmem:[%s1353 + $0xa70] sm:$0xff]
        %v3332 = vld [vmem:[%s1353 + $0xa78] sm:$0xff]
        %v3333 = vld [vmem:[%s1353 + $0xa80] sm:$0xff]
        %v3334 = vld [vmem:[%s1353 + $0xa88] sm:$0xff]
        %v3335 = vld [vmem:[%s1353 + $0xa90] sm:$0xff]
        %v3336 = vld [vmem:[%s1353 + $0xa98] sm:$0xff]
        %v3337 = vld [vmem:[%s1353 + $0xaa0] sm:$0xff]
        %v3338 = vld [vmem:[%s1353 + $0xaa8] sm:$0xff]
        %v3339 = vld [vmem:[%s1353 + $0xab0] sm:$0xff]
        %v3340 = vld [vmem:[%s1353 + $0xab8] sm:$0xff]
        %v3341 = vld [vmem:[%s1353 + $0xac0] sm:$0xff]
        %v3342 = vld [vmem:[%s1353 + $0xac8] sm:$0xff]
        %v3343 = vld [vmem:[%s1353 + $0xad0] sm:$0xff]
        %v3344 = vld [vmem:[%s1353 + $0xad8] sm:$0xff]
        %v3345 = vld [vmem:[%s1353 + $0xae0] sm:$0xff]
        %v3346 = vld [vmem:[%s1353 + $0xae8] sm:$0xff]
        %v3347 = vld [vmem:[%s1353 + $0xaf0] sm:$0xff]
        %v3348 = vld [vmem:[%s1353 + $0xaf8] sm:$0xff]
        %v3349 = vld [vmem:[%s1353 + $0xb00] sm:$0xff]
        %v3350 = vld [vmem:[%s1353 + $0xb08] sm:$0xff]
        %v3351 = vld [vmem:[%s1353 + $0xb10] sm:$0xff]
        %v3352 = vld [vmem:[%s1353 + $0xb18] sm:$0xff]
        %v3353 = vld [vmem:[%s1353 + $0xb20] sm:$0xff]
        %v3354 = vld [vmem:[%s1353 + $0xb28] sm:$0xff]
        %v3355 = vld [vmem:[%s1353 + $0xb30] sm:$0xff]
        %v3356 = vld [vmem:[%s1353 + $0xb38] sm:$0xff]
        %v3357 = vld [vmem:[%s1353 + $0xb40] sm:$0xff]
        %v3358 = vld [vmem:[%s1353 + $0xb48] sm:$0xff]
        %v3359 = vld [vmem:[%s1353 + $0xb50] sm:$0xff]
        %v3360 = vld [vmem:[%s1353 + $0xb58] sm:$0xff]
        %v3361 = vld [vmem:[%s1353 + $0xb60] sm:$0xff]
        %v3362 = vld [vmem:[%s1353 + $0xb68] sm:$0xff]
        %v3363 = vld [vmem:[%s1353 + $0xb70] sm:$0xff]
        %v3364 = vld [vmem:[%s1353 + $0xb78] sm:$0xff]
        %v3365 = vld [vmem:[%s1353 + $0xb80] sm:$0xff]
        %v3366 = vld [vmem:[%s1353 + $0xb88] sm:$0xff]
        %v3367 = vld [vmem:[%s1353 + $0xb90] sm:$0xff]
        %v3368 = vld [vmem:[%s1353 + $0xb98] sm:$0xff]
        %v3369 = vld [vmem:[%s1353 + $0xba0] sm:$0xff]
        %v3370 = vld [vmem:[%s1353 + $0xba8] sm:$0xff]
        %v3371 = vld [vmem:[%s1353 + $0xbb0] sm:$0xff]
        %v3372 = vld [vmem:[%s1353 + $0xbb8] sm:$0xff]
        %v3373 = vld [vmem:[%s1353 + $0xbc0] sm:$0xff]
        %v3374 = vld [vmem:[%s1353 + $0xbc8] sm:$0xff]
        %v3375 = vld [vmem:[%s1353 + $0xbd0] sm:$0xff]
        %v3376 = vld [vmem:[%s1353 + $0xbd8] sm:$0xff]
        %v3377 = vld [vmem:[%s1353 + $0xbe0] sm:$0xff]
        %v3378 = vld [vmem:[%s1353 + $0xbe8] sm:$0xff]
        %v3379 = vld [vmem:[%s1353 + $0xbf0] sm:$0xff]
        %v3380 = vld [vmem:[%s1353 + $0xbf8] sm:$0xff]
        %v3381 = vld [vmem:[%s1353 + $0xc00] sm:$0xff]
        %v3382 = vld [vmem:[%s1353 + $0xc08] sm:$0xff]
        %v3383 = vld [vmem:[%s1353 + $0xc10] sm:$0xff]
        %v3384 = vld [vmem:[%s1353 + $0xc18] sm:$0xff]
        %v3385 = vld [vmem:[%s1353 + $0xc20] sm:$0xff]
        %v3386 = vld [vmem:[%s1353 + $0xc28] sm:$0xff]
        %v3387 = vld [vmem:[%s1353 + $0xc30] sm:$0xff]
        %v3388 = vld [vmem:[%s1353 + $0xc38] sm:$0xff]
        %v3389 = vld [vmem:[%s1353 + $0xc40] sm:$0xff]
        %v3390 = vld [vmem:[%s1353 + $0xc48] sm:$0xff]
        %v3391 = vld [vmem:[%s1353 + $0xc50] sm:$0xff]
        %v3392 = vld [vmem:[%s1353 + $0xc58] sm:$0xff]
        %v3393 = vld [vmem:[%s1353 + $0xc60] sm:$0xff]
        %v3394 = vld [vmem:[%s1353 + $0xc68] sm:$0xff]
        %v3395 = vld [vmem:[%s1353 + $0xc70] sm:$0xff]
        %v3396 = vld [vmem:[%s1353 + $0xc78] sm:$0xff]
        %v3397 = vld [vmem:[%s1353 + $0xc80] sm:$0xff]
        %v3398 = vld [vmem:[%s1353 + $0xc88] sm:$0xff]
        %v3399 = vld [vmem:[%s1353 + $0xc90] sm:$0xff]
        %v3400 = vld [vmem:[%s1353 + $0xc98] sm:$0xff]
        %v3401 = vld [vmem:[%s1353 + $0xca0] sm:$0xff]
        %v3402 = vld [vmem:[%s1353 + $0xca8] sm:$0xff]
        %v3403 = vld [vmem:[%s1353 + $0xcb0] sm:$0xff]
        %v3404 = vld [vmem:[%s1353 + $0xcb8] sm:$0xff]
        %v3405 = vld [vmem:[%s1353 + $0xcc0] sm:$0xff]
        %v3406 = vld [vmem:[%s1353 + $0xcc8] sm:$0xff]
        %v3407 = vld [vmem:[%s1353 + $0xcd0] sm:$0xff]
        %v3408 = vld [vmem:[%s1353 + $0xcd8] sm:$0xff]
        %v3409 = vld [vmem:[%s1353 + $0xce0] sm:$0xff]
        %v3410 = vld [vmem:[%s1353 + $0xce8] sm:$0xff]
        %v3411 = vld [vmem:[%s1353 + $0xcf0] sm:$0xff]
        %v3412 = vld [vmem:[%s1353 + $0xcf8] sm:$0xff]
        %v3413 = vld [vmem:[%s1353 + $0xd00] sm:$0xff]
        %v3414 = vld [vmem:[%s1353 + $0xd08] sm:$0xff]
        %v3415 = vld [vmem:[%s1353 + $0xd10] sm:$0xff]
        %v3416 = vld [vmem:[%s1353 + $0xd18] sm:$0xff]
        %v3417 = vld [vmem:[%s1353 + $0xd20] sm:$0xff]
        %v3418 = vld [vmem:[%s1353 + $0xd28] sm:$0xff]
        %v3419 = vld [vmem:[%s1353 + $0xd30] sm:$0xff]
        %v3420 = vld [vmem:[%s1353 + $0xd38] sm:$0xff]
        %v3421 = vld [vmem:[%s1353 + $0xd40] sm:$0xff]
        %v3422 = vld [vmem:[%s1353 + $0xd48] sm:$0xff]
        %v3423 = vld [vmem:[%s1353 + $0xd50] sm:$0xff]
        %v3424 = vld [vmem:[%s1353 + $0xd58] sm:$0xff]
        %v3425 = vld [vmem:[%s1353 + $0xd60] sm:$0xff]
        %v3426 = vld [vmem:[%s1353 + $0xd68] sm:$0xff]
        %v3427 = vld [vmem:[%s1353 + $0xd70] sm:$0xff]
        %v3428 = vld [vmem:[%s1353 + $0xd78] sm:$0xff]
        %v3429 = vld [vmem:[%s1353 + $0xd80] sm:$0xff]
        %v3430 = vld [vmem:[%s1353 + $0xd88] sm:$0xff]
        %v3431 = vld [vmem:[%s1353 + $0xd90] sm:$0xff]
        %v3432 = vld [vmem:[%s1353 + $0xd98] sm:$0xff]
        %v3433 = vld [vmem:[%s1353 + $0xda0] sm:$0xff]
        %v3434 = vld [vmem:[%s1353 + $0xda8] sm:$0xff]
        %v3435 = vld [vmem:[%s1353 + $0xdb0] sm:$0xff]
        %v3436 = vld [vmem:[%s1353 + $0xdb8] sm:$0xff]
        %v3437 = vld [vmem:[%s1353 + $0xdc0] sm:$0xff]
        %v3438 = vld [vmem:[%s1353 + $0xdc8] sm:$0xff]
        %v3439 = vld [vmem:[%s1353 + $0xdd0] sm:$0xff]
        %v3440 = vld [vmem:[%s1353 + $0xdd8] sm:$0xff]
        %v3441 = vld [vmem:[%s1353 + $0xde0] sm:$0xff]
        %v3442 = vld [vmem:[%s1353 + $0xde8] sm:$0xff]
        %v3443 = vld [vmem:[%s1353 + $0xdf0] sm:$0xff]
        %v3444 = vld [vmem:[%s1353 + $0xdf8] sm:$0xff]
        %v3445 = vld [vmem:[%s1353 + $0xe00] sm:$0xff]
        %v3446 = vld [vmem:[%s1353 + $0xe08] sm:$0xff]
        %v3447 = vld [vmem:[%s1353 + $0xe10] sm:$0xff]
        %v3448 = vld [vmem:[%s1353 + $0xe18] sm:$0xff]
        %v3449 = vld [vmem:[%s1353 + $0xe20] sm:$0xff]
        %v3450 = vld [vmem:[%s1353 + $0xe28] sm:$0xff]
        %v3451 = vld [vmem:[%s1353 + $0xe30] sm:$0xff]
        %v3452 = vld [vmem:[%s1353 + $0xe38] sm:$0xff]
        %v3453 = vld [vmem:[%s1353 + $0xe40] sm:$0xff]
        %v3454 = vld [vmem:[%s1353 + $0xe48] sm:$0xff]
        %v3455 = vld [vmem:[%s1353 + $0xe50] sm:$0xff]
        %v3456 = vld [vmem:[%s1353 + $0xe58] sm:$0xff]
        %v3457 = vld [vmem:[%s1353 + $0xe60] sm:$0xff]
        %v3458 = vld [vmem:[%s1353 + $0xe68] sm:$0xff]
        %v3459 = vld [vmem:[%s1353 + $0xe70] sm:$0xff]
        %v3460 = vld [vmem:[%s1353 + $0xe78] sm:$0xff]
        %v3461 = vld [vmem:[%s1353 + $0xe80] sm:$0xff]
        %v3462 = vld [vmem:[%s1353 + $0xe88] sm:$0xff]
        %v3463 = vld [vmem:[%s1353 + $0xe90] sm:$0xff]
        %v3464 = vld [vmem:[%s1353 + $0xe98] sm:$0xff]
        %v3465 = vld [vmem:[%s1353 + $0xea0] sm:$0xff]
        %v3466 = vld [vmem:[%s1353 + $0xea8] sm:$0xff]
        %v3467 = vld [vmem:[%s1353 + $0xeb0] sm:$0xff]
        %v3468 = vld [vmem:[%s1353 + $0xeb8] sm:$0xff]
        %v3469 = vld [vmem:[%s1353 + $0xec0] sm:$0xff]
        %v3470 = vld [vmem:[%s1353 + $0xec8] sm:$0xff]
        %v3471 = vld [vmem:[%s1353 + $0xed0] sm:$0xff]
        %v3472 = vld [vmem:[%s1353 + $0xed8] sm:$0xff]
        %v3473 = vld [vmem:[%s1353 + $0xee0] sm:$0xff]
        %v3474 = vld [vmem:[%s1353 + $0xee8] sm:$0xff]
        %v3475 = vld [vmem:[%s1353 + $0xef0] sm:$0xff]
        %v3476 = vld [vmem:[%s1353 + $0xef8] sm:$0xff]
        %v3477 = vld [vmem:[%s1353 + $0xf00] sm:$0xff]
        %v3478 = vld [vmem:[%s1353 + $0xf08] sm:$0xff]
        %v3479 = vld [vmem:[%s1353 + $0xf10] sm:$0xff]
        %v3480 = vld [vmem:[%s1353 + $0xf18] sm:$0xff]
        %v3481 = vld [vmem:[%s1353 + $0xf20] sm:$0xff]
        %v3482 = vld [vmem:[%s1353 + $0xf28] sm:$0xff]
        %v3483 = vld [vmem:[%s1353 + $0xf30] sm:$0xff]
        %v3484 = vld [vmem:[%s1353 + $0xf38] sm:$0xff]
        %v3485 = vld [vmem:[%s1353 + $0xf40] sm:$0xff]
        %v3486 = vld [vmem:[%s1353 + $0xf48] sm:$0xff]
        %v3487 = vld [vmem:[%s1353 + $0xf50] sm:$0xff]
        %v3488 = vld [vmem:[%s1353 + $0xf58] sm:$0xff]
        %v3489 = vld [vmem:[%s1353 + $0xf60] sm:$0xff]
        %v3490 = vld [vmem:[%s1353 + $0xf68] sm:$0xff]
        %v3491 = vld [vmem:[%s1353 + $0xf70] sm:$0xff]
        %v3492 = vld [vmem:[%s1353 + $0xf78] sm:$0xff]
        %v3493 = vld [vmem:[%s1353 + $0xf80] sm:$0xff]
        %v3494 = vld [vmem:[%s1353 + $0xf88] sm:$0xff]
        %v3495 = vld [vmem:[%s1353 + $0xf90] sm:$0xff]
        %v3496 = vld [vmem:[%s1353 + $0xf98] sm:$0xff]
        %v3497 = vld [vmem:[%s1353 + $0xfa0] sm:$0xff]
        %v3498 = vld [vmem:[%s1353 + $0xfa8] sm:$0xff]
        %v3499 = vld [vmem:[%s1353 + $0xfb0] sm:$0xff]
        %v3500 = vld [vmem:[%s1353 + $0xfb8] sm:$0xff]
        %v3501 = vld [vmem:[%s1353 + $0xfc0] sm:$0xff]
        %v3502 = vld [vmem:[%s1353 + $0xfc8] sm:$0xff]
        %v3503 = vld [vmem:[%s1353 + $0xfd0] sm:$0xff]
        %v3504 = vld [vmem:[%s1353 + $0xfd8] sm:$0xff]
        %v3505 = vld [vmem:[%s1353 + $0xfe0] sm:$0xff]
        %v3506 = vld [vmem:[%s1353 + $0xfe8] sm:$0xff]
        %v3507 = vld [vmem:[%s1353 + $0xff0] sm:$0xff]
        %v3508 = vld [vmem:[%s1353 + $0xff8] sm:$0xff]
        %v3509 = vld [vmem:[%s1353 + $0x1000] sm:$0xff]
        %v3510 = vld [vmem:[%s1353 + $0x1008] sm:$0xff]
        %v3511 = vld [vmem:[%s1353 + $0x1010] sm:$0xff]
        %v3512 = vld [vmem:[%s1353 + $0x1018] sm:$0xff]
        %v3513 = vld [vmem:[%s1353 + $0x1020] sm:$0xff]
        %v3514 = vld [vmem:[%s1353 + $0x1028] sm:$0xff]
        %v3515 = vld [vmem:[%s1353 + $0x1030] sm:$0xff]
        %v3516 = vld [vmem:[%s1353 + $0x1038] sm:$0xff]
        %v3517 = vld [vmem:[%s1353 + $0x1040] sm:$0xff]
        %v3518 = vld [vmem:[%s1353 + $0x1048] sm:$0xff]
        %v3519 = vld [vmem:[%s1353 + $0x1050] sm:$0xff]
        %v3520 = vld [vmem:[%s1353 + $0x1058] sm:$0xff]
        %v3521 = vld [vmem:[%s1353 + $0x1060] sm:$0xff]
        %v3522 = vld [vmem:[%s1353 + $0x1068] sm:$0xff]
        %v3523 = vld [vmem:[%s1353 + $0x1070] sm:$0xff]
        %v3524 = vld [vmem:[%s1353 + $0x1078] sm:$0xff]
        %v3525 = vld [vmem:[%s1353 + $0x1080] sm:$0xff]
        %v3526 = vld [vmem:[%s1353 + $0x1088] sm:$0xff]
        %v3527 = vld [vmem:[%s1353 + $0x1090] sm:$0xff]
        %v3528 = vld [vmem:[%s1353 + $0x1098] sm:$0xff]
        %v3529 = vld [vmem:[%s1353 + $0x10a0] sm:$0xff]
        %v3530 = vld [vmem:[%s1353 + $0x10a8] sm:$0xff]
        %v3531 = vld [vmem:[%s1353 + $0x10b0] sm:$0xff]
        %v3532 = vld [vmem:[%s1353 + $0x10b8] sm:$0xff]
        %v3533 = vld [vmem:[%s1353 + $0x10c0] sm:$0xff]
        %v3534 = vld [vmem:[%s1353 + $0x10c8] sm:$0xff]
        %v3535 = vld [vmem:[%s1353 + $0x10d0] sm:$0xff]
        %v3536 = vld [vmem:[%s1353 + $0x10d8] sm:$0xff]
        %v3537 = vld [vmem:[%s1353 + $0x10e0] sm:$0xff]
        %v3538 = vld [vmem:[%s1353 + $0x10e8] sm:$0xff]
        %v3539 = vld [vmem:[%s1353 + $0x10f0] sm:$0xff]
        %v3540 = vld [vmem:[%s1353 + $0x10f8] sm:$0xff]
        %v3541 = vld [vmem:[%s1353 + $0x1100] sm:$0xff]
        %v3542 = vld [vmem:[%s1353 + $0x1108] sm:$0xff]
        %v3543 = vld [vmem:[%s1353 + $0x1110] sm:$0xff]
        %v3544 = vld [vmem:[%s1353 + $0x1118] sm:$0xff]
        %v3545 = vld [vmem:[%s1353 + $0x1120] sm:$0xff]
        %v3546 = vld [vmem:[%s1353 + $0x1128] sm:$0xff]
        %v3547 = vld [vmem:[%s1353 + $0x1130] sm:$0xff]
        %v3548 = vld [vmem:[%s1353 + $0x1138] sm:$0xff]
        %v3549 = vld [vmem:[%s1353 + $0x1140] sm:$0xff]
        %v3550 = vld [vmem:[%s1353 + $0x1148] sm:$0xff]
        %v3551 = vld [vmem:[%s1353 + $0x1150] sm:$0xff]
        %v3552 = vld [vmem:[%s1353 + $0x1158] sm:$0xff]
        %v3553 = vld [vmem:[%s1353 + $0x1160] sm:$0xff]
        %v3554 = vld [vmem:[%s1353 + $0x1168] sm:$0xff]
        %v3555 = vld [vmem:[%s1353 + $0x1170] sm:$0xff]
        %v3556 = vld [vmem:[%s1353 + $0x1178] sm:$0xff]
        %v3557 = vld [vmem:[%s1353 + $0x1180] sm:$0xff]
        %v3558 = vld [vmem:[%s1353 + $0x1188] sm:$0xff]
        %v3559 = vld [vmem:[%s1353 + $0x1190] sm:$0xff]
        %v3560 = vld [vmem:[%s1353 + $0x1198] sm:$0xff]
        %v3561 = vld [vmem:[%s1353 + $0x11a0] sm:$0xff]
        %v3562 = vld [vmem:[%s1353 + $0x11a8] sm:$0xff]
        %v3563 = vld [vmem:[%s1353 + $0x11b0] sm:$0xff]
        %v3564 = vld [vmem:[%s1353 + $0x11b8] sm:$0xff]
        %v3565 = vld [vmem:[%s1353 + $0x11c0] sm:$0xff]
        %v3566 = vld [vmem:[%s1353 + $0x11c8] sm:$0xff]
        %v3567 = vld [vmem:[%s1353 + $0x11d0] sm:$0xff]
        %v3568 = vld [vmem:[%s1353 + $0x11d8] sm:$0xff]
        %v3569 = vld [vmem:[%s1353 + $0x11e0] sm:$0xff]
        %v3570 = vld [vmem:[%s1353 + $0x11e8] sm:$0xff]
        %v3571 = vld [vmem:[%s1353 + $0x11f0] sm:$0xff]
        %v3572 = vld [vmem:[%s1353 + $0x11f8] sm:$0xff]
        %v3573 = vld [vmem:[%s1353 + $0x1200] sm:$0xff]
        %v3574 = vld [vmem:[%s1353 + $0x1208] sm:$0xff]
        %v3575 = vld [vmem:[%s1353 + $0x1210] sm:$0xff]
        %v3576 = vld [vmem:[%s1353 + $0x1218] sm:$0xff]
        %v3577 = vld [vmem:[%s1353 + $0x1220] sm:$0xff]
        %v3578 = vld [vmem:[%s1353 + $0x1228] sm:$0xff]
        %v3579 = vld [vmem:[%s1353 + $0x1230] sm:$0xff]
        %v3580 = vld [vmem:[%s1353 + $0x1238] sm:$0xff]
        %v3581 = vld [vmem:[%s1353 + $0x1240] sm:$0xff]
        %v3582 = vld [vmem:[%s1353 + $0x1248] sm:$0xff]
        %v3583 = vld [vmem:[%s1353 + $0x1250] sm:$0xff]
        %v3584 = vld [vmem:[%s1353 + $0x1258] sm:$0xff]
        %v3585 = vld [vmem:[%s1353 + $0x1260] sm:$0xff]
        %v3586 = vld [vmem:[%s1353 + $0x1268] sm:$0xff]
        %v3587 = vld [vmem:[%s1353 + $0x1270] sm:$0xff]
        %v3588 = vld [vmem:[%s1353 + $0x1278] sm:$0xff]
        %v3589 = vld [vmem:[%s1353 + $0x1280] sm:$0xff]
        %v3590 = vld [vmem:[%s1353 + $0x1288] sm:$0xff]
        %v3591 = vld [vmem:[%s1353 + $0x1290] sm:$0xff]
        %v3592 = vld [vmem:[%s1353 + $0x1298] sm:$0xff]
        %v3593 = vld [vmem:[%s1353 + $0x12a0] sm:$0xff]
        %v3594 = vld [vmem:[%s1353 + $0x12a8] sm:$0xff]
        %v3595 = vld [vmem:[%s1353 + $0x12b0] sm:$0xff]
        %v3596 = vld [vmem:[%s1353 + $0x12b8] sm:$0xff]
        %v3597 = vld [vmem:[%s1353 + $0x12c0] sm:$0xff]
        %v3598 = vld [vmem:[%s1353 + $0x12c8] sm:$0xff]
        %v3599 = vld [vmem:[%s1353 + $0x12d0] sm:$0xff]
        %v3600 = vld [vmem:[%s1353 + $0x12d8] sm:$0xff]
        %v3601 = vld [vmem:[%s1353 + $0x12e0] sm:$0xff]
        %v3602 = vld [vmem:[%s1353 + $0x12e8] sm:$0xff]
        %v3603 = vld [vmem:[%s1353 + $0x12f0] sm:$0xff]
        %v3604 = vld [vmem:[%s1353 + $0x12f8] sm:$0xff]
        %v3605 = vld [vmem:[%s1353 + $0x1300] sm:$0xff]
        %v3606 = vld [vmem:[%s1353 + $0x1308] sm:$0xff]
        %v3607 = vld [vmem:[%s1353 + $0x1310] sm:$0xff]
        %v3608 = vld [vmem:[%s1353 + $0x1318] sm:$0xff]
        %v3609 = vld [vmem:[%s1353 + $0x1320] sm:$0xff]
        %v3610 = vld [vmem:[%s1353 + $0x1328] sm:$0xff]
        %v3611 = vld [vmem:[%s1353 + $0x1330] sm:$0xff]
        %v3612 = vld [vmem:[%s1353 + $0x1338] sm:$0xff]
        %v3613 = vld [vmem:[%s1353 + $0x1340] sm:$0xff]
        %v3614 = vld [vmem:[%s1353 + $0x1348] sm:$0xff]
        %v3615 = vld [vmem:[%s1353 + $0x1350] sm:$0xff]
        %v3616 = vld [vmem:[%s1353 + $0x1358] sm:$0xff]
        %v3617 = vld [vmem:[%s1353 + $0x1360] sm:$0xff]
        %v3618 = vld [vmem:[%s1353 + $0x1368] sm:$0xff]
        %v3619 = vld [vmem:[%s1353 + $0x1370] sm:$0xff]
        %v3620 = vld [vmem:[%s1353 + $0x1378] sm:$0xff]
        %v3621 = vld [vmem:[%s1353 + $0x1380] sm:$0xff]
        %v3622 = vld [vmem:[%s1353 + $0x1388] sm:$0xff]
        %v3623 = vld [vmem:[%s1353 + $0x1390] sm:$0xff]
        %v3624 = vld [vmem:[%s1353 + $0x1398] sm:$0xff]
        %v3625 = vld [vmem:[%s1353 + $0x13a0] sm:$0xff]
        %v3626 = vld [vmem:[%s1353 + $0x13a8] sm:$0xff]
        %v3627 = vld [vmem:[%s1353 + $0x13b0] sm:$0xff]
        %v3628 = vld [vmem:[%s1353 + $0x13b8] sm:$0xff]
        %v3629 = vld [vmem:[%s1353 + $0x13c0] sm:$0xff]
        %v3630 = vld [vmem:[%s1353 + $0x13c8] sm:$0xff]
        %v3631 = vld [vmem:[%s1353 + $0x13d0] sm:$0xff]
        %v3632 = vld [vmem:[%s1353 + $0x13d8] sm:$0xff]
        %v3633 = vld [vmem:[%s1353 + $0x13e0] sm:$0xff]
        %v3634 = vld [vmem:[%s1353 + $0x13e8] sm:$0xff]
        %v3635 = vld [vmem:[%s1353 + $0x13f0] sm:$0xff]
        %v3636 = vld [vmem:[%s1353 + $0x13f8] sm:$0xff]
        %v3637 = vld [vmem:[%s1353 + $0x1400] sm:$0xff]
        %v3638 = vld [vmem:[%s1353 + $0x1408] sm:$0xff]
        %v3639 = vld [vmem:[%s1353 + $0x1410] sm:$0xff]
        %v3640 = vld [vmem:[%s1353 + $0x1418] sm:$0xff]
        %v3641 = vld [vmem:[%s1353 + $0x1420] sm:$0xff]
        %v3642 = vld [vmem:[%s1353 + $0x1428] sm:$0xff]
        %v3643 = vld [vmem:[%s1353 + $0x1430] sm:$0xff]
        %v3644 = vld [vmem:[%s1353 + $0x1438] sm:$0xff]
        %v3645 = vld [vmem:[%s1353 + $0x1440] sm:$0xff]
        %v3646 = vld [vmem:[%s1353 + $0x1448] sm:$0xff]
        %v3647 = vld [vmem:[%s1353 + $0x1450] sm:$0xff]
        %v3648 = vld [vmem:[%s1353 + $0x1458] sm:$0xff]
        %v3649 = vld [vmem:[%s1353 + $0x1460] sm:$0xff]
        %v3650 = vld [vmem:[%s1353 + $0x1468] sm:$0xff]
        %v3651 = vld [vmem:[%s1353 + $0x1470] sm:$0xff]
        %v3652 = vld [vmem:[%s1353 + $0x1478] sm:$0xff]
        %v3653 = vld [vmem:[%s1353 + $0x1480] sm:$0xff]
        %v3654 = vld [vmem:[%s1353 + $0x1488] sm:$0xff]
        %v3655 = vld [vmem:[%s1353 + $0x1490] sm:$0xff]
        %v3656 = vld [vmem:[%s1353 + $0x1498] sm:$0xff]
        %v3657 = vld [vmem:[%s1353 + $0x14a0] sm:$0xff]
        %v3658 = vld [vmem:[%s1353 + $0x14a8] sm:$0xff]
        %v3659 = vld [vmem:[%s1353 + $0x14b0] sm:$0xff]
        %v3660 = vld [vmem:[%s1353 + $0x14b8] sm:$0xff]
        %v3661 = vld [vmem:[%s1353 + $0x14c0] sm:$0xff]
        %v3662 = vld [vmem:[%s1353 + $0x14c8] sm:$0xff]
        %v3663 = vld [vmem:[%s1353 + $0x14d0] sm:$0xff]
        %v3664 = vld [vmem:[%s1353 + $0x14d8] sm:$0xff]
        %v3665 = vld [vmem:[%s1353 + $0x14e0] sm:$0xff]
        %v3666 = vld [vmem:[%s1353 + $0x14e8] sm:$0xff]
        %v3667 = vld [vmem:[%s1353 + $0x14f0] sm:$0xff]
        %v3668 = vld [vmem:[%s1353 + $0x14f8] sm:$0xff]
        %v3669 = vld [vmem:[%s1353 + $0x1500] sm:$0xff]
        %v3670 = vld [vmem:[%s1353 + $0x1508] sm:$0xff]
        %v3671 = vld [vmem:[%s1353 + $0x1510] sm:$0xff]
        %v3672 = vld [vmem:[%s1353 + $0x1518] sm:$0xff]
        %v3673 = vld [vmem:[%s1353 + $0x1520] sm:$0xff]
        %v3674 = vld [vmem:[%s1353 + $0x1528] sm:$0xff]
        %v3675 = vld [vmem:[%s1353 + $0x1530] sm:$0xff]
        %v3676 = vld [vmem:[%s1353 + $0x1538] sm:$0xff]
        %v3677 = vld [vmem:[%s1353 + $0x1540] sm:$0xff]
        %v3678 = vld [vmem:[%s1353 + $0x1548] sm:$0xff]
        %v3679 = vld [vmem:[%s1353 + $0x1550] sm:$0xff]
        %v3680 = vld [vmem:[%s1353 + $0x1558] sm:$0xff]
        %v3681 = vld [vmem:[%s1353 + $0x1560] sm:$0xff]
        %v3682 = vld [vmem:[%s1353 + $0x1568] sm:$0xff]
        %v3683 = vld [vmem:[%s1353 + $0x1570] sm:$0xff]
        %v3684 = vld [vmem:[%s1353 + $0x1578] sm:$0xff]
        %v3685 = vld [vmem:[%s1353 + $0x1580] sm:$0xff]
        %v3686 = vld [vmem:[%s1353 + $0x1588] sm:$0xff]
        %v3687 = vld [vmem:[%s1353 + $0x1590] sm:$0xff]
        %v3688 = vld [vmem:[%s1353 + $0x1598] sm:$0xff]
        %v3689 = vld [vmem:[%s1353 + $0x15a0] sm:$0xff]
        %v3690 = vld [vmem:[%s1353 + $0x15a8] sm:$0xff]
        %v3691 = vld [vmem:[%s1353 + $0x15b0] sm:$0xff]
        %v3692 = vld [vmem:[%s1353 + $0x15b8] sm:$0xff]
        %v3693 = vld [vmem:[%s1353 + $0x15c0] sm:$0xff]
        %v3694 = vld [vmem:[%s1353 + $0x15c8] sm:$0xff]
        %v3695 = vld [vmem:[%s1353 + $0x15d0] sm:$0xff]
        %v3696 = vld [vmem:[%s1353 + $0x15d8] sm:$0xff]
        %v3697 = vld [vmem:[%s1353 + $0x15e0] sm:$0xff]
        %v3698 = vld [vmem:[%s1353 + $0x15e8] sm:$0xff]
        %v3699 = vld [vmem:[%s1353 + $0x15f0] sm:$0xff]
        %v3700 = vld [vmem:[%s1353 + $0x15f8] sm:$0xff]
        %v3701 = vld [vmem:[%s1353 + $0x1600] sm:$0xff]
        %v3702 = vld [vmem:[%s1353 + $0x1608] sm:$0xff]
        %v3703 = vld [vmem:[%s1353 + $0x1610] sm:$0xff]
        %v3704 = vld [vmem:[%s1353 + $0x1618] sm:$0xff]
        %v3705 = vld [vmem:[%s1353 + $0x1620] sm:$0xff]
        %v3706 = vld [vmem:[%s1353 + $0x1628] sm:$0xff]
        %v3707 = vld [vmem:[%s1353 + $0x1630] sm:$0xff]
        %v3708 = vld [vmem:[%s1353 + $0x1638] sm:$0xff]
        %v3709 = vld [vmem:[%s1353 + $0x1640] sm:$0xff]
        %v3710 = vld [vmem:[%s1353 + $0x1648] sm:$0xff]
        %v3711 = vld [vmem:[%s1353 + $0x1650] sm:$0xff]
        %v3712 = vld [vmem:[%s1353 + $0x1658] sm:$0xff]
        %v3713 = vld [vmem:[%s1353 + $0x1660] sm:$0xff]
        %v3714 = vld [vmem:[%s1353 + $0x1668] sm:$0xff]
        %v3715 = vld [vmem:[%s1353 + $0x1670] sm:$0xff]
        %v3716 = vld [vmem:[%s1353 + $0x1678] sm:$0xff]
        %v3717 = vld [vmem:[%s1353 + $0x1680] sm:$0xff]
        %v3718 = vld [vmem:[%s1353 + $0x1688] sm:$0xff]
        %v3719 = vld [vmem:[%s1353 + $0x1690] sm:$0xff]
        %v3720 = vld [vmem:[%s1353 + $0x1698] sm:$0xff]
        %v3721 = vld [vmem:[%s1353 + $0x16a0] sm:$0xff]
        %v3722 = vld [vmem:[%s1353 + $0x16a8] sm:$0xff]
        %v3723 = vld [vmem:[%s1353 + $0x16b0] sm:$0xff]
        %v3724 = vld [vmem:[%s1353 + $0x16b8] sm:$0xff]
        %v3725 = vld [vmem:[%s1353 + $0x16c0] sm:$0xff]
        %v3726 = vld [vmem:[%s1353 + $0x16c8] sm:$0xff]
        %v3727 = vld [vmem:[%s1353 + $0x16d0] sm:$0xff]
        %v3728 = vld [vmem:[%s1353 + $0x16d8] sm:$0xff]
        %v3729 = vld [vmem:[%s1353 + $0x16e0] sm:$0xff]
        %v3730 = vld [vmem:[%s1353 + $0x16e8] sm:$0xff]
        %v3731 = vld [vmem:[%s1353 + $0x16f0] sm:$0xff]
        %v3732 = vld [vmem:[%s1353 + $0x16f8] sm:$0xff]
        %v3733 = vld [vmem:[%s1353 + $0x1700] sm:$0xff]
        %v3734 = vld [vmem:[%s1353 + $0x1708] sm:$0xff]
        %v3735 = vld [vmem:[%s1353 + $0x1710] sm:$0xff]
        %v3736 = vld [vmem:[%s1353 + $0x1718] sm:$0xff]
        %v3737 = vld [vmem:[%s1353 + $0x1720] sm:$0xff]
        %v3738 = vld [vmem:[%s1353 + $0x1728] sm:$0xff]
        %v3739 = vld [vmem:[%s1353 + $0x1730] sm:$0xff]
        %v3740 = vld [vmem:[%s1353 + $0x1738] sm:$0xff]
        %v3741 = vld [vmem:[%s1353 + $0x1740] sm:$0xff]
        %v3742 = vld [vmem:[%s1353 + $0x1748] sm:$0xff]
        %v3743 = vld [vmem:[%s1353 + $0x1750] sm:$0xff]
        %v3744 = vld [vmem:[%s1353 + $0x1758] sm:$0xff]
        %v3745 = vld [vmem:[%s1353 + $0x1760] sm:$0xff]
        %v3746 = vld [vmem:[%s1353 + $0x1768] sm:$0xff]
        %v3747 = vld [vmem:[%s1353 + $0x1770] sm:$0xff]
        %v3748 = vld [vmem:[%s1353 + $0x1778] sm:$0xff]
        %v3749 = vld [vmem:[%s1353 + $0x1780] sm:$0xff]
        %v3750 = vld [vmem:[%s1353 + $0x1788] sm:$0xff]
        %v3751 = vld [vmem:[%s1353 + $0x1790] sm:$0xff]
        %v3752 = vld [vmem:[%s1353 + $0x1798] sm:$0xff]
        %v3753 = vld [vmem:[%s1353 + $0x17a0] sm:$0xff]
        %v3754 = vld [vmem:[%s1353 + $0x17a8] sm:$0xff]
        %v3755 = vld [vmem:[%s1353 + $0x17b0] sm:$0xff]
        %v3756 = vld [vmem:[%s1353 + $0x17b8] sm:$0xff]
        %v3757 = vld [vmem:[%s1353 + $0x17c0] sm:$0xff]
        %v3758 = vld [vmem:[%s1353 + $0x17c8] sm:$0xff]
        %v3759 = vld [vmem:[%s1353 + $0x17d0] sm:$0xff]
        %v3760 = vld [vmem:[%s1353 + $0x17d8] sm:$0xff]
        %v3761 = vld [vmem:[%s1353 + $0x17e0] sm:$0xff]
        %v3762 = vld [vmem:[%s1353 + $0x17e8] sm:$0xff]
        %v3763 = vld [vmem:[%s1353 + $0x17f0] sm:$0xff]
        %v3764 = vld [vmem:[%s1353 + $0x17f8] sm:$0xff]
        %v3765 = vld [vmem:[%s1353 + $0x1800] sm:$0xff]
        %v3766 = vld [vmem:[%s1353 + $0x1808] sm:$0xff]
        %v3767 = vld [vmem:[%s1353 + $0x1810] sm:$0xff]
        %v3768 = vld [vmem:[%s1353 + $0x1818] sm:$0xff]
        %v3769 = vld [vmem:[%s1353 + $0x1820] sm:$0xff]
        %v3770 = vld [vmem:[%s1353 + $0x1828] sm:$0xff]
        %v3771 = vld [vmem:[%s1353 + $0x1830] sm:$0xff]
        %v3772 = vld [vmem:[%s1353 + $0x1838] sm:$0xff]
        %v3773 = vld [vmem:[%s1353 + $0x1840] sm:$0xff]
        %v3774 = vld [vmem:[%s1353 + $0x1848] sm:$0xff]
        %v3775 = vld [vmem:[%s1353 + $0x1850] sm:$0xff]
        %v3776 = vld [vmem:[%s1353 + $0x1858] sm:$0xff]
        %v3777 = vld [vmem:[%s1353 + $0x1860] sm:$0xff]
        %v3778 = vld [vmem:[%s1353 + $0x1868] sm:$0xff]
        %v3779 = vld [vmem:[%s1353 + $0x1870] sm:$0xff]
        %v3780 = vld [vmem:[%s1353 + $0x1878] sm:$0xff]
        %v3781 = vld [vmem:[%s1353 + $0x1880] sm:$0xff]
        %v3782 = vld [vmem:[%s1353 + $0x1888] sm:$0xff]
        %v3783 = vld [vmem:[%s1353 + $0x1890] sm:$0xff]
        %v3784 = vld [vmem:[%s1353 + $0x1898] sm:$0xff]
        %v3785 = vld [vmem:[%s1353 + $0x18a0] sm:$0xff]
        %v3786 = vld [vmem:[%s1353 + $0x18a8] sm:$0xff]
        %v3787 = vld [vmem:[%s1353 + $0x18b0] sm:$0xff]
        %v3788 = vld [vmem:[%s1353 + $0x18b8] sm:$0xff]
        %v3789 = vld [vmem:[%s1353 + $0x18c0] sm:$0xff]
        %v3790 = vld [vmem:[%s1353 + $0x18c8] sm:$0xff]
        %v3791 = vld [vmem:[%s1353 + $0x18d0] sm:$0xff]
        %v3792 = vld [vmem:[%s1353 + $0x18d8] sm:$0xff]
        %v3793 = vld [vmem:[%s1353 + $0x18e0] sm:$0xff]
        %v3794 = vld [vmem:[%s1353 + $0x18e8] sm:$0xff]
        %v3795 = vld [vmem:[%s1353 + $0x18f0] sm:$0xff]
        %v3796 = vld [vmem:[%s1353 + $0x18f8] sm:$0xff]
        %v3797 = vld [vmem:[%s1353 + $0x1900] sm:$0xff]
        %v3798 = vld [vmem:[%s1353 + $0x1908] sm:$0xff]
        %v3799 = vld [vmem:[%s1353 + $0x1910] sm:$0xff]
        %v3800 = vld [vmem:[%s1353 + $0x1918] sm:$0xff]
        %v3801 = vld [vmem:[%s1353 + $0x1920] sm:$0xff]
        %v3802 = vld [vmem:[%s1353 + $0x1928] sm:$0xff]
        %v3803 = vld [vmem:[%s1353 + $0x1930] sm:$0xff]
        %v3804 = vld [vmem:[%s1353 + $0x1938] sm:$0xff]
        %v3805 = vld [vmem:[%s1353 + $0x1940] sm:$0xff]
        %v3806 = vld [vmem:[%s1353 + $0x1948] sm:$0xff]
        %v3807 = vld [vmem:[%s1353 + $0x1950] sm:$0xff]
        %v3808 = vld [vmem:[%s1353 + $0x1958] sm:$0xff]
        %v3809 = vld [vmem:[%s1353 + $0x1960] sm:$0xff]
        %v3810 = vld [vmem:[%s1353 + $0x1968] sm:$0xff]
        %v3811 = vld [vmem:[%s1353 + $0x1970] sm:$0xff]
        %v3812 = vld [vmem:[%s1353 + $0x1978] sm:$0xff]
        %v3813 = vld [vmem:[%s1353 + $0x1980] sm:$0xff]
        %v3814 = vld [vmem:[%s1353 + $0x1988] sm:$0xff]
        %v3815 = vld [vmem:[%s1353 + $0x1990] sm:$0xff]
        %v3816 = vld [vmem:[%s1353 + $0x1998] sm:$0xff]
        %v3817 = vld [vmem:[%s1353 + $0x19a0] sm:$0xff]
        %v3818 = vld [vmem:[%s1353 + $0x19a8] sm:$0xff]
        %v3819 = vld [vmem:[%s1353 + $0x19b0] sm:$0xff]
        %v3820 = vld [vmem:[%s1353 + $0x19b8] sm:$0xff]
        %v3821 = vld [vmem:[%s1353 + $0x19c0] sm:$0xff]
        %v3822 = vld [vmem:[%s1353 + $0x19c8] sm:$0xff]
        %v3823 = vld [vmem:[%s1353 + $0x19d0] sm:$0xff]
        %v3824 = vld [vmem:[%s1353 + $0x19d8] sm:$0xff]
        %v3825 = vld [vmem:[%s1353 + $0x19e0] sm:$0xff]
        %v3826 = vld [vmem:[%s1353 + $0x19e8] sm:$0xff]
        %v3827 = vld [vmem:[%s1353 + $0x19f0] sm:$0xff]
        %v3828 = vld [vmem:[%s1353 + $0x19f8] sm:$0xff]
        %v3829 = vld [vmem:[%s1353 + $0x1a00] sm:$0xff]
        %v3830 = vld [vmem:[%s1353 + $0x1a08] sm:$0xff]
        %v3831 = vld [vmem:[%s1353 + $0x1a10] sm:$0xff]
        %v3832 = vld [vmem:[%s1353 + $0x1a18] sm:$0xff]
        %v3833 = vld [vmem:[%s1353 + $0x1a20] sm:$0xff]
        %v3834 = vld [vmem:[%s1353 + $0x1a28] sm:$0xff]
        %v3835 = vld [vmem:[%s1353 + $0x1a30] sm:$0xff]
        %v3836 = vld [vmem:[%s1353 + $0x1a38] sm:$0xff]
        %v3837 = vld [vmem:[%s1353 + $0x1a40] sm:$0xff]
        %v3838 = vld [vmem:[%s1353 + $0x1a48] sm:$0xff]
        %v3839 = vld [vmem:[%s1353 + $0x1a50] sm:$0xff]
        %v3840 = vld [vmem:[%s1353 + $0x1a58] sm:$0xff]
        %v3841 = vld [vmem:[%s1353 + $0x1a60] sm:$0xff]
        %v3842 = vld [vmem:[%s1353 + $0x1a68] sm:$0xff]
        %v3843 = vld [vmem:[%s1353 + $0x1a70] sm:$0xff]
        %v3844 = vld [vmem:[%s1353 + $0x1a78] sm:$0xff]
        %v3845 = vld [vmem:[%s1353 + $0x1a80] sm:$0xff]
        %v3846 = vld [vmem:[%s1353 + $0x1a88] sm:$0xff]
        %v3847 = vld [vmem:[%s1353 + $0x1a90] sm:$0xff]
        %v3848 = vld [vmem:[%s1353 + $0x1a98] sm:$0xff]
        %v3849 = vld [vmem:[%s1353 + $0x1aa0] sm:$0xff]
        %v3850 = vld [vmem:[%s1353 + $0x1aa8] sm:$0xff]
        %v3851 = vld [vmem:[%s1353 + $0x1ab0] sm:$0xff]
        %v3852 = vld [vmem:[%s1353 + $0x1ab8] sm:$0xff]
        %v3853 = vld [vmem:[%s1353 + $0x1ac0] sm:$0xff]
        %v3854 = vld [vmem:[%s1353 + $0x1ac8] sm:$0xff]
        %v3855 = vld [vmem:[%s1353 + $0x1ad0] sm:$0xff]
        %v3856 = vld [vmem:[%s1353 + $0x1ad8] sm:$0xff]
        %v3857 = vld [vmem:[%s1353 + $0x1ae0] sm:$0xff]
        %v3858 = vld [vmem:[%s1353 + $0x1ae8] sm:$0xff]
        %v3859 = vld [vmem:[%s1353 + $0x1af0] sm:$0xff]
        %v3860 = vld [vmem:[%s1353 + $0x1af8] sm:$0xff]
        %v3861 = vld [vmem:[%s1353 + $0x1b00] sm:$0xff]
        %v3862 = vld [vmem:[%s1353 + $0x1b08] sm:$0xff]
        %v3863 = vld [vmem:[%s1353 + $0x1b10] sm:$0xff]
        %v3864 = vld [vmem:[%s1353 + $0x1b18] sm:$0xff]
        %v3865 = vld [vmem:[%s1353 + $0x1b20] sm:$0xff]
        %v3866 = vld [vmem:[%s1353 + $0x1b28] sm:$0xff]
        %v3867 = vld [vmem:[%s1353 + $0x1b30] sm:$0xff]
        %v3868 = vld [vmem:[%s1353 + $0x1b38] sm:$0xff]
        %v3869 = vld [vmem:[%s1353 + $0x1b40] sm:$0xff]
        %v3870 = vld [vmem:[%s1353 + $0x1b48] sm:$0xff]
        %v3871 = vld [vmem:[%s1353 + $0x1b50] sm:$0xff]
        %v3872 = vld [vmem:[%s1353 + $0x1b58] sm:$0xff]
        %v3873 = vld [vmem:[%s1353 + $0x1b60] sm:$0xff]
        %v3874 = vld [vmem:[%s1353 + $0x1b68] sm:$0xff]
        %v3875 = vld [vmem:[%s1353 + $0x1b70] sm:$0xff]
        %v3876 = vld [vmem:[%s1353 + $0x1b78] sm:$0xff]
        %v3877 = vld [vmem:[%s1353 + $0x1b80] sm:$0xff]
        %v3878 = vld [vmem:[%s1353 + $0x1b88] sm:$0xff]
        %v3879 = vld [vmem:[%s1353 + $0x1b90] sm:$0xff]
        %v3880 = vld [vmem:[%s1353 + $0x1b98] sm:$0xff]
        %v3881 = vld [vmem:[%s1353 + $0x1ba0] sm:$0xff]
        %v3882 = vld [vmem:[%s1353 + $0x1ba8] sm:$0xff]
        %v3883 = vld [vmem:[%s1353 + $0x1bb0] sm:$0xff]
        %v3884 = vld [vmem:[%s1353 + $0x1bb8] sm:$0xff]
        %v3885 = vld [vmem:[%s1353 + $0x1bc0] sm:$0xff]
        %v3886 = vld [vmem:[%s1353 + $0x1bc8] sm:$0xff]
        %v3887 = vld [vmem:[%s1353 + $0x1bd0] sm:$0xff]
        %v3888 = vld [vmem:[%s1353 + $0x1bd8] sm:$0xff]
        %v3889 = vld [vmem:[%s1353 + $0x1be0] sm:$0xff]
        %v3890 = vld [vmem:[%s1353 + $0x1be8] sm:$0xff]
        %v3891 = vld [vmem:[%s1353 + $0x1bf0] sm:$0xff]
        %v3892 = vld [vmem:[%s1353 + $0x1bf8] sm:$0xff]
        %v3893 = vld [vmem:[%s1353 + $0x1c00] sm:$0xff]
        %v3894 = vld [vmem:[%s1353 + $0x1c08] sm:$0xff]
        %v3895 = vld [vmem:[%s1353 + $0x1c10] sm:$0xff]
        %v3896 = vld [vmem:[%s1353 + $0x1c18] sm:$0xff]
        %v3897 = vld [vmem:[%s1353 + $0x1c20] sm:$0xff]
        %v3898 = vld [vmem:[%s1353 + $0x1c28] sm:$0xff]
        %v3899 = vld [vmem:[%s1353 + $0x1c30] sm:$0xff]
        %v3900 = vld [vmem:[%s1353 + $0x1c38] sm:$0xff]
        %v3901 = vld [vmem:[%s1353 + $0x1c40] sm:$0xff]
        %v3902 = vld [vmem:[%s1353 + $0x1c48] sm:$0xff]
        %v3903 = vld [vmem:[%s1353 + $0x1c50] sm:$0xff]
        %v3904 = vld [vmem:[%s1353 + $0x1c58] sm:$0xff]
        %v3905 = vld [vmem:[%s1353 + $0x1c60] sm:$0xff]
        %v3906 = vld [vmem:[%s1353 + $0x1c68] sm:$0xff]
        %v3907 = vld [vmem:[%s1353 + $0x1c70] sm:$0xff]
        %v3908 = vld [vmem:[%s1353 + $0x1c78] sm:$0xff]
        %v3909 = vld [vmem:[%s1353 + $0x1c80] sm:$0xff]
        %v3910 = vld [vmem:[%s1353 + $0x1c88] sm:$0xff]
        %v3911 = vld [vmem:[%s1353 + $0x1c90] sm:$0xff]
        %v3912 = vld [vmem:[%s1353 + $0x1c98] sm:$0xff]
        %v3913 = vld [vmem:[%s1353 + $0x1ca0] sm:$0xff]
        %v3914 = vld [vmem:[%s1353 + $0x1ca8] sm:$0xff]
        %v3915 = vld [vmem:[%s1353 + $0x1cb0] sm:$0xff]
        %v3916 = vld [vmem:[%s1353 + $0x1cb8] sm:$0xff]
        %v3917 = vld [vmem:[%s1353 + $0x1cc0] sm:$0xff]
        %v3918 = vld [vmem:[%s1353 + $0x1cc8] sm:$0xff]
        %v3919 = vld [vmem:[%s1353 + $0x1cd0] sm:$0xff]
        %v3920 = vld [vmem:[%s1353 + $0x1cd8] sm:$0xff]
        %v3921 = vld [vmem:[%s1353 + $0x1ce0] sm:$0xff]
        %v3922 = vld [vmem:[%s1353 + $0x1ce8] sm:$0xff]
        %v3923 = vld [vmem:[%s1353 + $0x1cf0] sm:$0xff]
        %v3924 = vld [vmem:[%s1353 + $0x1cf8] sm:$0xff]
        %v3925 = vld [vmem:[%s1353 + $0x1d00] sm:$0xff]
        %v3926 = vld [vmem:[%s1353 + $0x1d08] sm:$0xff]
        %v3927 = vld [vmem:[%s1353 + $0x1d10] sm:$0xff]
        %v3928 = vld [vmem:[%s1353 + $0x1d18] sm:$0xff]
        %v3929 = vld [vmem:[%s1353 + $0x1d20] sm:$0xff]
        %v3930 = vld [vmem:[%s1353 + $0x1d28] sm:$0xff]
        %v3931 = vld [vmem:[%s1353 + $0x1d30] sm:$0xff]
        %v3932 = vld [vmem:[%s1353 + $0x1d38] sm:$0xff]
        %v3933 = vld [vmem:[%s1353 + $0x1d40] sm:$0xff]
        %v3934 = vld [vmem:[%s1353 + $0x1d48] sm:$0xff]
        %v3935 = vld [vmem:[%s1353 + $0x1d50] sm:$0xff]
        %v3936 = vld [vmem:[%s1353 + $0x1d58] sm:$0xff]
        %v3937 = vld [vmem:[%s1353 + $0x1d60] sm:$0xff]
        %v3938 = vld [vmem:[%s1353 + $0x1d68] sm:$0xff]
        %v3939 = vld [vmem:[%s1353 + $0x1d70] sm:$0xff]
        %v3940 = vld [vmem:[%s1353 + $0x1d78] sm:$0xff]
        %v3941 = vld [vmem:[%s1353 + $0x1d80] sm:$0xff]
        %v3942 = vld [vmem:[%s1353 + $0x1d88] sm:$0xff]
        %v3943 = vld [vmem:[%s1353 + $0x1d90] sm:$0xff]
        %v3944 = vld [vmem:[%s1353 + $0x1d98] sm:$0xff]
        %v3945 = vld [vmem:[%s1353 + $0x1da0] sm:$0xff]
        %v3946 = vld [vmem:[%s1353 + $0x1da8] sm:$0xff]
        %v3947 = vld [vmem:[%s1353 + $0x1db0] sm:$0xff]
        %v3948 = vld [vmem:[%s1353 + $0x1db8] sm:$0xff]
        %v3949 = vld [vmem:[%s1353 + $0x1dc0] sm:$0xff]
        %v3950 = vld [vmem:[%s1353 + $0x1dc8] sm:$0xff]
        %v3951 = vld [vmem:[%s1353 + $0x1dd0] sm:$0xff]
        %v3952 = vld [vmem:[%s1353 + $0x1dd8] sm:$0xff]
        %v3953 = vld [vmem:[%s1353 + $0x1de0] sm:$0xff]
        %v3954 = vld [vmem:[%s1353 + $0x1de8] sm:$0xff]
        %v3955 = vld [vmem:[%s1353 + $0x1df0] sm:$0xff]
        %v3956 = vld [vmem:[%s1353 + $0x1df8] sm:$0xff]
        %v3957 = vld [vmem:[%s1353 + $0x1e00] sm:$0xff]
        %v3958 = vld [vmem:[%s1353 + $0x1e08] sm:$0xff]
        %v3959 = vld [vmem:[%s1353 + $0x1e10] sm:$0xff]
        %v3960 = vld [vmem:[%s1353 + $0x1e18] sm:$0xff]
        %v3961 = vld [vmem:[%s1353 + $0x1e20] sm:$0xff]
        %v3962 = vld [vmem:[%s1353 + $0x1e28] sm:$0xff]
        %v3963 = vld [vmem:[%s1353 + $0x1e30] sm:$0xff]
        %v3964 = vld [vmem:[%s1353 + $0x1e38] sm:$0xff]
        %v3965 = vld [vmem:[%s1353 + $0x1e40] sm:$0xff]
        %v3966 = vld [vmem:[%s1353 + $0x1e48] sm:$0xff]
        %v3967 = vld [vmem:[%s1353 + $0x1e50] sm:$0xff]
        %v3968 = vld [vmem:[%s1353 + $0x1e58] sm:$0xff]
        %v3969 = vld [vmem:[%s1353 + $0x1e60] sm:$0xff]
        %v3970 = vld [vmem:[%s1353 + $0x1e68] sm:$0xff]
        %v3971 = vld [vmem:[%s1353 + $0x1e70] sm:$0xff]
        %v3972 = vld [vmem:[%s1353 + $0x1e78] sm:$0xff]
        %v3973 = vld [vmem:[%s1353 + $0x1e80] sm:$0xff]
        %v3974 = vld [vmem:[%s1353 + $0x1e88] sm:$0xff]
        %v3975 = vld [vmem:[%s1353 + $0x1e90] sm:$0xff]
        %v3976 = vld [vmem:[%s1353 + $0x1e98] sm:$0xff]
        %v3977 = vld [vmem:[%s1353 + $0x1ea0] sm:$0xff]
        %v3978 = vld [vmem:[%s1353 + $0x1ea8] sm:$0xff]
        %v3979 = vld [vmem:[%s1353 + $0x1eb0] sm:$0xff]
        %v3980 = vld [vmem:[%s1353 + $0x1eb8] sm:$0xff]
        %v3981 = vld [vmem:[%s1353 + $0x1ec0] sm:$0xff]
        %v3982 = vld [vmem:[%s1353 + $0x1ec8] sm:$0xff]
        %v3983 = vld [vmem:[%s1353 + $0x1ed0] sm:$0xff]
        %v3984 = vld [vmem:[%s1353 + $0x1ed8] sm:$0xff]
        %v3985 = vld [vmem:[%s1353 + $0x1ee0] sm:$0xff]
        %v3986 = vld [vmem:[%s1353 + $0x1ee8] sm:$0xff]
        %v3987 = vld [vmem:[%s1353 + $0x1ef0] sm:$0xff]
        %v3988 = vld [vmem:[%s1353 + $0x1ef8] sm:$0xff]
        %v3989 = vld [vmem:[%s1353 + $0x1f00] sm:$0xff]
        %v3990 = vld [vmem:[%s1353 + $0x1f08] sm:$0xff]
        %v3991 = vld [vmem:[%s1353 + $0x1f10] sm:$0xff]
        %v3992 = vld [vmem:[%s1353 + $0x1f18] sm:$0xff]
        %v3993 = vld [vmem:[%s1353 + $0x1f20] sm:$0xff]
        %v3994 = vld [vmem:[%s1353 + $0x1f28] sm:$0xff]
        %v3995 = vld [vmem:[%s1353 + $0x1f30] sm:$0xff]
        %v3996 = vld [vmem:[%s1353 + $0x1f38] sm:$0xff]
        %v3997 = vld [vmem:[%s1353 + $0x1f40] sm:$0xff]
        %v3998 = vld [vmem:[%s1353 + $0x1f48] sm:$0xff]
        %v3999 = vld [vmem:[%s1353 + $0x1f50] sm:$0xff]
        %v4000 = vld [vmem:[%s1353 + $0x1f58] sm:$0xff]
        %v4001 = vld [vmem:[%s1353 + $0x1f60] sm:$0xff]
        %v4002 = vld [vmem:[%s1353 + $0x1f68] sm:$0xff]
        %v4003 = vld [vmem:[%s1353 + $0x1f70] sm:$0xff]
        %v4004 = vld [vmem:[%s1353 + $0x1f78] sm:$0xff]
        %v4005 = vld [vmem:[%s1353 + $0x1f80] sm:$0xff]
        %v4006 = vld [vmem:[%s1353 + $0x1f88] sm:$0xff]
        %v4007 = vld [vmem:[%s1353 + $0x1f90] sm:$0xff]
        %v4008 = vld [vmem:[%s1353 + $0x1f98] sm:$0xff]
        %v4009 = vld [vmem:[%s1353 + $0x1fa0] sm:$0xff]
        %v4010 = vld [vmem:[%s1353 + $0x1fa8] sm:$0xff]
        %v4011 = vld [vmem:[%s1353 + $0x1fb0] sm:$0xff]
        %v4012 = vld [vmem:[%s1353 + $0x1fb8] sm:$0xff]
        %v4013 = vld [vmem:[%s1353 + $0x1fc0] sm:$0xff]
        %v4014 = vld [vmem:[%s1353 + $0x1fc8] sm:$0xff]
        %v4015 = vld [vmem:[%s1353 + $0x1fd0] sm:$0xff]
        %v4016 = vld [vmem:[%s1353 + $0x1fd8] sm:$0xff]
        %v4017 = vld [vmem:[%s1353 + $0x1fe0] sm:$0xff]
        %v4018 = vld [vmem:[%s1353 + $0x1fe8] sm:$0xff]
        %v4019 = vld [vmem:[%s1353 + $0x1ff0] sm:$0xff]
        %v4020 = vld [vmem:[%s1353 + $0x1ff8] sm:$0xff]
        %4021 = vmatprep.subr.mxu0 %v2998
        %4022 = vmatpush1.msra.mxu0 %v2997
        %4023 = vmatprep.subr.mxu0 %v3014
        %4024 = vmatpush1.msra.mxu0 %v3013
        %4025 = vmatprep.subr.mxu0 %v3030
        %4026 = vmatpush1.msra.mxu0 %v3029
        %4027 = vmatprep.subr.mxu0 %v3046
        %4028 = vmatpush1.msra.mxu0 %v3045
        %4029 = vmatprep.subr.mxu0 %v3062
        %4030 = vmatpush1.msra.mxu0 %v3061
        %4031 = vmatprep.subr.mxu0 %v3078
        %4032 = vmatpush1.msra.mxu0 %v3077
        %4033 = vmatprep.subr.mxu0 %v3094
        %4034 = vmatpush1.msra.mxu0 %v3093
        %4035 = vmatprep.subr.mxu0 %v3110
        %4036 = vmatpush1.msra.mxu0 %v3109
        %4037 = vmatprep.subr.mxu0 %v3126
        %4038 = vmatpush1.msra.mxu0 %v3125
        %4039 = vmatprep.subr.mxu0 %v3142
        %4040 = vmatpush1.msra.mxu0 %v3141
        %4041 = vmatprep.subr.mxu0 %v3158
        %4042 = vmatpush1.msra.mxu0 %v3157
        %4043 = vmatprep.subr.mxu0 %v3174
        %4044 = vmatpush1.msra.mxu0 %v3173
        %4045 = vmatprep.subr.mxu0 %v3190
        %4046 = vmatpush1.msra.mxu0 %v3189
        %4047 = vmatprep.subr.mxu0 %v3206
        %4048 = vmatpush1.msra.mxu0 %v3205
        %4049 = vmatprep.subr.mxu0 %v3222
        %4050 = vmatpush1.msra.mxu0 %v3221
        %4051 = vmatprep.subr.mxu0 %v3238
        %4052 = vmatpush1.msra.mxu0 %v3237
        %4053 = vmatprep.subr.mxu0 %v3254
        %4054 = vmatpush1.msra.mxu0 %v3253
        %4055 = vmatprep.subr.mxu0 %v3270
        %4056 = vmatpush1.msra.mxu0 %v3269
        %4057 = vmatprep.subr.mxu0 %v3286
        %4058 = vmatpush1.msra.mxu0 %v3285
        %4059 = vmatprep.subr.mxu0 %v3302
        %4060 = vmatpush1.msra.mxu0 %v3301
        %4061 = vmatprep.subr.mxu0 %v3318
        %4062 = vmatpush1.msra.mxu0 %v3317
        %4063 = vmatprep.subr.mxu0 %v3334
        %4064 = vmatpush1.msra.mxu0 %v3333
        %4065 = vmatprep.subr.mxu0 %v3350
        %4066 = vmatpush1.msra.mxu0 %v3349
        %4067 = vmatprep.subr.mxu0 %v3366
        %4068 = vmatpush1.msra.mxu0 %v3365
        %4069 = vmatprep.subr.mxu0 %v3382
        %4070 = vmatpush1.msra.mxu0 %v3381
        %4071 = vmatprep.subr.mxu0 %v3398
        %4072 = vmatpush1.msra.mxu0 %v3397
        %4073 = vmatprep.subr.mxu0 %v3414
        %4074 = vmatpush1.msra.mxu0 %v3413
        %4075 = vmatprep.subr.mxu0 %v3430
        %4076 = vmatpush1.msra.mxu0 %v3429
        %4077 = vmatprep.subr.mxu0 %v3446
        %4078 = vmatpush1.msra.mxu0 %v3445
        %4079 = vmatprep.subr.mxu0 %v3462
        %4080 = vmatpush1.msra.mxu0 %v3461
        %4081 = vmatprep.subr.mxu0 %v3478
        %4082 = vmatpush1.msra.mxu0 %v3477
        %4083 = vmatprep.subr.mxu0 %v3494
        %4084 = vmatpush1.msra.mxu0 %v3493
        %4085 = vmatprep.mubr.f32.mxu0 %v2978
        %4086 = vmatmul.mubr.f32.gmra.mrb[0].mxu0 %v2977
        %v4087 = vpop.f32.mrb[0].mxu0
        %v4088 = vadd.f32 0.0, %v4087
        %v4089 = vpop.f32.mrb[0].mxu0
        %v4090 = vadd.f32 0.0, %v4089
        %4091 = vdwg.mxu0
        %4092 = vmatprep.subr.mxu0 %v3510
        %4093 = vmatpush1.msra.mxu0 %v3509
        %4094 = vmatprep.subr.mxu0 %v3526
        %4095 = vmatpush1.msra.mxu0 %v3525
        %4096 = vmatprep.subr.mxu0 %v3542
        %4097 = vmatpush1.msra.mxu0 %v3541
        %4098 = vmatprep.subr.mxu0 %v3558
        %4099 = vmatpush1.msra.mxu0 %v3557
        %4100 = vmatprep.subr.mxu0 %v3574
        %4101 = vmatpush1.msra.mxu0 %v3573
        %4102 = vmatprep.subr.mxu0 %v3590
        %4103 = vmatpush1.msra.mxu0 %v3589
        %4104 = vmatprep.subr.mxu0 %v3606
        %4105 = vmatpush1.msra.mxu0 %v3605
        %4106 = vmatprep.subr.mxu0 %v3622
        %4107 = vmatpush1.msra.mxu0 %v3621
        %4108 = vmatprep.subr.mxu0 %v3638
        %4109 = vmatpush1.msra.mxu0 %v3637
        %4110 = vmatprep.subr.mxu0 %v3654
        %4111 = vmatpush1.msra.mxu0 %v3653
        %4112 = vmatprep.subr.mxu0 %v3670
        %4113 = vmatpush1.msra.mxu0 %v3669
        %4114 = vmatprep.subr.mxu0 %v3686
        %4115 = vmatpush1.msra.mxu0 %v3685
        %4116 = vmatprep.subr.mxu0 %v3702
        %4117 = vmatpush1.msra.mxu0 %v3701
        %4118 = vmatprep.subr.mxu0 %v3718
        %4119 = vmatpush1.msra.mxu0 %v3717
        %4120 = vmatprep.subr.mxu0 %v3734
        %4121 = vmatpush1.msra.mxu0 %v3733
        %4122 = vmatprep.subr.mxu0 %v3750
        %4123 = vmatpush1.msra.mxu0 %v3749
        %4124 = vmatprep.subr.mxu0 %v3766
        %4125 = vmatpush1.msra.mxu0 %v3765
        %4126 = vmatprep.subr.mxu0 %v3782
        %4127 = vmatpush1.msra.mxu0 %v3781
        %4128 = vmatprep.subr.mxu0 %v3798
        %4129 = vmatpush1.msra.mxu0 %v3797
        %4130 = vmatprep.subr.mxu0 %v3814
        %4131 = vmatpush1.msra.mxu0 %v3813
        %4132 = vmatprep.subr.mxu0 %v3830
        %4133 = vmatpush1.msra.mxu0 %v3829
        %4134 = vmatprep.subr.mxu0 %v3846
        %4135 = vmatpush1.msra.mxu0 %v3845
        %4136 = vmatprep.subr.mxu0 %v3862
        %4137 = vmatpush1.msra.mxu0 %v3861
        %4138 = vmatprep.subr.mxu0 %v3878
        %4139 = vmatpush1.msra.mxu0 %v3877
        %4140 = vmatprep.subr.mxu0 %v3894
        %4141 = vmatpush1.msra.mxu0 %v3893
        %4142 = vmatprep.subr.mxu0 %v3910
        %4143 = vmatpush1.msra.mxu0 %v3909
        %4144 = vmatprep.subr.mxu0 %v3926
        %4145 = vmatpush1.msra.mxu0 %v3925
        %4146 = vmatprep.subr.mxu0 %v3942
        %4147 = vmatpush1.msra.mxu0 %v3941
        %4148 = vmatprep.subr.mxu0 %v3958
        %4149 = vmatpush1.msra.mxu0 %v3957
        %4150 = vmatprep.subr.mxu0 %v3974
        %4151 = vmatpush1.msra.mxu0 %v3973
        %4152 = vmatprep.subr.mxu0 %v3990
        %4153 = vmatpush1.msra.mxu0 %v3989
        %4154 = vmatprep.subr.mxu0 %v4006
        %4155 = vmatpush1.msra.mxu0 %v4005
        %4156 = vmatprep.mubr.f32.mxu0 %v2980
        %4157 = vmatmul.mubr.f32.gmra.mrb[0].mxu0 %v2979
        %v4158 = vpop.f32.mrb[0].mxu0
        %v4159 = vadd.f32 %v4088, %v4158
        %v4160 = vpop.f32.mrb[0].mxu0
        %v4161 = vadd.f32 %v4090, %v4160
        %4162 = vdwg.mxu0
        %4163 = vmatprep.subr.mxu0 %v3000
        %4164 = vmatpush1.msra.mxu0 %v2999
        %4165 = vmatprep.subr.mxu0 %v3016
        %4166 = vmatpush1.msra.mxu0 %v3015
        %4167 = vmatprep.subr.mxu0 %v3032
        %4168 = vmatpush1.msra.mxu0 %v3031
        %4169 = vmatprep.subr.mxu0 %v3048
        %4170 = vmatpush1.msra.mxu0 %v3047
        %4171 = vmatprep.subr.mxu0 %v3064
        %4172 = vmatpush1.msra.mxu0 %v3063
        %4173 = vmatprep.subr.mxu0 %v3080
        %4174 = vmatpush1.msra.mxu0 %v3079
        %4175 = vmatprep.subr.mxu0 %v3096
        %4176 = vmatpush1.msra.mxu0 %v3095
        %4177 = vmatprep.subr.mxu0 %v3112
        %4178 = vmatpush1.msra.mxu0 %v3111
        %4179 = vmatprep.subr.mxu0 %v3128
        %4180 = vmatpush1.msra.mxu0 %v3127
        %4181 = vmatprep.subr.mxu0 %v3144
        %4182 = vmatpush1.msra.mxu0 %v3143
        %4183 = vmatprep.subr.mxu0 %v3160
        %4184 = vmatpush1.msra.mxu0 %v3159
        %4185 = vmatprep.subr.mxu0 %v3176
        %4186 = vmatpush1.msra.mxu0 %v3175
        %4187 = vmatprep.subr.mxu0 %v3192
        %4188 = vmatpush1.msra.mxu0 %v3191
        %4189 = vmatprep.subr.mxu0 %v3208
        %4190 = vmatpush1.msra.mxu0 %v3207
        %4191 = vmatprep.subr.mxu0 %v3224
        %4192 = vmatpush1.msra.mxu0 %v3223
        %4193 = vmatprep.subr.mxu0 %v3240
        %4194 = vmatpush1.msra.mxu0 %v3239
        %4195 = vmatprep.subr.mxu0 %v3256
        %4196 = vmatpush1.msra.mxu0 %v3255
        %4197 = vmatprep.subr.mxu0 %v3272
        %4198 = vmatpush1.msra.mxu0 %v3271
        %4199 = vmatprep.subr.mxu0 %v3288
        %4200 = vmatpush1.msra.mxu0 %v3287
        %4201 = vmatprep.subr.mxu0 %v3304
        %4202 = vmatpush1.msra.mxu0 %v3303
        %4203 = vmatprep.subr.mxu0 %v3320
        %4204 = vmatpush1.msra.mxu0 %v3319
        %4205 = vmatprep.subr.mxu0 %v3336
        %4206 = vmatpush1.msra.mxu0 %v3335
        %4207 = vmatprep.subr.mxu0 %v3352
        %4208 = vmatpush1.msra.mxu0 %v3351
        %4209 = vmatprep.subr.mxu0 %v3368
        %4210 = vmatpush1.msra.mxu0 %v3367
        %4211 = vmatprep.subr.mxu0 %v3384
        %4212 = vmatpush1.msra.mxu0 %v3383
        %4213 = vmatprep.subr.mxu0 %v3400
        %4214 = vmatpush1.msra.mxu0 %v3399
        %4215 = vmatprep.subr.mxu0 %v3416
        %4216 = vmatpush1.msra.mxu0 %v3415
        %4217 = vmatprep.subr.mxu0 %v3432
        %4218 = vmatpush1.msra.mxu0 %v3431
        %4219 = vmatprep.subr.mxu0 %v3448
        %4220 = vmatpush1.msra.mxu0 %v3447
        %4221 = vmatprep.subr.mxu0 %v3464
        %4222 = vmatpush1.msra.mxu0 %v3463
        %4223 = vmatprep.subr.mxu0 %v3480
        %4224 = vmatpush1.msra.mxu0 %v3479
        %4225 = vmatprep.subr.mxu0 %v3496
        %4226 = vmatpush1.msra.mxu0 %v3495
        %4227 = vmatprep.mubr.f32.mxu0 %v2978
        %4228 = vmatmul.mubr.f32.gmra.mrb[0].mxu0 %v2977
        %v4229 = vpop.f32.mrb[0].mxu0
        %v4230 = vadd.f32 0.0, %v4229
        %v4231 = vpop.f32.mrb[0].mxu0
        %v4232 = vadd.f32 0.0, %v4231
        %4233 = vdwg.mxu0
        %4234 = vmatprep.subr.mxu0 %v3512
        %4235 = vmatpush1.msra.mxu0 %v3511
        %4236 = vmatprep.subr.mxu0 %v3528
        %4237 = vmatpush1.msra.mxu0 %v3527
        %4238 = vmatprep.subr.mxu0 %v3544
        %4239 = vmatpush1.msra.mxu0 %v3543
        %4240 = vmatprep.subr.mxu0 %v3560
        %4241 = vmatpush1.msra.mxu0 %v3559
        %4242 = vmatprep.subr.mxu0 %v3576
        %4243 = vmatpush1.msra.mxu0 %v3575
        %4244 = vmatprep.subr.mxu0 %v3592
        %4245 = vmatpush1.msra.mxu0 %v3591
        %4246 = vmatprep.subr.mxu0 %v3608
        %4247 = vmatpush1.msra.mxu0 %v3607
        %4248 = vmatprep.subr.mxu0 %v3624
        %4249 = vmatpush1.msra.mxu0 %v3623
        %4250 = vmatprep.subr.mxu0 %v3640
        %4251 = vmatpush1.msra.mxu0 %v3639
        %4252 = vmatprep.subr.mxu0 %v3656
        %4253 = vmatpush1.msra.mxu0 %v3655
        %4254 = vmatprep.subr.mxu0 %v3672
        %4255 = vmatpush1.msra.mxu0 %v3671
        %4256 = vmatprep.subr.mxu0 %v3688
        %4257 = vmatpush1.msra.mxu0 %v3687
        %4258 = vmatprep.subr.mxu0 %v3704
        %4259 = vmatpush1.msra.mxu0 %v3703
        %4260 = vmatprep.subr.mxu0 %v3720
        %4261 = vmatpush1.msra.mxu0 %v3719
        %4262 = vmatprep.subr.mxu0 %v3736
        %4263 = vmatpush1.msra.mxu0 %v3735
        %4264 = vmatprep.subr.mxu0 %v3752
        %4265 = vmatpush1.msra.mxu0 %v3751
        %4266 = vmatprep.subr.mxu0 %v3768
        %4267 = vmatpush1.msra.mxu0 %v3767
        %4268 = vmatprep.subr.mxu0 %v3784
        %4269 = vmatpush1.msra.mxu0 %v3783
        %4270 = vmatprep.subr.mxu0 %v3800
        %4271 = vmatpush1.msra.mxu0 %v3799
        %4272 = vmatprep.subr.mxu0 %v3816
        %4273 = vmatpush1.msra.mxu0 %v3815
        %4274 = vmatprep.subr.mxu0 %v3832
        %4275 = vmatpush1.msra.mxu0 %v3831
        %4276 = vmatprep.subr.mxu0 %v3848
        %4277 = vmatpush1.msra.mxu0 %v3847
        %4278 = vmatprep.subr.mxu0 %v3864
        %4279 = vmatpush1.msra.mxu0 %v3863
        %4280 = vmatprep.subr.mxu0 %v3880
        %4281 = vmatpush1.msra.mxu0 %v3879
        %4282 = vmatprep.subr.mxu0 %v3896
        %4283 = vmatpush1.msra.mxu0 %v3895
        %4284 = vmatprep.subr.mxu0 %v3912
        %4285 = vmatpush1.msra.mxu0 %v3911
        %4286 = vmatprep.subr.mxu0 %v3928
        %4287 = vmatpush1.msra.mxu0 %v3927
        %4288 = vmatprep.subr.mxu0 %v3944
        %4289 = vmatpush1.msra.mxu0 %v3943
        %4290 = vmatprep.subr.mxu0 %v3960
        %4291 = vmatpush1.msra.mxu0 %v3959
        %4292 = vmatprep.subr.mxu0 %v3976
        %4293 = vmatpush1.msra.mxu0 %v3975
        %4294 = vmatprep.subr.mxu0 %v3992
        %4295 = vmatpush1.msra.mxu0 %v3991
        %4296 = vmatprep.subr.mxu0 %v4008
        %4297 = vmatpush1.msra.mxu0 %v4007
        %4298 = vmatprep.mubr.f32.mxu0 %v2980
        %4299 = vmatmul.mubr.f32.gmra.mrb[0].mxu0 %v2979
        %v4300 = vpop.f32.mrb[0].mxu0
        %v4301 = vadd.f32 %v4230, %v4300
        %v4302 = vpop.f32.mrb[0].mxu0
        %v4303 = vadd.f32 %v4232, %v4302
        %4304 = vdwg.mxu0
        %4305 = vmatprep.subr.mxu0 %v3002
        %4306 = vmatpush1.msra.mxu0 %v3001
        %4307 = vmatprep.subr.mxu0 %v3018
        %4308 = vmatpush1.msra.mxu0 %v3017
        %4309 = vmatprep.subr.mxu0 %v3034
        %4310 = vmatpush1.msra.mxu0 %v3033
        %4311 = vmatprep.subr.mxu0 %v3050
        %4312 = vmatpush1.msra.mxu0 %v3049
        %4313 = vmatprep.subr.mxu0 %v3066
        %4314 = vmatpush1.msra.mxu0 %v3065
        %4315 = vmatprep.subr.mxu0 %v3082
        %4316 = vmatpush1.msra.mxu0 %v3081
        %4317 = vmatprep.subr.mxu0 %v3098
        %4318 = vmatpush1.msra.mxu0 %v3097
        %4319 = vmatprep.subr.mxu0 %v3114
        %4320 = vmatpush1.msra.mxu0 %v3113
        %4321 = vmatprep.subr.mxu0 %v3130
        %4322 = vmatpush1.msra.mxu0 %v3129
        %4323 = vmatprep.subr.mxu0 %v3146
        %4324 = vmatpush1.msra.mxu0 %v3145
        %4325 = vmatprep.subr.mxu0 %v3162
        %4326 = vmatpush1.msra.mxu0 %v3161
        %4327 = vmatprep.subr.mxu0 %v3178
        %4328 = vmatpush1.msra.mxu0 %v3177
        %4329 = vmatprep.subr.mxu0 %v3194
        %4330 = vmatpush1.msra.mxu0 %v3193
        %4331 = vmatprep.subr.mxu0 %v3210
        %4332 = vmatpush1.msra.mxu0 %v3209
        %4333 = vmatprep.subr.mxu0 %v3226
        %4334 = vmatpush1.msra.mxu0 %v3225
        %4335 = vmatprep.subr.mxu0 %v3242
        %4336 = vmatpush1.msra.mxu0 %v3241
        %4337 = vmatprep.subr.mxu0 %v3258
        %4338 = vmatpush1.msra.mxu0 %v3257
        %4339 = vmatprep.subr.mxu0 %v3274
        %4340 = vmatpush1.msra.mxu0 %v3273
        %4341 = vmatprep.subr.mxu0 %v3290
        %4342 = vmatpush1.msra.mxu0 %v3289
        %4343 = vmatprep.subr.mxu0 %v3306
        %4344 = vmatpush1.msra.mxu0 %v3305
        %4345 = vmatprep.subr.mxu0 %v3322
        %4346 = vmatpush1.msra.mxu0 %v3321
        %4347 = vmatprep.subr.mxu0 %v3338
        %4348 = vmatpush1.msra.mxu0 %v3337
        %4349 = vmatprep.subr.mxu0 %v3354
        %4350 = vmatpush1.msra.mxu0 %v3353
        %4351 = vmatprep.subr.mxu0 %v3370
        %4352 = vmatpush1.msra.mxu0 %v3369
        %4353 = vmatprep.subr.mxu0 %v3386
        %4354 = vmatpush1.msra.mxu0 %v3385
        %4355 = vmatprep.subr.mxu0 %v3402
        %4356 = vmatpush1.msra.mxu0 %v3401
        %4357 = vmatprep.subr.mxu0 %v3418
        %4358 = vmatpush1.msra.mxu0 %v3417
        %4359 = vmatprep.subr.mxu0 %v3434
        %4360 = vmatpush1.msra.mxu0 %v3433
        %4361 = vmatprep.subr.mxu0 %v3450
        %4362 = vmatpush1.msra.mxu0 %v3449
        %4363 = vmatprep.subr.mxu0 %v3466
        %4364 = vmatpush1.msra.mxu0 %v3465
        %4365 = vmatprep.subr.mxu0 %v3482
        %4366 = vmatpush1.msra.mxu0 %v3481
        %4367 = vmatprep.subr.mxu0 %v3498
        %4368 = vmatpush1.msra.mxu0 %v3497
        %4369 = vmatprep.mubr.f32.mxu0 %v2978
        %4370 = vmatmul.mubr.f32.gmra.mrb[0].mxu0 %v2977
        %v4371 = vpop.f32.mrb[0].mxu0
        %v4372 = vadd.f32 0.0, %v4371
        %v4373 = vpop.f32.mrb[0].mxu0
        %v4374 = vadd.f32 0.0, %v4373
        %4375 = vdwg.mxu0
        %4376 = vmatprep.subr.mxu0 %v3514
        %4377 = vmatpush1.msra.mxu0 %v3513
        %4378 = vmatprep.subr.mxu0 %v3530
        %4379 = vmatpush1.msra.mxu0 %v3529
        %4380 = vmatprep.subr.mxu0 %v3546
        %4381 = vmatpush1.msra.mxu0 %v3545
        %4382 = vmatprep.subr.mxu0 %v3562
        %4383 = vmatpush1.msra.mxu0 %v3561
        %4384 = vmatprep.subr.mxu0 %v3578
        %4385 = vmatpush1.msra.mxu0 %v3577
        %4386 = vmatprep.subr.mxu0 %v3594
        %4387 = vmatpush1.msra.mxu0 %v3593
        %4388 = vmatprep.subr.mxu0 %v3610
        %4389 = vmatpush1.msra.mxu0 %v3609
        %4390 = vmatprep.subr.mxu0 %v3626
        %4391 = vmatpush1.msra.mxu0 %v3625
        %4392 = vmatprep.subr.mxu0 %v3642
        %4393 = vmatpush1.msra.mxu0 %v3641
        %4394 = vmatprep.subr.mxu0 %v3658
        %4395 = vmatpush1.msra.mxu0 %v3657
        %4396 = vmatprep.subr.mxu0 %v3674
        %4397 = vmatpush1.msra.mxu0 %v3673
        %4398 = vmatprep.subr.mxu0 %v3690
        %4399 = vmatpush1.msra.mxu0 %v3689
        %4400 = vmatprep.subr.mxu0 %v3706
        %4401 = vmatpush1.msra.mxu0 %v3705
        %4402 = vmatprep.subr.mxu0 %v3722
        %4403 = vmatpush1.msra.mxu0 %v3721
        %4404 = vmatprep.subr.mxu0 %v3738
        %4405 = vmatpush1.msra.mxu0 %v3737
        %4406 = vmatprep.subr.mxu0 %v3754
        %4407 = vmatpush1.msra.mxu0 %v3753
        %4408 = vmatprep.subr.mxu0 %v3770
        %4409 = vmatpush1.msra.mxu0 %v3769
        %4410 = vmatprep.subr.mxu0 %v3786
        %4411 = vmatpush1.msra.mxu0 %v3785
        %4412 = vmatprep.subr.mxu0 %v3802
        %4413 = vmatpush1.msra.mxu0 %v3801
        %4414 = vmatprep.subr.mxu0 %v3818
        %4415 = vmatpush1.msra.mxu0 %v3817
        %4416 = vmatprep.subr.mxu0 %v3834
        %4417 = vmatpush1.msra.mxu0 %v3833
        %4418 = vmatprep.subr.mxu0 %v3850
        %4419 = vmatpush1.msra.mxu0 %v3849
        %4420 = vmatprep.subr.mxu0 %v3866
        %4421 = vmatpush1.msra.mxu0 %v3865
        %4422 = vmatprep.subr.mxu0 %v3882
        %4423 = vmatpush1.msra.mxu0 %v3881
        %4424 = vmatprep.subr.mxu0 %v3898
        %4425 = vmatpush1.msra.mxu0 %v3897
        %4426 = vmatprep.subr.mxu0 %v3914
        %4427 = vmatpush1.msra.mxu0 %v3913
        %4428 = vmatprep.subr.mxu0 %v3930
        %4429 = vmatpush1.msra.mxu0 %v3929
        %4430 = vmatprep.subr.mxu0 %v3946
        %4431 = vmatpush1.msra.mxu0 %v3945
        %4432 = vmatprep.subr.mxu0 %v3962
        %4433 = vmatpush1.msra.mxu0 %v3961
        %4434 = vmatprep.subr.mxu0 %v3978
        %4435 = vmatpush1.msra.mxu0 %v3977
        %4436 = vmatprep.subr.mxu0 %v3994
        %4437 = vmatpush1.msra.mxu0 %v3993
        %4438 = vmatprep.subr.mxu0 %v4010
        %4439 = vmatpush1.msra.mxu0 %v4009
        %4440 = vmatprep.mubr.f32.mxu0 %v2980
        %4441 = vmatmul.mubr.f32.gmra.mrb[0].mxu0 %v2979
        %v4442 = vpop.f32.mrb[0].mxu0
        %v4443 = vadd.f32 %v4372, %v4442
        %v4444 = vpop.f32.mrb[0].mxu0
        %v4445 = vadd.f32 %v4374, %v4444
        %4446 = vdwg.mxu0
        %4447 = vmatprep.subr.mxu0 %v3004
        %4448 = vmatpush1.msra.mxu0 %v3003
        %4449 = vmatprep.subr.mxu0 %v3020
        %4450 = vmatpush1.msra.mxu0 %v3019
        %4451 = vmatprep.subr.mxu0 %v3036
        %4452 = vmatpush1.msra.mxu0 %v3035
        %4453 = vmatprep.subr.mxu0 %v3052
        %4454 = vmatpush1.msra.mxu0 %v3051
        %4455 = vmatprep.subr.mxu0 %v3068
        %4456 = vmatpush1.msra.mxu0 %v3067
        %4457 = vmatprep.subr.mxu0 %v3084
        %4458 = vmatpush1.msra.mxu0 %v3083
        %4459 = vmatprep.subr.mxu0 %v3100
        %4460 = vmatpush1.msra.mxu0 %v3099
        %4461 = vmatprep.subr.mxu0 %v3116
        %4462 = vmatpush1.msra.mxu0 %v3115
        %4463 = vmatprep.subr.mxu0 %v3132
        %4464 = vmatpush1.msra.mxu0 %v3131
        %4465 = vmatprep.subr.mxu0 %v3148
        %4466 = vmatpush1.msra.mxu0 %v3147
        %4467 = vmatprep.subr.mxu0 %v3164
        %4468 = vmatpush1.msra.mxu0 %v3163
        %4469 = vmatprep.subr.mxu0 %v3180
        %4470 = vmatpush1.msra.mxu0 %v3179
        %4471 = vmatprep.subr.mxu0 %v3196
        %4472 = vmatpush1.msra.mxu0 %v3195
        %4473 = vmatprep.subr.mxu0 %v3212
        %4474 = vmatpush1.msra.mxu0 %v3211
        %4475 = vmatprep.subr.mxu0 %v3228
        %4476 = vmatpush1.msra.mxu0 %v3227
        %4477 = vmatprep.subr.mxu0 %v3244
        %4478 = vmatpush1.msra.mxu0 %v3243
        %4479 = vmatprep.subr.mxu0 %v3260
        %4480 = vmatpush1.msra.mxu0 %v3259
        %4481 = vmatprep.subr.mxu0 %v3276
        %4482 = vmatpush1.msra.mxu0 %v3275
        %4483 = vmatprep.subr.mxu0 %v3292
        %4484 = vmatpush1.msra.mxu0 %v3291
        %4485 = vmatprep.subr.mxu0 %v3308
        %4486 = vmatpush1.msra.mxu0 %v3307
        %4487 = vmatprep.subr.mxu0 %v3324
        %4488 = vmatpush1.msra.mxu0 %v3323
        %4489 = vmatprep.subr.mxu0 %v3340
        %4490 = vmatpush1.msra.mxu0 %v3339
        %4491 = vmatprep.subr.mxu0 %v3356
        %4492 = vmatpush1.msra.mxu0 %v3355
        %4493 = vmatprep.subr.mxu0 %v3372
        %4494 = vmatpush1.msra.mxu0 %v3371
        %4495 = vmatprep.subr.mxu0 %v3388
        %4496 = vmatpush1.msra.mxu0 %v3387
        %4497 = vmatprep.subr.mxu0 %v3404
        %4498 = vmatpush1.msra.mxu0 %v3403
        %4499 = vmatprep.subr.mxu0 %v3420
        %4500 = vmatpush1.msra.mxu0 %v3419
        %4501 = vmatprep.subr.mxu0 %v3436
        %4502 = vmatpush1.msra.mxu0 %v3435
        %4503 = vmatprep.subr.mxu0 %v3452
        %4504 = vmatpush1.msra.mxu0 %v3451
        %4505 = vmatprep.subr.mxu0 %v3468
        %4506 = vmatpush1.msra.mxu0 %v3467
        %4507 = vmatprep.subr.mxu0 %v3484
        %4508 = vmatpush1.msra.mxu0 %v3483
        %4509 = vmatprep.subr.mxu0 %v3500
        %4510 = vmatpush1.msra.mxu0 %v3499
        %4511 = vmatprep.mubr.f32.mxu0 %v2978
        %4512 = vmatmul.mubr.f32.gmra.mrb[0].mxu0 %v2977
        %v4513 = vpop.f32.mrb[0].mxu0
        %v4514 = vadd.f32 0.0, %v4513
        %v4515 = vpop.f32.mrb[0].mxu0
        %v4516 = vadd.f32 0.0, %v4515
        %4517 = vdwg.mxu0
        %4518 = vmatprep.subr.mxu0 %v3516
        %4519 = vmatpush1.msra.mxu0 %v3515
        %4520 = vmatprep.subr.mxu0 %v3532
        %4521 = vmatpush1.msra.mxu0 %v3531
        %4522 = vmatprep.subr.mxu0 %v3548
        %4523 = vmatpush1.msra.mxu0 %v3547
        %4524 = vmatprep.subr.mxu0 %v3564
        %4525 = vmatpush1.msra.mxu0 %v3563
        %4526 = vmatprep.subr.mxu0 %v3580
        %4527 = vmatpush1.msra.mxu0 %v3579
        %4528 = vmatprep.subr.mxu0 %v3596
        %4529 = vmatpush1.msra.mxu0 %v3595
        %4530 = vmatprep.subr.mxu0 %v3612
        %4531 = vmatpush1.msra.mxu0 %v3611
        %4532 = vmatprep.subr.mxu0 %v3628
        %4533 = vmatpush1.msra.mxu0 %v3627
        %4534 = vmatprep.subr.mxu0 %v3644
        %4535 = vmatpush1.msra.mxu0 %v3643
        %4536 = vmatprep.subr.mxu0 %v3660
        %4537 = vmatpush1.msra.mxu0 %v3659
        %4538 = vmatprep.subr.mxu0 %v3676
        %4539 = vmatpush1.msra.mxu0 %v3675
        %4540 = vmatprep.subr.mxu0 %v3692
        %4541 = vmatpush1.msra.mxu0 %v3691
        %4542 = vmatprep.subr.mxu0 %v3708
        %4543 = vmatpush1.msra.mxu0 %v3707
        %4544 = vmatprep.subr.mxu0 %v3724
        %4545 = vmatpush1.msra.mxu0 %v3723
        %4546 = vmatprep.subr.mxu0 %v3740
        %4547 = vmatpush1.msra.mxu0 %v3739
        %4548 = vmatprep.subr.mxu0 %v3756
        %4549 = vmatpush1.msra.mxu0 %v3755
        %4550 = vmatprep.subr.mxu0 %v3772
        %4551 = vmatpush1.msra.mxu0 %v3771
        %4552 = vmatprep.subr.mxu0 %v3788
        %4553 = vmatpush1.msra.mxu0 %v3787
        %4554 = vmatprep.subr.mxu0 %v3804
        %4555 = vmatpush1.msra.mxu0 %v3803
        %4556 = vmatprep.subr.mxu0 %v3820
        %4557 = vmatpush1.msra.mxu0 %v3819
        %4558 = vmatprep.subr.mxu0 %v3836
        %4559 = vmatpush1.msra.mxu0 %v3835
        %4560 = vmatprep.subr.mxu0 %v3852
        %4561 = vmatpush1.msra.mxu0 %v3851
        %4562 = vmatprep.subr.mxu0 %v3868
        %4563 = vmatpush1.msra.mxu0 %v3867
        %4564 = vmatprep.subr.mxu0 %v3884
        %4565 = vmatpush1.msra.mxu0 %v3883
        %4566 = vmatprep.subr.mxu0 %v3900
        %4567 = vmatpush1.msra.mxu0 %v3899
        %4568 = vmatprep.subr.mxu0 %v3916
        %4569 = vmatpush1.msra.mxu0 %v3915
        %4570 = vmatprep.subr.mxu0 %v3932
        %4571 = vmatpush1.msra.mxu0 %v3931
        %4572 = vmatprep.subr.mxu0 %v3948
        %4573 = vmatpush1.msra.mxu0 %v3947
        %4574 = vmatprep.subr.mxu0 %v3964
        %4575 = vmatpush1.msra.mxu0 %v3963
        %4576 = vmatprep.subr.mxu0 %v3980
        %4577 = vmatpush1.msra.mxu0 %v3979
        %4578 = vmatprep.subr.mxu0 %v3996
        %4579 = vmatpush1.msra.mxu0 %v3995
        %4580 = vmatprep.subr.mxu0 %v4012
        %4581 = vmatpush1.msra.mxu0 %v4011
        %4582 = vmatprep.mubr.f32.mxu0 %v2980
        %4583 = vmatmul.mubr.f32.gmra.mrb[0].mxu0 %v2979
        %v4584 = vpop.f32.mrb[0].mxu0
        %v4585 = vadd.f32 %v4514, %v4584
        %v4586 = vpop.f32.mrb[0].mxu0
        %v4587 = vadd.f32 %v4516, %v4586
        %4588 = vdwg.mxu0
        %4589 = vmatprep.subr.mxu0 %v3006
        %4590 = vmatpush1.msra.mxu0 %v3005
        %4591 = vmatprep.subr.mxu0 %v3022
        %4592 = vmatpush1.msra.mxu0 %v3021
        %4593 = vmatprep.subr.mxu0 %v3038
        %4594 = vmatpush1.msra.mxu0 %v3037
        %4595 = vmatprep.subr.mxu0 %v3054
        %4596 = vmatpush1.msra.mxu0 %v3053
        %4597 = vmatprep.subr.mxu0 %v3070
        %4598 = vmatpush1.msra.mxu0 %v3069
        %4599 = vmatprep.subr.mxu0 %v3086
        %4600 = vmatpush1.msra.mxu0 %v3085
        %4601 = vmatprep.subr.mxu0 %v3102
        %4602 = vmatpush1.msra.mxu0 %v3101
        %4603 = vmatprep.subr.mxu0 %v3118
        %4604 = vmatpush1.msra.mxu0 %v3117
        %4605 = vmatprep.subr.mxu0 %v3134
        %4606 = vmatpush1.msra.mxu0 %v3133
        %4607 = vmatprep.subr.mxu0 %v3150
        %4608 = vmatpush1.msra.mxu0 %v3149
        %4609 = vmatprep.subr.mxu0 %v3166
        %4610 = vmatpush1.msra.mxu0 %v3165
        %4611 = vmatprep.subr.mxu0 %v3182
        %4612 = vmatpush1.msra.mxu0 %v3181
        %4613 = vmatprep.subr.mxu0 %v3198
        %4614 = vmatpush1.msra.mxu0 %v3197
        %4615 = vmatprep.subr.mxu0 %v3214
        %4616 = vmatpush1.msra.mxu0 %v3213
        %4617 = vmatprep.subr.mxu0 %v3230
        %4618 = vmatpush1.msra.mxu0 %v3229
        %4619 = vmatprep.subr.mxu0 %v3246
        %4620 = vmatpush1.msra.mxu0 %v3245
        %4621 = vmatprep.subr.mxu0 %v3262
        %4622 = vmatpush1.msra.mxu0 %v3261
        %4623 = vmatprep.subr.mxu0 %v3278
        %4624 = vmatpush1.msra.mxu0 %v3277
        %4625 = vmatprep.subr.mxu0 %v3294
        %4626 = vmatpush1.msra.mxu0 %v3293
        %4627 = vmatprep.subr.mxu0 %v3310
        %4628 = vmatpush1.msra.mxu0 %v3309
        %4629 = vmatprep.subr.mxu0 %v3326
        %4630 = vmatpush1.msra.mxu0 %v3325
        %4631 = vmatprep.subr.mxu0 %v3342
        %4632 = vmatpush1.msra.mxu0 %v3341
        %4633 = vmatprep.subr.mxu0 %v3358
        %4634 = vmatpush1.msra.mxu0 %v3357
        %4635 = vmatprep.subr.mxu0 %v3374
        %4636 = vmatpush1.msra.mxu0 %v3373
        %4637 = vmatprep.subr.mxu0 %v3390
        %4638 = vmatpush1.msra.mxu0 %v3389
        %4639 = vmatprep.subr.mxu0 %v3406
        %4640 = vmatpush1.msra.mxu0 %v3405
        %4641 = vmatprep.subr.mxu0 %v3422
        %4642 = vmatpush1.msra.mxu0 %v3421
        %4643 = vmatprep.subr.mxu0 %v3438
        %4644 = vmatpush1.msra.mxu0 %v3437
        %4645 = vmatprep.subr.mxu0 %v3454
        %4646 = vmatpush1.msra.mxu0 %v3453
        %4647 = vmatprep.subr.mxu0 %v3470
        %4648 = vmatpush1.msra.mxu0 %v3469
        %4649 = vmatprep.subr.mxu0 %v3486
        %4650 = vmatpush1.msra.mxu0 %v3485
        %4651 = vmatprep.subr.mxu0 %v3502
        %4652 = vmatpush1.msra.mxu0 %v3501
        %4653 = vmatprep.mubr.f32.mxu0 %v2978
        %4654 = vmatmul.mubr.f32.gmra.mrb[0].mxu0 %v2977
        %v4655 = vpop.f32.mrb[0].mxu0
        %v4656 = vadd.f32 0.0, %v4655
        %v4657 = vpop.f32.mrb[0].mxu0
        %v4658 = vadd.f32 0.0, %v4657
        %4659 = vdwg.mxu0
        %4660 = vmatprep.subr.mxu0 %v3518
        %4661 = vmatpush1.msra.mxu0 %v3517
        %4662 = vmatprep.subr.mxu0 %v3534
        %4663 = vmatpush1.msra.mxu0 %v3533
        %4664 = vmatprep.subr.mxu0 %v3550
        %4665 = vmatpush1.msra.mxu0 %v3549
        %4666 = vmatprep.subr.mxu0 %v3566
        %4667 = vmatpush1.msra.mxu0 %v3565
        %4668 = vmatprep.subr.mxu0 %v3582
        %4669 = vmatpush1.msra.mxu0 %v3581
        %4670 = vmatprep.subr.mxu0 %v3598
        %4671 = vmatpush1.msra.mxu0 %v3597
        %4672 = vmatprep.subr.mxu0 %v3614
        %4673 = vmatpush1.msra.mxu0 %v3613
        %4674 = vmatprep.subr.mxu0 %v3630
        %4675 = vmatpush1.msra.mxu0 %v3629
        %4676 = vmatprep.subr.mxu0 %v3646
        %4677 = vmatpush1.msra.mxu0 %v3645
        %4678 = vmatprep.subr.mxu0 %v3662
        %4679 = vmatpush1.msra.mxu0 %v3661
        %4680 = vmatprep.subr.mxu0 %v3678
        %4681 = vmatpush1.msra.mxu0 %v3677
        %4682 = vmatprep.subr.mxu0 %v3694
        %4683 = vmatpush1.msra.mxu0 %v3693
        %4684 = vmatprep.subr.mxu0 %v3710
        %4685 = vmatpush1.msra.mxu0 %v3709
        %4686 = vmatprep.subr.mxu0 %v3726
        %4687 = vmatpush1.msra.mxu0 %v3725
        %4688 = vmatprep.subr.mxu0 %v3742
        %4689 = vmatpush1.msra.mxu0 %v3741
        %4690 = vmatprep.subr.mxu0 %v3758
        %4691 = vmatpush1.msra.mxu0 %v3757
        %4692 = vmatprep.subr.mxu0 %v3774
        %4693 = vmatpush1.msra.mxu0 %v3773
        %4694 = vmatprep.subr.mxu0 %v3790
        %4695 = vmatpush1.msra.mxu0 %v3789
        %4696 = vmatprep.subr.mxu0 %v3806
        %4697 = vmatpush1.msra.mxu0 %v3805
        %4698 = vmatprep.subr.mxu0 %v3822
        %4699 = vmatpush1.msra.mxu0 %v3821
        %4700 = vmatprep.subr.mxu0 %v3838
        %4701 = vmatpush1.msra.mxu0 %v3837
        %4702 = vmatprep.subr.mxu0 %v3854
        %4703 = vmatpush1.msra.mxu0 %v3853
        %4704 = vmatprep.subr.mxu0 %v3870
        %4705 = vmatpush1.msra.mxu0 %v3869
        %4706 = vmatprep.subr.mxu0 %v3886
        %4707 = vmatpush1.msra.mxu0 %v3885
        %4708 = vmatprep.subr.mxu0 %v3902
        %4709 = vmatpush1.msra.mxu0 %v3901
        %4710 = vmatprep.subr.mxu0 %v3918
        %4711 = vmatpush1.msra.mxu0 %v3917
        %4712 = vmatprep.subr.mxu0 %v3934
        %4713 = vmatpush1.msra.mxu0 %v3933
        %4714 = vmatprep.subr.mxu0 %v3950
        %4715 = vmatpush1.msra.mxu0 %v3949
        %4716 = vmatprep.subr.mxu0 %v3966
        %4717 = vmatpush1.msra.mxu0 %v3965
        %4718 = vmatprep.subr.mxu0 %v3982
        %4719 = vmatpush1.msra.mxu0 %v3981
        %4720 = vmatprep.subr.mxu0 %v3998
        %4721 = vmatpush1.msra.mxu0 %v3997
        %4722 = vmatprep.subr.mxu0 %v4014
        %4723 = vmatpush1.msra.mxu0 %v4013
        %4724 = vmatprep.mubr.f32.mxu0 %v2980
        %4725 = vmatmul.mubr.f32.gmra.mrb[0].mxu0 %v2979
        %v4726 = vpop.f32.mrb[0].mxu0
        %v4727 = vadd.f32 %v4656, %v4726
        %v4728 = vpop.f32.mrb[0].mxu0
        %v4729 = vadd.f32 %v4658, %v4728
        %4730 = vdwg.mxu0
        %4731 = vmatprep.subr.mxu0 %v3008
        %4732 = vmatpush1.msra.mxu0 %v3007
        %4733 = vmatprep.subr.mxu0 %v3024
        %4734 = vmatpush1.msra.mxu0 %v3023
        %4735 = vmatprep.subr.mxu0 %v3040
        %4736 = vmatpush1.msra.mxu0 %v3039
        %4737 = vmatprep.subr.mxu0 %v3056
        %4738 = vmatpush1.msra.mxu0 %v3055
        %4739 = vmatprep.subr.mxu0 %v3072
        %4740 = vmatpush1.msra.mxu0 %v3071
        %4741 = vmatprep.subr.mxu0 %v3088
        %4742 = vmatpush1.msra.mxu0 %v3087
        %4743 = vmatprep.subr.mxu0 %v3104
        %4744 = vmatpush1.msra.mxu0 %v3103
        %4745 = vmatprep.subr.mxu0 %v3120
        %4746 = vmatpush1.msra.mxu0 %v3119
        %4747 = vmatprep.subr.mxu0 %v3136
        %4748 = vmatpush1.msra.mxu0 %v3135
        %4749 = vmatprep.subr.mxu0 %v3152
        %4750 = vmatpush1.msra.mxu0 %v3151
        %4751 = vmatprep.subr.mxu0 %v3168
        %4752 = vmatpush1.msra.mxu0 %v3167
        %4753 = vmatprep.subr.mxu0 %v3184
        %4754 = vmatpush1.msra.mxu0 %v3183
        %4755 = vmatprep.subr.mxu0 %v3200
        %4756 = vmatpush1.msra.mxu0 %v3199
        %4757 = vmatprep.subr.mxu0 %v3216
        %4758 = vmatpush1.msra.mxu0 %v3215
        %4759 = vmatprep.subr.mxu0 %v3232
        %4760 = vmatpush1.msra.mxu0 %v3231
        %4761 = vmatprep.subr.mxu0 %v3248
        %4762 = vmatpush1.msra.mxu0 %v3247
        %4763 = vmatprep.subr.mxu0 %v3264
        %4764 = vmatpush1.msra.mxu0 %v3263
        %4765 = vmatprep.subr.mxu0 %v3280
        %4766 = vmatpush1.msra.mxu0 %v3279
        %4767 = vmatprep.subr.mxu0 %v3296
        %4768 = vmatpush1.msra.mxu0 %v3295
        %4769 = vmatprep.subr.mxu0 %v3312
        %4770 = vmatpush1.msra.mxu0 %v3311
        %4771 = vmatprep.subr.mxu0 %v3328
        %4772 = vmatpush1.msra.mxu0 %v3327
        %4773 = vmatprep.subr.mxu0 %v3344
        %4774 = vmatpush1.msra.mxu0 %v3343
        %4775 = vmatprep.subr.mxu0 %v3360
        %4776 = vmatpush1.msra.mxu0 %v3359
        %4777 = vmatprep.subr.mxu0 %v3376
        %4778 = vmatpush1.msra.mxu0 %v3375
        %4779 = vmatprep.subr.mxu0 %v3392
        %4780 = vmatpush1.msra.mxu0 %v3391
        %4781 = vmatprep.subr.mxu0 %v3408
        %4782 = vmatpush1.msra.mxu0 %v3407
        %4783 = vmatprep.subr.mxu0 %v3424
        %4784 = vmatpush1.msra.mxu0 %v3423
        %4785 = vmatprep.subr.mxu0 %v3440
        %4786 = vmatpush1.msra.mxu0 %v3439
        %4787 = vmatprep.subr.mxu0 %v3456
        %4788 = vmatpush1.msra.mxu0 %v3455
        %4789 = vmatprep.subr.mxu0 %v3472
        %4790 = vmatpush1.msra.mxu0 %v3471
        %4791 = vmatprep.subr.mxu0 %v3488
        %4792 = vmatpush1.msra.mxu0 %v3487
        %4793 = vmatprep.subr.mxu0 %v3504
        %4794 = vmatpush1.msra.mxu0 %v3503
        %4795 = vmatprep.mubr.f32.mxu0 %v2978
        %4796 = vmatmul.mubr.f32.gmra.mrb[0].mxu0 %v2977
        %v4797 = vpop.f32.mrb[0].mxu0
        %v4798 = vadd.f32 0.0, %v4797
        %v4799 = vpop.f32.mrb[0].mxu0
        %v4800 = vadd.f32 0.0, %v4799
        %4801 = vdwg.mxu0
        %4802 = vmatprep.subr.mxu0 %v3520
        %4803 = vmatpush1.msra.mxu0 %v3519
        %4804 = vmatprep.subr.mxu0 %v3536
        %4805 = vmatpush1.msra.mxu0 %v3535
        %4806 = vmatprep.subr.mxu0 %v3552
        %4807 = vmatpush1.msra.mxu0 %v3551
        %4808 = vmatprep.subr.mxu0 %v3568
        %4809 = vmatpush1.msra.mxu0 %v3567
        %4810 = vmatprep.subr.mxu0 %v3584
        %4811 = vmatpush1.msra.mxu0 %v3583
        %4812 = vmatprep.subr.mxu0 %v3600
        %4813 = vmatpush1.msra.mxu0 %v3599
        %4814 = vmatprep.subr.mxu0 %v3616
        %4815 = vmatpush1.msra.mxu0 %v3615
        %4816 = vmatprep.subr.mxu0 %v3632
        %4817 = vmatpush1.msra.mxu0 %v3631
        %4818 = vmatprep.subr.mxu0 %v3648
        %4819 = vmatpush1.msra.mxu0 %v3647
        %4820 = vmatprep.subr.mxu0 %v3664
        %4821 = vmatpush1.msra.mxu0 %v3663
        %4822 = vmatprep.subr.mxu0 %v3680
        %4823 = vmatpush1.msra.mxu0 %v3679
        %4824 = vmatprep.subr.mxu0 %v3696
        %4825 = vmatpush1.msra.mxu0 %v3695
        %4826 = vmatprep.subr.mxu0 %v3712
        %4827 = vmatpush1.msra.mxu0 %v3711
        %4828 = vmatprep.subr.mxu0 %v3728
        %4829 = vmatpush1.msra.mxu0 %v3727
        %4830 = vmatprep.subr.mxu0 %v3744
        %4831 = vmatpush1.msra.mxu0 %v3743
        %4832 = vmatprep.subr.mxu0 %v3760
        %4833 = vmatpush1.msra.mxu0 %v3759
        %4834 = vmatprep.subr.mxu0 %v3776
        %4835 = vmatpush1.msra.mxu0 %v3775
        %4836 = vmatprep.subr.mxu0 %v3792
        %4837 = vmatpush1.msra.mxu0 %v3791
        %4838 = vmatprep.subr.mxu0 %v3808
        %4839 = vmatpush1.msra.mxu0 %v3807
        %4840 = vmatprep.subr.mxu0 %v3824
        %4841 = vmatpush1.msra.mxu0 %v3823
        %4842 = vmatprep.subr.mxu0 %v3840
        %4843 = vmatpush1.msra.mxu0 %v3839
        %4844 = vmatprep.subr.mxu0 %v3856
        %4845 = vmatpush1.msra.mxu0 %v3855
        %4846 = vmatprep.subr.mxu0 %v3872
        %4847 = vmatpush1.msra.mxu0 %v3871
        %4848 = vmatprep.subr.mxu0 %v3888
        %4849 = vmatpush1.msra.mxu0 %v3887
        %4850 = vmatprep.subr.mxu0 %v3904
        %4851 = vmatpush1.msra.mxu0 %v3903
        %4852 = vmatprep.subr.mxu0 %v3920
        %4853 = vmatpush1.msra.mxu0 %v3919
        %4854 = vmatprep.subr.mxu0 %v3936
        %4855 = vmatpush1.msra.mxu0 %v3935
        %4856 = vmatprep.subr.mxu0 %v3952
        %4857 = vmatpush1.msra.mxu0 %v3951
        %4858 = vmatprep.subr.mxu0 %v3968
        %4859 = vmatpush1.msra.mxu0 %v3967
        %4860 = vmatprep.subr.mxu0 %v3984
        %4861 = vmatpush1.msra.mxu0 %v3983
        %4862 = vmatprep.subr.mxu0 %v4000
        %4863 = vmatpush1.msra.mxu0 %v3999
        %4864 = vmatprep.subr.mxu0 %v4016
        %4865 = vmatpush1.msra.mxu0 %v4015
        %4866 = vmatprep.mubr.f32.mxu0 %v2980
        %4867 = vmatmul.mubr.f32.gmra.mrb[0].mxu0 %v2979
        %v4868 = vpop.f32.mrb[0].mxu0
        %v4869 = vadd.f32 %v4798, %v4868
        %v4870 = vpop.f32.mrb[0].mxu0
        %v4871 = vadd.f32 %v4800, %v4870
        %4872 = vdwg.mxu0
        %4873 = vmatprep.subr.mxu0 %v3010
        %4874 = vmatpush1.msra.mxu0 %v3009
        %4875 = vmatprep.subr.mxu0 %v3026
        %4876 = vmatpush1.msra.mxu0 %v3025
        %4877 = vmatprep.subr.mxu0 %v3042
        %4878 = vmatpush1.msra.mxu0 %v3041
        %4879 = vmatprep.subr.mxu0 %v3058
        %4880 = vmatpush1.msra.mxu0 %v3057
        %4881 = vmatprep.subr.mxu0 %v3074
        %4882 = vmatpush1.msra.mxu0 %v3073
        %4883 = vmatprep.subr.mxu0 %v3090
        %4884 = vmatpush1.msra.mxu0 %v3089
        %4885 = vmatprep.subr.mxu0 %v3106
        %4886 = vmatpush1.msra.mxu0 %v3105
        %4887 = vmatprep.subr.mxu0 %v3122
        %4888 = vmatpush1.msra.mxu0 %v3121
        %4889 = vmatprep.subr.mxu0 %v3138
        %4890 = vmatpush1.msra.mxu0 %v3137
        %4891 = vmatprep.subr.mxu0 %v3154
        %4892 = vmatpush1.msra.mxu0 %v3153
        %4893 = vmatprep.subr.mxu0 %v3170
        %4894 = vmatpush1.msra.mxu0 %v3169
        %4895 = vmatprep.subr.mxu0 %v3186
        %4896 = vmatpush1.msra.mxu0 %v3185
        %4897 = vmatprep.subr.mxu0 %v3202
        %4898 = vmatpush1.msra.mxu0 %v3201
        %4899 = vmatprep.subr.mxu0 %v3218
        %4900 = vmatpush1.msra.mxu0 %v3217
        %4901 = vmatprep.subr.mxu0 %v3234
        %4902 = vmatpush1.msra.mxu0 %v3233
        %4903 = vmatprep.subr.mxu0 %v3250
        %4904 = vmatpush1.msra.mxu0 %v3249
        %4905 = vmatprep.subr.mxu0 %v3266
        %4906 = vmatpush1.msra.mxu0 %v3265
        %4907 = vmatprep.subr.mxu0 %v3282
        %4908 = vmatpush1.msra.mxu0 %v3281
        %4909 = vmatprep.subr.mxu0 %v3298
        %4910 = vmatpush1.msra.mxu0 %v3297
        %4911 = vmatprep.subr.mxu0 %v3314
        %4912 = vmatpush1.msra.mxu0 %v3313
        %4913 = vmatprep.subr.mxu0 %v3330
        %4914 = vmatpush1.msra.mxu0 %v3329
        %4915 = vmatprep.subr.mxu0 %v3346
        %4916 = vmatpush1.msra.mxu0 %v3345
        %4917 = vmatprep.subr.mxu0 %v3362
        %4918 = vmatpush1.msra.mxu0 %v3361
        %4919 = vmatprep.subr.mxu0 %v3378
        %4920 = vmatpush1.msra.mxu0 %v3377
        %4921 = vmatprep.subr.mxu0 %v3394
        %4922 = vmatpush1.msra.mxu0 %v3393
        %4923 = vmatprep.subr.mxu0 %v3410
        %4924 = vmatpush1.msra.mxu0 %v3409
        %4925 = vmatprep.subr.mxu0 %v3426
        %4926 = vmatpush1.msra.mxu0 %v3425
        %4927 = vmatprep.subr.mxu0 %v3442
        %4928 = vmatpush1.msra.mxu0 %v3441
        %4929 = vmatprep.subr.mxu0 %v3458
        %4930 = vmatpush1.msra.mxu0 %v3457
        %4931 = vmatprep.subr.mxu0 %v3474
        %4932 = vmatpush1.msra.mxu0 %v3473
        %4933 = vmatprep.subr.mxu0 %v3490
        %4934 = vmatpush1.msra.mxu0 %v3489
        %4935 = vmatprep.subr.mxu0 %v3506
        %4936 = vmatpush1.msra.mxu0 %v3505
        %4937 = vmatprep.mubr.f32.mxu0 %v2978
        %4938 = vmatmul.mubr.f32.gmra.mrb[0].mxu0 %v2977
        %v4939 = vpop.f32.mrb[0].mxu0
        %v4940 = vadd.f32 0.0, %v4939
        %v4941 = vpop.f32.mrb[0].mxu0
        %v4942 = vadd.f32 0.0, %v4941
        %4943 = vdwg.mxu0
        %4944 = vmatprep.subr.mxu0 %v3522
        %4945 = vmatpush1.msra.mxu0 %v3521
        %4946 = vmatprep.subr.mxu0 %v3538
        %4947 = vmatpush1.msra.mxu0 %v3537
        %4948 = vmatprep.subr.mxu0 %v3554
        %4949 = vmatpush1.msra.mxu0 %v3553
        %4950 = vmatprep.subr.mxu0 %v3570
        %4951 = vmatpush1.msra.mxu0 %v3569
        %4952 = vmatprep.subr.mxu0 %v3586
        %4953 = vmatpush1.msra.mxu0 %v3585
        %4954 = vmatprep.subr.mxu0 %v3602
        %4955 = vmatpush1.msra.mxu0 %v3601
        %4956 = vmatprep.subr.mxu0 %v3618
        %4957 = vmatpush1.msra.mxu0 %v3617
        %4958 = vmatprep.subr.mxu0 %v3634
        %4959 = vmatpush1.msra.mxu0 %v3633
        %4960 = vmatprep.subr.mxu0 %v3650
        %4961 = vmatpush1.msra.mxu0 %v3649
        %4962 = vmatprep.subr.mxu0 %v3666
        %4963 = vmatpush1.msra.mxu0 %v3665
        %4964 = vmatprep.subr.mxu0 %v3682
        %4965 = vmatpush1.msra.mxu0 %v3681
        %4966 = vmatprep.subr.mxu0 %v3698
        %4967 = vmatpush1.msra.mxu0 %v3697
        %4968 = vmatprep.subr.mxu0 %v3714
        %4969 = vmatpush1.msra.mxu0 %v3713
        %4970 = vmatprep.subr.mxu0 %v3730
        %4971 = vmatpush1.msra.mxu0 %v3729
        %4972 = vmatprep.subr.mxu0 %v3746
        %4973 = vmatpush1.msra.mxu0 %v3745
        %4974 = vmatprep.subr.mxu0 %v3762
        %4975 = vmatpush1.msra.mxu0 %v3761
        %4976 = vmatprep.subr.mxu0 %v3778
        %4977 = vmatpush1.msra.mxu0 %v3777
        %4978 = vmatprep.subr.mxu0 %v3794
        %4979 = vmatpush1.msra.mxu0 %v3793
        %4980 = vmatprep.subr.mxu0 %v3810
        %4981 = vmatpush1.msra.mxu0 %v3809
        %4982 = vmatprep.subr.mxu0 %v3826
        %4983 = vmatpush1.msra.mxu0 %v3825
        %4984 = vmatprep.subr.mxu0 %v3842
        %4985 = vmatpush1.msra.mxu0 %v3841
        %4986 = vmatprep.subr.mxu0 %v3858
        %4987 = vmatpush1.msra.mxu0 %v3857
        %4988 = vmatprep.subr.mxu0 %v3874
        %4989 = vmatpush1.msra.mxu0 %v3873
        %4990 = vmatprep.subr.mxu0 %v3890
        %4991 = vmatpush1.msra.mxu0 %v3889
        %4992 = vmatprep.subr.mxu0 %v3906
        %4993 = vmatpush1.msra.mxu0 %v3905
        %4994 = vmatprep.subr.mxu0 %v3922
        %4995 = vmatpush1.msra.mxu0 %v3921
        %4996 = vmatprep.subr.mxu0 %v3938
        %4997 = vmatpush1.msra.mxu0 %v3937
        %4998 = vmatprep.subr.mxu0 %v3954
        %4999 = vmatpush1.msra.mxu0 %v3953
        %5000 = vmatprep.subr.mxu0 %v3970
        %5001 = vmatpush1.msra.mxu0 %v3969
        %5002 = vmatprep.subr.mxu0 %v3986
        %5003 = vmatpush1.msra.mxu0 %v3985
        %5004 = vmatprep.subr.mxu0 %v4002
        %5005 = vmatpush1.msra.mxu0 %v4001
        %5006 = vmatprep.subr.mxu0 %v4018
        %5007 = vmatpush1.msra.mxu0 %v4017
        %5008 = vmatprep.mubr.f32.mxu0 %v2980
        %5009 = vmatmul.mubr.f32.gmra.mrb[0].mxu0 %v2979
        %v5010 = vpop.f32.mrb[0].mxu0
        %v5011 = vadd.f32 %v4940, %v5010
        %v5012 = vpop.f32.mrb[0].mxu0
        %v5013 = vadd.f32 %v4942, %v5012
        %5014 = vdwg.mxu0
        %5015 = vmatprep.subr.mxu0 %v3012
        %5016 = vmatpush1.msra.mxu0 %v3011
        %5017 = vmatprep.subr.mxu0 %v3028
        %5018 = vmatpush1.msra.mxu0 %v3027
        %5019 = vmatprep.subr.mxu0 %v3044
        %5020 = vmatpush1.msra.mxu0 %v3043
        %5021 = vmatprep.subr.mxu0 %v3060
        %5022 = vmatpush1.msra.mxu0 %v3059
        %5023 = vmatprep.subr.mxu0 %v3076
        %5024 = vmatpush1.msra.mxu0 %v3075
        %5025 = vmatprep.subr.mxu0 %v3092
        %5026 = vmatpush1.msra.mxu0 %v3091
        %5027 = vmatprep.subr.mxu0 %v3108
        %5028 = vmatpush1.msra.mxu0 %v3107
        %5029 = vmatprep.subr.mxu0 %v3124
        %5030 = vmatpush1.msra.mxu0 %v3123
        %5031 = vmatprep.subr.mxu0 %v3140
        %5032 = vmatpush1.msra.mxu0 %v3139
        %5033 = vmatprep.subr.mxu0 %v3156
        %5034 = vmatpush1.msra.mxu0 %v3155
        %5035 = vmatprep.subr.mxu0 %v3172
        %5036 = vmatpush1.msra.mxu0 %v3171
        %5037 = vmatprep.subr.mxu0 %v3188
        %5038 = vmatpush1.msra.mxu0 %v3187
        %5039 = vmatprep.subr.mxu0 %v3204
        %5040 = vmatpush1.msra.mxu0 %v3203
        %5041 = vmatprep.subr.mxu0 %v3220
        %5042 = vmatpush1.msra.mxu0 %v3219
        %5043 = vmatprep.subr.mxu0 %v3236
        %5044 = vmatpush1.msra.mxu0 %v3235
        %5045 = vmatprep.subr.mxu0 %v3252
        %5046 = vmatpush1.msra.mxu0 %v3251
        %5047 = vmatprep.subr.mxu0 %v3268
        %5048 = vmatpush1.msra.mxu0 %v3267
        %5049 = vmatprep.subr.mxu0 %v3284
        %5050 = vmatpush1.msra.mxu0 %v3283
        %5051 = vmatprep.subr.mxu0 %v3300
        %5052 = vmatpush1.msra.mxu0 %v3299
        %5053 = vmatprep.subr.mxu0 %v3316
        %5054 = vmatpush1.msra.mxu0 %v3315
        %5055 = vmatprep.subr.mxu0 %v3332
        %5056 = vmatpush1.msra.mxu0 %v3331
        %5057 = vmatprep.subr.mxu0 %v3348
        %5058 = vmatpush1.msra.mxu0 %v3347
        %5059 = vmatprep.subr.mxu0 %v3364
        %5060 = vmatpush1.msra.mxu0 %v3363
        %5061 = vmatprep.subr.mxu0 %v3380
        %5062 = vmatpush1.msra.mxu0 %v3379
        %5063 = vmatprep.subr.mxu0 %v3396
        %5064 = vmatpush1.msra.mxu0 %v3395
        %5065 = vmatprep.subr.mxu0 %v3412
        %5066 = vmatpush1.msra.mxu0 %v3411
        %5067 = vmatprep.subr.mxu0 %v3428
        %5068 = vmatpush1.msra.mxu0 %v3427
        %5069 = vmatprep.subr.mxu0 %v3444
        %5070 = vmatpush1.msra.mxu0 %v3443
        %5071 = vmatprep.subr.mxu0 %v3460
        %5072 = vmatpush1.msra.mxu0 %v3459
        %5073 = vmatprep.subr.mxu0 %v3476
        %5074 = vmatpush1.msra.mxu0 %v3475
        %5075 = vmatprep.subr.mxu0 %v3492
        %5076 = vmatpush1.msra.mxu0 %v3491
        %5077 = vmatprep.subr.mxu0 %v3508
        %5078 = vmatpush1.msra.mxu0 %v3507
        %5079 = vmatprep.mubr.f32.mxu0 %v2978
        %5080 = vmatmul.mubr.f32.gmra.mrb[0].mxu0 %v2977
        %v5081 = vpop.f32.mrb[0].mxu0
        %v5082 = vadd.f32 0.0, %v5081
        %v5083 = vpop.f32.mrb[0].mxu0
        %v5084 = vadd.f32 0.0, %v5083
        %5085 = vdwg.mxu0
        %5086 = vmatprep.subr.mxu0 %v3524
        %5087 = vmatpush1.msra.mxu0 %v3523
        %5088 = vmatprep.subr.mxu0 %v3540
        %5089 = vmatpush1.msra.mxu0 %v3539
        %5090 = vmatprep.subr.mxu0 %v3556
        %5091 = vmatpush1.msra.mxu0 %v3555
        %5092 = vmatprep.subr.mxu0 %v3572
        %5093 = vmatpush1.msra.mxu0 %v3571
        %5094 = vmatprep.subr.mxu0 %v3588
        %5095 = vmatpush1.msra.mxu0 %v3587
        %5096 = vmatprep.subr.mxu0 %v3604
        %5097 = vmatpush1.msra.mxu0 %v3603
        %5098 = vmatprep.subr.mxu0 %v3620
        %5099 = vmatpush1.msra.mxu0 %v3619
        %5100 = vmatprep.subr.mxu0 %v3636
        %5101 = vmatpush1.msra.mxu0 %v3635
        %5102 = vmatprep.subr.mxu0 %v3652
        %5103 = vmatpush1.msra.mxu0 %v3651
        %5104 = vmatprep.subr.mxu0 %v3668
        %5105 = vmatpush1.msra.mxu0 %v3667
        %5106 = vmatprep.subr.mxu0 %v3684
        %5107 = vmatpush1.msra.mxu0 %v3683
        %5108 = vmatprep.subr.mxu0 %v3700
        %5109 = vmatpush1.msra.mxu0 %v3699
        %5110 = vmatprep.subr.mxu0 %v3716
        %5111 = vmatpush1.msra.mxu0 %v3715
        %5112 = vmatprep.subr.mxu0 %v3732
        %5113 = vmatpush1.msra.mxu0 %v3731
        %5114 = vmatprep.subr.mxu0 %v3748
        %5115 = vmatpush1.msra.mxu0 %v3747
        %5116 = vmatprep.subr.mxu0 %v3764
        %5117 = vmatpush1.msra.mxu0 %v3763
        %5118 = vmatprep.subr.mxu0 %v3780
        %5119 = vmatpush1.msra.mxu0 %v3779
        %5120 = vmatprep.subr.mxu0 %v3796
        %5121 = vmatpush1.msra.mxu0 %v3795
        %5122 = vmatprep.subr.mxu0 %v3812
        %5123 = vmatpush1.msra.mxu0 %v3811
        %5124 = vmatprep.subr.mxu0 %v3828
        %5125 = vmatpush1.msra.mxu0 %v3827
        %5126 = vmatprep.subr.mxu0 %v3844
        %5127 = vmatpush1.msra.mxu0 %v3843
        %5128 = vmatprep.subr.mxu0 %v3860
        %5129 = vmatpush1.msra.mxu0 %v3859
        %5130 = vmatprep.subr.mxu0 %v3876
        %5131 = vmatpush1.msra.mxu0 %v3875
        %5132 = vmatprep.subr.mxu0 %v3892
        %5133 = vmatpush1.msra.mxu0 %v3891
        %5134 = vmatprep.subr.mxu0 %v3908
        %5135 = vmatpush1.msra.mxu0 %v3907
        %5136 = vmatprep.subr.mxu0 %v3924
        %5137 = vmatpush1.msra.mxu0 %v3923
        %5138 = vmatprep.subr.mxu0 %v3940
        %5139 = vmatpush1.msra.mxu0 %v3939
        %5140 = vmatprep.subr.mxu0 %v3956
        %5141 = vmatpush1.msra.mxu0 %v3955
        %5142 = vmatprep.subr.mxu0 %v3972
        %5143 = vmatpush1.msra.mxu0 %v3971
        %5144 = vmatprep.subr.mxu0 %v3988
        %5145 = vmatpush1.msra.mxu0 %v3987
        %5146 = vmatprep.subr.mxu0 %v4004
        %5147 = vmatpush1.msra.mxu0 %v4003
        %5148 = vmatprep.subr.mxu0 %v4020
        %5149 = vmatpush1.msra.mxu0 %v4019
        %5150 = vmatprep.mubr.f32.mxu0 %v2980
        %5151 = vmatmul.mubr.f32.gmra.mrb[0].mxu0 %v2979
        %v5152 = vpop.f32.mrb[0].mxu0
        %v5153 = vadd.f32 %v5082, %v5152
        %v5154 = vpop.f32.mrb[0].mxu0
        %v5155 = vadd.f32 %v5084, %v5154
        %5156 = vdwg.mxu0
        %v5157 = vadd.f32 %v2981, %v4159
        %v5158 = vadd.f32 %v2982, %v4161
        %v5159 = vadd.f32 %v2983, %v4301
        %v5160 = vadd.f32 %v2984, %v4303
        %v5161 = vadd.f32 %v2985, %v4443
        %v5162 = vadd.f32 %v2986, %v4445
        %v5163 = vadd.f32 %v2987, %v4585
        %v5164 = vadd.f32 %v2988, %v4587
        %v5165 = vadd.f32 %v2989, %v4727
        %v5166 = vadd.f32 %v2990, %v4729
        %v5167 = vadd.f32 %v2991, %v4869
        %v5168 = vadd.f32 %v2992, %v4871
        %v5169 = vadd.f32 %v2993, %v5011
        %v5170 = vadd.f32 %v2994, %v5013
        %v5171 = vadd.f32 %v2995, %v5153
        %v5172 = vadd.f32 %v2996, %v5155
        %5173 = vst [vmem:[#allocation3] sm:$0xff] %v5157
        %5174 = vst [vmem:[#allocation3 + $0x8] sm:$0xff] %v5158
        %5175 = vst [vmem:[#allocation3 + $0x10] sm:$0xff] %v5159
        %5176 = vst [vmem:[#allocation3 + $0x18] sm:$0xff] %v5160
        %5177 = vst [vmem:[#allocation3 + $0x20] sm:$0xff] %v5161
        %5178 = vst [vmem:[#allocation3 + $0x28] sm:$0xff] %v5162
        %5179 = vst [vmem:[#allocation3 + $0x30] sm:$0xff] %v5163
        %5180 = vst [vmem:[#allocation3 + $0x38] sm:$0xff] %v5164
        %5181 = vst [vmem:[#allocation3 + $0x40] sm:$0xff] %v5165
        %5182 = vst [vmem:[#allocation3 + $0x48] sm:$0xff] %v5166
        %5183 = vst [vmem:[#allocation3 + $0x50] sm:$0xff] %v5167
        %5184 = vst [vmem:[#allocation3 + $0x58] sm:$0xff] %v5168
        %5185 = vst [vmem:[#allocation3 + $0x60] sm:$0xff] %v5169
        %5186 = vst [vmem:[#allocation3 + $0x68] sm:$0xff] %v5170
        %5187 = vst [vmem:[#allocation3 + $0x70] sm:$0xff] %v5171
        %5188 = vst [vmem:[#allocation3 + $0x78] sm:$0xff] %v5172
        %p5189 = scmp.eq.s32.totalorder %s26, 3
        // Predicated region
        $region80: #{embed_amp.1} parent=66 // pred_check
          %p5190 = pneg %p5189
        $region81: #{embed_amp.1} parent=66 // pred_check_branch
          %5192 = sbr.rel (%p5190) target = $region83
        $region82: #{embed_amp.1} parent=66 // pred_region
          %v5193 = vld [vmem:[#allocation3] sm:$0xff]
          %v5194 = vld [vmem:[#allocation3 + $0x8] sm:$0xff]
          %v5195 = vld [vmem:[#allocation3 + $0x10] sm:$0xff]
          %v5196 = vld [vmem:[#allocation3 + $0x18] sm:$0xff]
          %v5197 = vld [vmem:[#allocation3 + $0x20] sm:$0xff]
          %v5198 = vld [vmem:[#allocation3 + $0x28] sm:$0xff]
          %v5199 = vld [vmem:[#allocation3 + $0x30] sm:$0xff]
          %v5200 = vld [vmem:[#allocation3 + $0x38] sm:$0xff]
          %v5201 = vld [vmem:[#allocation3 + $0x40] sm:$0xff]
          %v5202 = vld [vmem:[#allocation3 + $0x48] sm:$0xff]
          %v5203 = vld [vmem:[#allocation3 + $0x50] sm:$0xff]
          %v5204 = vld [vmem:[#allocation3 + $0x58] sm:$0xff]
          %v5205 = vld [vmem:[#allocation3 + $0x60] sm:$0xff]
          %v5206 = vld [vmem:[#allocation3 + $0x68] sm:$0xff]
          %v5207 = vld [vmem:[#allocation3 + $0x70] sm:$0xff]
          %v5208 = vld [vmem:[#allocation3 + $0x78] sm:$0xff]
          %v5209 = vld [vmem:[%s6] sm:$0xff]
          %v5210 = vld [vmem:[%s6 + $0x8] sm:$0xff]
          %v5213 = vlaneseq
          %v5214 = vshrl.u32 %v5213, 7
          %v5215 = vsub.s32 0, %v5214
          %v5216 = vrot.slane %v5209, %v5215
          %v5217 = vlaneseq
          %v5218 = vshrl.u32 %v5217, 7
          %v5219 = vsub.s32 1, %v5218
          %v5220 = vrot.slane %v5209, %v5219
          %v5221 = vlaneseq
          %v5222 = vshrl.u32 %v5221, 7
          %v5223 = vsub.s32 2, %v5222
          %v5224 = vrot.slane %v5209, %v5223
          %v5225 = vlaneseq
          %v5226 = vshrl.u32 %v5225, 7
          %v5227 = vsub.s32 3, %v5226
          %v5228 = vrot.slane %v5209, %v5227
          %v5229 = vlaneseq
          %v5230 = vshrl.u32 %v5229, 7
          %v5231 = vsub.s32 4, %v5230
          %v5232 = vrot.slane %v5209, %v5231
          %v5233 = vlaneseq
          %v5234 = vshrl.u32 %v5233, 7
          %v5235 = vsub.s32 5, %v5234
          %v5236 = vrot.slane %v5209, %v5235
          %v5237 = vlaneseq
          %v5238 = vshrl.u32 %v5237, 7
          %v5239 = vsub.s32 6, %v5238
          %v5240 = vrot.slane %v5209, %v5239
          %v5241 = vlaneseq
          %v5242 = vshrl.u32 %v5241, 7
          %v5243 = vsub.s32 7, %v5242
          %v5244 = vrot.slane %v5209, %v5243
          %v5245 = vlaneseq
          %v5246 = vshrl.u32 %v5245, 7
          %v5247 = vsub.s32 0, %v5246
          %v5248 = vrot.slane %v5210, %v5247
          %v5249 = vlaneseq
          %v5250 = vshrl.u32 %v5249, 7
          %v5251 = vsub.s32 1, %v5250
          %v5252 = vrot.slane %v5210, %v5251
          %v5253 = vlaneseq
          %v5254 = vshrl.u32 %v5253, 7
          %v5255 = vsub.s32 2, %v5254
          %v5256 = vrot.slane %v5210, %v5255
          %v5257 = vlaneseq
          %v5258 = vshrl.u32 %v5257, 7
          %v5259 = vsub.s32 3, %v5258
          %v5260 = vrot.slane %v5210, %v5259
          %v5261 = vlaneseq
          %v5262 = vshrl.u32 %v5261, 7
          %v5263 = vsub.s32 4, %v5262
          %v5264 = vrot.slane %v5210, %v5263
          %v5265 = vlaneseq
          %v5266 = vshrl.u32 %v5265, 7
          %v5267 = vsub.s32 5, %v5266
          %v5268 = vrot.slane %v5210, %v5267
          %v5269 = vlaneseq
          %v5270 = vshrl.u32 %v5269, 7
          %v5271 = vsub.s32 6, %v5270
          %v5272 = vrot.slane %v5210, %v5271
          %v5273 = vlaneseq
          %v5274 = vshrl.u32 %v5273, 7
          %v5275 = vsub.s32 7, %v5274
          %v5276 = vrot.slane %v5210, %v5275
          %v5293 = vadd.f32 %v5193, %v5216
          %v5294 = vadd.f32 %v5194, %v5220
          %v5295 = vadd.f32 %v5195, %v5224
          %v5296 = vadd.f32 %v5196, %v5228
          %v5297 = vadd.f32 %v5197, %v5232
          %v5298 = vadd.f32 %v5198, %v5236
          %v5299 = vadd.f32 %v5199, %v5240
          %v5300 = vadd.f32 %v5200, %v5244
          %v5301 = vadd.f32 %v5201, %v5248
          %v5302 = vadd.f32 %v5202, %v5252
          %v5303 = vadd.f32 %v5203, %v5256
          %v5304 = vadd.f32 %v5204, %v5260
          %v5305 = vadd.f32 %v5205, %v5264
          %v5306 = vadd.f32 %v5206, %v5268
          %v5307 = vadd.f32 %v5207, %v5272
          %v5308 = vadd.f32 %v5208, %v5276
          %5309 = vst [vmem:[%s1411] sm:$0xff] %v5293
          %5310 = vst [vmem:[%s1411 + $0x8] sm:$0xff] %v5294
          %5311 = vst [vmem:[%s1411 + $0x10] sm:$0xff] %v5295
          %5312 = vst [vmem:[%s1411 + $0x18] sm:$0xff] %v5296
          %5313 = vst [vmem:[%s1411 + $0x20] sm:$0xff] %v5297
          %5314 = vst [vmem:[%s1411 + $0x28] sm:$0xff] %v5298
          %5315 = vst [vmem:[%s1411 + $0x30] sm:$0xff] %v5299
          %5316 = vst [vmem:[%s1411 + $0x38] sm:$0xff] %v5300
          %5317 = vst [vmem:[%s1411 + $0x40] sm:$0xff] %v5301
          %5318 = vst [vmem:[%s1411 + $0x48] sm:$0xff] %v5302
          %5319 = vst [vmem:[%s1411 + $0x50] sm:$0xff] %v5303
          %5320 = vst [vmem:[%s1411 + $0x58] sm:$0xff] %v5304
          %5321 = vst [vmem:[%s1411 + $0x60] sm:$0xff] %v5305
          %5322 = vst [vmem:[%s1411 + $0x68] sm:$0xff] %v5306
          %5323 = vst [vmem:[%s1411 + $0x70] sm:$0xff] %v5307
          %5324 = vst [vmem:[%s1411 + $0x78] sm:$0xff] %v5308
        $region83: #{embed_amp.1} parent=66 // pred_fallthru
          _
        %p5325 = scmp.lt.s32.totalorder %s25, 0
        %s5326 = scalar_select %p5325, %s25, 0
        %s5327 = smul.addr %s5326, 16
        %s5328 = smul.addr %s5327, 8
        %s5329 = scalar_lea.vmem %s7, %s5328
        // Predicated region
        $region84: #{embed_amp.1} parent=66 // pred_check
          %p5330 = pneg %p218
        $region85: #{embed_amp.1} parent=66 // pred_check_branch
          %5332 = sbr.rel (%p5330) target = $region87
        $region86: #{embed_amp.1} parent=66 // pred_region
          _
        $region87: #{embed_amp.1} parent=66 // pred_fallthru
          _
        // Predicated region
        $region88: #{embed_amp.1} parent=66 // pred_check
          %p5333 = pneg %p218
        $region89: #{embed_amp.1} parent=66 // pred_check_branch
          %5335 = sbr.rel (%p5333) target = $region91
        $region90: #{embed_amp.1} parent=66 // pred_region
          %p5336 = scmp.lt.s32.totalorder %s25, 0
          %s5337 = scalar_select %p5336, %s25, 0
          %s5338 = smul.addr %s5337, 16
          %s5339 = smul.addr %s5338, 8
          %s5340 = scalar_lea.vmem %s7, %s5339
        $region91: #{embed_amp.1} parent=66 // pred_fallthru
          _
      $region67: #{embed_amp.1} parent=5 // pred_fallthru
        _
      %p5341 = scmp.le.s32.totalorder 2, %s16
      // Predicated region
      $region92: #{embed_amp.1} parent=5 // pred_check
        %p5342 = pneg %p5341
      $region93: #{embed_amp.1} parent=5 // pred_check_branch
        %5344 = sbr.rel (%p5342) target = $region95
      $region94: #{embed_amp.1} parent=5 // pred_region
        %s5345 = ssub.s32 %s16, 2
      $region95: #{embed_amp.1} parent=5 // pred_fallthru
        _
    $region6: #{embed_amp.1} parent=1 // loop_footer
      %s20 = sadd.s32 1, %s16
    $region7: #{embed_amp.1} parent=1 // loop_footer_branch
      %15 = sbr.rel target = $region3
    $region8: #{embed_amp.1} parent=1 // loop_exit
      _
    %5346 = vsyncpa [#allocation6], 1
    %s5347 = scalar_lea.sflag [#allocation6], 1
    %5348 = vsyncpa %s5347, 1

</llo_original>
